<compile_context>
chip_gen: v7x
topology: tpu7x:2x2x1
jax: 0.10.0
libtpu: 0.0.40
codegen_flags: <defaults>
</compile_context>

<pallas_src>
import numpy as np
import jax
import jax.numpy as jnp
from jax.experimental import pallas as pl
from jax.experimental.pallas import tpu as pltpu

_HIGHEST = jax.lax.Precision.HIGHEST   # reference only
EPS = 1e-5                             # InstanceNorm2d default eps
BATCH_BLOCK = 16                       # samples per grid step


def tnet_kernel(xc_ref, t1_ref, t2_ref, w3_ref, b1_ref, b2_ref, b3_ref, out_ref):
    B = out_ref.shape[0]                      # samples per step (16)
    half = xc_ref.shape[0] // 2               # 16*B rows per y-parity block

    # ---- Conv2d(1,32,k=7) as one Toeplitz matmul over the whole block -------
    # rows = (y-parity, pooled-y, sample); lanes = (x-parity, pooled-x, cout)
    c1 = jnp.dot(xc_ref[...], t1_ref[...],
                 preferred_element_type=jnp.float32)          # (2*16*B, 1024) f32

    # ---- MaxPool2d(2,2): pure VPU maxes over aligned halves -----------------
    yp = jnp.maximum(c1[:half, :], c1[half:, :])              # pool over y-parity
    pp = jnp.maximum(yp[:, :512], yp[:, 512:])                # pool over x-parity
    # bias + tanh after the pool (max commutes with monotone tanh / +bias)
    P = jnp.tanh(pp + b1_ref[...]).astype(jnp.bfloat16)       # (16*B, 512)
    # P rows = (pooled-y, sample), lanes = (pooled-x, cin)

    # ---- Conv2d(32,64,k=6): 6 accumulated Toeplitz matmuls (one per ky) -----
    # operand for tap ky is an ALIGNED 16-row-offset slice of P (rows (oy+ky, n))
    acc = jnp.dot(P[0:8 * B, :], t2_ref[0],
                  preferred_element_type=jnp.float32)          # (8*B, 512) f32
    for ky in range(1, 6):
        acc = acc + jnp.dot(P[ky * B:ky * B + 8 * B, :], t2_ref[ky],
                            preferred_element_type=jnp.float32)
    c2 = jnp.tanh(acc + b2_ref[...]).astype(jnp.bfloat16)      # rows (oy, n), lanes (ox, cout)

    # ---- flatten: 8 aligned (B, 512) blocks lane-concatenated ---------------
    fc_in = jnp.concatenate([c2[oy * B:(oy + 1) * B, :] for oy in range(8)],
                            axis=1)                            # (B, 4096) bf16

    # ---- Linear(4096,128) + Tanh --------------------------------------------
    out_ref[...] = jnp.tanh(
        jnp.dot(fc_in, w3_ref[...], preferred_element_type=jnp.float32)
        + b3_ref[...])                                         # (B, 128) f32


@jax.jit
def tnet_forward(x, params):
    N = x.shape[0]
    B = BATCH_BLOCK
    n_pad = (-N) % B
    npad = N + n_pad
    G = npad // B

    # ---- InstanceNorm2d(1) hoisted to the wrapper (f32, before bf16 cast) ---
    xi = x[:, 0, :, :].astype(jnp.float32)                     # (N, 32, 32)
    mean = jnp.mean(xi, axis=(1, 2), keepdims=True)
    var = jnp.mean((xi - mean) ** 2, axis=(1, 2), keepdims=True)   # biased (PyTorch)
    xn = (xi - mean) * jax.lax.rsqrt(var + EPS)
    xn = jnp.pad(xn, ((0, n_pad), (0, 8), (0, 0)))             # (npad, 40, 32)

    # ---- conv1 im2col: rows (y-parity, pooled-y, sample), lanes (ky, x_in) ---
    xg = xn.reshape(G, B, 40, 32)
    p_ = np.arange(2)
    yy = np.arange(16)
    kk = np.arange(7)
    ridx = 2 * yy[None, :, None] + p_[:, None, None] + kk[None, None, :]   # (2,16,7), max 37
    cols = xg[:, :, ridx, :]                                   # (G, B, 2, 16, 7, 32)
    cols = jnp.transpose(cols, (0, 2, 3, 1, 4, 5)).reshape(G, 2 * 16 * B, 224)
    x_cols = jnp.pad(cols, ((0, 0), (0, 0), (0, 32))).astype(jnp.bfloat16)
    x_cols = x_cols.reshape(G * 2 * 16 * B, 256)               # lane dim padded 224 -> 256

    # ---- Toeplitz-packed conv1 weight: (ky, x_in) -> (x-parity, pooled-x, cout)
    xin = np.arange(32)
    px = np.arange(16)
    kx1 = xin[:, None, None] - (2 * px[None, None, :] + p_[None, :, None])  # (xin, p, px)
    valid1 = (kx1 >= 0) & (kx1 <= 6) & (px[None, None, :] <= 12)
    kx1c = np.clip(kx1, 0, 6)
    w1 = params['w1'][:, 0, :, :]                              # (cout=32, ky=7, kx=7)
    T1 = w1[:, :, kx1c] * valid1[None, None]                   # (32, 7, 32, 2, 16)
    T1 = jnp.transpose(T1, (1, 2, 3, 4, 0)).reshape(224, 1024)
    T1 = jnp.pad(T1, ((0, 32), (0, 0))).astype(jnp.bfloat16)   # (256, 1024)

    # ---- Toeplitz-packed conv2 weight per ky: (pooled-x, cin) -> (ox, cout) --
    xr = np.arange(16)
    oxr = np.arange(8)
    kx2 = xr[:, None] - oxr[None, :]                           # (x, ox)
    valid2 = (kx2 >= 0) & (kx2 <= 5) & (xr[:, None] <= 12)
    kx2c = np.clip(kx2, 0, 5)
    w2 = params['w2']                                          # (cout=64, cin=32, ky=6, kx=6)
    T2 = w2[:, :, :, kx2c] * valid2[None, None, None]          # (64, 32, 6, 16, 8)
    T2 = jnp.transpose(T2, (2, 3, 1, 4, 0)).reshape(6, 512, 512).astype(jnp.bfloat16)

    # ---- FC weight permuted to the kernel's (oy, ox, cout) flatten order -----
    W3p = jnp.transpose(params['w3'].reshape(128, 64, 8, 8), (2, 3, 1, 0))
    W3p = W3p.reshape(4096, 128).astype(jnp.bfloat16)

    b1r = jnp.tile(params['b1'], 16).reshape(1, 512).astype(jnp.float32)   # lanes (px, cin)
    b2r = jnp.tile(params['b2'], 8).reshape(1, 512).astype(jnp.float32)    # lanes (ox, cout)
    b3r = params['b3'].reshape(1, 128).astype(jnp.float32)

    rows = 2 * 16 * B                                          # 512 im2col rows per step
    out = pl.pallas_call(
        tnet_kernel,
        out_shape=jax.ShapeDtypeStruct((npad, 128), jnp.float32),
        grid=(G,),
        in_specs=[
            pl.BlockSpec((rows, 256), lambda g: (g, 0)),       # conv1 im2col (bf16)
            pl.BlockSpec((256, 1024), lambda g: (0, 0)),       # T1 (conv1 Toeplitz)
            pl.BlockSpec((6, 512, 512), lambda g: (0, 0, 0)),  # T2 (conv2 Toeplitz, per ky)
            pl.BlockSpec((4096, 128), lambda g: (0, 0)),       # W3 (permuted)
            pl.BlockSpec((1, 512), lambda g: (0, 0)),          # b1 tiled over pooled-x
            pl.BlockSpec((1, 512), lambda g: (0, 0)),          # b2 tiled over ox
            pl.BlockSpec((1, 128), lambda g: (0, 0)),          # b3
        ],
        out_specs=pl.BlockSpec((B, 128), lambda g: (g, 0)),
        compiler_params=pltpu.CompilerParams(
            dimension_semantics=("parallel",),                 # megacore on v7x
            vmem_limit_bytes=40 * 1024 * 1024,                 # ~15 MB needed; < 64 MiB/TC on v7x
        ),
    )(x_cols, T1, T2, W3p, b1r, b2r, b3r)
    return out[:N]                                             # (N, 128)


def make_params(key):
    ks = jax.random.split(key, 6)

    def u(k, shape, fan_in):
        bound = 1.0 / np.sqrt(fan_in)
        return jax.random.uniform(k, shape, jnp.float32, -bound, bound)

    return dict(
        w1=u(ks[0], (32, 1, 7, 7), 1 * 7 * 7),
        b1=u(ks[1], (32,), 1 * 7 * 7),
        w2=u(ks[2], (64, 32, 6, 6), 32 * 6 * 6),
        b2=u(ks[3], (64,), 32 * 6 * 6),
        w3=u(ks[4], (128, 64 * 8 * 8), 64 * 8 * 8),
        b3=u(ks[5], (128,), 64 * 8 * 8),
    )


def tnet_reference(x, params):
    # pure-JAX f32 reference with PyTorch semantics (validation only)
    x = x.astype(jnp.float32)
    mean = jnp.mean(x, axis=(2, 3), keepdims=True)
    var = jnp.mean((x - mean) ** 2, axis=(2, 3), keepdims=True)
    xn = (x - mean) * jax.lax.rsqrt(var + EPS)
    y = jax.lax.conv_general_dilated(xn, params['w1'], (1, 1), 'VALID',
                                     dimension_numbers=('NCHW', 'OIHW', 'NCHW'),
                                     precision=_HIGHEST)
    y = jnp.tanh(y + params['b1'].reshape(1, 32, 1, 1))
    y = jax.lax.reduce_window(y, -jnp.inf, jax.lax.max,
                              (1, 1, 2, 2), (1, 1, 2, 2), 'VALID')
    y = jax.lax.conv_general_dilated(y, params['w2'], (1, 1), 'VALID',
                                     dimension_numbers=('NCHW', 'OIHW', 'NCHW'),
                                     precision=_HIGHEST)
    y = jnp.tanh(y + params['b2'].reshape(1, 64, 1, 1))
    flat = y.reshape(y.shape[0], -1)                           # (N, 4096) in (c,h,w) order
    return jnp.tanh(jnp.dot(flat, params['w3'].T, precision=_HIGHEST)
                    + params['b3'][None, :])


if __name__ == "__main__":
    key = jax.random.PRNGKey(0)
    kp, kx = jax.random.split(key)
    params = make_params(kp)
    x = jax.random.normal(kx, (2, 1, 32, 32), dtype=jnp.float32)  # TFeat 32x32 patches

    out = tnet_forward(x, params)
    out = jax.block_until_ready(out)

    ref = tnet_reference(x, params)
    assert out.shape == (2, 128)
    assert bool(jnp.all(jnp.isfinite(out)))
    assert bool(jnp.allclose(out, ref, atol=2e-2, rtol=2e-2)), \
        f"max abs err {float(jnp.max(jnp.abs(out - ref)))}"
    print("KERNEL_OK")
</pallas_src>

<mosaic_0001>
module attributes {stable_mosaic.version = 11 : i64} {
  func.func @tnet_kernel(%arg0: i32, %arg1: memref<512x256xbf16, #tpu.memory_space<vmem>>, %arg2: memref<256x1024xbf16, #tpu.memory_space<vmem>>, %arg3: memref<6x512x512xbf16, #tpu.memory_space<vmem>>, %arg4: memref<4096x128xbf16, #tpu.memory_space<vmem>>, %arg5: memref<1x512xf32, #tpu.memory_space<vmem>>, %arg6: memref<1x512xf32, #tpu.memory_space<vmem>>, %arg7: memref<1x128xf32, #tpu.memory_space<vmem>>, %arg8: memref<16x128xf32, #tpu.memory_space<vmem>>) attributes {dimension_semantics = [#tpu.dimension_semantics<parallel>], iteration_bounds = array<i64: 1>, scalar_prefetch = 0 : i64, scratch_operands = 0 : i64, tpu.core_type = #tpu.core_type<tc>, window_params = [{transform_indices = @transform_0, window_bounds = array<i64: 512, 256>}, {pipeline_mode = #tpu.pipeline_mode<synchronous>, transform_indices = @transform_1, window_bounds = array<i64: 256, 1024>}, {pipeline_mode = #tpu.pipeline_mode<synchronous>, transform_indices = @transform_2, window_bounds = array<i64: 6, 512, 512>}, {pipeline_mode = #tpu.pipeline_mode<synchronous>, transform_indices = @transform_3, window_bounds = array<i64: 4096, 128>}, {pipeline_mode = #tpu.pipeline_mode<synchronous>, transform_indices = @transform_4, window_bounds = array<i64: 1, 512>}, {pipeline_mode = #tpu.pipeline_mode<synchronous>, transform_indices = @transform_5, window_bounds = array<i64: 1, 512>}, {pipeline_mode = #tpu.pipeline_mode<synchronous>, transform_indices = @transform_6, window_bounds = array<i64: 1, 128>}, {transform_indices = @transform_7, window_bounds = array<i64: 16, 128>}]} {
    %c0 = arith.constant 0 : index
    %c0_0 = arith.constant 0 : index
    %0 = vector.load %arg1[%c0, %c0_0] : memref<512x256xbf16, #tpu.memory_space<vmem>>, vector<512x256xbf16>
    %c0_1 = arith.constant 0 : index
    %c0_2 = arith.constant 0 : index
    %1 = vector.load %arg2[%c0_1, %c0_2] : memref<256x1024xbf16, #tpu.memory_space<vmem>>, vector<256x1024xbf16>
    %cst = arith.constant dense<0.000000e+00> : vector<512x1024xf32>
    %2 = tpu.matmul %0, %1, %cst {dimension_numbers = #tpu.dot_dimension_numbers<[1], [0], [0], [1], [0, 0, 1, 1], [], []>} : vector<512x256xbf16>, vector<256x1024xbf16>, vector<512x1024xf32> -> vector<512x1024xf32>
    %3 = vector.extract_strided_slice %2 {offsets = [0, 0], sizes = [256, 1024], strides = [1, 1]} : vector<512x1024xf32> to vector<256x1024xf32>
    %4 = vector.extract_strided_slice %2 {offsets = [256, 0], sizes = [256, 1024], strides = [1, 1]} : vector<512x1024xf32> to vector<256x1024xf32>
    %5 = arith.maximumf %3, %4 : vector<256x1024xf32>
    %6 = vector.extract_strided_slice %5 {offsets = [0, 0], sizes = [256, 512], strides = [1, 1]} : vector<256x1024xf32> to vector<256x512xf32>
    %7 = vector.extract_strided_slice %5 {offsets = [0, 512], sizes = [256, 512], strides = [1, 1]} : vector<256x1024xf32> to vector<256x512xf32>
    %8 = arith.maximumf %6, %7 : vector<256x512xf32>
    %c0_3 = arith.constant 0 : index
    %c0_4 = arith.constant 0 : index
    %9 = vector.load %arg5[%c0_3, %c0_4] : memref<1x512xf32, #tpu.memory_space<vmem>>, vector<1x512xf32>
    %10 = vector.broadcast %9 : vector<1x512xf32> to vector<256x512xf32>
    %11 = arith.addf %8, %10 : vector<256x512xf32>
    %12 = math.tanh %11 : vector<256x512xf32>
    %13 = arith.truncf %12 : vector<256x512xf32> to vector<256x512xbf16>
    %14 = vector.extract_strided_slice %13 {offsets = [0, 0], sizes = [128, 512], strides = [1, 1]} : vector<256x512xbf16> to vector<128x512xbf16>
    %c0_5 = arith.constant 0 : index
    %c0_6 = arith.constant 0 : index
    %c0_7 = arith.constant 0 : index
    %15 = vector.load %arg3[%c0_5, %c0_6, %c0_7] : memref<6x512x512xbf16, #tpu.memory_space<vmem>>, vector<1x512x512xbf16>
    %16 = vector.shape_cast %15 : vector<1x512x512xbf16> to vector<512x512xbf16>
    %cst_8 = arith.constant dense<0.000000e+00> : vector<128x512xf32>
    %17 = tpu.matmul %14, %16, %cst_8 {dimension_numbers = #tpu.dot_dimension_numbers<[1], [0], [0], [1], [0, 0, 1, 1], [], []>} : vector<128x512xbf16>, vector<512x512xbf16>, vector<128x512xf32> -> vector<128x512xf32>
    %18 = vector.extract_strided_slice %13 {offsets = [16, 0], sizes = [128, 512], strides = [1, 1]} : vector<256x512xbf16> to vector<128x512xbf16>
    %c1 = arith.constant 1 : index
    %c0_9 = arith.constant 0 : index
    %c0_10 = arith.constant 0 : index
    %19 = vector.load %arg3[%c1, %c0_9, %c0_10] : memref<6x512x512xbf16, #tpu.memory_space<vmem>>, vector<1x512x512xbf16>
    %20 = vector.shape_cast %19 : vector<1x512x512xbf16> to vector<512x512xbf16>
    %cst_11 = arith.constant dense<0.000000e+00> : vector<128x512xf32>
    %21 = tpu.matmul %18, %20, %cst_11 {dimension_numbers = #tpu.dot_dimension_numbers<[1], [0], [0], [1], [0, 0, 1, 1], [], []>} : vector<128x512xbf16>, vector<512x512xbf16>, vector<128x512xf32> -> vector<128x512xf32>
    %22 = arith.addf %17, %21 : vector<128x512xf32>
    %23 = vector.extract_strided_slice %13 {offsets = [32, 0], sizes = [128, 512], strides = [1, 1]} : vector<256x512xbf16> to vector<128x512xbf16>
    %c2 = arith.constant 2 : index
    %c0_12 = arith.constant 0 : index
    %c0_13 = arith.constant 0 : index
    %24 = vector.load %arg3[%c2, %c0_12, %c0_13] : memref<6x512x512xbf16, #tpu.memory_space<vmem>>, vector<1x512x512xbf16>
    %25 = vector.shape_cast %24 : vector<1x512x512xbf16> to vector<512x512xbf16>
    %cst_14 = arith.constant dense<0.000000e+00> : vector<128x512xf32>
    %26 = tpu.matmul %23, %25, %cst_14 {dimension_numbers = #tpu.dot_dimension_numbers<[1], [0], [0], [1], [0, 0, 1, 1], [], []>} : vector<128x512xbf16>, vector<512x512xbf16>, vector<128x512xf32> -> vector<128x512xf32>
    %27 = arith.addf %22, %26 : vector<128x512xf32>
    %28 = vector.extract_strided_slice %13 {offsets = [48, 0], sizes = [128, 512], strides = [1, 1]} : vector<256x512xbf16> to vector<128x512xbf16>
    %c3 = arith.constant 3 : index
    %c0_15 = arith.constant 0 : index
    %c0_16 = arith.constant 0 : index
    %29 = vector.load %arg3[%c3, %c0_15, %c0_16] : memref<6x512x512xbf16, #tpu.memory_space<vmem>>, vector<1x512x512xbf16>
    %30 = vector.shape_cast %29 : vector<1x512x512xbf16> to vector<512x512xbf16>
    %cst_17 = arith.constant dense<0.000000e+00> : vector<128x512xf32>
    %31 = tpu.matmul %28, %30, %cst_17 {dimension_numbers = #tpu.dot_dimension_numbers<[1], [0], [0], [1], [0, 0, 1, 1], [], []>} : vector<128x512xbf16>, vector<512x512xbf16>, vector<128x512xf32> -> vector<128x512xf32>
    %32 = arith.addf %27, %31 : vector<128x512xf32>
    %33 = vector.extract_strided_slice %13 {offsets = [64, 0], sizes = [128, 512], strides = [1, 1]} : vector<256x512xbf16> to vector<128x512xbf16>
    %c4 = arith.constant 4 : index
    %c0_18 = arith.constant 0 : index
    %c0_19 = arith.constant 0 : index
    %34 = vector.load %arg3[%c4, %c0_18, %c0_19] : memref<6x512x512xbf16, #tpu.memory_space<vmem>>, vector<1x512x512xbf16>
    %35 = vector.shape_cast %34 : vector<1x512x512xbf16> to vector<512x512xbf16>
    %cst_20 = arith.constant dense<0.000000e+00> : vector<128x512xf32>
    %36 = tpu.matmul %33, %35, %cst_20 {dimension_numbers = #tpu.dot_dimension_numbers<[1], [0], [0], [1], [0, 0, 1, 1], [], []>} : vector<128x512xbf16>, vector<512x512xbf16>, vector<128x512xf32> -> vector<128x512xf32>
    %37 = arith.addf %32, %36 : vector<128x512xf32>
    %38 = vector.extract_strided_slice %13 {offsets = [80, 0], sizes = [128, 512], strides = [1, 1]} : vector<256x512xbf16> to vector<128x512xbf16>
    %c5 = arith.constant 5 : index
    %c0_21 = arith.constant 0 : index
    %c0_22 = arith.constant 0 : index
    %39 = vector.load %arg3[%c5, %c0_21, %c0_22] : memref<6x512x512xbf16, #tpu.memory_space<vmem>>, vector<1x512x512xbf16>
    %40 = vector.shape_cast %39 : vector<1x512x512xbf16> to vector<512x512xbf16>
    %cst_23 = arith.constant dense<0.000000e+00> : vector<128x512xf32>
    %41 = tpu.matmul %38, %40, %cst_23 {dimension_numbers = #tpu.dot_dimension_numbers<[1], [0], [0], [1], [0, 0, 1, 1], [], []>} : vector<128x512xbf16>, vector<512x512xbf16>, vector<128x512xf32> -> vector<128x512xf32>
    %42 = arith.addf %37, %41 : vector<128x512xf32>
    %c0_24 = arith.constant 0 : index
    %c0_25 = arith.constant 0 : index
    %43 = vector.load %arg6[%c0_24, %c0_25] : memref<1x512xf32, #tpu.memory_space<vmem>>, vector<1x512xf32>
    %44 = vector.broadcast %43 : vector<1x512xf32> to vector<128x512xf32>
    %45 = arith.addf %42, %44 : vector<128x512xf32>
    %46 = math.tanh %45 : vector<128x512xf32>
    %47 = arith.truncf %46 : vector<128x512xf32> to vector<128x512xbf16>
    %48 = vector.extract_strided_slice %47 {offsets = [0, 0], sizes = [16, 512], strides = [1, 1]} : vector<128x512xbf16> to vector<16x512xbf16>
    %49 = vector.extract_strided_slice %47 {offsets = [16, 0], sizes = [16, 512], strides = [1, 1]} : vector<128x512xbf16> to vector<16x512xbf16>
    %50 = vector.extract_strided_slice %47 {offsets = [32, 0], sizes = [16, 512], strides = [1, 1]} : vector<128x512xbf16> to vector<16x512xbf16>
    %51 = vector.extract_strided_slice %47 {offsets = [48, 0], sizes = [16, 512], strides = [1, 1]} : vector<128x512xbf16> to vector<16x512xbf16>
    %52 = vector.extract_strided_slice %47 {offsets = [64, 0], sizes = [16, 512], strides = [1, 1]} : vector<128x512xbf16> to vector<16x512xbf16>
    %53 = vector.extract_strided_slice %47 {offsets = [80, 0], sizes = [16, 512], strides = [1, 1]} : vector<128x512xbf16> to vector<16x512xbf16>
    %54 = vector.extract_strided_slice %47 {offsets = [96, 0], sizes = [16, 512], strides = [1, 1]} : vector<128x512xbf16> to vector<16x512xbf16>
    %55 = vector.extract_strided_slice %47 {offsets = [112, 0], sizes = [16, 512], strides = [1, 1]} : vector<128x512xbf16> to vector<16x512xbf16>
    %56 = tpu.concatenate %48, %49, %50, %51, %52, %53, %54, %55 in 1 : vector<16x512xbf16>, vector<16x512xbf16>, vector<16x512xbf16>, vector<16x512xbf16>, vector<16x512xbf16>, vector<16x512xbf16>, vector<16x512xbf16>, vector<16x512xbf16> -> vector<16x4096xbf16>
    %c0_26 = arith.constant 0 : index
    %c0_27 = arith.constant 0 : index
    %57 = vector.load %arg4[%c0_26, %c0_27] : memref<4096x128xbf16, #tpu.memory_space<vmem>>, vector<4096x128xbf16>
    %cst_28 = arith.constant dense<0.000000e+00> : vector<16x128xf32>
    %58 = tpu.matmul %56, %57, %cst_28 {dimension_numbers = #tpu.dot_dimension_numbers<[1], [0], [0], [1], [0, 0, 1, 1], [], []>} : vector<16x4096xbf16>, vector<4096x128xbf16>, vector<16x128xf32> -> vector<16x128xf32>
    %c0_29 = arith.constant 0 : index
    %c0_30 = arith.constant 0 : index
    %59 = vector.load %arg7[%c0_29, %c0_30] : memref<1x128xf32, #tpu.memory_space<vmem>>, vector<1x128xf32>
    %60 = vector.broadcast %59 : vector<1x128xf32> to vector<16x128xf32>
    %61 = arith.addf %58, %60 : vector<16x128xf32>
    %62 = math.tanh %61 : vector<16x128xf32>
    %c0_31 = arith.constant 0 : index
    %c0_32 = arith.constant 0 : index
    %63 = vector.load %arg8[%c0_31, %c0_32] : memref<16x128xf32, #tpu.memory_space<vmem>>, vector<16x128xf32>
    tpu.vector_store %arg8[%c0_31, %c0_32], %62 {strides = array<i32>} : memref<16x128xf32, #tpu.memory_space<vmem>>, vector<16x128xf32>,
    return
  }
  func.func @transform_0(%arg0: i32) -> (i32, i32) {
    %c0_i32 = arith.constant 0 : i32
    %c0_i32_0 = arith.constant 0 : i32
    return %arg0, %c0_i32 : i32, i32
  }
  func.func @transform_1(%arg0: i32) -> (i32, i32) {
    %c0_i32 = arith.constant 0 : i32
    %c0_i32_0 = arith.constant 0 : i32
    %c0_i32_1 = arith.constant 0 : i32
    return %c0_i32, %c0_i32_0 : i32, i32
  }
  func.func @transform_2(%arg0: i32) -> (i32, i32, i32) {
    %c0_i32 = arith.constant 0 : i32
    %c0_i32_0 = arith.constant 0 : i32
    %c0_i32_1 = arith.constant 0 : i32
    %c0_i32_2 = arith.constant 0 : i32
    return %c0_i32, %c0_i32_0, %c0_i32_1 : i32, i32, i32
  }
  func.func @transform_3(%arg0: i32) -> (i32, i32) {
    %c0_i32 = arith.constant 0 : i32
    %c0_i32_0 = arith.constant 0 : i32
    %c0_i32_1 = arith.constant 0 : i32
    return %c0_i32, %c0_i32_0 : i32, i32
  }
  func.func @transform_4(%arg0: i32) -> (i32, i32) {
    %c0_i32 = arith.constant 0 : i32
    %c0_i32_0 = arith.constant 0 : i32
    %c0_i32_1 = arith.constant 0 : i32
    return %c0_i32, %c0_i32_0 : i32, i32
  }
  func.func @transform_5(%arg0: i32) -> (i32, i32) {
    %c0_i32 = arith.constant 0 : i32
    %c0_i32_0 = arith.constant 0 : i32
    %c0_i32_1 = arith.constant 0 : i32
    return %c0_i32, %c0_i32_0 : i32, i32
  }
  func.func @transform_6(%arg0: i32) -> (i32, i32) {
    %c0_i32 = arith.constant 0 : i32
    %c0_i32_0 = arith.constant 0 : i32
    %c0_i32_1 = arith.constant 0 : i32
    return %c0_i32, %c0_i32_0 : i32, i32
  }
  func.func @transform_7(%arg0: i32) -> (i32, i32) {
    %c0_i32 = arith.constant 0 : i32
    %c0_i32_0 = arith.constant 0 : i32
    return %arg0, %c0_i32 : i32, i32
  }
}

</mosaic_0001>

<llo_original>
// kernel: tile.13
$region0: #{tile.13}
  #allocation0 [shape = 's32[1]{0}', space=sflag, size = 0x4, scoped, tag = 'scoped memory for tile.13']
  %s0 = inlined_call_operand.vmem [shape: f32[32], index: 0, kind: input, shape index: {}]
  %s1 = inlined_call_operand.vmem [shape: f32[16,32], index: 1, kind: output, shape index: {}]
  // Predicated region
  $region2: #{tile.13} parent=0 // pred_check
    _
  $region3: #{tile.13} parent=0 // pred_check_branch
    %3 = sbr.rel (0) target = $region5
  $region4: #{tile.13} parent=0 // pred_region
    _
  $region5: #{tile.13} parent=0 // pred_fallthru
    _
  %v4 = vld [vmem:[%s0] ss:$0 sm:$0xff]
  %5 = vst [vmem:[%s1] sm:$0xff] %v4
  %s6 = scalar_lea.vmem %s1, 8
  %7 = vst [vmem:[%s6] sm:$0xff] %v4

// kernel: tile.14
$region0: #{tile.14}
  %s0 = inlined_call_operand.vmem [shape: f32[16,32], index: 0, kind: input, shape index: {}]
  %s1 = inlined_call_operand.vmem [shape: f32[1,512], index: 1, kind: output, shape index: {}]
  $region1: #{tile.14} parent=0
    #allocation0 [shape = 'u8[16384]{0}', space=vmem, size = 0x4000, scoped, tag = 'scoped mem for output reshape']
    %v2 = vld [vmem:[%s0] ss:$4 sm:$0xf]
    %vm3 = vcmask 261120
    %4 = vst.msk [vmem:[#allocation0] ss:$8 sm:$0xf] %vm3, %v2
    %s5 = scalar_lea.vmem %s0, 3
    %v6 = vld [vmem:[%s5] ss:$4 sm:$0xf]
    %7 = vrot.lane.b32.xlu0 %v6, 96
    %v8 = vpop.permute.xlu0 %7
    %vm9 = vcmask 1048320
    %10 = vst.msk [vmem:[#allocation0] ss:$8 sm:$0xf] %vm9, %v8
    %s11 = scalar_lea.vmem %s0, 2
    %v12 = vld [vmem:[%s11] ss:$4 sm:$0xf]
    %13 = vrot.lane.b32.xlu0 %v12, 64
    %v14 = vpop.permute.xlu0 %13
    %vm15 = vcmask 785920
    %16 = vst.msk [vmem:[#allocation0] ss:$8 sm:$0xf] %vm15, %v14
    %s17 = scalar_lea.vmem %s0, 1
    %v18 = vld [vmem:[%s17] ss:$4 sm:$0xf]
    %19 = vrot.lane.b32.xlu0 %v18, 32
    %v20 = vpop.permute.xlu0 %19
    %vm21 = vcmask 523520
    %22 = vst.msk [vmem:[#allocation0] ss:$8 sm:$0xf] %vm21, %v20
    %s24 = sshllo.u32 0, 1
    %v26 = vld [vmem:[#allocation0] sm:%s24]
    %s27 = sshllo.u32 0, 1
    %28 = vst [vmem:[%s1] sm:%s27] %v26
    %s29 = scalar_lea.vmem [#allocation0], 8
    %v30 = vld [vmem:[%s29] sm:%s24]
    %s31 = sshllo.u32 0, 1
    %s32 = scalar_lea.vmem %s1, 1
    %33 = vst [vmem:[%s32] sm:%s31] %v30
    %s34 = scalar_lea.vmem [#allocation0], 16
    %v35 = vld [vmem:[%s34] sm:%s24]
    %s36 = sshllo.u32 0, 1
    %s37 = smul.addr 1, 2
    %s38 = scalar_lea.vmem %s1, %s37
    %39 = vst [vmem:[%s38] sm:%s36] %v35
    %s40 = scalar_lea.vmem [#allocation0], 24
    %v41 = vld [vmem:[%s40] sm:%s24]
    %s42 = sshllo.u32 0, 1
    %s43 = smul.addr 1, 3
    %s44 = scalar_lea.vmem %s1, %s43
    %45 = vst [vmem:[%s44] sm:%s42] %v41

// kernel: tile.18
$region0: #{tile.18}
  #allocation0 [shape = 's32[1]{0}', space=sflag, size = 0x4, scoped, tag = 'scoped memory for tile.18']
  %s0 = inlined_call_operand.vmem [shape: f32[64], index: 0, kind: input, shape index: {}]
  %s1 = inlined_call_operand.vmem [shape: f32[8,64], index: 1, kind: output, shape index: {}]
  // Predicated region
  $region2: #{tile.18} parent=0 // pred_check
    _
  $region3: #{tile.18} parent=0 // pred_check_branch
    %3 = sbr.rel (0) target = $region5
  $region4: #{tile.18} parent=0 // pred_region
    _
  $region5: #{tile.18} parent=0 // pred_fallthru
    _
  %v4 = vld [vmem:[%s0] ss:$0 sm:$0xff]
  %5 = vst [vmem:[%s1] sm:$0xff] %v4

// kernel: tile.19
$region0: #{tile.19}
  %s0 = inlined_call_operand.vmem [shape: f32[8,64], index: 0, kind: input, shape index: {}]
  %s1 = inlined_call_operand.vmem [shape: f32[1,512], index: 1, kind: output, shape index: {}]
  $region1: #{tile.19} parent=0
    #allocation0 [shape = 'u8[16384]{0}', space=vmem, size = 0x4000, scoped, tag = 'scoped mem for output reshape']
    %v2 = vld [vmem:[%s0] ss:$2 sm:$0xf]
    %vm3 = vcmask 523264
    %4 = vst.msk [vmem:[#allocation0] ss:$8 sm:$0xf] %vm3, %v2
    %s5 = scalar_lea.vmem %s0, 1
    %v6 = vld [vmem:[%s5] ss:$2 sm:$0xf]
    %7 = vrot.lane.b32.xlu0 %v6, 64
    %v8 = vpop.permute.xlu0 %7
    %vm9 = vcmask 1048064
    %10 = vst.msk [vmem:[#allocation0] ss:$8 sm:$0xf] %vm9, %v8
    %s12 = sshllo.u32 0, 1
    %v14 = vld [vmem:[#allocation0] sm:%s12]
    %s15 = sshllo.u32 0, 1
    %16 = vst [vmem:[%s1] sm:%s15] %v14
    %s17 = scalar_lea.vmem [#allocation0], 8
    %v18 = vld [vmem:[%s17] sm:%s12]
    %s19 = sshllo.u32 0, 1
    %s20 = scalar_lea.vmem %s1, 1
    %21 = vst [vmem:[%s20] sm:%s19] %v18
    %s22 = scalar_lea.vmem [#allocation0], 16
    %v23 = vld [vmem:[%s22] sm:%s12]
    %s24 = sshllo.u32 0, 1
    %s25 = smul.addr 1, 2
    %s26 = scalar_lea.vmem %s1, %s25
    %27 = vst [vmem:[%s26] sm:%s24] %v23
    %s28 = scalar_lea.vmem [#allocation0], 24
    %v29 = vld [vmem:[%s28] sm:%s12]
    %s30 = sshllo.u32 0, 1
    %s31 = smul.addr 1, 3
    %s32 = scalar_lea.vmem %s1, %s31
    %33 = vst [vmem:[%s32] sm:%s30] %v29

// kernel: tnet_forward.1
$region0: #{tnet_forward.1}
  #allocation0 [shape = 'u32[]', space=smem, size = 0x4, offset = 0x4, fixed_abs, tag = 'smem constant byte address 0x4 - core index']
  #allocation1 [shape = 'u32[144,128]{1,0:T(1,128)}', space=vmem, size = 0x12000, scoped, tag = 'internal scratch']
  %s0 = inlined_call_operand.vmem [shape: bf16[512,256], index: 0, kind: input, shape index: {}]
  %s1 = inlined_call_operand.vmem [shape: bf16[256,1024], index: 1, kind: input, shape index: {}]
  %s2 = inlined_call_operand.vmem [shape: bf16[6,512,512], index: 2, kind: input, shape index: {}]
  %s3 = inlined_call_operand.vmem [shape: bf16[4096,128], index: 3, kind: input, shape index: {}]
  %s4 = inlined_call_operand.vmem [shape: f32[1,512], index: 4, kind: input, shape index: {}]
  %s5 = inlined_call_operand.vmem [shape: f32[1,512], index: 5, kind: input, shape index: {}]
  %s6 = inlined_call_operand.vmem [shape: f32[1,128], index: 6, kind: input, shape index: {}]
  %s7 = inlined_call_operand.vmem [shape: f32[16,128], index: 7, kind: output, shape index: {}]
  %s8 = sld [smem:[#allocation0]]
  $region38: #{tnet_forward.1} parent=0
    _
  %s10 = ssub.s32 1, %s8
  %s11 = scalar_select 0, %s10, %s8
  // Predicated region
  $region2: #{tnet_forward.1} parent=0 // pred_check
    _
  $region3: #{tnet_forward.1} parent=0 // pred_check_branch
    %13 = sbr.rel (0) target = $region5
  $region4: #{tnet_forward.1} parent=0 // pred_region
    _
  $region5: #{tnet_forward.1} parent=0 // pred_fallthru
    _
  // Predicated region
  $region6: #{tnet_forward.1} parent=0 // pred_check
    _
  $region7: #{tnet_forward.1} parent=0 // pred_check_branch
    %15 = sbr.rel (0) target = $region9
  $region8: #{tnet_forward.1} parent=0 // pred_region
    _
  $region9: #{tnet_forward.1} parent=0 // pred_fallthru
    _
  // Predicated region
  $region10: #{tnet_forward.1} parent=0 // pred_check
    _
  $region11: #{tnet_forward.1} parent=0 // pred_check_branch
    %17 = sbr.rel (0) target = $region13
  $region12: #{tnet_forward.1} parent=0 // pred_region
    _
  $region13: #{tnet_forward.1} parent=0 // pred_fallthru
    _
  // Predicated region
  $region14: #{tnet_forward.1} parent=0 // pred_check
    _
  $region15: #{tnet_forward.1} parent=0 // pred_check_branch
    %19 = sbr.rel (0) target = $region17
  $region16: #{tnet_forward.1} parent=0 // pred_region
    _
  $region17: #{tnet_forward.1} parent=0 // pred_fallthru
    _
  // Predicated region
  $region18: #{tnet_forward.1} parent=0 // pred_check
    _
  $region19: #{tnet_forward.1} parent=0 // pred_check_branch
    %21 = sbr.rel (0) target = $region21
  $region20: #{tnet_forward.1} parent=0 // pred_region
    _
  $region21: #{tnet_forward.1} parent=0 // pred_fallthru
    _
  // Predicated region
  $region22: #{tnet_forward.1} parent=0 // pred_check
    _
  $region23: #{tnet_forward.1} parent=0 // pred_check_branch
    %23 = sbr.rel (0) target = $region25
  $region24: #{tnet_forward.1} parent=0 // pred_region
    _
  $region25: #{tnet_forward.1} parent=0 // pred_fallthru
    _
  // Predicated region
  $region26: #{tnet_forward.1} parent=0 // pred_check
    _
  $region27: #{tnet_forward.1} parent=0 // pred_check_branch
    %25 = sbr.rel (0) target = $region29
  $region28: #{tnet_forward.1} parent=0 // pred_region
    _
  $region29: #{tnet_forward.1} parent=0 // pred_fallthru
    _
  %v27 = vld [vmem:[%s0] sm:$0xff]
  %v28 = vld [vmem:[%s0 + $0x8] sm:$0xff]
  %v29 = vld [vmem:[%s0 + $0x10] sm:$0xff]
  %v30 = vld [vmem:[%s0 + $0x18] sm:$0xff]
  %v31 = vld [vmem:[%s0 + $0x20] sm:$0xff]
  %v32 = vld [vmem:[%s0 + $0x28] sm:$0xff]
  %v33 = vld [vmem:[%s0 + $0x30] sm:$0xff]
  %v34 = vld [vmem:[%s0 + $0x38] sm:$0xff]
  %v35 = vld [vmem:[%s0 + $0x40] sm:$0xff]
  %v36 = vld [vmem:[%s0 + $0x48] sm:$0xff]
  %v37 = vld [vmem:[%s0 + $0x50] sm:$0xff]
  %v38 = vld [vmem:[%s0 + $0x58] sm:$0xff]
  %v39 = vld [vmem:[%s0 + $0x60] sm:$0xff]
  %v40 = vld [vmem:[%s0 + $0x68] sm:$0xff]
  %v41 = vld [vmem:[%s0 + $0x70] sm:$0xff]
  %v42 = vld [vmem:[%s0 + $0x78] sm:$0xff]
  %v43 = vld [vmem:[%s0 + $0x80] sm:$0xff]
  %v44 = vld [vmem:[%s0 + $0x88] sm:$0xff]
  %v45 = vld [vmem:[%s0 + $0x90] sm:$0xff]
  %v46 = vld [vmem:[%s0 + $0x98] sm:$0xff]
  %v47 = vld [vmem:[%s0 + $0xa0] sm:$0xff]
  %v48 = vld [vmem:[%s0 + $0xa8] sm:$0xff]
  %v49 = vld [vmem:[%s0 + $0xb0] sm:$0xff]
  %v50 = vld [vmem:[%s0 + $0xb8] sm:$0xff]
  %v51 = vld [vmem:[%s0 + $0xc0] sm:$0xff]
  %v52 = vld [vmem:[%s0 + $0xc8] sm:$0xff]
  %v53 = vld [vmem:[%s0 + $0xd0] sm:$0xff]
  %v54 = vld [vmem:[%s0 + $0xd8] sm:$0xff]
  %v55 = vld [vmem:[%s0 + $0xe0] sm:$0xff]
  %v56 = vld [vmem:[%s0 + $0xe8] sm:$0xff]
  %v57 = vld [vmem:[%s0 + $0xf0] sm:$0xff]
  %v58 = vld [vmem:[%s0 + $0xf8] sm:$0xff]
  %v59 = vld [vmem:[%s0 + $0x100] sm:$0xff]
  %v60 = vld [vmem:[%s0 + $0x108] sm:$0xff]
  %v61 = vld [vmem:[%s0 + $0x110] sm:$0xff]
  %v62 = vld [vmem:[%s0 + $0x118] sm:$0xff]
  %v63 = vld [vmem:[%s0 + $0x120] sm:$0xff]
  %v64 = vld [vmem:[%s0 + $0x128] sm:$0xff]
  %v65 = vld [vmem:[%s0 + $0x130] sm:$0xff]
  %v66 = vld [vmem:[%s0 + $0x138] sm:$0xff]
  %v67 = vld [vmem:[%s0 + $0x140] sm:$0xff]
  %v68 = vld [vmem:[%s0 + $0x148] sm:$0xff]
  %v69 = vld [vmem:[%s0 + $0x150] sm:$0xff]
  %v70 = vld [vmem:[%s0 + $0x158] sm:$0xff]
  %v71 = vld [vmem:[%s0 + $0x160] sm:$0xff]
  %v72 = vld [vmem:[%s0 + $0x168] sm:$0xff]
  %v73 = vld [vmem:[%s0 + $0x170] sm:$0xff]
  %v74 = vld [vmem:[%s0 + $0x178] sm:$0xff]
  %v75 = vld [vmem:[%s0 + $0x180] sm:$0xff]
  %v76 = vld [vmem:[%s0 + $0x188] sm:$0xff]
  %v77 = vld [vmem:[%s0 + $0x190] sm:$0xff]
  %v78 = vld [vmem:[%s0 + $0x198] sm:$0xff]
  %v79 = vld [vmem:[%s0 + $0x1a0] sm:$0xff]
  %v80 = vld [vmem:[%s0 + $0x1a8] sm:$0xff]
  %v81 = vld [vmem:[%s0 + $0x1b0] sm:$0xff]
  %v82 = vld [vmem:[%s0 + $0x1b8] sm:$0xff]
  %v83 = vld [vmem:[%s0 + $0x1c0] sm:$0xff]
  %v84 = vld [vmem:[%s0 + $0x1c8] sm:$0xff]
  %v85 = vld [vmem:[%s0 + $0x1d0] sm:$0xff]
  %v86 = vld [vmem:[%s0 + $0x1d8] sm:$0xff]
  %v87 = vld [vmem:[%s0 + $0x1e0] sm:$0xff]
  %v88 = vld [vmem:[%s0 + $0x1e8] sm:$0xff]
  %v89 = vld [vmem:[%s0 + $0x1f0] sm:$0xff]
  %v90 = vld [vmem:[%s0 + $0x1f8] sm:$0xff]
  %v91 = vld [vmem:[%s1] sm:$0xff]
  %v92 = vld [vmem:[%s1 + $0x8] sm:$0xff]
  %v93 = vld [vmem:[%s1 + $0x10] sm:$0xff]
  %v94 = vld [vmem:[%s1 + $0x18] sm:$0xff]
  %v95 = vld [vmem:[%s1 + $0x20] sm:$0xff]
  %v96 = vld [vmem:[%s1 + $0x28] sm:$0xff]
  %v97 = vld [vmem:[%s1 + $0x30] sm:$0xff]
  %v98 = vld [vmem:[%s1 + $0x38] sm:$0xff]
  %v99 = vld [vmem:[%s1 + $0x40] sm:$0xff]
  %v100 = vld [vmem:[%s1 + $0x48] sm:$0xff]
  %v101 = vld [vmem:[%s1 + $0x50] sm:$0xff]
  %v102 = vld [vmem:[%s1 + $0x58] sm:$0xff]
  %v103 = vld [vmem:[%s1 + $0x60] sm:$0xff]
  %v104 = vld [vmem:[%s1 + $0x68] sm:$0xff]
  %v105 = vld [vmem:[%s1 + $0x70] sm:$0xff]
  %v106 = vld [vmem:[%s1 + $0x78] sm:$0xff]
  %v107 = vld [vmem:[%s1 + $0x80] sm:$0xff]
  %v108 = vld [vmem:[%s1 + $0x88] sm:$0xff]
  %v109 = vld [vmem:[%s1 + $0x90] sm:$0xff]
  %v110 = vld [vmem:[%s1 + $0x98] sm:$0xff]
  %v111 = vld [vmem:[%s1 + $0xa0] sm:$0xff]
  %v112 = vld [vmem:[%s1 + $0xa8] sm:$0xff]
  %v113 = vld [vmem:[%s1 + $0xb0] sm:$0xff]
  %v114 = vld [vmem:[%s1 + $0xb8] sm:$0xff]
  %v115 = vld [vmem:[%s1 + $0xc0] sm:$0xff]
  %v116 = vld [vmem:[%s1 + $0xc8] sm:$0xff]
  %v117 = vld [vmem:[%s1 + $0xd0] sm:$0xff]
  %v118 = vld [vmem:[%s1 + $0xd8] sm:$0xff]
  %v119 = vld [vmem:[%s1 + $0xe0] sm:$0xff]
  %v120 = vld [vmem:[%s1 + $0xe8] sm:$0xff]
  %v121 = vld [vmem:[%s1 + $0xf0] sm:$0xff]
  %v122 = vld [vmem:[%s1 + $0xf8] sm:$0xff]
  %v123 = vld [vmem:[%s1 + $0x100] sm:$0xff]
  %v124 = vld [vmem:[%s1 + $0x108] sm:$0xff]
  %v125 = vld [vmem:[%s1 + $0x110] sm:$0xff]
  %v126 = vld [vmem:[%s1 + $0x118] sm:$0xff]
  %v127 = vld [vmem:[%s1 + $0x120] sm:$0xff]
  %v128 = vld [vmem:[%s1 + $0x128] sm:$0xff]
  %v129 = vld [vmem:[%s1 + $0x130] sm:$0xff]
  %v130 = vld [vmem:[%s1 + $0x138] sm:$0xff]
  %v131 = vld [vmem:[%s1 + $0x140] sm:$0xff]
  %v132 = vld [vmem:[%s1 + $0x148] sm:$0xff]
  %v133 = vld [vmem:[%s1 + $0x150] sm:$0xff]
  %v134 = vld [vmem:[%s1 + $0x158] sm:$0xff]
  %v135 = vld [vmem:[%s1 + $0x160] sm:$0xff]
  %v136 = vld [vmem:[%s1 + $0x168] sm:$0xff]
  %v137 = vld [vmem:[%s1 + $0x170] sm:$0xff]
  %v138 = vld [vmem:[%s1 + $0x178] sm:$0xff]
  %v139 = vld [vmem:[%s1 + $0x180] sm:$0xff]
  %v140 = vld [vmem:[%s1 + $0x188] sm:$0xff]
  %v141 = vld [vmem:[%s1 + $0x190] sm:$0xff]
  %v142 = vld [vmem:[%s1 + $0x198] sm:$0xff]
  %v143 = vld [vmem:[%s1 + $0x1a0] sm:$0xff]
  %v144 = vld [vmem:[%s1 + $0x1a8] sm:$0xff]
  %v145 = vld [vmem:[%s1 + $0x1b0] sm:$0xff]
  %v146 = vld [vmem:[%s1 + $0x1b8] sm:$0xff]
  %v147 = vld [vmem:[%s1 + $0x1c0] sm:$0xff]
  %v148 = vld [vmem:[%s1 + $0x1c8] sm:$0xff]
  %v149 = vld [vmem:[%s1 + $0x1d0] sm:$0xff]
  %v150 = vld [vmem:[%s1 + $0x1d8] sm:$0xff]
  %v151 = vld [vmem:[%s1 + $0x1e0] sm:$0xff]
  %v152 = vld [vmem:[%s1 + $0x1e8] sm:$0xff]
  %v153 = vld [vmem:[%s1 + $0x1f0] sm:$0xff]
  %v154 = vld [vmem:[%s1 + $0x1f8] sm:$0xff]
  %v155 = vld [vmem:[%s1 + $0x200] sm:$0xff]
  %v156 = vld [vmem:[%s1 + $0x208] sm:$0xff]
  %v157 = vld [vmem:[%s1 + $0x210] sm:$0xff]
  %v158 = vld [vmem:[%s1 + $0x218] sm:$0xff]
  %v159 = vld [vmem:[%s1 + $0x220] sm:$0xff]
  %v160 = vld [vmem:[%s1 + $0x228] sm:$0xff]
  %v161 = vld [vmem:[%s1 + $0x230] sm:$0xff]
  %v162 = vld [vmem:[%s1 + $0x238] sm:$0xff]
  %v163 = vld [vmem:[%s1 + $0x240] sm:$0xff]
  %v164 = vld [vmem:[%s1 + $0x248] sm:$0xff]
  %v165 = vld [vmem:[%s1 + $0x250] sm:$0xff]
  %v166 = vld [vmem:[%s1 + $0x258] sm:$0xff]
  %v167 = vld [vmem:[%s1 + $0x260] sm:$0xff]
  %v168 = vld [vmem:[%s1 + $0x268] sm:$0xff]
  %v169 = vld [vmem:[%s1 + $0x270] sm:$0xff]
  %v170 = vld [vmem:[%s1 + $0x278] sm:$0xff]
  %v171 = vld [vmem:[%s1 + $0x280] sm:$0xff]
  %v172 = vld [vmem:[%s1 + $0x288] sm:$0xff]
  %v173 = vld [vmem:[%s1 + $0x290] sm:$0xff]
  %v174 = vld [vmem:[%s1 + $0x298] sm:$0xff]
  %v175 = vld [vmem:[%s1 + $0x2a0] sm:$0xff]
  %v176 = vld [vmem:[%s1 + $0x2a8] sm:$0xff]
  %v177 = vld [vmem:[%s1 + $0x2b0] sm:$0xff]
  %v178 = vld [vmem:[%s1 + $0x2b8] sm:$0xff]
  %v179 = vld [vmem:[%s1 + $0x2c0] sm:$0xff]
  %v180 = vld [vmem:[%s1 + $0x2c8] sm:$0xff]
  %v181 = vld [vmem:[%s1 + $0x2d0] sm:$0xff]
  %v182 = vld [vmem:[%s1 + $0x2d8] sm:$0xff]
  %v183 = vld [vmem:[%s1 + $0x2e0] sm:$0xff]
  %v184 = vld [vmem:[%s1 + $0x2e8] sm:$0xff]
  %v185 = vld [vmem:[%s1 + $0x2f0] sm:$0xff]
  %v186 = vld [vmem:[%s1 + $0x2f8] sm:$0xff]
  %v187 = vld [vmem:[%s1 + $0x300] sm:$0xff]
  %v188 = vld [vmem:[%s1 + $0x308] sm:$0xff]
  %v189 = vld [vmem:[%s1 + $0x310] sm:$0xff]
  %v190 = vld [vmem:[%s1 + $0x318] sm:$0xff]
  %v191 = vld [vmem:[%s1 + $0x320] sm:$0xff]
  %v192 = vld [vmem:[%s1 + $0x328] sm:$0xff]
  %v193 = vld [vmem:[%s1 + $0x330] sm:$0xff]
  %v194 = vld [vmem:[%s1 + $0x338] sm:$0xff]
  %v195 = vld [vmem:[%s1 + $0x340] sm:$0xff]
  %v196 = vld [vmem:[%s1 + $0x348] sm:$0xff]
  %v197 = vld [vmem:[%s1 + $0x350] sm:$0xff]
  %v198 = vld [vmem:[%s1 + $0x358] sm:$0xff]
  %v199 = vld [vmem:[%s1 + $0x360] sm:$0xff]
  %v200 = vld [vmem:[%s1 + $0x368] sm:$0xff]
  %v201 = vld [vmem:[%s1 + $0x370] sm:$0xff]
  %v202 = vld [vmem:[%s1 + $0x378] sm:$0xff]
  %v203 = vld [vmem:[%s1 + $0x380] sm:$0xff]
  %v204 = vld [vmem:[%s1 + $0x388] sm:$0xff]
  %v205 = vld [vmem:[%s1 + $0x390] sm:$0xff]
  %v206 = vld [vmem:[%s1 + $0x398] sm:$0xff]
  %v207 = vld [vmem:[%s1 + $0x3a0] sm:$0xff]
  %v208 = vld [vmem:[%s1 + $0x3a8] sm:$0xff]
  %v209 = vld [vmem:[%s1 + $0x3b0] sm:$0xff]
  %v210 = vld [vmem:[%s1 + $0x3b8] sm:$0xff]
  %v211 = vld [vmem:[%s1 + $0x3c0] sm:$0xff]
  %v212 = vld [vmem:[%s1 + $0x3c8] sm:$0xff]
  %v213 = vld [vmem:[%s1 + $0x3d0] sm:$0xff]
  %v214 = vld [vmem:[%s1 + $0x3d8] sm:$0xff]
  %v215 = vld [vmem:[%s1 + $0x3e0] sm:$0xff]
  %v216 = vld [vmem:[%s1 + $0x3e8] sm:$0xff]
  %v217 = vld [vmem:[%s1 + $0x3f0] sm:$0xff]
  %v218 = vld [vmem:[%s1 + $0x3f8] sm:$0xff]
  %v283 = vunpack.c.l.b16 %v27
  %v284 = vunpack.c.h.b16 %v27
  %v285 = vunpack.c.l.b16 %v28
  %v286 = vunpack.c.h.b16 %v28
  %v287 = vunpack.c.l.b16 %v29
  %v288 = vunpack.c.h.b16 %v29
  %v289 = vunpack.c.l.b16 %v30
  %v290 = vunpack.c.h.b16 %v30
  %v291 = vunpack.c.l.b16 %v31
  %v292 = vunpack.c.h.b16 %v31
  %v293 = vunpack.c.l.b16 %v32
  %v294 = vunpack.c.h.b16 %v32
  %v295 = vunpack.c.l.b16 %v33
  %v296 = vunpack.c.h.b16 %v33
  %v297 = vunpack.c.l.b16 %v34
  %v298 = vunpack.c.h.b16 %v34
  %v299 = vunpack.c.l.b16 %v35
  %v300 = vunpack.c.h.b16 %v35
  %v301 = vunpack.c.l.b16 %v36
  %v302 = vunpack.c.h.b16 %v36
  %v303 = vunpack.c.l.b16 %v37
  %v304 = vunpack.c.h.b16 %v37
  %v305 = vunpack.c.l.b16 %v38
  %v306 = vunpack.c.h.b16 %v38
  %v307 = vunpack.c.l.b16 %v39
  %v308 = vunpack.c.h.b16 %v39
  %v309 = vunpack.c.l.b16 %v40
  %v310 = vunpack.c.h.b16 %v40
  %v311 = vunpack.c.l.b16 %v41
  %v312 = vunpack.c.h.b16 %v41
  %v313 = vunpack.c.l.b16 %v42
  %v314 = vunpack.c.h.b16 %v42
  %v315 = vunpack.c.l.b16 %v43
  %v316 = vunpack.c.h.b16 %v43
  %v317 = vunpack.c.l.b16 %v44
  %v318 = vunpack.c.h.b16 %v44
  %v319 = vunpack.c.l.b16 %v45
  %v320 = vunpack.c.h.b16 %v45
  %v321 = vunpack.c.l.b16 %v46
  %v322 = vunpack.c.h.b16 %v46
  %v323 = vunpack.c.l.b16 %v47
  %v324 = vunpack.c.h.b16 %v47
  %v325 = vunpack.c.l.b16 %v48
  %v326 = vunpack.c.h.b16 %v48
  %v327 = vunpack.c.l.b16 %v49
  %v328 = vunpack.c.h.b16 %v49
  %v329 = vunpack.c.l.b16 %v50
  %v330 = vunpack.c.h.b16 %v50
  %v331 = vunpack.c.l.b16 %v51
  %v332 = vunpack.c.h.b16 %v51
  %v333 = vunpack.c.l.b16 %v52
  %v334 = vunpack.c.h.b16 %v52
  %v335 = vunpack.c.l.b16 %v53
  %v336 = vunpack.c.h.b16 %v53
  %v337 = vunpack.c.l.b16 %v54
  %v338 = vunpack.c.h.b16 %v54
  %v339 = vunpack.c.l.b16 %v55
  %v340 = vunpack.c.h.b16 %v55
  %v341 = vunpack.c.l.b16 %v56
  %v342 = vunpack.c.h.b16 %v56
  %v343 = vunpack.c.l.b16 %v57
  %v344 = vunpack.c.h.b16 %v57
  %v345 = vunpack.c.l.b16 %v58
  %v346 = vunpack.c.h.b16 %v58
  %v347 = vunpack.c.l.b16 %v59
  %v348 = vunpack.c.h.b16 %v59
  %v349 = vunpack.c.l.b16 %v60
  %v350 = vunpack.c.h.b16 %v60
  %v351 = vunpack.c.l.b16 %v61
  %v352 = vunpack.c.h.b16 %v61
  %v353 = vunpack.c.l.b16 %v62
  %v354 = vunpack.c.h.b16 %v62
  %v355 = vunpack.c.l.b16 %v63
  %v356 = vunpack.c.h.b16 %v63
  %v357 = vunpack.c.l.b16 %v64
  %v358 = vunpack.c.h.b16 %v64
  %v359 = vunpack.c.l.b16 %v65
  %v360 = vunpack.c.h.b16 %v65
  %v361 = vunpack.c.l.b16 %v66
  %v362 = vunpack.c.h.b16 %v66
  %v363 = vunpack.c.l.b16 %v67
  %v364 = vunpack.c.h.b16 %v67
  %v365 = vunpack.c.l.b16 %v68
  %v366 = vunpack.c.h.b16 %v68
  %v367 = vunpack.c.l.b16 %v69
  %v368 = vunpack.c.h.b16 %v69
  %v369 = vunpack.c.l.b16 %v70
  %v370 = vunpack.c.h.b16 %v70
  %v371 = vunpack.c.l.b16 %v71
  %v372 = vunpack.c.h.b16 %v71
  %v373 = vunpack.c.l.b16 %v72
  %v374 = vunpack.c.h.b16 %v72
  %v375 = vunpack.c.l.b16 %v73
  %v376 = vunpack.c.h.b16 %v73
  %v377 = vunpack.c.l.b16 %v74
  %v378 = vunpack.c.h.b16 %v74
  %v379 = vunpack.c.l.b16 %v75
  %v380 = vunpack.c.h.b16 %v75
  %v381 = vunpack.c.l.b16 %v76
  %v382 = vunpack.c.h.b16 %v76
  %v383 = vunpack.c.l.b16 %v77
  %v384 = vunpack.c.h.b16 %v77
  %v385 = vunpack.c.l.b16 %v78
  %v386 = vunpack.c.h.b16 %v78
  %v387 = vunpack.c.l.b16 %v79
  %v388 = vunpack.c.h.b16 %v79
  %v389 = vunpack.c.l.b16 %v80
  %v390 = vunpack.c.h.b16 %v80
  %v391 = vunpack.c.l.b16 %v81
  %v392 = vunpack.c.h.b16 %v81
  %v393 = vunpack.c.l.b16 %v82
  %v394 = vunpack.c.h.b16 %v82
  %v395 = vunpack.c.l.b16 %v83
  %v396 = vunpack.c.h.b16 %v83
  %v397 = vunpack.c.l.b16 %v84
  %v398 = vunpack.c.h.b16 %v84
  %v399 = vunpack.c.l.b16 %v85
  %v400 = vunpack.c.h.b16 %v85
  %v401 = vunpack.c.l.b16 %v86
  %v402 = vunpack.c.h.b16 %v86
  %v403 = vunpack.c.l.b16 %v87
  %v404 = vunpack.c.h.b16 %v87
  %v405 = vunpack.c.l.b16 %v88
  %v406 = vunpack.c.h.b16 %v88
  %v407 = vunpack.c.l.b16 %v89
  %v408 = vunpack.c.h.b16 %v89
  %v409 = vunpack.c.l.b16 %v90
  %v410 = vunpack.c.h.b16 %v90
  %v411 = vpack.c.b16 %v285, %v283
  %v412 = vpack.c.b16 %v286, %v284
  %v413 = vpack.c.b16 %v289, %v287
  %v414 = vpack.c.b16 %v290, %v288
  %v415 = vpack.c.b16 %v293, %v291
  %v416 = vpack.c.b16 %v294, %v292
  %v417 = vpack.c.b16 %v297, %v295
  %v418 = vpack.c.b16 %v298, %v296
  %v419 = vpack.c.b16 %v301, %v299
  %v420 = vpack.c.b16 %v302, %v300
  %v421 = vpack.c.b16 %v305, %v303
  %v422 = vpack.c.b16 %v306, %v304
  %v423 = vpack.c.b16 %v309, %v307
  %v424 = vpack.c.b16 %v310, %v308
  %v425 = vpack.c.b16 %v313, %v311
  %v426 = vpack.c.b16 %v314, %v312
  %v427 = vpack.c.b16 %v317, %v315
  %v428 = vpack.c.b16 %v318, %v316
  %v429 = vpack.c.b16 %v321, %v319
  %v430 = vpack.c.b16 %v322, %v320
  %v431 = vpack.c.b16 %v325, %v323
  %v432 = vpack.c.b16 %v326, %v324
  %v433 = vpack.c.b16 %v329, %v327
  %v434 = vpack.c.b16 %v330, %v328
  %v435 = vpack.c.b16 %v333, %v331
  %v436 = vpack.c.b16 %v334, %v332
  %v437 = vpack.c.b16 %v337, %v335
  %v438 = vpack.c.b16 %v338, %v336
  %v439 = vpack.c.b16 %v341, %v339
  %v440 = vpack.c.b16 %v342, %v340
  %v441 = vpack.c.b16 %v345, %v343
  %v442 = vpack.c.b16 %v346, %v344
  %v443 = vpack.c.b16 %v349, %v347
  %v444 = vpack.c.b16 %v350, %v348
  %v445 = vpack.c.b16 %v353, %v351
  %v446 = vpack.c.b16 %v354, %v352
  %v447 = vpack.c.b16 %v357, %v355
  %v448 = vpack.c.b16 %v358, %v356
  %v449 = vpack.c.b16 %v361, %v359
  %v450 = vpack.c.b16 %v362, %v360
  %v451 = vpack.c.b16 %v365, %v363
  %v452 = vpack.c.b16 %v366, %v364
  %v453 = vpack.c.b16 %v369, %v367
  %v454 = vpack.c.b16 %v370, %v368
  %v455 = vpack.c.b16 %v373, %v371
  %v456 = vpack.c.b16 %v374, %v372
  %v457 = vpack.c.b16 %v377, %v375
  %v458 = vpack.c.b16 %v378, %v376
  %v459 = vpack.c.b16 %v381, %v379
  %v460 = vpack.c.b16 %v382, %v380
  %v461 = vpack.c.b16 %v385, %v383
  %v462 = vpack.c.b16 %v386, %v384
  %v463 = vpack.c.b16 %v389, %v387
  %v464 = vpack.c.b16 %v390, %v388
  %v465 = vpack.c.b16 %v393, %v391
  %v466 = vpack.c.b16 %v394, %v392
  %v467 = vpack.c.b16 %v397, %v395
  %v468 = vpack.c.b16 %v398, %v396
  %v469 = vpack.c.b16 %v401, %v399
  %v470 = vpack.c.b16 %v402, %v400
  %v471 = vpack.c.b16 %v405, %v403
  %v472 = vpack.c.b16 %v406, %v404
  %v473 = vpack.c.b16 %v409, %v407
  %v474 = vpack.c.b16 %v410, %v408
  %v667 = vunpack.c.l.b16 %v91
  %v668 = vunpack.c.h.b16 %v91
  %v669 = vunpack.c.l.b16 %v92
  %v670 = vunpack.c.h.b16 %v92
  %v671 = vunpack.c.l.b16 %v93
  %v672 = vunpack.c.h.b16 %v93
  %v673 = vunpack.c.l.b16 %v94
  %v674 = vunpack.c.h.b16 %v94
  %v675 = vunpack.c.l.b16 %v95
  %v676 = vunpack.c.h.b16 %v95
  %v677 = vunpack.c.l.b16 %v96
  %v678 = vunpack.c.h.b16 %v96
  %v679 = vunpack.c.l.b16 %v97
  %v680 = vunpack.c.h.b16 %v97
  %v681 = vunpack.c.l.b16 %v98
  %v682 = vunpack.c.h.b16 %v98
  %v683 = vunpack.c.l.b16 %v99
  %v684 = vunpack.c.h.b16 %v99
  %v685 = vunpack.c.l.b16 %v100
  %v686 = vunpack.c.h.b16 %v100
  %v687 = vunpack.c.l.b16 %v101
  %v688 = vunpack.c.h.b16 %v101
  %v689 = vunpack.c.l.b16 %v102
  %v690 = vunpack.c.h.b16 %v102
  %v691 = vunpack.c.l.b16 %v103
  %v692 = vunpack.c.h.b16 %v103
  %v693 = vunpack.c.l.b16 %v104
  %v694 = vunpack.c.h.b16 %v104
  %v695 = vunpack.c.l.b16 %v105
  %v696 = vunpack.c.h.b16 %v105
  %v697 = vunpack.c.l.b16 %v106
  %v698 = vunpack.c.h.b16 %v106
  %v699 = vunpack.c.l.b16 %v107
  %v700 = vunpack.c.h.b16 %v107
  %v701 = vunpack.c.l.b16 %v108
  %v702 = vunpack.c.h.b16 %v108
  %v703 = vunpack.c.l.b16 %v109
  %v704 = vunpack.c.h.b16 %v109
  %v705 = vunpack.c.l.b16 %v110
  %v706 = vunpack.c.h.b16 %v110
  %v707 = vunpack.c.l.b16 %v111
  %v708 = vunpack.c.h.b16 %v111
  %v709 = vunpack.c.l.b16 %v112
  %v710 = vunpack.c.h.b16 %v112
  %v711 = vunpack.c.l.b16 %v113
  %v712 = vunpack.c.h.b16 %v113
  %v713 = vunpack.c.l.b16 %v114
  %v714 = vunpack.c.h.b16 %v114
  %v715 = vunpack.c.l.b16 %v115
  %v716 = vunpack.c.h.b16 %v115
  %v717 = vunpack.c.l.b16 %v116
  %v718 = vunpack.c.h.b16 %v116
  %v719 = vunpack.c.l.b16 %v117
  %v720 = vunpack.c.h.b16 %v117
  %v721 = vunpack.c.l.b16 %v118
  %v722 = vunpack.c.h.b16 %v118
  %v723 = vunpack.c.l.b16 %v119
  %v724 = vunpack.c.h.b16 %v119
  %v725 = vunpack.c.l.b16 %v120
  %v726 = vunpack.c.h.b16 %v120
  %v727 = vunpack.c.l.b16 %v121
  %v728 = vunpack.c.h.b16 %v121
  %v729 = vunpack.c.l.b16 %v122
  %v730 = vunpack.c.h.b16 %v122
  %v731 = vunpack.c.l.b16 %v123
  %v732 = vunpack.c.h.b16 %v123
  %v733 = vunpack.c.l.b16 %v124
  %v734 = vunpack.c.h.b16 %v124
  %v735 = vunpack.c.l.b16 %v125
  %v736 = vunpack.c.h.b16 %v125
  %v737 = vunpack.c.l.b16 %v126
  %v738 = vunpack.c.h.b16 %v126
  %v739 = vunpack.c.l.b16 %v127
  %v740 = vunpack.c.h.b16 %v127
  %v741 = vunpack.c.l.b16 %v128
  %v742 = vunpack.c.h.b16 %v128
  %v743 = vunpack.c.l.b16 %v129
  %v744 = vunpack.c.h.b16 %v129
  %v745 = vunpack.c.l.b16 %v130
  %v746 = vunpack.c.h.b16 %v130
  %v747 = vunpack.c.l.b16 %v131
  %v748 = vunpack.c.h.b16 %v131
  %v749 = vunpack.c.l.b16 %v132
  %v750 = vunpack.c.h.b16 %v132
  %v751 = vunpack.c.l.b16 %v133
  %v752 = vunpack.c.h.b16 %v133
  %v753 = vunpack.c.l.b16 %v134
  %v754 = vunpack.c.h.b16 %v134
  %v755 = vunpack.c.l.b16 %v135
  %v756 = vunpack.c.h.b16 %v135
  %v757 = vunpack.c.l.b16 %v136
  %v758 = vunpack.c.h.b16 %v136
  %v759 = vunpack.c.l.b16 %v137
  %v760 = vunpack.c.h.b16 %v137
  %v761 = vunpack.c.l.b16 %v138
  %v762 = vunpack.c.h.b16 %v138
  %v763 = vunpack.c.l.b16 %v139
  %v764 = vunpack.c.h.b16 %v139
  %v765 = vunpack.c.l.b16 %v140
  %v766 = vunpack.c.h.b16 %v140
  %v767 = vunpack.c.l.b16 %v141
  %v768 = vunpack.c.h.b16 %v141
  %v769 = vunpack.c.l.b16 %v142
  %v770 = vunpack.c.h.b16 %v142
  %v771 = vunpack.c.l.b16 %v143
  %v772 = vunpack.c.h.b16 %v143
  %v773 = vunpack.c.l.b16 %v144
  %v774 = vunpack.c.h.b16 %v144
  %v775 = vunpack.c.l.b16 %v145
  %v776 = vunpack.c.h.b16 %v145
  %v777 = vunpack.c.l.b16 %v146
  %v778 = vunpack.c.h.b16 %v146
  %v779 = vunpack.c.l.b16 %v147
  %v780 = vunpack.c.h.b16 %v147
  %v781 = vunpack.c.l.b16 %v148
  %v782 = vunpack.c.h.b16 %v148
  %v783 = vunpack.c.l.b16 %v149
  %v784 = vunpack.c.h.b16 %v149
  %v785 = vunpack.c.l.b16 %v150
  %v786 = vunpack.c.h.b16 %v150
  %v787 = vunpack.c.l.b16 %v151
  %v788 = vunpack.c.h.b16 %v151
  %v789 = vunpack.c.l.b16 %v152
  %v790 = vunpack.c.h.b16 %v152
  %v791 = vunpack.c.l.b16 %v153
  %v792 = vunpack.c.h.b16 %v153
  %v793 = vunpack.c.l.b16 %v154
  %v794 = vunpack.c.h.b16 %v154
  %v795 = vunpack.c.l.b16 %v155
  %v796 = vunpack.c.h.b16 %v155
  %v797 = vunpack.c.l.b16 %v156
  %v798 = vunpack.c.h.b16 %v156
  %v799 = vunpack.c.l.b16 %v157
  %v800 = vunpack.c.h.b16 %v157
  %v801 = vunpack.c.l.b16 %v158
  %v802 = vunpack.c.h.b16 %v158
  %v803 = vunpack.c.l.b16 %v159
  %v804 = vunpack.c.h.b16 %v159
  %v805 = vunpack.c.l.b16 %v160
  %v806 = vunpack.c.h.b16 %v160
  %v807 = vunpack.c.l.b16 %v161
  %v808 = vunpack.c.h.b16 %v161
  %v809 = vunpack.c.l.b16 %v162
  %v810 = vunpack.c.h.b16 %v162
  %v811 = vunpack.c.l.b16 %v163
  %v812 = vunpack.c.h.b16 %v163
  %v813 = vunpack.c.l.b16 %v164
  %v814 = vunpack.c.h.b16 %v164
  %v815 = vunpack.c.l.b16 %v165
  %v816 = vunpack.c.h.b16 %v165
  %v817 = vunpack.c.l.b16 %v166
  %v818 = vunpack.c.h.b16 %v166
  %v819 = vunpack.c.l.b16 %v167
  %v820 = vunpack.c.h.b16 %v167
  %v821 = vunpack.c.l.b16 %v168
  %v822 = vunpack.c.h.b16 %v168
  %v823 = vunpack.c.l.b16 %v169
  %v824 = vunpack.c.h.b16 %v169
  %v825 = vunpack.c.l.b16 %v170
  %v826 = vunpack.c.h.b16 %v170
  %v827 = vunpack.c.l.b16 %v171
  %v828 = vunpack.c.h.b16 %v171
  %v829 = vunpack.c.l.b16 %v172
  %v830 = vunpack.c.h.b16 %v172
  %v831 = vunpack.c.l.b16 %v173
  %v832 = vunpack.c.h.b16 %v173
  %v833 = vunpack.c.l.b16 %v174
  %v834 = vunpack.c.h.b16 %v174
  %v835 = vunpack.c.l.b16 %v175
  %v836 = vunpack.c.h.b16 %v175
  %v837 = vunpack.c.l.b16 %v176
  %v838 = vunpack.c.h.b16 %v176
  %v839 = vunpack.c.l.b16 %v177
  %v840 = vunpack.c.h.b16 %v177
  %v841 = vunpack.c.l.b16 %v178
  %v842 = vunpack.c.h.b16 %v178
  %v843 = vunpack.c.l.b16 %v179
  %v844 = vunpack.c.h.b16 %v179
  %v845 = vunpack.c.l.b16 %v180
  %v846 = vunpack.c.h.b16 %v180
  %v847 = vunpack.c.l.b16 %v181
  %v848 = vunpack.c.h.b16 %v181
  %v849 = vunpack.c.l.b16 %v182
  %v850 = vunpack.c.h.b16 %v182
  %v851 = vunpack.c.l.b16 %v183
  %v852 = vunpack.c.h.b16 %v183
  %v853 = vunpack.c.l.b16 %v184
  %v854 = vunpack.c.h.b16 %v184
  %v855 = vunpack.c.l.b16 %v185
  %v856 = vunpack.c.h.b16 %v185
  %v857 = vunpack.c.l.b16 %v186
  %v858 = vunpack.c.h.b16 %v186
  %v859 = vunpack.c.l.b16 %v187
  %v860 = vunpack.c.h.b16 %v187
  %v861 = vunpack.c.l.b16 %v188
  %v862 = vunpack.c.h.b16 %v188
  %v863 = vunpack.c.l.b16 %v189
  %v864 = vunpack.c.h.b16 %v189
  %v865 = vunpack.c.l.b16 %v190
  %v866 = vunpack.c.h.b16 %v190
  %v867 = vunpack.c.l.b16 %v191
  %v868 = vunpack.c.h.b16 %v191
  %v869 = vunpack.c.l.b16 %v192
  %v870 = vunpack.c.h.b16 %v192
  %v871 = vunpack.c.l.b16 %v193
  %v872 = vunpack.c.h.b16 %v193
  %v873 = vunpack.c.l.b16 %v194
  %v874 = vunpack.c.h.b16 %v194
  %v875 = vunpack.c.l.b16 %v195
  %v876 = vunpack.c.h.b16 %v195
  %v877 = vunpack.c.l.b16 %v196
  %v878 = vunpack.c.h.b16 %v196
  %v879 = vunpack.c.l.b16 %v197
  %v880 = vunpack.c.h.b16 %v197
  %v881 = vunpack.c.l.b16 %v198
  %v882 = vunpack.c.h.b16 %v198
  %v883 = vunpack.c.l.b16 %v199
  %v884 = vunpack.c.h.b16 %v199
  %v885 = vunpack.c.l.b16 %v200
  %v886 = vunpack.c.h.b16 %v200
  %v887 = vunpack.c.l.b16 %v201
  %v888 = vunpack.c.h.b16 %v201
  %v889 = vunpack.c.l.b16 %v202
  %v890 = vunpack.c.h.b16 %v202
  %v891 = vunpack.c.l.b16 %v203
  %v892 = vunpack.c.h.b16 %v203
  %v893 = vunpack.c.l.b16 %v204
  %v894 = vunpack.c.h.b16 %v204
  %v895 = vunpack.c.l.b16 %v205
  %v896 = vunpack.c.h.b16 %v205
  %v897 = vunpack.c.l.b16 %v206
  %v898 = vunpack.c.h.b16 %v206
  %v899 = vunpack.c.l.b16 %v207
  %v900 = vunpack.c.h.b16 %v207
  %v901 = vunpack.c.l.b16 %v208
  %v902 = vunpack.c.h.b16 %v208
  %v903 = vunpack.c.l.b16 %v209
  %v904 = vunpack.c.h.b16 %v209
  %v905 = vunpack.c.l.b16 %v210
  %v906 = vunpack.c.h.b16 %v210
  %v907 = vunpack.c.l.b16 %v211
  %v908 = vunpack.c.h.b16 %v211
  %v909 = vunpack.c.l.b16 %v212
  %v910 = vunpack.c.h.b16 %v212
  %v911 = vunpack.c.l.b16 %v213
  %v912 = vunpack.c.h.b16 %v213
  %v913 = vunpack.c.l.b16 %v214
  %v914 = vunpack.c.h.b16 %v214
  %v915 = vunpack.c.l.b16 %v215
  %v916 = vunpack.c.h.b16 %v215
  %v917 = vunpack.c.l.b16 %v216
  %v918 = vunpack.c.h.b16 %v216
  %v919 = vunpack.c.l.b16 %v217
  %v920 = vunpack.c.h.b16 %v217
  %v921 = vunpack.c.l.b16 %v218
  %v922 = vunpack.c.h.b16 %v218
  %v923 = vpack.c.b16 %v675, %v667
  %v924 = vpack.c.b16 %v676, %v668
  %v925 = vpack.c.b16 %v677, %v669
  %v926 = vpack.c.b16 %v678, %v670
  %v927 = vpack.c.b16 %v679, %v671
  %v928 = vpack.c.b16 %v680, %v672
  %v929 = vpack.c.b16 %v681, %v673
  %v930 = vpack.c.b16 %v682, %v674
  %v931 = vpack.c.b16 %v691, %v683
  %v932 = vpack.c.b16 %v692, %v684
  %v933 = vpack.c.b16 %v693, %v685
  %v934 = vpack.c.b16 %v694, %v686
  %v935 = vpack.c.b16 %v695, %v687
  %v936 = vpack.c.b16 %v696, %v688
  %v937 = vpack.c.b16 %v697, %v689
  %v938 = vpack.c.b16 %v698, %v690
  %v939 = vpack.c.b16 %v707, %v699
  %v940 = vpack.c.b16 %v708, %v700
  %v941 = vpack.c.b16 %v709, %v701
  %v942 = vpack.c.b16 %v710, %v702
  %v943 = vpack.c.b16 %v711, %v703
  %v944 = vpack.c.b16 %v712, %v704
  %v945 = vpack.c.b16 %v713, %v705
  %v946 = vpack.c.b16 %v714, %v706
  %v947 = vpack.c.b16 %v723, %v715
  %v948 = vpack.c.b16 %v724, %v716
  %v949 = vpack.c.b16 %v725, %v717
  %v950 = vpack.c.b16 %v726, %v718
  %v951 = vpack.c.b16 %v727, %v719
  %v952 = vpack.c.b16 %v728, %v720
  %v953 = vpack.c.b16 %v729, %v721
  %v954 = vpack.c.b16 %v730, %v722
  %v955 = vpack.c.b16 %v739, %v731
  %v956 = vpack.c.b16 %v740, %v732
  %v957 = vpack.c.b16 %v741, %v733
  %v958 = vpack.c.b16 %v742, %v734
  %v959 = vpack.c.b16 %v743, %v735
  %v960 = vpack.c.b16 %v744, %v736
  %v961 = vpack.c.b16 %v745, %v737
  %v962 = vpack.c.b16 %v746, %v738
  %v963 = vpack.c.b16 %v755, %v747
  %v964 = vpack.c.b16 %v756, %v748
  %v965 = vpack.c.b16 %v757, %v749
  %v966 = vpack.c.b16 %v758, %v750
  %v967 = vpack.c.b16 %v759, %v751
  %v968 = vpack.c.b16 %v760, %v752
  %v969 = vpack.c.b16 %v761, %v753
  %v970 = vpack.c.b16 %v762, %v754
  %v971 = vpack.c.b16 %v771, %v763
  %v972 = vpack.c.b16 %v772, %v764
  %v973 = vpack.c.b16 %v773, %v765
  %v974 = vpack.c.b16 %v774, %v766
  %v975 = vpack.c.b16 %v775, %v767
  %v976 = vpack.c.b16 %v776, %v768
  %v977 = vpack.c.b16 %v777, %v769
  %v978 = vpack.c.b16 %v778, %v770
  %v979 = vpack.c.b16 %v787, %v779
  %v980 = vpack.c.b16 %v788, %v780
  %v981 = vpack.c.b16 %v789, %v781
  %v982 = vpack.c.b16 %v790, %v782
  %v983 = vpack.c.b16 %v791, %v783
  %v984 = vpack.c.b16 %v792, %v784
  %v985 = vpack.c.b16 %v793, %v785
  %v986 = vpack.c.b16 %v794, %v786
  %v987 = vpack.c.b16 %v803, %v795
  %v988 = vpack.c.b16 %v804, %v796
  %v989 = vpack.c.b16 %v805, %v797
  %v990 = vpack.c.b16 %v806, %v798
  %v991 = vpack.c.b16 %v807, %v799
  %v992 = vpack.c.b16 %v808, %v800
  %v993 = vpack.c.b16 %v809, %v801
  %v994 = vpack.c.b16 %v810, %v802
  %v995 = vpack.c.b16 %v819, %v811
  %v996 = vpack.c.b16 %v820, %v812
  %v997 = vpack.c.b16 %v821, %v813
  %v998 = vpack.c.b16 %v822, %v814
  %v999 = vpack.c.b16 %v823, %v815
  %v1000 = vpack.c.b16 %v824, %v816
  %v1001 = vpack.c.b16 %v825, %v817
  %v1002 = vpack.c.b16 %v826, %v818
  %v1003 = vpack.c.b16 %v835, %v827
  %v1004 = vpack.c.b16 %v836, %v828
  %v1005 = vpack.c.b16 %v837, %v829
  %v1006 = vpack.c.b16 %v838, %v830
  %v1007 = vpack.c.b16 %v839, %v831
  %v1008 = vpack.c.b16 %v840, %v832
  %v1009 = vpack.c.b16 %v841, %v833
  %v1010 = vpack.c.b16 %v842, %v834
  %v1011 = vpack.c.b16 %v851, %v843
  %v1012 = vpack.c.b16 %v852, %v844
  %v1013 = vpack.c.b16 %v853, %v845
  %v1014 = vpack.c.b16 %v854, %v846
  %v1015 = vpack.c.b16 %v855, %v847
  %v1016 = vpack.c.b16 %v856, %v848
  %v1017 = vpack.c.b16 %v857, %v849
  %v1018 = vpack.c.b16 %v858, %v850
  %v1019 = vpack.c.b16 %v867, %v859
  %v1020 = vpack.c.b16 %v868, %v860
  %v1021 = vpack.c.b16 %v869, %v861
  %v1022 = vpack.c.b16 %v870, %v862
  %v1023 = vpack.c.b16 %v871, %v863
  %v1024 = vpack.c.b16 %v872, %v864
  %v1025 = vpack.c.b16 %v873, %v865
  %v1026 = vpack.c.b16 %v874, %v866
  %v1027 = vpack.c.b16 %v883, %v875
  %v1028 = vpack.c.b16 %v884, %v876
  %v1029 = vpack.c.b16 %v885, %v877
  %v1030 = vpack.c.b16 %v886, %v878
  %v1031 = vpack.c.b16 %v887, %v879
  %v1032 = vpack.c.b16 %v888, %v880
  %v1033 = vpack.c.b16 %v889, %v881
  %v1034 = vpack.c.b16 %v890, %v882
  %v1035 = vpack.c.b16 %v899, %v891
  %v1036 = vpack.c.b16 %v900, %v892
  %v1037 = vpack.c.b16 %v901, %v893
  %v1038 = vpack.c.b16 %v902, %v894
  %v1039 = vpack.c.b16 %v903, %v895
  %v1040 = vpack.c.b16 %v904, %v896
  %v1041 = vpack.c.b16 %v905, %v897
  %v1042 = vpack.c.b16 %v906, %v898
  %v1043 = vpack.c.b16 %v915, %v907
  %v1044 = vpack.c.b16 %v916, %v908
  %v1045 = vpack.c.b16 %v917, %v909
  %v1046 = vpack.c.b16 %v918, %v910
  %v1047 = vpack.c.b16 %v919, %v911
  %v1048 = vpack.c.b16 %v920, %v912
  %v1049 = vpack.c.b16 %v921, %v913
  %v1050 = vpack.c.b16 %v922, %v914
  %1179 = vmatprep.subr.bf16.mxu0 %v924
  %1180 = vmatpush1.bf16.msra.mxu0 %v923
  %1181 = vmatprep.subr.bf16.mxu0 %v932
  %1182 = vmatpush1.bf16.msra.mxu0 %v931
  %1183 = vmatprep.subr.bf16.mxu0 %v940
  %1184 = vmatpush1.bf16.msra.mxu0 %v939
  %1185 = vmatprep.subr.bf16.mxu0 %v948
  %1186 = vmatpush1.bf16.msra.mxu0 %v947
  %1187 = vmatprep.subr.bf16.mxu0 %v956
  %1188 = vmatpush1.bf16.msra.mxu0 %v955
  %1189 = vmatprep.subr.bf16.mxu0 %v964
  %1190 = vmatpush1.bf16.msra.mxu0 %v963
  %1191 = vmatprep.subr.bf16.mxu0 %v972
  %1192 = vmatpush1.bf16.msra.mxu0 %v971
  %1193 = vmatprep.subr.bf16.mxu0 %v980
  %1194 = vmatpush1.bf16.msra.mxu0 %v979
  %1195 = vmatprep.subr.bf16.mxu0 %v988
  %1196 = vmatpush1.bf16.msra.mxu0 %v987
  %1197 = vmatprep.subr.bf16.mxu0 %v996
  %1198 = vmatpush1.bf16.msra.mxu0 %v995
  %1199 = vmatprep.subr.bf16.mxu0 %v1004
  %1200 = vmatpush1.bf16.msra.mxu0 %v1003
  %1201 = vmatprep.subr.bf16.mxu0 %v1012
  %1202 = vmatpush1.bf16.msra.mxu0 %v1011
  %1203 = vmatprep.subr.bf16.mxu0 %v1020
  %1204 = vmatpush1.bf16.msra.mxu0 %v1019
  %1205 = vmatprep.subr.bf16.mxu0 %v1028
  %1206 = vmatpush1.bf16.msra.mxu0 %v1027
  %1207 = vmatprep.subr.bf16.mxu0 %v1036
  %1208 = vmatpush1.bf16.msra.mxu0 %v1035
  %1209 = vmatprep.subr.bf16.mxu0 %v1044
  %1210 = vmatpush1.bf16.msra.mxu0 %v1043
  %1211 = vmatprep.mubr.bf16.mxu0 %v412
  %1212 = vmatmul.mubr.bf16.gmra.mrb[0].mxu0 %v411
  %v1213 = vpop.f32.mrb[0].mxu0
  %v1214 = vadd.f32 0.0, %v1213
  %v1215 = vpop.f32.mrb[0].mxu0
  %v1216 = vadd.f32 0.0, %v1215
  %v1217 = vpop.f32.mrb[0].mxu0
  %v1218 = vadd.f32 0.0, %v1217
  %v1219 = vpop.f32.mrb[0].mxu0
  %v1220 = vadd.f32 0.0, %v1219
  %1221 = vmatprep.mubr.bf16.mxu0 %v414
  %1222 = vmatmul.mubr.bf16.gmra.mrb[0].mxu0 %v413
  %v1223 = vpop.f32.mrb[0].mxu0
  %v1224 = vadd.f32 0.0, %v1223
  %v1225 = vpop.f32.mrb[0].mxu0
  %v1226 = vadd.f32 0.0, %v1225
  %v1227 = vpop.f32.mrb[0].mxu0
  %v1228 = vadd.f32 0.0, %v1227
  %v1229 = vpop.f32.mrb[0].mxu0
  %v1230 = vadd.f32 0.0, %v1229
  %1231 = vmatprep.mubr.bf16.mxu0 %v416
  %1232 = vmatmul.mubr.bf16.gmra.mrb[0].mxu0 %v415
  %v1233 = vpop.f32.mrb[0].mxu0
  %v1234 = vadd.f32 0.0, %v1233
  %v1235 = vpop.f32.mrb[0].mxu0
  %v1236 = vadd.f32 0.0, %v1235
  %v1237 = vpop.f32.mrb[0].mxu0
  %v1238 = vadd.f32 0.0, %v1237
  %v1239 = vpop.f32.mrb[0].mxu0
  %v1240 = vadd.f32 0.0, %v1239
  %1241 = vmatprep.mubr.bf16.mxu0 %v418
  %1242 = vmatmul.mubr.bf16.gmra.mrb[0].mxu0 %v417
  %v1243 = vpop.f32.mrb[0].mxu0
  %v1244 = vadd.f32 0.0, %v1243
  %v1245 = vpop.f32.mrb[0].mxu0
  %v1246 = vadd.f32 0.0, %v1245
  %v1247 = vpop.f32.mrb[0].mxu0
  %v1248 = vadd.f32 0.0, %v1247
  %v1249 = vpop.f32.mrb[0].mxu0
  %v1250 = vadd.f32 0.0, %v1249
  %1251 = vmatprep.mubr.bf16.mxu0 %v420
  %1252 = vmatmul.mubr.bf16.gmra.mrb[0].mxu0 %v419
  %v1253 = vpop.f32.mrb[0].mxu0
  %v1254 = vadd.f32 0.0, %v1253
  %v1255 = vpop.f32.mrb[0].mxu0
  %v1256 = vadd.f32 0.0, %v1255
  %v1257 = vpop.f32.mrb[0].mxu0
  %v1258 = vadd.f32 0.0, %v1257
  %v1259 = vpop.f32.mrb[0].mxu0
  %v1260 = vadd.f32 0.0, %v1259
  %1261 = vmatprep.mubr.bf16.mxu0 %v422
  %1262 = vmatmul.mubr.bf16.gmra.mrb[0].mxu0 %v421
  %v1263 = vpop.f32.mrb[0].mxu0
  %v1264 = vadd.f32 0.0, %v1263
  %v1265 = vpop.f32.mrb[0].mxu0
  %v1266 = vadd.f32 0.0, %v1265
  %v1267 = vpop.f32.mrb[0].mxu0
  %v1268 = vadd.f32 0.0, %v1267
  %v1269 = vpop.f32.mrb[0].mxu0
  %v1270 = vadd.f32 0.0, %v1269
  %1271 = vmatprep.mubr.bf16.mxu0 %v424
  %1272 = vmatmul.mubr.bf16.gmra.mrb[0].mxu0 %v423
  %v1273 = vpop.f32.mrb[0].mxu0
  %v1274 = vadd.f32 0.0, %v1273
  %v1275 = vpop.f32.mrb[0].mxu0
  %v1276 = vadd.f32 0.0, %v1275
  %v1277 = vpop.f32.mrb[0].mxu0
  %v1278 = vadd.f32 0.0, %v1277
  %v1279 = vpop.f32.mrb[0].mxu0
  %v1280 = vadd.f32 0.0, %v1279
  %1281 = vmatprep.mubr.bf16.mxu0 %v426
  %1282 = vmatmul.mubr.bf16.gmra.mrb[0].mxu0 %v425
  %v1283 = vpop.f32.mrb[0].mxu0
  %v1284 = vadd.f32 0.0, %v1283
  %v1285 = vpop.f32.mrb[0].mxu0
  %v1286 = vadd.f32 0.0, %v1285
  %v1287 = vpop.f32.mrb[0].mxu0
  %v1288 = vadd.f32 0.0, %v1287
  %v1289 = vpop.f32.mrb[0].mxu0
  %v1290 = vadd.f32 0.0, %v1289
  %1291 = vmatprep.mubr.bf16.mxu0 %v428
  %1292 = vmatmul.mubr.bf16.gmra.mrb[0].mxu0 %v427
  %v1293 = vpop.f32.mrb[0].mxu0
  %v1294 = vadd.f32 0.0, %v1293
  %v1295 = vpop.f32.mrb[0].mxu0
  %v1296 = vadd.f32 0.0, %v1295
  %v1297 = vpop.f32.mrb[0].mxu0
  %v1298 = vadd.f32 0.0, %v1297
  %v1299 = vpop.f32.mrb[0].mxu0
  %v1300 = vadd.f32 0.0, %v1299
  %1301 = vmatprep.mubr.bf16.mxu0 %v430
  %1302 = vmatmul.mubr.bf16.gmra.mrb[0].mxu0 %v429
  %v1303 = vpop.f32.mrb[0].mxu0
  %v1304 = vadd.f32 0.0, %v1303
  %v1305 = vpop.f32.mrb[0].mxu0
  %v1306 = vadd.f32 0.0, %v1305
  %v1307 = vpop.f32.mrb[0].mxu0
  %v1308 = vadd.f32 0.0, %v1307
  %v1309 = vpop.f32.mrb[0].mxu0
  %v1310 = vadd.f32 0.0, %v1309
  %1311 = vmatprep.mubr.bf16.mxu0 %v432
  %1312 = vmatmul.mubr.bf16.gmra.mrb[0].mxu0 %v431
  %v1313 = vpop.f32.mrb[0].mxu0
  %v1314 = vadd.f32 0.0, %v1313
  %v1315 = vpop.f32.mrb[0].mxu0
  %v1316 = vadd.f32 0.0, %v1315
  %v1317 = vpop.f32.mrb[0].mxu0
  %v1318 = vadd.f32 0.0, %v1317
  %v1319 = vpop.f32.mrb[0].mxu0
  %v1320 = vadd.f32 0.0, %v1319
  %1321 = vmatprep.mubr.bf16.mxu0 %v434
  %1322 = vmatmul.mubr.bf16.gmra.mrb[0].mxu0 %v433
  %v1323 = vpop.f32.mrb[0].mxu0
  %v1324 = vadd.f32 0.0, %v1323
  %v1325 = vpop.f32.mrb[0].mxu0
  %v1326 = vadd.f32 0.0, %v1325
  %v1327 = vpop.f32.mrb[0].mxu0
  %v1328 = vadd.f32 0.0, %v1327
  %v1329 = vpop.f32.mrb[0].mxu0
  %v1330 = vadd.f32 0.0, %v1329
  %1331 = vmatprep.mubr.bf16.mxu0 %v436
  %1332 = vmatmul.mubr.bf16.gmra.mrb[0].mxu0 %v435
  %v1333 = vpop.f32.mrb[0].mxu0
  %v1334 = vadd.f32 0.0, %v1333
  %v1335 = vpop.f32.mrb[0].mxu0
  %v1336 = vadd.f32 0.0, %v1335
  %v1337 = vpop.f32.mrb[0].mxu0
  %v1338 = vadd.f32 0.0, %v1337
  %v1339 = vpop.f32.mrb[0].mxu0
  %v1340 = vadd.f32 0.0, %v1339
  %1341 = vmatprep.mubr.bf16.mxu0 %v438
  %1342 = vmatmul.mubr.bf16.gmra.mrb[0].mxu0 %v437
  %v1343 = vpop.f32.mrb[0].mxu0
  %v1344 = vpop.f32.mrb[0].mxu0
  %v1345 = vpop.f32.mrb[0].mxu0
  %v1346 = vpop.f32.mrb[0].mxu0
  %1347 = vmatprep.mubr.bf16.mxu0 %v440
  %1348 = vmatmul.mubr.bf16.gmra.mrb[0].mxu0 %v439
  %v1349 = vpop.f32.mrb[0].mxu0
  %v1350 = vpop.f32.mrb[0].mxu0
  %v1351 = vpop.f32.mrb[0].mxu0
  %v1352 = vpop.f32.mrb[0].mxu0
  %1353 = vmatprep.mubr.bf16.mxu0 %v442
  %1354 = vmatmul.mubr.bf16.gmra.mrb[0].mxu0 %v441
  %v1355 = vpop.f32.mrb[0].mxu0
  %v1356 = vpop.f32.mrb[0].mxu0
  %v1357 = vpop.f32.mrb[0].mxu0
  %v1358 = vpop.f32.mrb[0].mxu0
  %1359 = vmatprep.mubr.bf16.mxu0 %v444
  %1360 = vmatmul.mubr.bf16.gmra.mrb[0].mxu0 %v443
  %v1361 = vpop.f32.mrb[0].mxu0
  %v1362 = vadd.f32 0.0, %v1361
  %v1363 = vpop.f32.mrb[0].mxu0
  %v1364 = vadd.f32 0.0, %v1363
  %v1365 = vpop.f32.mrb[0].mxu0
  %v1366 = vadd.f32 0.0, %v1365
  %v1367 = vpop.f32.mrb[0].mxu0
  %v1368 = vadd.f32 0.0, %v1367
  %1369 = vmatprep.mubr.bf16.mxu0 %v446
  %1370 = vmatmul.mubr.bf16.gmra.mrb[0].mxu0 %v445
  %v1371 = vpop.f32.mrb[0].mxu0
  %v1372 = vadd.f32 0.0, %v1371
  %v1373 = vpop.f32.mrb[0].mxu0
  %v1374 = vadd.f32 0.0, %v1373
  %v1375 = vpop.f32.mrb[0].mxu0
  %v1376 = vadd.f32 0.0, %v1375
  %v1377 = vpop.f32.mrb[0].mxu0
  %v1378 = vadd.f32 0.0, %v1377
  %1379 = vmatprep.mubr.bf16.mxu0 %v448
  %1380 = vmatmul.mubr.bf16.gmra.mrb[0].mxu0 %v447
  %v1381 = vpop.f32.mrb[0].mxu0
  %v1382 = vadd.f32 0.0, %v1381
  %v1383 = vpop.f32.mrb[0].mxu0
  %v1384 = vadd.f32 0.0, %v1383
  %v1385 = vpop.f32.mrb[0].mxu0
  %v1386 = vadd.f32 0.0, %v1385
  %v1387 = vpop.f32.mrb[0].mxu0
  %v1388 = vadd.f32 0.0, %v1387
  %1389 = vmatprep.mubr.bf16.mxu0 %v450
  %1390 = vmatmul.mubr.bf16.gmra.mrb[0].mxu0 %v449
  %v1391 = vpop.f32.mrb[0].mxu0
  %v1392 = vadd.f32 0.0, %v1391
  %v1393 = vpop.f32.mrb[0].mxu0
  %v1394 = vadd.f32 0.0, %v1393
  %v1395 = vpop.f32.mrb[0].mxu0
  %v1396 = vadd.f32 0.0, %v1395
  %v1397 = vpop.f32.mrb[0].mxu0
  %v1398 = vadd.f32 0.0, %v1397
  %1399 = vmatprep.mubr.bf16.mxu0 %v452
  %1400 = vmatmul.mubr.bf16.gmra.mrb[0].mxu0 %v451
  %v1401 = vpop.f32.mrb[0].mxu0
  %v1402 = vadd.f32 0.0, %v1401
  %v1403 = vpop.f32.mrb[0].mxu0
  %v1404 = vadd.f32 0.0, %v1403
  %v1405 = vpop.f32.mrb[0].mxu0
  %v1406 = vadd.f32 0.0, %v1405
  %v1407 = vpop.f32.mrb[0].mxu0
  %v1408 = vadd.f32 0.0, %v1407
  %1409 = vmatprep.mubr.bf16.mxu0 %v454
  %1410 = vmatmul.mubr.bf16.gmra.mrb[0].mxu0 %v453
  %v1411 = vpop.f32.mrb[0].mxu0
  %v1412 = vadd.f32 0.0, %v1411
  %v1413 = vpop.f32.mrb[0].mxu0
  %v1414 = vadd.f32 0.0, %v1413
  %v1415 = vpop.f32.mrb[0].mxu0
  %v1416 = vadd.f32 0.0, %v1415
  %v1417 = vpop.f32.mrb[0].mxu0
  %v1418 = vadd.f32 0.0, %v1417
  %1419 = vmatprep.mubr.bf16.mxu0 %v456
  %1420 = vmatmul.mubr.bf16.gmra.mrb[0].mxu0 %v455
  %v1421 = vpop.f32.mrb[0].mxu0
  %v1422 = vadd.f32 0.0, %v1421
  %v1423 = vpop.f32.mrb[0].mxu0
  %v1424 = vadd.f32 0.0, %v1423
  %v1425 = vpop.f32.mrb[0].mxu0
  %v1426 = vadd.f32 0.0, %v1425
  %v1427 = vpop.f32.mrb[0].mxu0
  %v1428 = vadd.f32 0.0, %v1427
  %1429 = vmatprep.mubr.bf16.mxu0 %v458
  %1430 = vmatmul.mubr.bf16.gmra.mrb[0].mxu0 %v457
  %v1431 = vpop.f32.mrb[0].mxu0
  %v1432 = vadd.f32 0.0, %v1431
  %v1433 = vpop.f32.mrb[0].mxu0
  %v1434 = vadd.f32 0.0, %v1433
  %v1435 = vpop.f32.mrb[0].mxu0
  %v1436 = vadd.f32 0.0, %v1435
  %v1437 = vpop.f32.mrb[0].mxu0
  %v1438 = vadd.f32 0.0, %v1437
  %1439 = vmatprep.mubr.bf16.mxu0 %v460
  %1440 = vmatmul.mubr.bf16.gmra.mrb[0].mxu0 %v459
  %v1441 = vpop.f32.mrb[0].mxu0
  %v1442 = vadd.f32 0.0, %v1441
  %v1443 = vpop.f32.mrb[0].mxu0
  %v1444 = vadd.f32 0.0, %v1443
  %v1445 = vpop.f32.mrb[0].mxu0
  %v1446 = vadd.f32 0.0, %v1445
  %v1447 = vpop.f32.mrb[0].mxu0
  %v1448 = vadd.f32 0.0, %v1447
  %1449 = vmatprep.mubr.bf16.mxu0 %v462
  %1450 = vmatmul.mubr.bf16.gmra.mrb[0].mxu0 %v461
  %v1451 = vpop.f32.mrb[0].mxu0
  %v1452 = vadd.f32 0.0, %v1451
  %v1453 = vpop.f32.mrb[0].mxu0
  %v1454 = vadd.f32 0.0, %v1453
  %v1455 = vpop.f32.mrb[0].mxu0
  %v1456 = vadd.f32 0.0, %v1455
  %v1457 = vpop.f32.mrb[0].mxu0
  %v1458 = vadd.f32 0.0, %v1457
  %1459 = vmatprep.mubr.bf16.mxu0 %v464
  %1460 = vmatmul.mubr.bf16.gmra.mrb[0].mxu0 %v463
  %v1461 = vpop.f32.mrb[0].mxu0
  %v1462 = vadd.f32 0.0, %v1461
  %v1463 = vpop.f32.mrb[0].mxu0
  %v1464 = vadd.f32 0.0, %v1463
  %v1465 = vpop.f32.mrb[0].mxu0
  %v1466 = vadd.f32 0.0, %v1465
  %v1467 = vpop.f32.mrb[0].mxu0
  %v1468 = vadd.f32 0.0, %v1467
  %1469 = vmatprep.mubr.bf16.mxu0 %v466
  %1470 = vmatmul.mubr.bf16.gmra.mrb[0].mxu0 %v465
  %v1471 = vpop.f32.mrb[0].mxu0
  %v1472 = vadd.f32 0.0, %v1471
  %v1473 = vpop.f32.mrb[0].mxu0
  %v1474 = vadd.f32 0.0, %v1473
  %v1475 = vpop.f32.mrb[0].mxu0
  %v1476 = vadd.f32 0.0, %v1475
  %v1477 = vpop.f32.mrb[0].mxu0
  %v1478 = vadd.f32 0.0, %v1477
  %1479 = vmatprep.mubr.bf16.mxu0 %v468
  %1480 = vmatmul.mubr.bf16.gmra.mrb[0].mxu0 %v467
  %v1481 = vpop.f32.mrb[0].mxu0
  %v1482 = vadd.f32 0.0, %v1481
  %v1483 = vpop.f32.mrb[0].mxu0
  %v1484 = vadd.f32 0.0, %v1483
  %v1485 = vpop.f32.mrb[0].mxu0
  %v1486 = vadd.f32 0.0, %v1485
  %v1487 = vpop.f32.mrb[0].mxu0
  %v1488 = vadd.f32 0.0, %v1487
  %1489 = vmatprep.mubr.bf16.mxu0 %v470
  %1490 = vmatmul.mubr.bf16.gmra.mrb[0].mxu0 %v469
  %v1491 = vpop.f32.mrb[0].mxu0
  %v1492 = vpop.f32.mrb[0].mxu0
  %v1493 = vpop.f32.mrb[0].mxu0
  %v1494 = vpop.f32.mrb[0].mxu0
  %1495 = vmatprep.mubr.bf16.mxu0 %v472
  %1496 = vmatmul.mubr.bf16.gmra.mrb[0].mxu0 %v471
  %v1497 = vpop.f32.mrb[0].mxu0
  %v1498 = vpop.f32.mrb[0].mxu0
  %v1499 = vpop.f32.mrb[0].mxu0
  %v1500 = vpop.f32.mrb[0].mxu0
  %1501 = vmatprep.mubr.bf16.mxu0 %v474
  %1502 = vmatmul.mubr.bf16.gmra.mrb[0].mxu0 %v473
  %v1503 = vpop.f32.mrb[0].mxu0
  %v1504 = vpop.f32.mrb[0].mxu0
  %v1505 = vpop.f32.mrb[0].mxu0
  %v1506 = vpop.f32.mrb[0].mxu0
  %1507 = vdwg.mxu0
  %1508 = vmatprep.subr.bf16.mxu0 %v926
  %1509 = vmatpush1.bf16.msra.mxu0 %v925
  %1510 = vmatprep.subr.bf16.mxu0 %v934
  %1511 = vmatpush1.bf16.msra.mxu0 %v933
  %1512 = vmatprep.subr.bf16.mxu0 %v942
  %1513 = vmatpush1.bf16.msra.mxu0 %v941
  %1514 = vmatprep.subr.bf16.mxu0 %v950
  %1515 = vmatpush1.bf16.msra.mxu0 %v949
  %1516 = vmatprep.subr.bf16.mxu0 %v958
  %1517 = vmatpush1.bf16.msra.mxu0 %v957
  %1518 = vmatprep.subr.bf16.mxu0 %v966
  %1519 = vmatpush1.bf16.msra.mxu0 %v965
  %1520 = vmatprep.subr.bf16.mxu0 %v974
  %1521 = vmatpush1.bf16.msra.mxu0 %v973
  %1522 = vmatprep.subr.bf16.mxu0 %v982
  %1523 = vmatpush1.bf16.msra.mxu0 %v981
  %1524 = vmatprep.subr.bf16.mxu0 %v990
  %1525 = vmatpush1.bf16.msra.mxu0 %v989
  %1526 = vmatprep.subr.bf16.mxu0 %v998
  %1527 = vmatpush1.bf16.msra.mxu0 %v997
  %1528 = vmatprep.subr.bf16.mxu0 %v1006
  %1529 = vmatpush1.bf16.msra.mxu0 %v1005
  %1530 = vmatprep.subr.bf16.mxu0 %v1014
  %1531 = vmatpush1.bf16.msra.mxu0 %v1013
  %1532 = vmatprep.subr.bf16.mxu0 %v1022
  %1533 = vmatpush1.bf16.msra.mxu0 %v1021
  %1534 = vmatprep.subr.bf16.mxu0 %v1030
  %1535 = vmatpush1.bf16.msra.mxu0 %v1029
  %1536 = vmatprep.subr.bf16.mxu0 %v1038
  %1537 = vmatpush1.bf16.msra.mxu0 %v1037
  %1538 = vmatprep.subr.bf16.mxu0 %v1046
  %1539 = vmatpush1.bf16.msra.mxu0 %v1045
  %1540 = vmatprep.mubr.bf16.mxu0 %v412
  %1541 = vmatmul.mubr.bf16.gmra.mrb[0].mxu0 %v411
  %v1542 = vpop.f32.mrb[0].mxu0
  %v1543 = vadd.f32 0.0, %v1542
  %v1544 = vpop.f32.mrb[0].mxu0
  %v1545 = vadd.f32 0.0, %v1544
  %v1546 = vpop.f32.mrb[0].mxu0
  %v1547 = vadd.f32 0.0, %v1546
  %v1548 = vpop.f32.mrb[0].mxu0
  %v1549 = vadd.f32 0.0, %v1548
  %1550 = vmatprep.mubr.bf16.mxu0 %v414
  %1551 = vmatmul.mubr.bf16.gmra.mrb[0].mxu0 %v413
  %v1552 = vpop.f32.mrb[0].mxu0
  %v1553 = vadd.f32 0.0, %v1552
  %v1554 = vpop.f32.mrb[0].mxu0
  %v1555 = vadd.f32 0.0, %v1554
  %v1556 = vpop.f32.mrb[0].mxu0
  %v1557 = vadd.f32 0.0, %v1556
  %v1558 = vpop.f32.mrb[0].mxu0
  %v1559 = vadd.f32 0.0, %v1558
  %1560 = vmatprep.mubr.bf16.mxu0 %v416
  %1561 = vmatmul.mubr.bf16.gmra.mrb[0].mxu0 %v415
  %v1562 = vpop.f32.mrb[0].mxu0
  %v1563 = vadd.f32 0.0, %v1562
  %v1564 = vpop.f32.mrb[0].mxu0
  %v1565 = vadd.f32 0.0, %v1564
  %v1566 = vpop.f32.mrb[0].mxu0
  %v1567 = vadd.f32 0.0, %v1566
  %v1568 = vpop.f32.mrb[0].mxu0
  %v1569 = vadd.f32 0.0, %v1568
  %1570 = vmatprep.mubr.bf16.mxu0 %v418
  %1571 = vmatmul.mubr.bf16.gmra.mrb[0].mxu0 %v417
  %v1572 = vpop.f32.mrb[0].mxu0
  %v1573 = vadd.f32 0.0, %v1572
  %v1574 = vpop.f32.mrb[0].mxu0
  %v1575 = vadd.f32 0.0, %v1574
  %v1576 = vpop.f32.mrb[0].mxu0
  %v1577 = vadd.f32 0.0, %v1576
  %v1578 = vpop.f32.mrb[0].mxu0
  %v1579 = vadd.f32 0.0, %v1578
  %1580 = vmatprep.mubr.bf16.mxu0 %v420
  %1581 = vmatmul.mubr.bf16.gmra.mrb[0].mxu0 %v419
  %v1582 = vpop.f32.mrb[0].mxu0
  %v1583 = vadd.f32 0.0, %v1582
  %v1584 = vpop.f32.mrb[0].mxu0
  %v1585 = vadd.f32 0.0, %v1584
  %v1586 = vpop.f32.mrb[0].mxu0
  %v1587 = vadd.f32 0.0, %v1586
  %v1588 = vpop.f32.mrb[0].mxu0
  %v1589 = vadd.f32 0.0, %v1588
  %1590 = vmatprep.mubr.bf16.mxu0 %v422
  %1591 = vmatmul.mubr.bf16.gmra.mrb[0].mxu0 %v421
  %v1592 = vpop.f32.mrb[0].mxu0
  %v1593 = vadd.f32 0.0, %v1592
  %v1594 = vpop.f32.mrb[0].mxu0
  %v1595 = vadd.f32 0.0, %v1594
  %v1596 = vpop.f32.mrb[0].mxu0
  %v1597 = vadd.f32 0.0, %v1596
  %v1598 = vpop.f32.mrb[0].mxu0
  %v1599 = vadd.f32 0.0, %v1598
  %1600 = vmatprep.mubr.bf16.mxu0 %v424
  %1601 = vmatmul.mubr.bf16.gmra.mrb[0].mxu0 %v423
  %v1602 = vpop.f32.mrb[0].mxu0
  %v1603 = vadd.f32 0.0, %v1602
  %v1604 = vpop.f32.mrb[0].mxu0
  %v1605 = vadd.f32 0.0, %v1604
  %v1606 = vpop.f32.mrb[0].mxu0
  %v1607 = vadd.f32 0.0, %v1606
  %v1608 = vpop.f32.mrb[0].mxu0
  %v1609 = vadd.f32 0.0, %v1608
  %1610 = vmatprep.mubr.bf16.mxu0 %v426
  %1611 = vmatmul.mubr.bf16.gmra.mrb[0].mxu0 %v425
  %v1612 = vpop.f32.mrb[0].mxu0
  %v1613 = vadd.f32 0.0, %v1612
  %v1614 = vpop.f32.mrb[0].mxu0
  %v1615 = vadd.f32 0.0, %v1614
  %v1616 = vpop.f32.mrb[0].mxu0
  %v1617 = vadd.f32 0.0, %v1616
  %v1618 = vpop.f32.mrb[0].mxu0
  %v1619 = vadd.f32 0.0, %v1618
  %1620 = vmatprep.mubr.bf16.mxu0 %v428
  %1621 = vmatmul.mubr.bf16.gmra.mrb[0].mxu0 %v427
  %v1622 = vpop.f32.mrb[0].mxu0
  %v1623 = vadd.f32 0.0, %v1622
  %v1624 = vpop.f32.mrb[0].mxu0
  %v1625 = vadd.f32 0.0, %v1624
  %v1626 = vpop.f32.mrb[0].mxu0
  %v1627 = vadd.f32 0.0, %v1626
  %v1628 = vpop.f32.mrb[0].mxu0
  %v1629 = vadd.f32 0.0, %v1628
  %1630 = vmatprep.mubr.bf16.mxu0 %v430
  %1631 = vmatmul.mubr.bf16.gmra.mrb[0].mxu0 %v429
  %v1632 = vpop.f32.mrb[0].mxu0
  %v1633 = vadd.f32 0.0, %v1632
  %v1634 = vpop.f32.mrb[0].mxu0
  %v1635 = vadd.f32 0.0, %v1634
  %v1636 = vpop.f32.mrb[0].mxu0
  %v1637 = vadd.f32 0.0, %v1636
  %v1638 = vpop.f32.mrb[0].mxu0
  %v1639 = vadd.f32 0.0, %v1638
  %1640 = vmatprep.mubr.bf16.mxu0 %v432
  %1641 = vmatmul.mubr.bf16.gmra.mrb[0].mxu0 %v431
  %v1642 = vpop.f32.mrb[0].mxu0
  %v1643 = vadd.f32 0.0, %v1642
  %v1644 = vpop.f32.mrb[0].mxu0
  %v1645 = vadd.f32 0.0, %v1644
  %v1646 = vpop.f32.mrb[0].mxu0
  %v1647 = vadd.f32 0.0, %v1646
  %v1648 = vpop.f32.mrb[0].mxu0
  %v1649 = vadd.f32 0.0, %v1648
  %1650 = vmatprep.mubr.bf16.mxu0 %v434
  %1651 = vmatmul.mubr.bf16.gmra.mrb[0].mxu0 %v433
  %v1652 = vpop.f32.mrb[0].mxu0
  %v1653 = vadd.f32 0.0, %v1652
  %v1654 = vpop.f32.mrb[0].mxu0
  %v1655 = vadd.f32 0.0, %v1654
  %v1656 = vpop.f32.mrb[0].mxu0
  %v1657 = vadd.f32 0.0, %v1656
  %v1658 = vpop.f32.mrb[0].mxu0
  %v1659 = vadd.f32 0.0, %v1658
  %1660 = vmatprep.mubr.bf16.mxu0 %v436
  %1661 = vmatmul.mubr.bf16.gmra.mrb[0].mxu0 %v435
  %v1662 = vpop.f32.mrb[0].mxu0
  %v1663 = vadd.f32 0.0, %v1662
  %v1664 = vpop.f32.mrb[0].mxu0
  %v1665 = vadd.f32 0.0, %v1664
  %v1666 = vpop.f32.mrb[0].mxu0
  %v1667 = vadd.f32 0.0, %v1666
  %v1668 = vpop.f32.mrb[0].mxu0
  %v1669 = vadd.f32 0.0, %v1668
  %1670 = vmatprep.mubr.bf16.mxu0 %v438
  %1671 = vmatmul.mubr.bf16.gmra.mrb[0].mxu0 %v437
  %v1672 = vpop.f32.mrb[0].mxu0
  %v1673 = vpop.f32.mrb[0].mxu0
  %v1674 = vpop.f32.mrb[0].mxu0
  %v1675 = vpop.f32.mrb[0].mxu0
  %1676 = vmatprep.mubr.bf16.mxu0 %v440
  %1677 = vmatmul.mubr.bf16.gmra.mrb[0].mxu0 %v439
  %v1678 = vpop.f32.mrb[0].mxu0
  %v1679 = vpop.f32.mrb[0].mxu0
  %v1680 = vpop.f32.mrb[0].mxu0
  %v1681 = vpop.f32.mrb[0].mxu0
  %1682 = vmatprep.mubr.bf16.mxu0 %v442
  %1683 = vmatmul.mubr.bf16.gmra.mrb[0].mxu0 %v441
  %v1684 = vpop.f32.mrb[0].mxu0
  %v1685 = vpop.f32.mrb[0].mxu0
  %v1686 = vpop.f32.mrb[0].mxu0
  %v1687 = vpop.f32.mrb[0].mxu0
  %1688 = vmatprep.mubr.bf16.mxu0 %v444
  %1689 = vmatmul.mubr.bf16.gmra.mrb[0].mxu0 %v443
  %v1690 = vpop.f32.mrb[0].mxu0
  %v1691 = vadd.f32 0.0, %v1690
  %v1692 = vpop.f32.mrb[0].mxu0
  %v1693 = vadd.f32 0.0, %v1692
  %v1694 = vpop.f32.mrb[0].mxu0
  %v1695 = vadd.f32 0.0, %v1694
  %v1696 = vpop.f32.mrb[0].mxu0
  %v1697 = vadd.f32 0.0, %v1696
  %1698 = vmatprep.mubr.bf16.mxu0 %v446
  %1699 = vmatmul.mubr.bf16.gmra.mrb[0].mxu0 %v445
  %v1700 = vpop.f32.mrb[0].mxu0
  %v1701 = vadd.f32 0.0, %v1700
  %v1702 = vpop.f32.mrb[0].mxu0
  %v1703 = vadd.f32 0.0, %v1702
  %v1704 = vpop.f32.mrb[0].mxu0
  %v1705 = vadd.f32 0.0, %v1704
  %v1706 = vpop.f32.mrb[0].mxu0
  %v1707 = vadd.f32 0.0, %v1706
  %1708 = vmatprep.mubr.bf16.mxu0 %v448
  %1709 = vmatmul.mubr.bf16.gmra.mrb[0].mxu0 %v447
  %v1710 = vpop.f32.mrb[0].mxu0
  %v1711 = vadd.f32 0.0, %v1710
  %v1712 = vpop.f32.mrb[0].mxu0
  %v1713 = vadd.f32 0.0, %v1712
  %v1714 = vpop.f32.mrb[0].mxu0
  %v1715 = vadd.f32 0.0, %v1714
  %v1716 = vpop.f32.mrb[0].mxu0
  %v1717 = vadd.f32 0.0, %v1716
  %1718 = vmatprep.mubr.bf16.mxu0 %v450
  %1719 = vmatmul.mubr.bf16.gmra.mrb[0].mxu0 %v449
  %v1720 = vpop.f32.mrb[0].mxu0
  %v1721 = vadd.f32 0.0, %v1720
  %v1722 = vpop.f32.mrb[0].mxu0
  %v1723 = vadd.f32 0.0, %v1722
  %v1724 = vpop.f32.mrb[0].mxu0
  %v1725 = vadd.f32 0.0, %v1724
  %v1726 = vpop.f32.mrb[0].mxu0
  %v1727 = vadd.f32 0.0, %v1726
  %1728 = vmatprep.mubr.bf16.mxu0 %v452
  %1729 = vmatmul.mubr.bf16.gmra.mrb[0].mxu0 %v451
  %v1730 = vpop.f32.mrb[0].mxu0
  %v1731 = vadd.f32 0.0, %v1730
  %v1732 = vpop.f32.mrb[0].mxu0
  %v1733 = vadd.f32 0.0, %v1732
  %v1734 = vpop.f32.mrb[0].mxu0
  %v1735 = vadd.f32 0.0, %v1734
  %v1736 = vpop.f32.mrb[0].mxu0
  %v1737 = vadd.f32 0.0, %v1736
  %1738 = vmatprep.mubr.bf16.mxu0 %v454
  %1739 = vmatmul.mubr.bf16.gmra.mrb[0].mxu0 %v453
  %v1740 = vpop.f32.mrb[0].mxu0
  %v1741 = vadd.f32 0.0, %v1740
  %v1742 = vpop.f32.mrb[0].mxu0
  %v1743 = vadd.f32 0.0, %v1742
  %v1744 = vpop.f32.mrb[0].mxu0
  %v1745 = vadd.f32 0.0, %v1744
  %v1746 = vpop.f32.mrb[0].mxu0
  %v1747 = vadd.f32 0.0, %v1746
  %1748 = vmatprep.mubr.bf16.mxu0 %v456
  %1749 = vmatmul.mubr.bf16.gmra.mrb[0].mxu0 %v455
  %v1750 = vpop.f32.mrb[0].mxu0
  %v1751 = vadd.f32 0.0, %v1750
  %v1752 = vpop.f32.mrb[0].mxu0
  %v1753 = vadd.f32 0.0, %v1752
  %v1754 = vpop.f32.mrb[0].mxu0
  %v1755 = vadd.f32 0.0, %v1754
  %v1756 = vpop.f32.mrb[0].mxu0
  %v1757 = vadd.f32 0.0, %v1756
  %1758 = vmatprep.mubr.bf16.mxu0 %v458
  %1759 = vmatmul.mubr.bf16.gmra.mrb[0].mxu0 %v457
  %v1760 = vpop.f32.mrb[0].mxu0
  %v1761 = vadd.f32 0.0, %v1760
  %v1762 = vpop.f32.mrb[0].mxu0
  %v1763 = vadd.f32 0.0, %v1762
  %v1764 = vpop.f32.mrb[0].mxu0
  %v1765 = vadd.f32 0.0, %v1764
  %v1766 = vpop.f32.mrb[0].mxu0
  %v1767 = vadd.f32 0.0, %v1766
  %1768 = vmatprep.mubr.bf16.mxu0 %v460
  %1769 = vmatmul.mubr.bf16.gmra.mrb[0].mxu0 %v459
  %v1770 = vpop.f32.mrb[0].mxu0
  %v1771 = vadd.f32 0.0, %v1770
  %v1772 = vpop.f32.mrb[0].mxu0
  %v1773 = vadd.f32 0.0, %v1772
  %v1774 = vpop.f32.mrb[0].mxu0
  %v1775 = vadd.f32 0.0, %v1774
  %v1776 = vpop.f32.mrb[0].mxu0
  %v1777 = vadd.f32 0.0, %v1776
  %1778 = vmatprep.mubr.bf16.mxu0 %v462
  %1779 = vmatmul.mubr.bf16.gmra.mrb[0].mxu0 %v461
  %v1780 = vpop.f32.mrb[0].mxu0
  %v1781 = vadd.f32 0.0, %v1780
  %v1782 = vpop.f32.mrb[0].mxu0
  %v1783 = vadd.f32 0.0, %v1782
  %v1784 = vpop.f32.mrb[0].mxu0
  %v1785 = vadd.f32 0.0, %v1784
  %v1786 = vpop.f32.mrb[0].mxu0
  %v1787 = vadd.f32 0.0, %v1786
  %1788 = vmatprep.mubr.bf16.mxu0 %v464
  %1789 = vmatmul.mubr.bf16.gmra.mrb[0].mxu0 %v463
  %v1790 = vpop.f32.mrb[0].mxu0
  %v1791 = vadd.f32 0.0, %v1790
  %v1792 = vpop.f32.mrb[0].mxu0
  %v1793 = vadd.f32 0.0, %v1792
  %v1794 = vpop.f32.mrb[0].mxu0
  %v1795 = vadd.f32 0.0, %v1794
  %v1796 = vpop.f32.mrb[0].mxu0
  %v1797 = vadd.f32 0.0, %v1796
  %1798 = vmatprep.mubr.bf16.mxu0 %v466
  %1799 = vmatmul.mubr.bf16.gmra.mrb[0].mxu0 %v465
  %v1800 = vpop.f32.mrb[0].mxu0
  %v1801 = vadd.f32 0.0, %v1800
  %v1802 = vpop.f32.mrb[0].mxu0
  %v1803 = vadd.f32 0.0, %v1802
  %v1804 = vpop.f32.mrb[0].mxu0
  %v1805 = vadd.f32 0.0, %v1804
  %v1806 = vpop.f32.mrb[0].mxu0
  %v1807 = vadd.f32 0.0, %v1806
  %1808 = vmatprep.mubr.bf16.mxu0 %v468
  %1809 = vmatmul.mubr.bf16.gmra.mrb[0].mxu0 %v467
  %v1810 = vpop.f32.mrb[0].mxu0
  %v1811 = vadd.f32 0.0, %v1810
  %v1812 = vpop.f32.mrb[0].mxu0
  %v1813 = vadd.f32 0.0, %v1812
  %v1814 = vpop.f32.mrb[0].mxu0
  %v1815 = vadd.f32 0.0, %v1814
  %v1816 = vpop.f32.mrb[0].mxu0
  %v1817 = vadd.f32 0.0, %v1816
  %1818 = vmatprep.mubr.bf16.mxu0 %v470
  %1819 = vmatmul.mubr.bf16.gmra.mrb[0].mxu0 %v469
  %v1820 = vpop.f32.mrb[0].mxu0
  %v1821 = vpop.f32.mrb[0].mxu0
  %v1822 = vpop.f32.mrb[0].mxu0
  %v1823 = vpop.f32.mrb[0].mxu0
  %1824 = vmatprep.mubr.bf16.mxu0 %v472
  %1825 = vmatmul.mubr.bf16.gmra.mrb[0].mxu0 %v471
  %v1826 = vpop.f32.mrb[0].mxu0
  %v1827 = vpop.f32.mrb[0].mxu0
  %v1828 = vpop.f32.mrb[0].mxu0
  %v1829 = vpop.f32.mrb[0].mxu0
  %1830 = vmatprep.mubr.bf16.mxu0 %v474
  %1831 = vmatmul.mubr.bf16.gmra.mrb[0].mxu0 %v473
  %v1832 = vpop.f32.mrb[0].mxu0
  %v1833 = vpop.f32.mrb[0].mxu0
  %v1834 = vpop.f32.mrb[0].mxu0
  %v1835 = vpop.f32.mrb[0].mxu0
  %1836 = vdwg.mxu0
  %1837 = vmatprep.subr.bf16.mxu0 %v928
  %1838 = vmatpush1.bf16.msra.mxu0 %v927
  %1839 = vmatprep.subr.bf16.mxu0 %v936
  %1840 = vmatpush1.bf16.msra.mxu0 %v935
  %1841 = vmatprep.subr.bf16.mxu0 %v944
  %1842 = vmatpush1.bf16.msra.mxu0 %v943
  %1843 = vmatprep.subr.bf16.mxu0 %v952
  %1844 = vmatpush1.bf16.msra.mxu0 %v951
  %1845 = vmatprep.subr.bf16.mxu0 %v960
  %1846 = vmatpush1.bf16.msra.mxu0 %v959
  %1847 = vmatprep.subr.bf16.mxu0 %v968
  %1848 = vmatpush1.bf16.msra.mxu0 %v967
  %1849 = vmatprep.subr.bf16.mxu0 %v976
  %1850 = vmatpush1.bf16.msra.mxu0 %v975
  %1851 = vmatprep.subr.bf16.mxu0 %v984
  %1852 = vmatpush1.bf16.msra.mxu0 %v983
  %1853 = vmatprep.subr.bf16.mxu0 %v992
  %1854 = vmatpush1.bf16.msra.mxu0 %v991
  %1855 = vmatprep.subr.bf16.mxu0 %v1000
  %1856 = vmatpush1.bf16.msra.mxu0 %v999
  %1857 = vmatprep.subr.bf16.mxu0 %v1008
  %1858 = vmatpush1.bf16.msra.mxu0 %v1007
  %1859 = vmatprep.subr.bf16.mxu0 %v1016
  %1860 = vmatpush1.bf16.msra.mxu0 %v1015
  %1861 = vmatprep.subr.bf16.mxu0 %v1024
  %1862 = vmatpush1.bf16.msra.mxu0 %v1023
  %1863 = vmatprep.subr.bf16.mxu0 %v1032
  %1864 = vmatpush1.bf16.msra.mxu0 %v1031
  %1865 = vmatprep.subr.bf16.mxu0 %v1040
  %1866 = vmatpush1.bf16.msra.mxu0 %v1039
  %1867 = vmatprep.subr.bf16.mxu0 %v1048
  %1868 = vmatpush1.bf16.msra.mxu0 %v1047
  %1869 = vmatprep.mubr.bf16.mxu0 %v412
  %1870 = vmatmul.mubr.bf16.gmra.mrb[0].mxu0 %v411
  %v1871 = vpop.f32.mrb[0].mxu0
  %v1872 = vadd.f32 0.0, %v1871
  %v1873 = vpop.f32.mrb[0].mxu0
  %v1874 = vadd.f32 0.0, %v1873
  %v1875 = vpop.f32.mrb[0].mxu0
  %v1876 = vadd.f32 0.0, %v1875
  %v1877 = vpop.f32.mrb[0].mxu0
  %v1878 = vadd.f32 0.0, %v1877
  %1879 = vmatprep.mubr.bf16.mxu0 %v414
  %1880 = vmatmul.mubr.bf16.gmra.mrb[0].mxu0 %v413
  %v1881 = vpop.f32.mrb[0].mxu0
  %v1882 = vadd.f32 0.0, %v1881
  %v1883 = vpop.f32.mrb[0].mxu0
  %v1884 = vadd.f32 0.0, %v1883
  %v1885 = vpop.f32.mrb[0].mxu0
  %v1886 = vadd.f32 0.0, %v1885
  %v1887 = vpop.f32.mrb[0].mxu0
  %v1888 = vadd.f32 0.0, %v1887
  %1889 = vmatprep.mubr.bf16.mxu0 %v416
  %1890 = vmatmul.mubr.bf16.gmra.mrb[0].mxu0 %v415
  %v1891 = vpop.f32.mrb[0].mxu0
  %v1892 = vadd.f32 0.0, %v1891
  %v1893 = vpop.f32.mrb[0].mxu0
  %v1894 = vadd.f32 0.0, %v1893
  %v1895 = vpop.f32.mrb[0].mxu0
  %v1896 = vadd.f32 0.0, %v1895
  %v1897 = vpop.f32.mrb[0].mxu0
  %v1898 = vadd.f32 0.0, %v1897
  %1899 = vmatprep.mubr.bf16.mxu0 %v418
  %1900 = vmatmul.mubr.bf16.gmra.mrb[0].mxu0 %v417
  %v1901 = vpop.f32.mrb[0].mxu0
  %v1902 = vadd.f32 0.0, %v1901
  %v1903 = vpop.f32.mrb[0].mxu0
  %v1904 = vadd.f32 0.0, %v1903
  %v1905 = vpop.f32.mrb[0].mxu0
  %v1906 = vadd.f32 0.0, %v1905
  %v1907 = vpop.f32.mrb[0].mxu0
  %v1908 = vadd.f32 0.0, %v1907
  %1909 = vmatprep.mubr.bf16.mxu0 %v420
  %1910 = vmatmul.mubr.bf16.gmra.mrb[0].mxu0 %v419
  %v1911 = vpop.f32.mrb[0].mxu0
  %v1912 = vadd.f32 0.0, %v1911
  %v1913 = vpop.f32.mrb[0].mxu0
  %v1914 = vadd.f32 0.0, %v1913
  %v1915 = vpop.f32.mrb[0].mxu0
  %v1916 = vadd.f32 0.0, %v1915
  %v1917 = vpop.f32.mrb[0].mxu0
  %v1918 = vadd.f32 0.0, %v1917
  %1919 = vmatprep.mubr.bf16.mxu0 %v422
  %1920 = vmatmul.mubr.bf16.gmra.mrb[0].mxu0 %v421
  %v1921 = vpop.f32.mrb[0].mxu0
  %v1922 = vadd.f32 0.0, %v1921
  %v1923 = vpop.f32.mrb[0].mxu0
  %v1924 = vadd.f32 0.0, %v1923
  %v1925 = vpop.f32.mrb[0].mxu0
  %v1926 = vadd.f32 0.0, %v1925
  %v1927 = vpop.f32.mrb[0].mxu0
  %v1928 = vadd.f32 0.0, %v1927
  %1929 = vmatprep.mubr.bf16.mxu0 %v424
  %1930 = vmatmul.mubr.bf16.gmra.mrb[0].mxu0 %v423
  %v1931 = vpop.f32.mrb[0].mxu0
  %v1932 = vadd.f32 0.0, %v1931
  %v1933 = vpop.f32.mrb[0].mxu0
  %v1934 = vadd.f32 0.0, %v1933
  %v1935 = vpop.f32.mrb[0].mxu0
  %v1936 = vadd.f32 0.0, %v1935
  %v1937 = vpop.f32.mrb[0].mxu0
  %v1938 = vadd.f32 0.0, %v1937
  %1939 = vmatprep.mubr.bf16.mxu0 %v426
  %1940 = vmatmul.mubr.bf16.gmra.mrb[0].mxu0 %v425
  %v1941 = vpop.f32.mrb[0].mxu0
  %v1942 = vadd.f32 0.0, %v1941
  %v1943 = vpop.f32.mrb[0].mxu0
  %v1944 = vadd.f32 0.0, %v1943
  %v1945 = vpop.f32.mrb[0].mxu0
  %v1946 = vadd.f32 0.0, %v1945
  %v1947 = vpop.f32.mrb[0].mxu0
  %v1948 = vadd.f32 0.0, %v1947
  %1949 = vmatprep.mubr.bf16.mxu0 %v428
  %1950 = vmatmul.mubr.bf16.gmra.mrb[0].mxu0 %v427
  %v1951 = vpop.f32.mrb[0].mxu0
  %v1952 = vadd.f32 0.0, %v1951
  %v1953 = vpop.f32.mrb[0].mxu0
  %v1954 = vadd.f32 0.0, %v1953
  %v1955 = vpop.f32.mrb[0].mxu0
  %v1956 = vadd.f32 0.0, %v1955
  %v1957 = vpop.f32.mrb[0].mxu0
  %v1958 = vadd.f32 0.0, %v1957
  %1959 = vmatprep.mubr.bf16.mxu0 %v430
  %1960 = vmatmul.mubr.bf16.gmra.mrb[0].mxu0 %v429
  %v1961 = vpop.f32.mrb[0].mxu0
  %v1962 = vadd.f32 0.0, %v1961
  %v1963 = vpop.f32.mrb[0].mxu0
  %v1964 = vadd.f32 0.0, %v1963
  %v1965 = vpop.f32.mrb[0].mxu0
  %v1966 = vadd.f32 0.0, %v1965
  %v1967 = vpop.f32.mrb[0].mxu0
  %v1968 = vadd.f32 0.0, %v1967
  %1969 = vmatprep.mubr.bf16.mxu0 %v432
  %1970 = vmatmul.mubr.bf16.gmra.mrb[0].mxu0 %v431
  %v1971 = vpop.f32.mrb[0].mxu0
  %v1972 = vadd.f32 0.0, %v1971
  %v1973 = vpop.f32.mrb[0].mxu0
  %v1974 = vadd.f32 0.0, %v1973
  %v1975 = vpop.f32.mrb[0].mxu0
  %v1976 = vadd.f32 0.0, %v1975
  %v1977 = vpop.f32.mrb[0].mxu0
  %v1978 = vadd.f32 0.0, %v1977
  %1979 = vmatprep.mubr.bf16.mxu0 %v434
  %1980 = vmatmul.mubr.bf16.gmra.mrb[0].mxu0 %v433
  %v1981 = vpop.f32.mrb[0].mxu0
  %v1982 = vadd.f32 0.0, %v1981
  %v1983 = vpop.f32.mrb[0].mxu0
  %v1984 = vadd.f32 0.0, %v1983
  %v1985 = vpop.f32.mrb[0].mxu0
  %v1986 = vadd.f32 0.0, %v1985
  %v1987 = vpop.f32.mrb[0].mxu0
  %v1988 = vadd.f32 0.0, %v1987
  %1989 = vmatprep.mubr.bf16.mxu0 %v436
  %1990 = vmatmul.mubr.bf16.gmra.mrb[0].mxu0 %v435
  %v1991 = vpop.f32.mrb[0].mxu0
  %v1992 = vadd.f32 0.0, %v1991
  %v1993 = vpop.f32.mrb[0].mxu0
  %v1994 = vadd.f32 0.0, %v1993
  %v1995 = vpop.f32.mrb[0].mxu0
  %v1996 = vadd.f32 0.0, %v1995
  %v1997 = vpop.f32.mrb[0].mxu0
  %v1998 = vadd.f32 0.0, %v1997
  %1999 = vmatprep.mubr.bf16.mxu0 %v438
  %2000 = vmatmul.mubr.bf16.gmra.mrb[0].mxu0 %v437
  %v2001 = vpop.f32.mrb[0].mxu0
  %v2002 = vpop.f32.mrb[0].mxu0
  %v2003 = vpop.f32.mrb[0].mxu0
  %v2004 = vpop.f32.mrb[0].mxu0
  %2005 = vmatprep.mubr.bf16.mxu0 %v440
  %2006 = vmatmul.mubr.bf16.gmra.mrb[0].mxu0 %v439
  %v2007 = vpop.f32.mrb[0].mxu0
  %v2008 = vpop.f32.mrb[0].mxu0
  %v2009 = vpop.f32.mrb[0].mxu0
  %v2010 = vpop.f32.mrb[0].mxu0
  %2011 = vmatprep.mubr.bf16.mxu0 %v442
  %2012 = vmatmul.mubr.bf16.gmra.mrb[0].mxu0 %v441
  %v2013 = vpop.f32.mrb[0].mxu0
  %v2014 = vpop.f32.mrb[0].mxu0
  %v2015 = vpop.f32.mrb[0].mxu0
  %v2016 = vpop.f32.mrb[0].mxu0
  %2017 = vmatprep.mubr.bf16.mxu0 %v444
  %2018 = vmatmul.mubr.bf16.gmra.mrb[0].mxu0 %v443
  %v2019 = vpop.f32.mrb[0].mxu0
  %v2020 = vadd.f32 0.0, %v2019
  %v2021 = vpop.f32.mrb[0].mxu0
  %v2022 = vadd.f32 0.0, %v2021
  %v2023 = vpop.f32.mrb[0].mxu0
  %v2024 = vadd.f32 0.0, %v2023
  %v2025 = vpop.f32.mrb[0].mxu0
  %v2026 = vadd.f32 0.0, %v2025
  %2027 = vmatprep.mubr.bf16.mxu0 %v446
  %2028 = vmatmul.mubr.bf16.gmra.mrb[0].mxu0 %v445
  %v2029 = vpop.f32.mrb[0].mxu0
  %v2030 = vadd.f32 0.0, %v2029
  %v2031 = vpop.f32.mrb[0].mxu0
  %v2032 = vadd.f32 0.0, %v2031
  %v2033 = vpop.f32.mrb[0].mxu0
  %v2034 = vadd.f32 0.0, %v2033
  %v2035 = vpop.f32.mrb[0].mxu0
  %v2036 = vadd.f32 0.0, %v2035
  %2037 = vmatprep.mubr.bf16.mxu0 %v448
  %2038 = vmatmul.mubr.bf16.gmra.mrb[0].mxu0 %v447
  %v2039 = vpop.f32.mrb[0].mxu0
  %v2040 = vadd.f32 0.0, %v2039
  %v2041 = vpop.f32.mrb[0].mxu0
  %v2042 = vadd.f32 0.0, %v2041
  %v2043 = vpop.f32.mrb[0].mxu0
  %v2044 = vadd.f32 0.0, %v2043
  %v2045 = vpop.f32.mrb[0].mxu0
  %v2046 = vadd.f32 0.0, %v2045
  %2047 = vmatprep.mubr.bf16.mxu0 %v450
  %2048 = vmatmul.mubr.bf16.gmra.mrb[0].mxu0 %v449
  %v2049 = vpop.f32.mrb[0].mxu0
  %v2050 = vadd.f32 0.0, %v2049
  %v2051 = vpop.f32.mrb[0].mxu0
  %v2052 = vadd.f32 0.0, %v2051
  %v2053 = vpop.f32.mrb[0].mxu0
  %v2054 = vadd.f32 0.0, %v2053
  %v2055 = vpop.f32.mrb[0].mxu0
  %v2056 = vadd.f32 0.0, %v2055
  %2057 = vmatprep.mubr.bf16.mxu0 %v452
  %2058 = vmatmul.mubr.bf16.gmra.mrb[0].mxu0 %v451
  %v2059 = vpop.f32.mrb[0].mxu0
  %v2060 = vadd.f32 0.0, %v2059
  %v2061 = vpop.f32.mrb[0].mxu0
  %v2062 = vadd.f32 0.0, %v2061
  %v2063 = vpop.f32.mrb[0].mxu0
  %v2064 = vadd.f32 0.0, %v2063
  %v2065 = vpop.f32.mrb[0].mxu0
  %v2066 = vadd.f32 0.0, %v2065
  %2067 = vmatprep.mubr.bf16.mxu0 %v454
  %2068 = vmatmul.mubr.bf16.gmra.mrb[0].mxu0 %v453
  %v2069 = vpop.f32.mrb[0].mxu0
  %v2070 = vadd.f32 0.0, %v2069
  %v2071 = vpop.f32.mrb[0].mxu0
  %v2072 = vadd.f32 0.0, %v2071
  %v2073 = vpop.f32.mrb[0].mxu0
  %v2074 = vadd.f32 0.0, %v2073
  %v2075 = vpop.f32.mrb[0].mxu0
  %v2076 = vadd.f32 0.0, %v2075
  %2077 = vmatprep.mubr.bf16.mxu0 %v456
  %2078 = vmatmul.mubr.bf16.gmra.mrb[0].mxu0 %v455
  %v2079 = vpop.f32.mrb[0].mxu0
  %v2080 = vadd.f32 0.0, %v2079
  %v2081 = vpop.f32.mrb[0].mxu0
  %v2082 = vadd.f32 0.0, %v2081
  %v2083 = vpop.f32.mrb[0].mxu0
  %v2084 = vadd.f32 0.0, %v2083
  %v2085 = vpop.f32.mrb[0].mxu0
  %v2086 = vadd.f32 0.0, %v2085
  %2087 = vmatprep.mubr.bf16.mxu0 %v458
  %2088 = vmatmul.mubr.bf16.gmra.mrb[0].mxu0 %v457
  %v2089 = vpop.f32.mrb[0].mxu0
  %v2090 = vadd.f32 0.0, %v2089
  %v2091 = vpop.f32.mrb[0].mxu0
  %v2092 = vadd.f32 0.0, %v2091
  %v2093 = vpop.f32.mrb[0].mxu0
  %v2094 = vadd.f32 0.0, %v2093
  %v2095 = vpop.f32.mrb[0].mxu0
  %v2096 = vadd.f32 0.0, %v2095
  %2097 = vmatprep.mubr.bf16.mxu0 %v460
  %2098 = vmatmul.mubr.bf16.gmra.mrb[0].mxu0 %v459
  %v2099 = vpop.f32.mrb[0].mxu0
  %v2100 = vadd.f32 0.0, %v2099
  %v2101 = vpop.f32.mrb[0].mxu0
  %v2102 = vadd.f32 0.0, %v2101
  %v2103 = vpop.f32.mrb[0].mxu0
  %v2104 = vadd.f32 0.0, %v2103
  %v2105 = vpop.f32.mrb[0].mxu0
  %v2106 = vadd.f32 0.0, %v2105
  %2107 = vmatprep.mubr.bf16.mxu0 %v462
  %2108 = vmatmul.mubr.bf16.gmra.mrb[0].mxu0 %v461
  %v2109 = vpop.f32.mrb[0].mxu0
  %v2110 = vadd.f32 0.0, %v2109
  %v2111 = vpop.f32.mrb[0].mxu0
  %v2112 = vadd.f32 0.0, %v2111
  %v2113 = vpop.f32.mrb[0].mxu0
  %v2114 = vadd.f32 0.0, %v2113
  %v2115 = vpop.f32.mrb[0].mxu0
  %v2116 = vadd.f32 0.0, %v2115
  %2117 = vmatprep.mubr.bf16.mxu0 %v464
  %2118 = vmatmul.mubr.bf16.gmra.mrb[0].mxu0 %v463
  %v2119 = vpop.f32.mrb[0].mxu0
  %v2120 = vadd.f32 0.0, %v2119
  %v2121 = vpop.f32.mrb[0].mxu0
  %v2122 = vadd.f32 0.0, %v2121
  %v2123 = vpop.f32.mrb[0].mxu0
  %v2124 = vadd.f32 0.0, %v2123
  %v2125 = vpop.f32.mrb[0].mxu0
  %v2126 = vadd.f32 0.0, %v2125
  %2127 = vmatprep.mubr.bf16.mxu0 %v466
  %2128 = vmatmul.mubr.bf16.gmra.mrb[0].mxu0 %v465
  %v2129 = vpop.f32.mrb[0].mxu0
  %v2130 = vadd.f32 0.0, %v2129
  %v2131 = vpop.f32.mrb[0].mxu0
  %v2132 = vadd.f32 0.0, %v2131
  %v2133 = vpop.f32.mrb[0].mxu0
  %v2134 = vadd.f32 0.0, %v2133
  %v2135 = vpop.f32.mrb[0].mxu0
  %v2136 = vadd.f32 0.0, %v2135
  %2137 = vmatprep.mubr.bf16.mxu0 %v468
  %2138 = vmatmul.mubr.bf16.gmra.mrb[0].mxu0 %v467
  %v2139 = vpop.f32.mrb[0].mxu0
  %v2140 = vadd.f32 0.0, %v2139
  %v2141 = vpop.f32.mrb[0].mxu0
  %v2142 = vadd.f32 0.0, %v2141
  %v2143 = vpop.f32.mrb[0].mxu0
  %v2144 = vadd.f32 0.0, %v2143
  %v2145 = vpop.f32.mrb[0].mxu0
  %v2146 = vadd.f32 0.0, %v2145
  %2147 = vmatprep.mubr.bf16.mxu0 %v470
  %2148 = vmatmul.mubr.bf16.gmra.mrb[0].mxu0 %v469
  %v2149 = vpop.f32.mrb[0].mxu0
  %v2150 = vpop.f32.mrb[0].mxu0
  %v2151 = vpop.f32.mrb[0].mxu0
  %v2152 = vpop.f32.mrb[0].mxu0
  %2153 = vmatprep.mubr.bf16.mxu0 %v472
  %2154 = vmatmul.mubr.bf16.gmra.mrb[0].mxu0 %v471
  %v2155 = vpop.f32.mrb[0].mxu0
  %v2156 = vpop.f32.mrb[0].mxu0
  %v2157 = vpop.f32.mrb[0].mxu0
  %v2158 = vpop.f32.mrb[0].mxu0
  %2159 = vmatprep.mubr.bf16.mxu0 %v474
  %2160 = vmatmul.mubr.bf16.gmra.mrb[0].mxu0 %v473
  %v2161 = vpop.f32.mrb[0].mxu0
  %v2162 = vpop.f32.mrb[0].mxu0
  %v2163 = vpop.f32.mrb[0].mxu0
  %v2164 = vpop.f32.mrb[0].mxu0
  %2165 = vdwg.mxu0
  %2166 = vmatprep.subr.bf16.mxu0 %v930
  %2167 = vmatpush1.bf16.msra.mxu0 %v929
  %2168 = vmatprep.subr.bf16.mxu0 %v938
  %2169 = vmatpush1.bf16.msra.mxu0 %v937
  %2170 = vmatprep.subr.bf16.mxu0 %v946
  %2171 = vmatpush1.bf16.msra.mxu0 %v945
  %2172 = vmatprep.subr.bf16.mxu0 %v954
  %2173 = vmatpush1.bf16.msra.mxu0 %v953
  %2174 = vmatprep.subr.bf16.mxu0 %v962
  %2175 = vmatpush1.bf16.msra.mxu0 %v961
  %2176 = vmatprep.subr.bf16.mxu0 %v970
  %2177 = vmatpush1.bf16.msra.mxu0 %v969
  %2178 = vmatprep.subr.bf16.mxu0 %v978
  %2179 = vmatpush1.bf16.msra.mxu0 %v977
  %2180 = vmatprep.subr.bf16.mxu0 %v986
  %2181 = vmatpush1.bf16.msra.mxu0 %v985
  %2182 = vmatprep.subr.bf16.mxu0 %v994
  %2183 = vmatpush1.bf16.msra.mxu0 %v993
  %2184 = vmatprep.subr.bf16.mxu0 %v1002
  %2185 = vmatpush1.bf16.msra.mxu0 %v1001
  %2186 = vmatprep.subr.bf16.mxu0 %v1010
  %2187 = vmatpush1.bf16.msra.mxu0 %v1009
  %2188 = vmatprep.subr.bf16.mxu0 %v1018
  %2189 = vmatpush1.bf16.msra.mxu0 %v1017
  %2190 = vmatprep.subr.bf16.mxu0 %v1026
  %2191 = vmatpush1.bf16.msra.mxu0 %v1025
  %2192 = vmatprep.subr.bf16.mxu0 %v1034
  %2193 = vmatpush1.bf16.msra.mxu0 %v1033
  %2194 = vmatprep.subr.bf16.mxu0 %v1042
  %2195 = vmatpush1.bf16.msra.mxu0 %v1041
  %2196 = vmatprep.subr.bf16.mxu0 %v1050
  %2197 = vmatpush1.bf16.msra.mxu0 %v1049
  %2198 = vmatprep.mubr.bf16.mxu0 %v412
  %2199 = vmatmul.mubr.bf16.gmra.mrb[0].mxu0 %v411
  %v2200 = vpop.f32.mrb[0].mxu0
  %v2201 = vadd.f32 0.0, %v2200
  %v2202 = vpop.f32.mrb[0].mxu0
  %v2203 = vadd.f32 0.0, %v2202
  %v2204 = vpop.f32.mrb[0].mxu0
  %v2205 = vadd.f32 0.0, %v2204
  %v2206 = vpop.f32.mrb[0].mxu0
  %v2207 = vadd.f32 0.0, %v2206
  %2208 = vmatprep.mubr.bf16.mxu0 %v414
  %2209 = vmatmul.mubr.bf16.gmra.mrb[0].mxu0 %v413
  %v2210 = vpop.f32.mrb[0].mxu0
  %v2211 = vadd.f32 0.0, %v2210
  %v2212 = vpop.f32.mrb[0].mxu0
  %v2213 = vadd.f32 0.0, %v2212
  %v2214 = vpop.f32.mrb[0].mxu0
  %v2215 = vadd.f32 0.0, %v2214
  %v2216 = vpop.f32.mrb[0].mxu0
  %v2217 = vadd.f32 0.0, %v2216
  %2218 = vmatprep.mubr.bf16.mxu0 %v416
  %2219 = vmatmul.mubr.bf16.gmra.mrb[0].mxu0 %v415
  %v2220 = vpop.f32.mrb[0].mxu0
  %v2221 = vadd.f32 0.0, %v2220
  %v2222 = vpop.f32.mrb[0].mxu0
  %v2223 = vadd.f32 0.0, %v2222
  %v2224 = vpop.f32.mrb[0].mxu0
  %v2225 = vadd.f32 0.0, %v2224
  %v2226 = vpop.f32.mrb[0].mxu0
  %v2227 = vadd.f32 0.0, %v2226
  %2228 = vmatprep.mubr.bf16.mxu0 %v418
  %2229 = vmatmul.mubr.bf16.gmra.mrb[0].mxu0 %v417
  %v2230 = vpop.f32.mrb[0].mxu0
  %v2231 = vadd.f32 0.0, %v2230
  %v2232 = vpop.f32.mrb[0].mxu0
  %v2233 = vadd.f32 0.0, %v2232
  %v2234 = vpop.f32.mrb[0].mxu0
  %v2235 = vadd.f32 0.0, %v2234
  %v2236 = vpop.f32.mrb[0].mxu0
  %v2237 = vadd.f32 0.0, %v2236
  %2238 = vmatprep.mubr.bf16.mxu0 %v420
  %2239 = vmatmul.mubr.bf16.gmra.mrb[0].mxu0 %v419
  %v2240 = vpop.f32.mrb[0].mxu0
  %v2241 = vadd.f32 0.0, %v2240
  %v2242 = vpop.f32.mrb[0].mxu0
  %v2243 = vadd.f32 0.0, %v2242
  %v2244 = vpop.f32.mrb[0].mxu0
  %v2245 = vadd.f32 0.0, %v2244
  %v2246 = vpop.f32.mrb[0].mxu0
  %v2247 = vadd.f32 0.0, %v2246
  %2248 = vmatprep.mubr.bf16.mxu0 %v422
  %2249 = vmatmul.mubr.bf16.gmra.mrb[0].mxu0 %v421
  %v2250 = vpop.f32.mrb[0].mxu0
  %v2251 = vadd.f32 0.0, %v2250
  %v2252 = vpop.f32.mrb[0].mxu0
  %v2253 = vadd.f32 0.0, %v2252
  %v2254 = vpop.f32.mrb[0].mxu0
  %v2255 = vadd.f32 0.0, %v2254
  %v2256 = vpop.f32.mrb[0].mxu0
  %v2257 = vadd.f32 0.0, %v2256
  %2258 = vmatprep.mubr.bf16.mxu0 %v424
  %2259 = vmatmul.mubr.bf16.gmra.mrb[0].mxu0 %v423
  %v2260 = vpop.f32.mrb[0].mxu0
  %v2261 = vadd.f32 0.0, %v2260
  %v2262 = vpop.f32.mrb[0].mxu0
  %v2263 = vadd.f32 0.0, %v2262
  %v2264 = vpop.f32.mrb[0].mxu0
  %v2265 = vadd.f32 0.0, %v2264
  %v2266 = vpop.f32.mrb[0].mxu0
  %v2267 = vadd.f32 0.0, %v2266
  %2268 = vmatprep.mubr.bf16.mxu0 %v426
  %2269 = vmatmul.mubr.bf16.gmra.mrb[0].mxu0 %v425
  %v2270 = vpop.f32.mrb[0].mxu0
  %v2271 = vadd.f32 0.0, %v2270
  %v2272 = vpop.f32.mrb[0].mxu0
  %v2273 = vadd.f32 0.0, %v2272
  %v2274 = vpop.f32.mrb[0].mxu0
  %v2275 = vadd.f32 0.0, %v2274
  %v2276 = vpop.f32.mrb[0].mxu0
  %v2277 = vadd.f32 0.0, %v2276
  %2278 = vmatprep.mubr.bf16.mxu0 %v428
  %2279 = vmatmul.mubr.bf16.gmra.mrb[0].mxu0 %v427
  %v2280 = vpop.f32.mrb[0].mxu0
  %v2281 = vadd.f32 0.0, %v2280
  %v2282 = vpop.f32.mrb[0].mxu0
  %v2283 = vadd.f32 0.0, %v2282
  %v2284 = vpop.f32.mrb[0].mxu0
  %v2285 = vadd.f32 0.0, %v2284
  %v2286 = vpop.f32.mrb[0].mxu0
  %v2287 = vadd.f32 0.0, %v2286
  %2288 = vmatprep.mubr.bf16.mxu0 %v430
  %2289 = vmatmul.mubr.bf16.gmra.mrb[0].mxu0 %v429
  %v2290 = vpop.f32.mrb[0].mxu0
  %v2291 = vadd.f32 0.0, %v2290
  %v2292 = vpop.f32.mrb[0].mxu0
  %v2293 = vadd.f32 0.0, %v2292
  %v2294 = vpop.f32.mrb[0].mxu0
  %v2295 = vadd.f32 0.0, %v2294
  %v2296 = vpop.f32.mrb[0].mxu0
  %v2297 = vadd.f32 0.0, %v2296
  %2298 = vmatprep.mubr.bf16.mxu0 %v432
  %2299 = vmatmul.mubr.bf16.gmra.mrb[0].mxu0 %v431
  %v2300 = vpop.f32.mrb[0].mxu0
  %v2301 = vadd.f32 0.0, %v2300
  %v2302 = vpop.f32.mrb[0].mxu0
  %v2303 = vadd.f32 0.0, %v2302
  %v2304 = vpop.f32.mrb[0].mxu0
  %v2305 = vadd.f32 0.0, %v2304
  %v2306 = vpop.f32.mrb[0].mxu0
  %v2307 = vadd.f32 0.0, %v2306
  %2308 = vmatprep.mubr.bf16.mxu0 %v434
  %2309 = vmatmul.mubr.bf16.gmra.mrb[0].mxu0 %v433
  %v2310 = vpop.f32.mrb[0].mxu0
  %v2311 = vadd.f32 0.0, %v2310
  %v2312 = vpop.f32.mrb[0].mxu0
  %v2313 = vadd.f32 0.0, %v2312
  %v2314 = vpop.f32.mrb[0].mxu0
  %v2315 = vadd.f32 0.0, %v2314
  %v2316 = vpop.f32.mrb[0].mxu0
  %v2317 = vadd.f32 0.0, %v2316
  %2318 = vmatprep.mubr.bf16.mxu0 %v436
  %2319 = vmatmul.mubr.bf16.gmra.mrb[0].mxu0 %v435
  %v2320 = vpop.f32.mrb[0].mxu0
  %v2321 = vadd.f32 0.0, %v2320
  %v2322 = vpop.f32.mrb[0].mxu0
  %v2323 = vadd.f32 0.0, %v2322
  %v2324 = vpop.f32.mrb[0].mxu0
  %v2325 = vadd.f32 0.0, %v2324
  %v2326 = vpop.f32.mrb[0].mxu0
  %v2327 = vadd.f32 0.0, %v2326
  %2328 = vmatprep.mubr.bf16.mxu0 %v438
  %2329 = vmatmul.mubr.bf16.gmra.mrb[0].mxu0 %v437
  %v2330 = vpop.f32.mrb[0].mxu0
  %v2331 = vpop.f32.mrb[0].mxu0
  %v2332 = vpop.f32.mrb[0].mxu0
  %v2333 = vpop.f32.mrb[0].mxu0
  %2334 = vmatprep.mubr.bf16.mxu0 %v440
  %2335 = vmatmul.mubr.bf16.gmra.mrb[0].mxu0 %v439
  %v2336 = vpop.f32.mrb[0].mxu0
  %v2337 = vpop.f32.mrb[0].mxu0
  %v2338 = vpop.f32.mrb[0].mxu0
  %v2339 = vpop.f32.mrb[0].mxu0
  %2340 = vmatprep.mubr.bf16.mxu0 %v442
  %2341 = vmatmul.mubr.bf16.gmra.mrb[0].mxu0 %v441
  %v2342 = vpop.f32.mrb[0].mxu0
  %v2343 = vpop.f32.mrb[0].mxu0
  %v2344 = vpop.f32.mrb[0].mxu0
  %v2345 = vpop.f32.mrb[0].mxu0
  %2346 = vmatprep.mubr.bf16.mxu0 %v444
  %2347 = vmatmul.mubr.bf16.gmra.mrb[0].mxu0 %v443
  %v2348 = vpop.f32.mrb[0].mxu0
  %v2349 = vadd.f32 0.0, %v2348
  %v2350 = vpop.f32.mrb[0].mxu0
  %v2351 = vadd.f32 0.0, %v2350
  %v2352 = vpop.f32.mrb[0].mxu0
  %v2353 = vadd.f32 0.0, %v2352
  %v2354 = vpop.f32.mrb[0].mxu0
  %v2355 = vadd.f32 0.0, %v2354
  %2356 = vmatprep.mubr.bf16.mxu0 %v446
  %2357 = vmatmul.mubr.bf16.gmra.mrb[0].mxu0 %v445
  %v2358 = vpop.f32.mrb[0].mxu0
  %v2359 = vadd.f32 0.0, %v2358
  %v2360 = vpop.f32.mrb[0].mxu0
  %v2361 = vadd.f32 0.0, %v2360
  %v2362 = vpop.f32.mrb[0].mxu0
  %v2363 = vadd.f32 0.0, %v2362
  %v2364 = vpop.f32.mrb[0].mxu0
  %v2365 = vadd.f32 0.0, %v2364
  %2366 = vmatprep.mubr.bf16.mxu0 %v448
  %2367 = vmatmul.mubr.bf16.gmra.mrb[0].mxu0 %v447
  %v2368 = vpop.f32.mrb[0].mxu0
  %v2369 = vadd.f32 0.0, %v2368
  %v2370 = vpop.f32.mrb[0].mxu0
  %v2371 = vadd.f32 0.0, %v2370
  %v2372 = vpop.f32.mrb[0].mxu0
  %v2373 = vadd.f32 0.0, %v2372
  %v2374 = vpop.f32.mrb[0].mxu0
  %v2375 = vadd.f32 0.0, %v2374
  %2376 = vmatprep.mubr.bf16.mxu0 %v450
  %2377 = vmatmul.mubr.bf16.gmra.mrb[0].mxu0 %v449
  %v2378 = vpop.f32.mrb[0].mxu0
  %v2379 = vadd.f32 0.0, %v2378
  %v2380 = vpop.f32.mrb[0].mxu0
  %v2381 = vadd.f32 0.0, %v2380
  %v2382 = vpop.f32.mrb[0].mxu0
  %v2383 = vadd.f32 0.0, %v2382
  %v2384 = vpop.f32.mrb[0].mxu0
  %v2385 = vadd.f32 0.0, %v2384
  %2386 = vmatprep.mubr.bf16.mxu0 %v452
  %2387 = vmatmul.mubr.bf16.gmra.mrb[0].mxu0 %v451
  %v2388 = vpop.f32.mrb[0].mxu0
  %v2389 = vadd.f32 0.0, %v2388
  %v2390 = vpop.f32.mrb[0].mxu0
  %v2391 = vadd.f32 0.0, %v2390
  %v2392 = vpop.f32.mrb[0].mxu0
  %v2393 = vadd.f32 0.0, %v2392
  %v2394 = vpop.f32.mrb[0].mxu0
  %v2395 = vadd.f32 0.0, %v2394
  %2396 = vmatprep.mubr.bf16.mxu0 %v454
  %2397 = vmatmul.mubr.bf16.gmra.mrb[0].mxu0 %v453
  %v2398 = vpop.f32.mrb[0].mxu0
  %v2399 = vadd.f32 0.0, %v2398
  %v2400 = vpop.f32.mrb[0].mxu0
  %v2401 = vadd.f32 0.0, %v2400
  %v2402 = vpop.f32.mrb[0].mxu0
  %v2403 = vadd.f32 0.0, %v2402
  %v2404 = vpop.f32.mrb[0].mxu0
  %v2405 = vadd.f32 0.0, %v2404
  %2406 = vmatprep.mubr.bf16.mxu0 %v456
  %2407 = vmatmul.mubr.bf16.gmra.mrb[0].mxu0 %v455
  %v2408 = vpop.f32.mrb[0].mxu0
  %v2409 = vadd.f32 0.0, %v2408
  %v2410 = vpop.f32.mrb[0].mxu0
  %v2411 = vadd.f32 0.0, %v2410
  %v2412 = vpop.f32.mrb[0].mxu0
  %v2413 = vadd.f32 0.0, %v2412
  %v2414 = vpop.f32.mrb[0].mxu0
  %v2415 = vadd.f32 0.0, %v2414
  %2416 = vmatprep.mubr.bf16.mxu0 %v458
  %2417 = vmatmul.mubr.bf16.gmra.mrb[0].mxu0 %v457
  %v2418 = vpop.f32.mrb[0].mxu0
  %v2419 = vadd.f32 0.0, %v2418
  %v2420 = vpop.f32.mrb[0].mxu0
  %v2421 = vadd.f32 0.0, %v2420
  %v2422 = vpop.f32.mrb[0].mxu0
  %v2423 = vadd.f32 0.0, %v2422
  %v2424 = vpop.f32.mrb[0].mxu0
  %v2425 = vadd.f32 0.0, %v2424
  %2426 = vmatprep.mubr.bf16.mxu0 %v460
  %2427 = vmatmul.mubr.bf16.gmra.mrb[0].mxu0 %v459
  %v2428 = vpop.f32.mrb[0].mxu0
  %v2429 = vadd.f32 0.0, %v2428
  %v2430 = vpop.f32.mrb[0].mxu0
  %v2431 = vadd.f32 0.0, %v2430
  %v2432 = vpop.f32.mrb[0].mxu0
  %v2433 = vadd.f32 0.0, %v2432
  %v2434 = vpop.f32.mrb[0].mxu0
  %v2435 = vadd.f32 0.0, %v2434
  %2436 = vmatprep.mubr.bf16.mxu0 %v462
  %2437 = vmatmul.mubr.bf16.gmra.mrb[0].mxu0 %v461
  %v2438 = vpop.f32.mrb[0].mxu0
  %v2439 = vadd.f32 0.0, %v2438
  %v2440 = vpop.f32.mrb[0].mxu0
  %v2441 = vadd.f32 0.0, %v2440
  %v2442 = vpop.f32.mrb[0].mxu0
  %v2443 = vadd.f32 0.0, %v2442
  %v2444 = vpop.f32.mrb[0].mxu0
  %v2445 = vadd.f32 0.0, %v2444
  %2446 = vmatprep.mubr.bf16.mxu0 %v464
  %2447 = vmatmul.mubr.bf16.gmra.mrb[0].mxu0 %v463
  %v2448 = vpop.f32.mrb[0].mxu0
  %v2449 = vadd.f32 0.0, %v2448
  %v2450 = vpop.f32.mrb[0].mxu0
  %v2451 = vadd.f32 0.0, %v2450
  %v2452 = vpop.f32.mrb[0].mxu0
  %v2453 = vadd.f32 0.0, %v2452
  %v2454 = vpop.f32.mrb[0].mxu0
  %v2455 = vadd.f32 0.0, %v2454
  %2456 = vmatprep.mubr.bf16.mxu0 %v466
  %2457 = vmatmul.mubr.bf16.gmra.mrb[0].mxu0 %v465
  %v2458 = vpop.f32.mrb[0].mxu0
  %v2459 = vadd.f32 0.0, %v2458
  %v2460 = vpop.f32.mrb[0].mxu0
  %v2461 = vadd.f32 0.0, %v2460
  %v2462 = vpop.f32.mrb[0].mxu0
  %v2463 = vadd.f32 0.0, %v2462
  %v2464 = vpop.f32.mrb[0].mxu0
  %v2465 = vadd.f32 0.0, %v2464
  %2466 = vmatprep.mubr.bf16.mxu0 %v468
  %2467 = vmatmul.mubr.bf16.gmra.mrb[0].mxu0 %v467
  %v2468 = vpop.f32.mrb[0].mxu0
  %v2469 = vadd.f32 0.0, %v2468
  %v2470 = vpop.f32.mrb[0].mxu0
  %v2471 = vadd.f32 0.0, %v2470
  %v2472 = vpop.f32.mrb[0].mxu0
  %v2473 = vadd.f32 0.0, %v2472
  %v2474 = vpop.f32.mrb[0].mxu0
  %v2475 = vadd.f32 0.0, %v2474
  %2476 = vmatprep.mubr.bf16.mxu0 %v470
  %2477 = vmatmul.mubr.bf16.gmra.mrb[0].mxu0 %v469
  %v2478 = vpop.f32.mrb[0].mxu0
  %v2479 = vpop.f32.mrb[0].mxu0
  %v2480 = vpop.f32.mrb[0].mxu0
  %v2481 = vpop.f32.mrb[0].mxu0
  %2482 = vmatprep.mubr.bf16.mxu0 %v472
  %2483 = vmatmul.mubr.bf16.gmra.mrb[0].mxu0 %v471
  %v2484 = vpop.f32.mrb[0].mxu0
  %v2485 = vpop.f32.mrb[0].mxu0
  %v2486 = vpop.f32.mrb[0].mxu0
  %v2487 = vpop.f32.mrb[0].mxu0
  %2488 = vmatprep.mubr.bf16.mxu0 %v474
  %2489 = vmatmul.mubr.bf16.gmra.mrb[0].mxu0 %v473
  %v2490 = vpop.f32.mrb[0].mxu0
  %v2491 = vpop.f32.mrb[0].mxu0
  %v2492 = vpop.f32.mrb[0].mxu0
  %v2493 = vpop.f32.mrb[0].mxu0
  %2494 = vdwg.mxu0
  %v2495 = vmax.f32 %v1214, %v1362
  %v2496 = vmax.f32 %v1216, %v1364
  %v2497 = vmax.f32 %v1543, %v1691
  %v2498 = vmax.f32 %v1545, %v1693
  %v2499 = vmax.f32 %v1872, %v2020
  %v2500 = vmax.f32 %v1874, %v2022
  %v2501 = vmax.f32 %v2201, %v2349
  %v2502 = vmax.f32 %v2203, %v2351
  %v2503 = vmax.f32 %v1218, %v1366
  %v2504 = vmax.f32 %v1220, %v1368
  %v2505 = vmax.f32 %v1547, %v1695
  %v2506 = vmax.f32 %v1549, %v1697
  %v2507 = vmax.f32 %v1876, %v2024
  %v2508 = vmax.f32 %v1878, %v2026
  %v2509 = vmax.f32 %v2205, %v2353
  %v2510 = vmax.f32 %v2207, %v2355
  %v2511 = vmax.f32 %v1224, %v1372
  %v2512 = vmax.f32 %v1226, %v1374
  %v2513 = vmax.f32 %v1553, %v1701
  %v2514 = vmax.f32 %v1555, %v1703
  %v2515 = vmax.f32 %v1882, %v2030
  %v2516 = vmax.f32 %v1884, %v2032
  %v2517 = vmax.f32 %v2211, %v2359
  %v2518 = vmax.f32 %v2213, %v2361
  %v2519 = vmax.f32 %v1228, %v1376
  %v2520 = vmax.f32 %v1230, %v1378
  %v2521 = vmax.f32 %v1557, %v1705
  %v2522 = vmax.f32 %v1559, %v1707
  %v2523 = vmax.f32 %v1886, %v2034
  %v2524 = vmax.f32 %v1888, %v2036
  %v2525 = vmax.f32 %v2215, %v2363
  %v2526 = vmax.f32 %v2217, %v2365
  %v2527 = vmax.f32 %v1234, %v1382
  %v2528 = vmax.f32 %v1236, %v1384
  %v2529 = vmax.f32 %v1563, %v1711
  %v2530 = vmax.f32 %v1565, %v1713
  %v2531 = vmax.f32 %v1892, %v2040
  %v2532 = vmax.f32 %v1894, %v2042
  %v2533 = vmax.f32 %v2221, %v2369
  %v2534 = vmax.f32 %v2223, %v2371
  %v2535 = vmax.f32 %v1238, %v1386
  %v2536 = vmax.f32 %v1240, %v1388
  %v2537 = vmax.f32 %v1567, %v1715
  %v2538 = vmax.f32 %v1569, %v1717
  %v2539 = vmax.f32 %v1896, %v2044
  %v2540 = vmax.f32 %v1898, %v2046
  %v2541 = vmax.f32 %v2225, %v2373
  %v2542 = vmax.f32 %v2227, %v2375
  %v2543 = vmax.f32 %v1244, %v1392
  %v2544 = vmax.f32 %v1246, %v1394
  %v2545 = vmax.f32 %v1573, %v1721
  %v2546 = vmax.f32 %v1575, %v1723
  %v2547 = vmax.f32 %v1902, %v2050
  %v2548 = vmax.f32 %v1904, %v2052
  %v2549 = vmax.f32 %v2231, %v2379
  %v2550 = vmax.f32 %v2233, %v2381
  %v2551 = vmax.f32 %v1248, %v1396
  %v2552 = vmax.f32 %v1250, %v1398
  %v2553 = vmax.f32 %v1577, %v1725
  %v2554 = vmax.f32 %v1579, %v1727
  %v2555 = vmax.f32 %v1906, %v2054
  %v2556 = vmax.f32 %v1908, %v2056
  %v2557 = vmax.f32 %v2235, %v2383
  %v2558 = vmax.f32 %v2237, %v2385
  %v2559 = vmax.f32 %v1254, %v1402
  %v2560 = vmax.f32 %v1256, %v1404
  %v2561 = vmax.f32 %v1583, %v1731
  %v2562 = vmax.f32 %v1585, %v1733
  %v2563 = vmax.f32 %v1912, %v2060
  %v2564 = vmax.f32 %v1914, %v2062
  %v2565 = vmax.f32 %v2241, %v2389
  %v2566 = vmax.f32 %v2243, %v2391
  %v2567 = vmax.f32 %v1258, %v1406
  %v2568 = vmax.f32 %v1260, %v1408
  %v2569 = vmax.f32 %v1587, %v1735
  %v2570 = vmax.f32 %v1589, %v1737
  %v2571 = vmax.f32 %v1916, %v2064
  %v2572 = vmax.f32 %v1918, %v2066
  %v2573 = vmax.f32 %v2245, %v2393
  %v2574 = vmax.f32 %v2247, %v2395
  %v2575 = vmax.f32 %v1264, %v1412
  %v2576 = vmax.f32 %v1266, %v1414
  %v2577 = vmax.f32 %v1593, %v1741
  %v2578 = vmax.f32 %v1595, %v1743
  %v2579 = vmax.f32 %v1922, %v2070
  %v2580 = vmax.f32 %v1924, %v2072
  %v2581 = vmax.f32 %v2251, %v2399
  %v2582 = vmax.f32 %v2253, %v2401
  %v2583 = vmax.f32 %v1268, %v1416
  %v2584 = vmax.f32 %v1270, %v1418
  %v2585 = vmax.f32 %v1597, %v1745
  %v2586 = vmax.f32 %v1599, %v1747
  %v2587 = vmax.f32 %v1926, %v2074
  %v2588 = vmax.f32 %v1928, %v2076
  %v2589 = vmax.f32 %v2255, %v2403
  %v2590 = vmax.f32 %v2257, %v2405
  %v2591 = vmax.f32 %v1274, %v1422
  %v2592 = vmax.f32 %v1276, %v1424
  %v2593 = vmax.f32 %v1603, %v1751
  %v2594 = vmax.f32 %v1605, %v1753
  %v2595 = vmax.f32 %v1932, %v2080
  %v2596 = vmax.f32 %v1934, %v2082
  %v2597 = vmax.f32 %v2261, %v2409
  %v2598 = vmax.f32 %v2263, %v2411
  %v2599 = vmax.f32 %v1278, %v1426
  %v2600 = vmax.f32 %v1280, %v1428
  %v2601 = vmax.f32 %v1607, %v1755
  %v2602 = vmax.f32 %v1609, %v1757
  %v2603 = vmax.f32 %v1936, %v2084
  %v2604 = vmax.f32 %v1938, %v2086
  %v2605 = vmax.f32 %v2265, %v2413
  %v2606 = vmax.f32 %v2267, %v2415
  %v2607 = vmax.f32 %v1284, %v1432
  %v2608 = vmax.f32 %v1286, %v1434
  %v2609 = vmax.f32 %v1613, %v1761
  %v2610 = vmax.f32 %v1615, %v1763
  %v2611 = vmax.f32 %v1942, %v2090
  %v2612 = vmax.f32 %v1944, %v2092
  %v2613 = vmax.f32 %v2271, %v2419
  %v2614 = vmax.f32 %v2273, %v2421
  %v2615 = vmax.f32 %v1288, %v1436
  %v2616 = vmax.f32 %v1290, %v1438
  %v2617 = vmax.f32 %v1617, %v1765
  %v2618 = vmax.f32 %v1619, %v1767
  %v2619 = vmax.f32 %v1946, %v2094
  %v2620 = vmax.f32 %v1948, %v2096
  %v2621 = vmax.f32 %v2275, %v2423
  %v2622 = vmax.f32 %v2277, %v2425
  %v2623 = vmax.f32 %v1294, %v1442
  %v2624 = vmax.f32 %v1296, %v1444
  %v2625 = vmax.f32 %v1623, %v1771
  %v2626 = vmax.f32 %v1625, %v1773
  %v2627 = vmax.f32 %v1952, %v2100
  %v2628 = vmax.f32 %v1954, %v2102
  %v2629 = vmax.f32 %v2281, %v2429
  %v2630 = vmax.f32 %v2283, %v2431
  %v2631 = vmax.f32 %v1298, %v1446
  %v2632 = vmax.f32 %v1300, %v1448
  %v2633 = vmax.f32 %v1627, %v1775
  %v2634 = vmax.f32 %v1629, %v1777
  %v2635 = vmax.f32 %v1956, %v2104
  %v2636 = vmax.f32 %v1958, %v2106
  %v2637 = vmax.f32 %v2285, %v2433
  %v2638 = vmax.f32 %v2287, %v2435
  %v2639 = vmax.f32 %v1304, %v1452
  %v2640 = vmax.f32 %v1306, %v1454
  %v2641 = vmax.f32 %v1633, %v1781
  %v2642 = vmax.f32 %v1635, %v1783
  %v2643 = vmax.f32 %v1962, %v2110
  %v2644 = vmax.f32 %v1964, %v2112
  %v2645 = vmax.f32 %v2291, %v2439
  %v2646 = vmax.f32 %v2293, %v2441
  %v2647 = vmax.f32 %v1308, %v1456
  %v2648 = vmax.f32 %v1310, %v1458
  %v2649 = vmax.f32 %v1637, %v1785
  %v2650 = vmax.f32 %v1639, %v1787
  %v2651 = vmax.f32 %v1966, %v2114
  %v2652 = vmax.f32 %v1968, %v2116
  %v2653 = vmax.f32 %v2295, %v2443
  %v2654 = vmax.f32 %v2297, %v2445
  %v2655 = vmax.f32 %v1314, %v1462
  %v2656 = vmax.f32 %v1316, %v1464
  %v2657 = vmax.f32 %v1643, %v1791
  %v2658 = vmax.f32 %v1645, %v1793
  %v2659 = vmax.f32 %v1972, %v2120
  %v2660 = vmax.f32 %v1974, %v2122
  %v2661 = vmax.f32 %v2301, %v2449
  %v2662 = vmax.f32 %v2303, %v2451
  %v2663 = vmax.f32 %v1318, %v1466
  %v2664 = vmax.f32 %v1320, %v1468
  %v2665 = vmax.f32 %v1647, %v1795
  %v2666 = vmax.f32 %v1649, %v1797
  %v2667 = vmax.f32 %v1976, %v2124
  %v2668 = vmax.f32 %v1978, %v2126
  %v2669 = vmax.f32 %v2305, %v2453
  %v2670 = vmax.f32 %v2307, %v2455
  %v2671 = vmax.f32 %v1324, %v1472
  %v2672 = vmax.f32 %v1326, %v1474
  %v2673 = vmax.f32 %v1653, %v1801
  %v2674 = vmax.f32 %v1655, %v1803
  %v2675 = vmax.f32 %v1982, %v2130
  %v2676 = vmax.f32 %v1984, %v2132
  %v2677 = vmax.f32 %v2311, %v2459
  %v2678 = vmax.f32 %v2313, %v2461
  %v2679 = vmax.f32 %v1328, %v1476
  %v2680 = vmax.f32 %v1330, %v1478
  %v2681 = vmax.f32 %v1657, %v1805
  %v2682 = vmax.f32 %v1659, %v1807
  %v2683 = vmax.f32 %v1986, %v2134
  %v2684 = vmax.f32 %v1988, %v2136
  %v2685 = vmax.f32 %v2315, %v2463
  %v2686 = vmax.f32 %v2317, %v2465
  %v2687 = vmax.f32 %v1334, %v1482
  %v2688 = vmax.f32 %v1336, %v1484
  %v2689 = vmax.f32 %v1663, %v1811
  %v2690 = vmax.f32 %v1665, %v1813
  %v2691 = vmax.f32 %v1992, %v2140
  %v2692 = vmax.f32 %v1994, %v2142
  %v2693 = vmax.f32 %v2321, %v2469
  %v2694 = vmax.f32 %v2323, %v2471
  %v2695 = vmax.f32 %v1338, %v1486
  %v2696 = vmax.f32 %v1340, %v1488
  %v2697 = vmax.f32 %v1667, %v1815
  %v2698 = vmax.f32 %v1669, %v1817
  %v2699 = vmax.f32 %v1996, %v2144
  %v2700 = vmax.f32 %v1998, %v2146
  %v2701 = vmax.f32 %v2325, %v2473
  %v2702 = vmax.f32 %v2327, %v2475
  %v2703 = vmax.f32 %v2495, %v2499
  %v2704 = vmax.f32 %v2496, %v2500
  %v2705 = vmax.f32 %v2497, %v2501
  %v2706 = vmax.f32 %v2498, %v2502
  %v2707 = vmax.f32 %v2503, %v2507
  %v2708 = vmax.f32 %v2504, %v2508
  %v2709 = vmax.f32 %v2505, %v2509
  %v2710 = vmax.f32 %v2506, %v2510
  %v2711 = vmax.f32 %v2511, %v2515
  %v2712 = vmax.f32 %v2512, %v2516
  %v2713 = vmax.f32 %v2513, %v2517
  %v2714 = vmax.f32 %v2514, %v2518
  %v2715 = vmax.f32 %v2519, %v2523
  %v2716 = vmax.f32 %v2520, %v2524
  %v2717 = vmax.f32 %v2521, %v2525
  %v2718 = vmax.f32 %v2522, %v2526
  %v2719 = vmax.f32 %v2527, %v2531
  %v2720 = vmax.f32 %v2528, %v2532
  %v2721 = vmax.f32 %v2529, %v2533
  %v2722 = vmax.f32 %v2530, %v2534
  %v2723 = vmax.f32 %v2535, %v2539
  %v2724 = vmax.f32 %v2536, %v2540
  %v2725 = vmax.f32 %v2537, %v2541
  %v2726 = vmax.f32 %v2538, %v2542
  %v2727 = vmax.f32 %v2543, %v2547
  %v2728 = vmax.f32 %v2544, %v2548
  %v2729 = vmax.f32 %v2545, %v2549
  %v2730 = vmax.f32 %v2546, %v2550
  %v2731 = vmax.f32 %v2551, %v2555
  %v2732 = vmax.f32 %v2552, %v2556
  %v2733 = vmax.f32 %v2553, %v2557
  %v2734 = vmax.f32 %v2554, %v2558
  %v2735 = vmax.f32 %v2559, %v2563
  %v2736 = vmax.f32 %v2560, %v2564
  %v2737 = vmax.f32 %v2561, %v2565
  %v2738 = vmax.f32 %v2562, %v2566
  %v2739 = vmax.f32 %v2567, %v2571
  %v2740 = vmax.f32 %v2568, %v2572
  %v2741 = vmax.f32 %v2569, %v2573
  %v2742 = vmax.f32 %v2570, %v2574
  %v2743 = vmax.f32 %v2575, %v2579
  %v2744 = vmax.f32 %v2576, %v2580
  %v2745 = vmax.f32 %v2577, %v2581
  %v2746 = vmax.f32 %v2578, %v2582
  %v2747 = vmax.f32 %v2583, %v2587
  %v2748 = vmax.f32 %v2584, %v2588
  %v2749 = vmax.f32 %v2585, %v2589
  %v2750 = vmax.f32 %v2586, %v2590
  %v2751 = vmax.f32 %v2591, %v2595
  %v2752 = vmax.f32 %v2592, %v2596
  %v2753 = vmax.f32 %v2593, %v2597
  %v2754 = vmax.f32 %v2594, %v2598
  %v2755 = vmax.f32 %v2599, %v2603
  %v2756 = vmax.f32 %v2600, %v2604
  %v2757 = vmax.f32 %v2601, %v2605
  %v2758 = vmax.f32 %v2602, %v2606
  %v2759 = vmax.f32 %v2607, %v2611
  %v2760 = vmax.f32 %v2608, %v2612
  %v2761 = vmax.f32 %v2609, %v2613
  %v2762 = vmax.f32 %v2610, %v2614
  %v2763 = vmax.f32 %v2615, %v2619
  %v2764 = vmax.f32 %v2616, %v2620
  %v2765 = vmax.f32 %v2617, %v2621
  %v2766 = vmax.f32 %v2618, %v2622
  %v2767 = vmax.f32 %v2623, %v2627
  %v2768 = vmax.f32 %v2624, %v2628
  %v2769 = vmax.f32 %v2625, %v2629
  %v2770 = vmax.f32 %v2626, %v2630
  %v2771 = vmax.f32 %v2631, %v2635
  %v2772 = vmax.f32 %v2632, %v2636
  %v2773 = vmax.f32 %v2633, %v2637
  %v2774 = vmax.f32 %v2634, %v2638
  %v2775 = vmax.f32 %v2639, %v2643
  %v2776 = vmax.f32 %v2640, %v2644
  %v2777 = vmax.f32 %v2641, %v2645
  %v2778 = vmax.f32 %v2642, %v2646
  %v2779 = vmax.f32 %v2647, %v2651
  %v2780 = vmax.f32 %v2648, %v2652
  %v2781 = vmax.f32 %v2649, %v2653
  %v2782 = vmax.f32 %v2650, %v2654
  %v2783 = vmax.f32 %v2655, %v2659
  %v2784 = vmax.f32 %v2656, %v2660
  %v2785 = vmax.f32 %v2657, %v2661
  %v2786 = vmax.f32 %v2658, %v2662
  %v2787 = vmax.f32 %v2663, %v2667
  %v2788 = vmax.f32 %v2664, %v2668
  %v2789 = vmax.f32 %v2665, %v2669
  %v2790 = vmax.f32 %v2666, %v2670
  %v2791 = vmax.f32 %v2671, %v2675
  %v2792 = vmax.f32 %v2672, %v2676
  %v2793 = vmax.f32 %v2673, %v2677
  %v2794 = vmax.f32 %v2674, %v2678
  %v2795 = vmax.f32 %v2679, %v2683
  %v2796 = vmax.f32 %v2680, %v2684
  %v2797 = vmax.f32 %v2681, %v2685
  %v2798 = vmax.f32 %v2682, %v2686
  %v2799 = vmax.f32 %v2687, %v2691
  %v2800 = vmax.f32 %v2688, %v2692
  %v2801 = vmax.f32 %v2689, %v2693
  %v2802 = vmax.f32 %v2690, %v2694
  %v2803 = vmax.f32 %v2695, %v2699
  %v2804 = vmax.f32 %v2696, %v2700
  %v2805 = vmax.f32 %v2697, %v2701
  %v2806 = vmax.f32 %v2698, %v2702
  %v2807 = vld [vmem:[%s4] sm:$0xf]
  %v2809 = vlaneseq
  %v2810 = vshrl.u32 %v2809, 7
  %v2811 = vsub.s32 0, %v2810
  %v2812 = vrot.slane %v2807, %v2811
  %v2813 = vlaneseq
  %v2814 = vshrl.u32 %v2813, 7
  %v2815 = vsub.s32 1, %v2814
  %v2816 = vrot.slane %v2807, %v2815
  %v2817 = vlaneseq
  %v2818 = vshrl.u32 %v2817, 7
  %v2819 = vsub.s32 2, %v2818
  %v2820 = vrot.slane %v2807, %v2819
  %v2821 = vlaneseq
  %v2822 = vshrl.u32 %v2821, 7
  %v2823 = vsub.s32 3, %v2822
  %v2824 = vrot.slane %v2807, %v2823
  %v2829 = vadd.f32 %v2703, %v2812
  %v2830 = vadd.f32 %v2704, %v2816
  %v2831 = vadd.f32 %v2705, %v2820
  %v2832 = vadd.f32 %v2706, %v2824
  %v2833 = vadd.f32 %v2707, %v2812
  %v2834 = vadd.f32 %v2708, %v2816
  %v2835 = vadd.f32 %v2709, %v2820
  %v2836 = vadd.f32 %v2710, %v2824
  %v2837 = vadd.f32 %v2711, %v2812
  %v2838 = vadd.f32 %v2712, %v2816
  %v2839 = vadd.f32 %v2713, %v2820
  %v2840 = vadd.f32 %v2714, %v2824
  %v2841 = vadd.f32 %v2715, %v2812
  %v2842 = vadd.f32 %v2716, %v2816
  %v2843 = vadd.f32 %v2717, %v2820
  %v2844 = vadd.f32 %v2718, %v2824
  %v2845 = vadd.f32 %v2719, %v2812
  %v2846 = vadd.f32 %v2720, %v2816
  %v2847 = vadd.f32 %v2721, %v2820
  %v2848 = vadd.f32 %v2722, %v2824
  %v2849 = vadd.f32 %v2723, %v2812
  %v2850 = vadd.f32 %v2724, %v2816
  %v2851 = vadd.f32 %v2725, %v2820
  %v2852 = vadd.f32 %v2726, %v2824
  %v2853 = vadd.f32 %v2727, %v2812
  %v2854 = vadd.f32 %v2728, %v2816
  %v2855 = vadd.f32 %v2729, %v2820
  %v2856 = vadd.f32 %v2730, %v2824
  %v2857 = vadd.f32 %v2731, %v2812
  %v2858 = vadd.f32 %v2732, %v2816
  %v2859 = vadd.f32 %v2733, %v2820
  %v2860 = vadd.f32 %v2734, %v2824
  %v2861 = vadd.f32 %v2735, %v2812
  %v2862 = vadd.f32 %v2736, %v2816
  %v2863 = vadd.f32 %v2737, %v2820
  %v2864 = vadd.f32 %v2738, %v2824
  %v2865 = vadd.f32 %v2739, %v2812
  %v2866 = vadd.f32 %v2740, %v2816
  %v2867 = vadd.f32 %v2741, %v2820
  %v2868 = vadd.f32 %v2742, %v2824
  %v2869 = vadd.f32 %v2743, %v2812
  %v2870 = vadd.f32 %v2744, %v2816
  %v2871 = vadd.f32 %v2745, %v2820
  %v2872 = vadd.f32 %v2746, %v2824
  %v2873 = vadd.f32 %v2747, %v2812
  %v2874 = vadd.f32 %v2748, %v2816
  %v2875 = vadd.f32 %v2749, %v2820
  %v2876 = vadd.f32 %v2750, %v2824
  %v2877 = vadd.f32 %v2751, %v2812
  %v2878 = vadd.f32 %v2752, %v2816
  %v2879 = vadd.f32 %v2753, %v2820
  %v2880 = vadd.f32 %v2754, %v2824
  %v2881 = vadd.f32 %v2755, %v2812
  %v2882 = vadd.f32 %v2756, %v2816
  %v2883 = vadd.f32 %v2757, %v2820
  %v2884 = vadd.f32 %v2758, %v2824
  %v2885 = vadd.f32 %v2759, %v2812
  %v2886 = vadd.f32 %v2760, %v2816
  %v2887 = vadd.f32 %v2761, %v2820
  %v2888 = vadd.f32 %v2762, %v2824
  %v2889 = vadd.f32 %v2763, %v2812
  %v2890 = vadd.f32 %v2764, %v2816
  %v2891 = vadd.f32 %v2765, %v2820
  %v2892 = vadd.f32 %v2766, %v2824
  %v2893 = vadd.f32 %v2767, %v2812
  %v2894 = vadd.f32 %v2768, %v2816
  %v2895 = vadd.f32 %v2769, %v2820
  %v2896 = vadd.f32 %v2770, %v2824
  %v2897 = vadd.f32 %v2771, %v2812
  %v2898 = vadd.f32 %v2772, %v2816
  %v2899 = vadd.f32 %v2773, %v2820
  %v2900 = vadd.f32 %v2774, %v2824
  %v2901 = vadd.f32 %v2775, %v2812
  %v2902 = vadd.f32 %v2776, %v2816
  %v2903 = vadd.f32 %v2777, %v2820
  %v2904 = vadd.f32 %v2778, %v2824
  %v2905 = vadd.f32 %v2779, %v2812
  %v2906 = vadd.f32 %v2780, %v2816
  %v2907 = vadd.f32 %v2781, %v2820
  %v2908 = vadd.f32 %v2782, %v2824
  %v2909 = vadd.f32 %v2783, %v2812
  %v2910 = vadd.f32 %v2784, %v2816
  %v2911 = vadd.f32 %v2785, %v2820
  %v2912 = vadd.f32 %v2786, %v2824
  %v2913 = vadd.f32 %v2787, %v2812
  %v2914 = vadd.f32 %v2788, %v2816
  %v2915 = vadd.f32 %v2789, %v2820
  %v2916 = vadd.f32 %v2790, %v2824
  %v2917 = vadd.f32 %v2791, %v2812
  %v2918 = vadd.f32 %v2792, %v2816
  %v2919 = vadd.f32 %v2793, %v2820
  %v2920 = vadd.f32 %v2794, %v2824
  %v2921 = vadd.f32 %v2795, %v2812
  %v2922 = vadd.f32 %v2796, %v2816
  %v2923 = vadd.f32 %v2797, %v2820
  %v2924 = vadd.f32 %v2798, %v2824
  %v2925 = vadd.f32 %v2799, %v2812
  %v2926 = vadd.f32 %v2800, %v2816
  %v2927 = vadd.f32 %v2801, %v2820
  %v2928 = vadd.f32 %v2802, %v2824
  %v2929 = vadd.f32 %v2803, %v2812
  %v2930 = vadd.f32 %v2804, %v2816
  %v2931 = vadd.f32 %v2805, %v2820
  %v2932 = vadd.f32 %v2806, %v2824
  %v2933 = vtanh.pop %v2829
  %v2934 = vtanh.pop %v2830
  %v2935 = vtanh.pop %v2831
  %v2936 = vtanh.pop %v2832
  %v2937 = vtanh.pop %v2833
  %v2938 = vtanh.pop %v2834
  %v2939 = vtanh.pop %v2835
  %v2940 = vtanh.pop %v2836
  %v2941 = vtanh.pop %v2837
  %v2942 = vtanh.pop %v2838
  %v2943 = vtanh.pop %v2839
  %v2944 = vtanh.pop %v2840
  %v2945 = vtanh.pop %v2841
  %v2946 = vtanh.pop %v2842
  %v2947 = vtanh.pop %v2843
  %v2948 = vtanh.pop %v2844
  %v2949 = vtanh.pop %v2845
  %v2950 = vtanh.pop %v2846
  %v2951 = vtanh.pop %v2847
  %v2952 = vtanh.pop %v2848
  %v2953 = vtanh.pop %v2849
  %v2954 = vtanh.pop %v2850
  %v2955 = vtanh.pop %v2851
  %v2956 = vtanh.pop %v2852
  %v2957 = vtanh.pop %v2853
  %v2958 = vtanh.pop %v2854
  %v2959 = vtanh.pop %v2855
  %v2960 = vtanh.pop %v2856
  %v2961 = vtanh.pop %v2857
  %v2962 = vtanh.pop %v2858
  %v2963 = vtanh.pop %v2859
  %v2964 = vtanh.pop %v2860
  %v2965 = vtanh.pop %v2861
  %v2966 = vtanh.pop %v2862
  %v2967 = vtanh.pop %v2863
  %v2968 = vtanh.pop %v2864
  %v2969 = vtanh.pop %v2865
  %v2970 = vtanh.pop %v2866
  %v2971 = vtanh.pop %v2867
  %v2972 = vtanh.pop %v2868
  %v2973 = vtanh.pop %v2869
  %v2974 = vtanh.pop %v2870
  %v2975 = vtanh.pop %v2871
  %v2976 = vtanh.pop %v2872
  %v2977 = vtanh.pop %v2873
  %v2978 = vtanh.pop %v2874
  %v2979 = vtanh.pop %v2875
  %v2980 = vtanh.pop %v2876
  %v2981 = vtanh.pop %v2877
  %v2982 = vtanh.pop %v2878
  %v2983 = vtanh.pop %v2879
  %v2984 = vtanh.pop %v2880
  %v2985 = vtanh.pop %v2881
  %v2986 = vtanh.pop %v2882
  %v2987 = vtanh.pop %v2883
  %v2988 = vtanh.pop %v2884
  %v2989 = vtanh.pop %v2885
  %v2990 = vtanh.pop %v2886
  %v2991 = vtanh.pop %v2887
  %v2992 = vtanh.pop %v2888
  %v2993 = vtanh.pop %v2889
  %v2994 = vtanh.pop %v2890
  %v2995 = vtanh.pop %v2891
  %v2996 = vtanh.pop %v2892
  %v2997 = vtanh.pop %v2893
  %v2998 = vtanh.pop %v2894
  %v2999 = vtanh.pop %v2895
  %v3000 = vtanh.pop %v2896
  %v3001 = vtanh.pop %v2897
  %v3002 = vtanh.pop %v2898
  %v3003 = vtanh.pop %v2899
  %v3004 = vtanh.pop %v2900
  %v3005 = vtanh.pop %v2901
  %v3006 = vtanh.pop %v2902
  %v3007 = vtanh.pop %v2903
  %v3008 = vtanh.pop %v2904
  %v3009 = vtanh.pop %v2905
  %v3010 = vtanh.pop %v2906
  %v3011 = vtanh.pop %v2907
  %v3012 = vtanh.pop %v2908
  %v3013 = vtanh.pop %v2909
  %v3014 = vtanh.pop %v2910
  %v3015 = vtanh.pop %v2911
  %v3016 = vtanh.pop %v2912
  %v3017 = vtanh.pop %v2913
  %v3018 = vtanh.pop %v2914
  %v3019 = vtanh.pop %v2915
  %v3020 = vtanh.pop %v2916
  %v3021 = vtanh.pop %v2917
  %v3022 = vtanh.pop %v2918
  %v3023 = vtanh.pop %v2919
  %v3024 = vtanh.pop %v2920
  %v3025 = vtanh.pop %v2921
  %v3026 = vtanh.pop %v2922
  %v3027 = vtanh.pop %v2923
  %v3028 = vtanh.pop %v2924
  %v3029 = vtanh.pop %v2925
  %v3030 = vtanh.pop %v2926
  %v3031 = vtanh.pop %v2927
  %v3032 = vtanh.pop %v2928
  %v3033 = vtanh.pop %v2929
  %v3034 = vtanh.pop %v2930
  %v3035 = vtanh.pop %v2931
  %v3036 = vtanh.pop %v2932
  %v3037 = vpack.c.bf16 %v2937, %v2933
  %v3038 = vpack.c.bf16 %v2938, %v2934
  %v3039 = vpack.c.bf16 %v2939, %v2935
  %v3040 = vpack.c.bf16 %v2940, %v2936
  %v3041 = vpack.c.bf16 %v2945, %v2941
  %v3042 = vpack.c.bf16 %v2946, %v2942
  %v3043 = vpack.c.bf16 %v2947, %v2943
  %v3044 = vpack.c.bf16 %v2948, %v2944
  %v3045 = vpack.c.bf16 %v2953, %v2949
  %v3046 = vpack.c.bf16 %v2954, %v2950
  %v3047 = vpack.c.bf16 %v2955, %v2951
  %v3048 = vpack.c.bf16 %v2956, %v2952
  %v3049 = vpack.c.bf16 %v2961, %v2957
  %v3050 = vpack.c.bf16 %v2962, %v2958
  %v3051 = vpack.c.bf16 %v2963, %v2959
  %v3052 = vpack.c.bf16 %v2964, %v2960
  %v3053 = vpack.c.bf16 %v2969, %v2965
  %v3054 = vpack.c.bf16 %v2970, %v2966
  %v3055 = vpack.c.bf16 %v2971, %v2967
  %v3056 = vpack.c.bf16 %v2972, %v2968
  %v3057 = vpack.c.bf16 %v2977, %v2973
  %v3058 = vpack.c.bf16 %v2978, %v2974
  %v3059 = vpack.c.bf16 %v2979, %v2975
  %v3060 = vpack.c.bf16 %v2980, %v2976
  %v3061 = vpack.c.bf16 %v2985, %v2981
  %v3062 = vpack.c.bf16 %v2986, %v2982
  %v3063 = vpack.c.bf16 %v2987, %v2983
  %v3064 = vpack.c.bf16 %v2988, %v2984
  %v3065 = vpack.c.bf16 %v2993, %v2989
  %v3066 = vpack.c.bf16 %v2994, %v2990
  %v3067 = vpack.c.bf16 %v2995, %v2991
  %v3068 = vpack.c.bf16 %v2996, %v2992
  %v3069 = vpack.c.bf16 %v3001, %v2997
  %v3070 = vpack.c.bf16 %v3002, %v2998
  %v3071 = vpack.c.bf16 %v3003, %v2999
  %v3072 = vpack.c.bf16 %v3004, %v3000
  %v3073 = vpack.c.bf16 %v3009, %v3005
  %v3074 = vpack.c.bf16 %v3010, %v3006
  %v3075 = vpack.c.bf16 %v3011, %v3007
  %v3076 = vpack.c.bf16 %v3012, %v3008
  %v3077 = vpack.c.bf16 %v3017, %v3013
  %v3078 = vpack.c.bf16 %v3018, %v3014
  %v3079 = vpack.c.bf16 %v3019, %v3015
  %v3080 = vpack.c.bf16 %v3020, %v3016
  %v3081 = vpack.c.bf16 %v3025, %v3021
  %v3082 = vpack.c.bf16 %v3026, %v3022
  %v3083 = vpack.c.bf16 %v3027, %v3023
  %v3084 = vpack.c.bf16 %v3028, %v3024
  %v3085 = vpack.c.bf16 %v3033, %v3029
  %v3086 = vpack.c.bf16 %v3034, %v3030
  %v3087 = vpack.c.bf16 %v3035, %v3031
  %v3088 = vpack.c.bf16 %v3036, %v3032
  %v3089 = vld [vmem:[%s2] sm:$0xff]
  %v3090 = vld [vmem:[%s2 + $0x8] sm:$0xff]
  %v3091 = vld [vmem:[%s2 + $0x10] sm:$0xff]
  %v3092 = vld [vmem:[%s2 + $0x18] sm:$0xff]
  %v3093 = vld [vmem:[%s2 + $0x20] sm:$0xff]
  %v3094 = vld [vmem:[%s2 + $0x28] sm:$0xff]
  %v3095 = vld [vmem:[%s2 + $0x30] sm:$0xff]
  %v3096 = vld [vmem:[%s2 + $0x38] sm:$0xff]
  %v3097 = vld [vmem:[%s2 + $0x40] sm:$0xff]
  %v3098 = vld [vmem:[%s2 + $0x48] sm:$0xff]
  %v3099 = vld [vmem:[%s2 + $0x50] sm:$0xff]
  %v3100 = vld [vmem:[%s2 + $0x58] sm:$0xff]
  %v3101 = vld [vmem:[%s2 + $0x60] sm:$0xff]
  %v3102 = vld [vmem:[%s2 + $0x68] sm:$0xff]
  %v3103 = vld [vmem:[%s2 + $0x70] sm:$0xff]
  %v3104 = vld [vmem:[%s2 + $0x78] sm:$0xff]
  %v3105 = vld [vmem:[%s2 + $0x80] sm:$0xff]
  %v3106 = vld [vmem:[%s2 + $0x88] sm:$0xff]
  %v3107 = vld [vmem:[%s2 + $0x90] sm:$0xff]
  %v3108 = vld [vmem:[%s2 + $0x98] sm:$0xff]
  %v3109 = vld [vmem:[%s2 + $0xa0] sm:$0xff]
  %v3110 = vld [vmem:[%s2 + $0xa8] sm:$0xff]
  %v3111 = vld [vmem:[%s2 + $0xb0] sm:$0xff]
  %v3112 = vld [vmem:[%s2 + $0xb8] sm:$0xff]
  %v3113 = vld [vmem:[%s2 + $0xc0] sm:$0xff]
  %v3114 = vld [vmem:[%s2 + $0xc8] sm:$0xff]
  %v3115 = vld [vmem:[%s2 + $0xd0] sm:$0xff]
  %v3116 = vld [vmem:[%s2 + $0xd8] sm:$0xff]
  %v3117 = vld [vmem:[%s2 + $0xe0] sm:$0xff]
  %v3118 = vld [vmem:[%s2 + $0xe8] sm:$0xff]
  %v3119 = vld [vmem:[%s2 + $0xf0] sm:$0xff]
  %v3120 = vld [vmem:[%s2 + $0xf8] sm:$0xff]
  %v3121 = vld [vmem:[%s2 + $0x100] sm:$0xff]
  %v3122 = vld [vmem:[%s2 + $0x108] sm:$0xff]
  %v3123 = vld [vmem:[%s2 + $0x110] sm:$0xff]
  %v3124 = vld [vmem:[%s2 + $0x118] sm:$0xff]
  %v3125 = vld [vmem:[%s2 + $0x120] sm:$0xff]
  %v3126 = vld [vmem:[%s2 + $0x128] sm:$0xff]
  %v3127 = vld [vmem:[%s2 + $0x130] sm:$0xff]
  %v3128 = vld [vmem:[%s2 + $0x138] sm:$0xff]
  %v3129 = vld [vmem:[%s2 + $0x140] sm:$0xff]
  %v3130 = vld [vmem:[%s2 + $0x148] sm:$0xff]
  %v3131 = vld [vmem:[%s2 + $0x150] sm:$0xff]
  %v3132 = vld [vmem:[%s2 + $0x158] sm:$0xff]
  %v3133 = vld [vmem:[%s2 + $0x160] sm:$0xff]
  %v3134 = vld [vmem:[%s2 + $0x168] sm:$0xff]
  %v3135 = vld [vmem:[%s2 + $0x170] sm:$0xff]
  %v3136 = vld [vmem:[%s2 + $0x178] sm:$0xff]
  %v3137 = vld [vmem:[%s2 + $0x180] sm:$0xff]
  %v3138 = vld [vmem:[%s2 + $0x188] sm:$0xff]
  %v3139 = vld [vmem:[%s2 + $0x190] sm:$0xff]
  %v3140 = vld [vmem:[%s2 + $0x198] sm:$0xff]
  %v3141 = vld [vmem:[%s2 + $0x1a0] sm:$0xff]
  %v3142 = vld [vmem:[%s2 + $0x1a8] sm:$0xff]
  %v3143 = vld [vmem:[%s2 + $0x1b0] sm:$0xff]
  %v3144 = vld [vmem:[%s2 + $0x1b8] sm:$0xff]
  %v3145 = vld [vmem:[%s2 + $0x1c0] sm:$0xff]
  %v3146 = vld [vmem:[%s2 + $0x1c8] sm:$0xff]
  %v3147 = vld [vmem:[%s2 + $0x1d0] sm:$0xff]
  %v3148 = vld [vmem:[%s2 + $0x1d8] sm:$0xff]
  %v3149 = vld [vmem:[%s2 + $0x1e0] sm:$0xff]
  %v3150 = vld [vmem:[%s2 + $0x1e8] sm:$0xff]
  %v3151 = vld [vmem:[%s2 + $0x1f0] sm:$0xff]
  %v3152 = vld [vmem:[%s2 + $0x1f8] sm:$0xff]
  %v3153 = vld [vmem:[%s2 + $0x200] sm:$0xff]
  %v3154 = vld [vmem:[%s2 + $0x208] sm:$0xff]
  %v3155 = vld [vmem:[%s2 + $0x210] sm:$0xff]
  %v3156 = vld [vmem:[%s2 + $0x218] sm:$0xff]
  %v3157 = vld [vmem:[%s2 + $0x220] sm:$0xff]
  %v3158 = vld [vmem:[%s2 + $0x228] sm:$0xff]
  %v3159 = vld [vmem:[%s2 + $0x230] sm:$0xff]
  %v3160 = vld [vmem:[%s2 + $0x238] sm:$0xff]
  %v3161 = vld [vmem:[%s2 + $0x240] sm:$0xff]
  %v3162 = vld [vmem:[%s2 + $0x248] sm:$0xff]
  %v3163 = vld [vmem:[%s2 + $0x250] sm:$0xff]
  %v3164 = vld [vmem:[%s2 + $0x258] sm:$0xff]
  %v3165 = vld [vmem:[%s2 + $0x260] sm:$0xff]
  %v3166 = vld [vmem:[%s2 + $0x268] sm:$0xff]
  %v3167 = vld [vmem:[%s2 + $0x270] sm:$0xff]
  %v3168 = vld [vmem:[%s2 + $0x278] sm:$0xff]
  %v3169 = vld [vmem:[%s2 + $0x280] sm:$0xff]
  %v3170 = vld [vmem:[%s2 + $0x288] sm:$0xff]
  %v3171 = vld [vmem:[%s2 + $0x290] sm:$0xff]
  %v3172 = vld [vmem:[%s2 + $0x298] sm:$0xff]
  %v3173 = vld [vmem:[%s2 + $0x2a0] sm:$0xff]
  %v3174 = vld [vmem:[%s2 + $0x2a8] sm:$0xff]
  %v3175 = vld [vmem:[%s2 + $0x2b0] sm:$0xff]
  %v3176 = vld [vmem:[%s2 + $0x2b8] sm:$0xff]
  %v3177 = vld [vmem:[%s2 + $0x2c0] sm:$0xff]
  %v3178 = vld [vmem:[%s2 + $0x2c8] sm:$0xff]
  %v3179 = vld [vmem:[%s2 + $0x2d0] sm:$0xff]
  %v3180 = vld [vmem:[%s2 + $0x2d8] sm:$0xff]
  %v3181 = vld [vmem:[%s2 + $0x2e0] sm:$0xff]
  %v3182 = vld [vmem:[%s2 + $0x2e8] sm:$0xff]
  %v3183 = vld [vmem:[%s2 + $0x2f0] sm:$0xff]
  %v3184 = vld [vmem:[%s2 + $0x2f8] sm:$0xff]
  %v3185 = vld [vmem:[%s2 + $0x300] sm:$0xff]
  %v3186 = vld [vmem:[%s2 + $0x308] sm:$0xff]
  %v3187 = vld [vmem:[%s2 + $0x310] sm:$0xff]
  %v3188 = vld [vmem:[%s2 + $0x318] sm:$0xff]
  %v3189 = vld [vmem:[%s2 + $0x320] sm:$0xff]
  %v3190 = vld [vmem:[%s2 + $0x328] sm:$0xff]
  %v3191 = vld [vmem:[%s2 + $0x330] sm:$0xff]
  %v3192 = vld [vmem:[%s2 + $0x338] sm:$0xff]
  %v3193 = vld [vmem:[%s2 + $0x340] sm:$0xff]
  %v3194 = vld [vmem:[%s2 + $0x348] sm:$0xff]
  %v3195 = vld [vmem:[%s2 + $0x350] sm:$0xff]
  %v3196 = vld [vmem:[%s2 + $0x358] sm:$0xff]
  %v3197 = vld [vmem:[%s2 + $0x360] sm:$0xff]
  %v3198 = vld [vmem:[%s2 + $0x368] sm:$0xff]
  %v3199 = vld [vmem:[%s2 + $0x370] sm:$0xff]
  %v3200 = vld [vmem:[%s2 + $0x378] sm:$0xff]
  %v3201 = vld [vmem:[%s2 + $0x380] sm:$0xff]
  %v3202 = vld [vmem:[%s2 + $0x388] sm:$0xff]
  %v3203 = vld [vmem:[%s2 + $0x390] sm:$0xff]
  %v3204 = vld [vmem:[%s2 + $0x398] sm:$0xff]
  %v3205 = vld [vmem:[%s2 + $0x3a0] sm:$0xff]
  %v3206 = vld [vmem:[%s2 + $0x3a8] sm:$0xff]
  %v3207 = vld [vmem:[%s2 + $0x3b0] sm:$0xff]
  %v3208 = vld [vmem:[%s2 + $0x3b8] sm:$0xff]
  %v3209 = vld [vmem:[%s2 + $0x3c0] sm:$0xff]
  %v3210 = vld [vmem:[%s2 + $0x3c8] sm:$0xff]
  %v3211 = vld [vmem:[%s2 + $0x3d0] sm:$0xff]
  %v3212 = vld [vmem:[%s2 + $0x3d8] sm:$0xff]
  %v3213 = vld [vmem:[%s2 + $0x3e0] sm:$0xff]
  %v3214 = vld [vmem:[%s2 + $0x3e8] sm:$0xff]
  %v3215 = vld [vmem:[%s2 + $0x3f0] sm:$0xff]
  %v3216 = vld [vmem:[%s2 + $0x3f8] sm:$0xff]
  %s3217 = scalar_lea.vmem %s2, 1024
  %v3218 = vld [vmem:[%s3217] sm:$0xff]
  %v3219 = vld [vmem:[%s3217 + $0x8] sm:$0xff]
  %v3220 = vld [vmem:[%s3217 + $0x10] sm:$0xff]
  %v3221 = vld [vmem:[%s3217 + $0x18] sm:$0xff]
  %v3222 = vld [vmem:[%s3217 + $0x20] sm:$0xff]
  %v3223 = vld [vmem:[%s3217 + $0x28] sm:$0xff]
  %v3224 = vld [vmem:[%s3217 + $0x30] sm:$0xff]
  %v3225 = vld [vmem:[%s3217 + $0x38] sm:$0xff]
  %v3226 = vld [vmem:[%s3217 + $0x40] sm:$0xff]
  %v3227 = vld [vmem:[%s3217 + $0x48] sm:$0xff]
  %v3228 = vld [vmem:[%s3217 + $0x50] sm:$0xff]
  %v3229 = vld [vmem:[%s3217 + $0x58] sm:$0xff]
  %v3230 = vld [vmem:[%s3217 + $0x60] sm:$0xff]
  %v3231 = vld [vmem:[%s3217 + $0x68] sm:$0xff]
  %v3232 = vld [vmem:[%s3217 + $0x70] sm:$0xff]
  %v3233 = vld [vmem:[%s3217 + $0x78] sm:$0xff]
  %v3234 = vld [vmem:[%s3217 + $0x80] sm:$0xff]
  %v3235 = vld [vmem:[%s3217 + $0x88] sm:$0xff]
  %v3236 = vld [vmem:[%s3217 + $0x90] sm:$0xff]
  %v3237 = vld [vmem:[%s3217 + $0x98] sm:$0xff]
  %v3238 = vld [vmem:[%s3217 + $0xa0] sm:$0xff]
  %v3239 = vld [vmem:[%s3217 + $0xa8] sm:$0xff]
  %v3240 = vld [vmem:[%s3217 + $0xb0] sm:$0xff]
  %v3241 = vld [vmem:[%s3217 + $0xb8] sm:$0xff]
  %v3242 = vld [vmem:[%s3217 + $0xc0] sm:$0xff]
  %v3243 = vld [vmem:[%s3217 + $0xc8] sm:$0xff]
  %v3244 = vld [vmem:[%s3217 + $0xd0] sm:$0xff]
  %v3245 = vld [vmem:[%s3217 + $0xd8] sm:$0xff]
  %v3246 = vld [vmem:[%s3217 + $0xe0] sm:$0xff]
  %v3247 = vld [vmem:[%s3217 + $0xe8] sm:$0xff]
  %v3248 = vld [vmem:[%s3217 + $0xf0] sm:$0xff]
  %v3249 = vld [vmem:[%s3217 + $0xf8] sm:$0xff]
  %v3250 = vld [vmem:[%s3217 + $0x100] sm:$0xff]
  %v3251 = vld [vmem:[%s3217 + $0x108] sm:$0xff]
  %v3252 = vld [vmem:[%s3217 + $0x110] sm:$0xff]
  %v3253 = vld [vmem:[%s3217 + $0x118] sm:$0xff]
  %v3254 = vld [vmem:[%s3217 + $0x120] sm:$0xff]
  %v3255 = vld [vmem:[%s3217 + $0x128] sm:$0xff]
  %v3256 = vld [vmem:[%s3217 + $0x130] sm:$0xff]
  %v3257 = vld [vmem:[%s3217 + $0x138] sm:$0xff]
  %v3258 = vld [vmem:[%s3217 + $0x140] sm:$0xff]
  %v3259 = vld [vmem:[%s3217 + $0x148] sm:$0xff]
  %v3260 = vld [vmem:[%s3217 + $0x150] sm:$0xff]
  %v3261 = vld [vmem:[%s3217 + $0x158] sm:$0xff]
  %v3262 = vld [vmem:[%s3217 + $0x160] sm:$0xff]
  %v3263 = vld [vmem:[%s3217 + $0x168] sm:$0xff]
  %v3264 = vld [vmem:[%s3217 + $0x170] sm:$0xff]
  %v3265 = vld [vmem:[%s3217 + $0x178] sm:$0xff]
  %v3266 = vld [vmem:[%s3217 + $0x180] sm:$0xff]
  %v3267 = vld [vmem:[%s3217 + $0x188] sm:$0xff]
  %v3268 = vld [vmem:[%s3217 + $0x190] sm:$0xff]
  %v3269 = vld [vmem:[%s3217 + $0x198] sm:$0xff]
  %v3270 = vld [vmem:[%s3217 + $0x1a0] sm:$0xff]
  %v3271 = vld [vmem:[%s3217 + $0x1a8] sm:$0xff]
  %v3272 = vld [vmem:[%s3217 + $0x1b0] sm:$0xff]
  %v3273 = vld [vmem:[%s3217 + $0x1b8] sm:$0xff]
  %v3274 = vld [vmem:[%s3217 + $0x1c0] sm:$0xff]
  %v3275 = vld [vmem:[%s3217 + $0x1c8] sm:$0xff]
  %v3276 = vld [vmem:[%s3217 + $0x1d0] sm:$0xff]
  %v3277 = vld [vmem:[%s3217 + $0x1d8] sm:$0xff]
  %v3278 = vld [vmem:[%s3217 + $0x1e0] sm:$0xff]
  %v3279 = vld [vmem:[%s3217 + $0x1e8] sm:$0xff]
  %v3280 = vld [vmem:[%s3217 + $0x1f0] sm:$0xff]
  %v3281 = vld [vmem:[%s3217 + $0x1f8] sm:$0xff]
  %v3282 = vld [vmem:[%s3217 + $0x200] sm:$0xff]
  %v3283 = vld [vmem:[%s3217 + $0x208] sm:$0xff]
  %v3284 = vld [vmem:[%s3217 + $0x210] sm:$0xff]
  %v3285 = vld [vmem:[%s3217 + $0x218] sm:$0xff]
  %v3286 = vld [vmem:[%s3217 + $0x220] sm:$0xff]
  %v3287 = vld [vmem:[%s3217 + $0x228] sm:$0xff]
  %v3288 = vld [vmem:[%s3217 + $0x230] sm:$0xff]
  %v3289 = vld [vmem:[%s3217 + $0x238] sm:$0xff]
  %v3290 = vld [vmem:[%s3217 + $0x240] sm:$0xff]
  %v3291 = vld [vmem:[%s3217 + $0x248] sm:$0xff]
  %v3292 = vld [vmem:[%s3217 + $0x250] sm:$0xff]
  %v3293 = vld [vmem:[%s3217 + $0x258] sm:$0xff]
  %v3294 = vld [vmem:[%s3217 + $0x260] sm:$0xff]
  %v3295 = vld [vmem:[%s3217 + $0x268] sm:$0xff]
  %v3296 = vld [vmem:[%s3217 + $0x270] sm:$0xff]
  %v3297 = vld [vmem:[%s3217 + $0x278] sm:$0xff]
  %v3298 = vld [vmem:[%s3217 + $0x280] sm:$0xff]
  %v3299 = vld [vmem:[%s3217 + $0x288] sm:$0xff]
  %v3300 = vld [vmem:[%s3217 + $0x290] sm:$0xff]
  %v3301 = vld [vmem:[%s3217 + $0x298] sm:$0xff]
  %v3302 = vld [vmem:[%s3217 + $0x2a0] sm:$0xff]
  %v3303 = vld [vmem:[%s3217 + $0x2a8] sm:$0xff]
  %v3304 = vld [vmem:[%s3217 + $0x2b0] sm:$0xff]
  %v3305 = vld [vmem:[%s3217 + $0x2b8] sm:$0xff]
  %v3306 = vld [vmem:[%s3217 + $0x2c0] sm:$0xff]
  %v3307 = vld [vmem:[%s3217 + $0x2c8] sm:$0xff]
  %v3308 = vld [vmem:[%s3217 + $0x2d0] sm:$0xff]
  %v3309 = vld [vmem:[%s3217 + $0x2d8] sm:$0xff]
  %v3310 = vld [vmem:[%s3217 + $0x2e0] sm:$0xff]
  %v3311 = vld [vmem:[%s3217 + $0x2e8] sm:$0xff]
  %v3312 = vld [vmem:[%s3217 + $0x2f0] sm:$0xff]
  %v3313 = vld [vmem:[%s3217 + $0x2f8] sm:$0xff]
  %v3314 = vld [vmem:[%s3217 + $0x300] sm:$0xff]
  %v3315 = vld [vmem:[%s3217 + $0x308] sm:$0xff]
  %v3316 = vld [vmem:[%s3217 + $0x310] sm:$0xff]
  %v3317 = vld [vmem:[%s3217 + $0x318] sm:$0xff]
  %v3318 = vld [vmem:[%s3217 + $0x320] sm:$0xff]
  %v3319 = vld [vmem:[%s3217 + $0x328] sm:$0xff]
  %v3320 = vld [vmem:[%s3217 + $0x330] sm:$0xff]
  %v3321 = vld [vmem:[%s3217 + $0x338] sm:$0xff]
  %v3322 = vld [vmem:[%s3217 + $0x340] sm:$0xff]
  %v3323 = vld [vmem:[%s3217 + $0x348] sm:$0xff]
  %v3324 = vld [vmem:[%s3217 + $0x350] sm:$0xff]
  %v3325 = vld [vmem:[%s3217 + $0x358] sm:$0xff]
  %v3326 = vld [vmem:[%s3217 + $0x360] sm:$0xff]
  %v3327 = vld [vmem:[%s3217 + $0x368] sm:$0xff]
  %v3328 = vld [vmem:[%s3217 + $0x370] sm:$0xff]
  %v3329 = vld [vmem:[%s3217 + $0x378] sm:$0xff]
  %v3330 = vld [vmem:[%s3217 + $0x380] sm:$0xff]
  %v3331 = vld [vmem:[%s3217 + $0x388] sm:$0xff]
  %v3332 = vld [vmem:[%s3217 + $0x390] sm:$0xff]
  %v3333 = vld [vmem:[%s3217 + $0x398] sm:$0xff]
  %v3334 = vld [vmem:[%s3217 + $0x3a0] sm:$0xff]
  %v3335 = vld [vmem:[%s3217 + $0x3a8] sm:$0xff]
  %v3336 = vld [vmem:[%s3217 + $0x3b0] sm:$0xff]
  %v3337 = vld [vmem:[%s3217 + $0x3b8] sm:$0xff]
  %v3338 = vld [vmem:[%s3217 + $0x3c0] sm:$0xff]
  %v3339 = vld [vmem:[%s3217 + $0x3c8] sm:$0xff]
  %v3340 = vld [vmem:[%s3217 + $0x3d0] sm:$0xff]
  %v3341 = vld [vmem:[%s3217 + $0x3d8] sm:$0xff]
  %v3342 = vld [vmem:[%s3217 + $0x3e0] sm:$0xff]
  %v3343 = vld [vmem:[%s3217 + $0x3e8] sm:$0xff]
  %v3344 = vld [vmem:[%s3217 + $0x3f0] sm:$0xff]
  %v3345 = vld [vmem:[%s3217 + $0x3f8] sm:$0xff]
  %v3474 = vunpack.c.l.b16 %v3218
  %v3475 = vunpack.c.h.b16 %v3218
  %v3476 = vunpack.c.l.b16 %v3219
  %v3477 = vunpack.c.h.b16 %v3219
  %v3478 = vunpack.c.l.b16 %v3220
  %v3479 = vunpack.c.h.b16 %v3220
  %v3480 = vunpack.c.l.b16 %v3221
  %v3481 = vunpack.c.h.b16 %v3221
  %v3482 = vunpack.c.l.b16 %v3222
  %v3483 = vunpack.c.h.b16 %v3222
  %v3484 = vunpack.c.l.b16 %v3223
  %v3485 = vunpack.c.h.b16 %v3223
  %v3486 = vunpack.c.l.b16 %v3224
  %v3487 = vunpack.c.h.b16 %v3224
  %v3488 = vunpack.c.l.b16 %v3225
  %v3489 = vunpack.c.h.b16 %v3225
  %v3490 = vunpack.c.l.b16 %v3226
  %v3491 = vunpack.c.h.b16 %v3226
  %v3492 = vunpack.c.l.b16 %v3227
  %v3493 = vunpack.c.h.b16 %v3227
  %v3494 = vunpack.c.l.b16 %v3228
  %v3495 = vunpack.c.h.b16 %v3228
  %v3496 = vunpack.c.l.b16 %v3229
  %v3497 = vunpack.c.h.b16 %v3229
  %v3498 = vunpack.c.l.b16 %v3230
  %v3499 = vunpack.c.h.b16 %v3230
  %v3500 = vunpack.c.l.b16 %v3231
  %v3501 = vunpack.c.h.b16 %v3231
  %v3502 = vunpack.c.l.b16 %v3232
  %v3503 = vunpack.c.h.b16 %v3232
  %v3504 = vunpack.c.l.b16 %v3233
  %v3505 = vunpack.c.h.b16 %v3233
  %v3506 = vunpack.c.l.b16 %v3234
  %v3507 = vunpack.c.h.b16 %v3234
  %v3508 = vunpack.c.l.b16 %v3235
  %v3509 = vunpack.c.h.b16 %v3235
  %v3510 = vunpack.c.l.b16 %v3236
  %v3511 = vunpack.c.h.b16 %v3236
  %v3512 = vunpack.c.l.b16 %v3237
  %v3513 = vunpack.c.h.b16 %v3237
  %v3514 = vunpack.c.l.b16 %v3238
  %v3515 = vunpack.c.h.b16 %v3238
  %v3516 = vunpack.c.l.b16 %v3239
  %v3517 = vunpack.c.h.b16 %v3239
  %v3518 = vunpack.c.l.b16 %v3240
  %v3519 = vunpack.c.h.b16 %v3240
  %v3520 = vunpack.c.l.b16 %v3241
  %v3521 = vunpack.c.h.b16 %v3241
  %v3522 = vunpack.c.l.b16 %v3242
  %v3523 = vunpack.c.h.b16 %v3242
  %v3524 = vunpack.c.l.b16 %v3243
  %v3525 = vunpack.c.h.b16 %v3243
  %v3526 = vunpack.c.l.b16 %v3244
  %v3527 = vunpack.c.h.b16 %v3244
  %v3528 = vunpack.c.l.b16 %v3245
  %v3529 = vunpack.c.h.b16 %v3245
  %v3530 = vunpack.c.l.b16 %v3246
  %v3531 = vunpack.c.h.b16 %v3246
  %v3532 = vunpack.c.l.b16 %v3247
  %v3533 = vunpack.c.h.b16 %v3247
  %v3534 = vunpack.c.l.b16 %v3248
  %v3535 = vunpack.c.h.b16 %v3248
  %v3536 = vunpack.c.l.b16 %v3249
  %v3537 = vunpack.c.h.b16 %v3249
  %v3538 = vunpack.c.l.b16 %v3250
  %v3539 = vunpack.c.h.b16 %v3250
  %v3540 = vunpack.c.l.b16 %v3251
  %v3541 = vunpack.c.h.b16 %v3251
  %v3542 = vunpack.c.l.b16 %v3252
  %v3543 = vunpack.c.h.b16 %v3252
  %v3544 = vunpack.c.l.b16 %v3253
  %v3545 = vunpack.c.h.b16 %v3253
  %v3546 = vunpack.c.l.b16 %v3254
  %v3547 = vunpack.c.h.b16 %v3254
  %v3548 = vunpack.c.l.b16 %v3255
  %v3549 = vunpack.c.h.b16 %v3255
  %v3550 = vunpack.c.l.b16 %v3256
  %v3551 = vunpack.c.h.b16 %v3256
  %v3552 = vunpack.c.l.b16 %v3257
  %v3553 = vunpack.c.h.b16 %v3257
  %v3554 = vunpack.c.l.b16 %v3258
  %v3555 = vunpack.c.h.b16 %v3258
  %v3556 = vunpack.c.l.b16 %v3259
  %v3557 = vunpack.c.h.b16 %v3259
  %v3558 = vunpack.c.l.b16 %v3260
  %v3559 = vunpack.c.h.b16 %v3260
  %v3560 = vunpack.c.l.b16 %v3261
  %v3561 = vunpack.c.h.b16 %v3261
  %v3562 = vunpack.c.l.b16 %v3262
  %v3563 = vunpack.c.h.b16 %v3262
  %v3564 = vunpack.c.l.b16 %v3263
  %v3565 = vunpack.c.h.b16 %v3263
  %v3566 = vunpack.c.l.b16 %v3264
  %v3567 = vunpack.c.h.b16 %v3264
  %v3568 = vunpack.c.l.b16 %v3265
  %v3569 = vunpack.c.h.b16 %v3265
  %v3570 = vunpack.c.l.b16 %v3266
  %v3571 = vunpack.c.h.b16 %v3266
  %v3572 = vunpack.c.l.b16 %v3267
  %v3573 = vunpack.c.h.b16 %v3267
  %v3574 = vunpack.c.l.b16 %v3268
  %v3575 = vunpack.c.h.b16 %v3268
  %v3576 = vunpack.c.l.b16 %v3269
  %v3577 = vunpack.c.h.b16 %v3269
  %v3578 = vunpack.c.l.b16 %v3270
  %v3579 = vunpack.c.h.b16 %v3270
  %v3580 = vunpack.c.l.b16 %v3271
  %v3581 = vunpack.c.h.b16 %v3271
  %v3582 = vunpack.c.l.b16 %v3272
  %v3583 = vunpack.c.h.b16 %v3272
  %v3584 = vunpack.c.l.b16 %v3273
  %v3585 = vunpack.c.h.b16 %v3273
  %v3586 = vunpack.c.l.b16 %v3274
  %v3587 = vunpack.c.h.b16 %v3274
  %v3588 = vunpack.c.l.b16 %v3275
  %v3589 = vunpack.c.h.b16 %v3275
  %v3590 = vunpack.c.l.b16 %v3276
  %v3591 = vunpack.c.h.b16 %v3276
  %v3592 = vunpack.c.l.b16 %v3277
  %v3593 = vunpack.c.h.b16 %v3277
  %v3594 = vunpack.c.l.b16 %v3278
  %v3595 = vunpack.c.h.b16 %v3278
  %v3596 = vunpack.c.l.b16 %v3279
  %v3597 = vunpack.c.h.b16 %v3279
  %v3598 = vunpack.c.l.b16 %v3280
  %v3599 = vunpack.c.h.b16 %v3280
  %v3600 = vunpack.c.l.b16 %v3281
  %v3601 = vunpack.c.h.b16 %v3281
  %v3602 = vunpack.c.l.b16 %v3282
  %v3603 = vunpack.c.h.b16 %v3282
  %v3604 = vunpack.c.l.b16 %v3283
  %v3605 = vunpack.c.h.b16 %v3283
  %v3606 = vunpack.c.l.b16 %v3284
  %v3607 = vunpack.c.h.b16 %v3284
  %v3608 = vunpack.c.l.b16 %v3285
  %v3609 = vunpack.c.h.b16 %v3285
  %v3610 = vunpack.c.l.b16 %v3286
  %v3611 = vunpack.c.h.b16 %v3286
  %v3612 = vunpack.c.l.b16 %v3287
  %v3613 = vunpack.c.h.b16 %v3287
  %v3614 = vunpack.c.l.b16 %v3288
  %v3615 = vunpack.c.h.b16 %v3288
  %v3616 = vunpack.c.l.b16 %v3289
  %v3617 = vunpack.c.h.b16 %v3289
  %v3618 = vunpack.c.l.b16 %v3290
  %v3619 = vunpack.c.h.b16 %v3290
  %v3620 = vunpack.c.l.b16 %v3291
  %v3621 = vunpack.c.h.b16 %v3291
  %v3622 = vunpack.c.l.b16 %v3292
  %v3623 = vunpack.c.h.b16 %v3292
  %v3624 = vunpack.c.l.b16 %v3293
  %v3625 = vunpack.c.h.b16 %v3293
  %v3626 = vunpack.c.l.b16 %v3294
  %v3627 = vunpack.c.h.b16 %v3294
  %v3628 = vunpack.c.l.b16 %v3295
  %v3629 = vunpack.c.h.b16 %v3295
  %v3630 = vunpack.c.l.b16 %v3296
  %v3631 = vunpack.c.h.b16 %v3296
  %v3632 = vunpack.c.l.b16 %v3297
  %v3633 = vunpack.c.h.b16 %v3297
  %v3634 = vunpack.c.l.b16 %v3298
  %v3635 = vunpack.c.h.b16 %v3298
  %v3636 = vunpack.c.l.b16 %v3299
  %v3637 = vunpack.c.h.b16 %v3299
  %v3638 = vunpack.c.l.b16 %v3300
  %v3639 = vunpack.c.h.b16 %v3300
  %v3640 = vunpack.c.l.b16 %v3301
  %v3641 = vunpack.c.h.b16 %v3301
  %v3642 = vunpack.c.l.b16 %v3302
  %v3643 = vunpack.c.h.b16 %v3302
  %v3644 = vunpack.c.l.b16 %v3303
  %v3645 = vunpack.c.h.b16 %v3303
  %v3646 = vunpack.c.l.b16 %v3304
  %v3647 = vunpack.c.h.b16 %v3304
  %v3648 = vunpack.c.l.b16 %v3305
  %v3649 = vunpack.c.h.b16 %v3305
  %v3650 = vunpack.c.l.b16 %v3306
  %v3651 = vunpack.c.h.b16 %v3306
  %v3652 = vunpack.c.l.b16 %v3307
  %v3653 = vunpack.c.h.b16 %v3307
  %v3654 = vunpack.c.l.b16 %v3308
  %v3655 = vunpack.c.h.b16 %v3308
  %v3656 = vunpack.c.l.b16 %v3309
  %v3657 = vunpack.c.h.b16 %v3309
  %v3658 = vunpack.c.l.b16 %v3310
  %v3659 = vunpack.c.h.b16 %v3310
  %v3660 = vunpack.c.l.b16 %v3311
  %v3661 = vunpack.c.h.b16 %v3311
  %v3662 = vunpack.c.l.b16 %v3312
  %v3663 = vunpack.c.h.b16 %v3312
  %v3664 = vunpack.c.l.b16 %v3313
  %v3665 = vunpack.c.h.b16 %v3313
  %v3666 = vunpack.c.l.b16 %v3314
  %v3667 = vunpack.c.h.b16 %v3314
  %v3668 = vunpack.c.l.b16 %v3315
  %v3669 = vunpack.c.h.b16 %v3315
  %v3670 = vunpack.c.l.b16 %v3316
  %v3671 = vunpack.c.h.b16 %v3316
  %v3672 = vunpack.c.l.b16 %v3317
  %v3673 = vunpack.c.h.b16 %v3317
  %v3674 = vunpack.c.l.b16 %v3318
  %v3675 = vunpack.c.h.b16 %v3318
  %v3676 = vunpack.c.l.b16 %v3319
  %v3677 = vunpack.c.h.b16 %v3319
  %v3678 = vunpack.c.l.b16 %v3320
  %v3679 = vunpack.c.h.b16 %v3320
  %v3680 = vunpack.c.l.b16 %v3321
  %v3681 = vunpack.c.h.b16 %v3321
  %v3682 = vunpack.c.l.b16 %v3322
  %v3683 = vunpack.c.h.b16 %v3322
  %v3684 = vunpack.c.l.b16 %v3323
  %v3685 = vunpack.c.h.b16 %v3323
  %v3686 = vunpack.c.l.b16 %v3324
  %v3687 = vunpack.c.h.b16 %v3324
  %v3688 = vunpack.c.l.b16 %v3325
  %v3689 = vunpack.c.h.b16 %v3325
  %v3690 = vunpack.c.l.b16 %v3326
  %v3691 = vunpack.c.h.b16 %v3326
  %v3692 = vunpack.c.l.b16 %v3327
  %v3693 = vunpack.c.h.b16 %v3327
  %v3694 = vunpack.c.l.b16 %v3328
  %v3695 = vunpack.c.h.b16 %v3328
  %v3696 = vunpack.c.l.b16 %v3329
  %v3697 = vunpack.c.h.b16 %v3329
  %v3698 = vunpack.c.l.b16 %v3330
  %v3699 = vunpack.c.h.b16 %v3330
  %v3700 = vunpack.c.l.b16 %v3331
  %v3701 = vunpack.c.h.b16 %v3331
  %v3702 = vunpack.c.l.b16 %v3332
  %v3703 = vunpack.c.h.b16 %v3332
  %v3704 = vunpack.c.l.b16 %v3333
  %v3705 = vunpack.c.h.b16 %v3333
  %v3706 = vunpack.c.l.b16 %v3334
  %v3707 = vunpack.c.h.b16 %v3334
  %v3708 = vunpack.c.l.b16 %v3335
  %v3709 = vunpack.c.h.b16 %v3335
  %v3710 = vunpack.c.l.b16 %v3336
  %v3711 = vunpack.c.h.b16 %v3336
  %v3712 = vunpack.c.l.b16 %v3337
  %v3713 = vunpack.c.h.b16 %v3337
  %v3714 = vunpack.c.l.b16 %v3338
  %v3715 = vunpack.c.h.b16 %v3338
  %v3716 = vunpack.c.l.b16 %v3339
  %v3717 = vunpack.c.h.b16 %v3339
  %v3718 = vunpack.c.l.b16 %v3340
  %v3719 = vunpack.c.h.b16 %v3340
  %v3720 = vunpack.c.l.b16 %v3341
  %v3721 = vunpack.c.h.b16 %v3341
  %v3722 = vunpack.c.l.b16 %v3342
  %v3723 = vunpack.c.h.b16 %v3342
  %v3724 = vunpack.c.l.b16 %v3343
  %v3725 = vunpack.c.h.b16 %v3343
  %v3726 = vunpack.c.l.b16 %v3344
  %v3727 = vunpack.c.h.b16 %v3344
  %v3728 = vunpack.c.l.b16 %v3345
  %v3729 = vunpack.c.h.b16 %v3345
  %v3730 = vpack.c.b16 %v3478, %v3474
  %v3731 = vpack.c.b16 %v3479, %v3475
  %v3732 = vpack.c.b16 %v3480, %v3476
  %v3733 = vpack.c.b16 %v3481, %v3477
  %v3734 = vpack.c.b16 %v3486, %v3482
  %v3735 = vpack.c.b16 %v3487, %v3483
  %v3736 = vpack.c.b16 %v3488, %v3484
  %v3737 = vpack.c.b16 %v3489, %v3485
  %v3738 = vpack.c.b16 %v3494, %v3490
  %v3739 = vpack.c.b16 %v3495, %v3491
  %v3740 = vpack.c.b16 %v3496, %v3492
  %v3741 = vpack.c.b16 %v3497, %v3493
  %v3742 = vpack.c.b16 %v3502, %v3498
  %v3743 = vpack.c.b16 %v3503, %v3499
  %v3744 = vpack.c.b16 %v3504, %v3500
  %v3745 = vpack.c.b16 %v3505, %v3501
  %v3746 = vpack.c.b16 %v3510, %v3506
  %v3747 = vpack.c.b16 %v3511, %v3507
  %v3748 = vpack.c.b16 %v3512, %v3508
  %v3749 = vpack.c.b16 %v3513, %v3509
  %v3750 = vpack.c.b16 %v3518, %v3514
  %v3751 = vpack.c.b16 %v3519, %v3515
  %v3752 = vpack.c.b16 %v3520, %v3516
  %v3753 = vpack.c.b16 %v3521, %v3517
  %v3754 = vpack.c.b16 %v3526, %v3522
  %v3755 = vpack.c.b16 %v3527, %v3523
  %v3756 = vpack.c.b16 %v3528, %v3524
  %v3757 = vpack.c.b16 %v3529, %v3525
  %v3758 = vpack.c.b16 %v3534, %v3530
  %v3759 = vpack.c.b16 %v3535, %v3531
  %v3760 = vpack.c.b16 %v3536, %v3532
  %v3761 = vpack.c.b16 %v3537, %v3533
  %v3762 = vpack.c.b16 %v3542, %v3538
  %v3763 = vpack.c.b16 %v3543, %v3539
  %v3764 = vpack.c.b16 %v3544, %v3540
  %v3765 = vpack.c.b16 %v3545, %v3541
  %v3766 = vpack.c.b16 %v3550, %v3546
  %v3767 = vpack.c.b16 %v3551, %v3547
  %v3768 = vpack.c.b16 %v3552, %v3548
  %v3769 = vpack.c.b16 %v3553, %v3549
  %v3770 = vpack.c.b16 %v3558, %v3554
  %v3771 = vpack.c.b16 %v3559, %v3555
  %v3772 = vpack.c.b16 %v3560, %v3556
  %v3773 = vpack.c.b16 %v3561, %v3557
  %v3774 = vpack.c.b16 %v3566, %v3562
  %v3775 = vpack.c.b16 %v3567, %v3563
  %v3776 = vpack.c.b16 %v3568, %v3564
  %v3777 = vpack.c.b16 %v3569, %v3565
  %v3778 = vpack.c.b16 %v3574, %v3570
  %v3779 = vpack.c.b16 %v3575, %v3571
  %v3780 = vpack.c.b16 %v3576, %v3572
  %v3781 = vpack.c.b16 %v3577, %v3573
  %v3782 = vpack.c.b16 %v3582, %v3578
  %v3783 = vpack.c.b16 %v3583, %v3579
  %v3784 = vpack.c.b16 %v3584, %v3580
  %v3785 = vpack.c.b16 %v3585, %v3581
  %v3786 = vpack.c.b16 %v3590, %v3586
  %v3787 = vpack.c.b16 %v3591, %v3587
  %v3788 = vpack.c.b16 %v3592, %v3588
  %v3789 = vpack.c.b16 %v3593, %v3589
  %v3790 = vpack.c.b16 %v3598, %v3594
  %v3791 = vpack.c.b16 %v3599, %v3595
  %v3792 = vpack.c.b16 %v3600, %v3596
  %v3793 = vpack.c.b16 %v3601, %v3597
  %v3794 = vpack.c.b16 %v3606, %v3602
  %v3795 = vpack.c.b16 %v3607, %v3603
  %v3796 = vpack.c.b16 %v3608, %v3604
  %v3797 = vpack.c.b16 %v3609, %v3605
  %v3798 = vpack.c.b16 %v3614, %v3610
  %v3799 = vpack.c.b16 %v3615, %v3611
  %v3800 = vpack.c.b16 %v3616, %v3612
  %v3801 = vpack.c.b16 %v3617, %v3613
  %v3802 = vpack.c.b16 %v3622, %v3618
  %v3803 = vpack.c.b16 %v3623, %v3619
  %v3804 = vpack.c.b16 %v3624, %v3620
  %v3805 = vpack.c.b16 %v3625, %v3621
  %v3806 = vpack.c.b16 %v3630, %v3626
  %v3807 = vpack.c.b16 %v3631, %v3627
  %v3808 = vpack.c.b16 %v3632, %v3628
  %v3809 = vpack.c.b16 %v3633, %v3629
  %v3810 = vpack.c.b16 %v3638, %v3634
  %v3811 = vpack.c.b16 %v3639, %v3635
  %v3812 = vpack.c.b16 %v3640, %v3636
  %v3813 = vpack.c.b16 %v3641, %v3637
  %v3814 = vpack.c.b16 %v3646, %v3642
  %v3815 = vpack.c.b16 %v3647, %v3643
  %v3816 = vpack.c.b16 %v3648, %v3644
  %v3817 = vpack.c.b16 %v3649, %v3645
  %v3818 = vpack.c.b16 %v3654, %v3650
  %v3819 = vpack.c.b16 %v3655, %v3651
  %v3820 = vpack.c.b16 %v3656, %v3652
  %v3821 = vpack.c.b16 %v3657, %v3653
  %v3822 = vpack.c.b16 %v3662, %v3658
  %v3823 = vpack.c.b16 %v3663, %v3659
  %v3824 = vpack.c.b16 %v3664, %v3660
  %v3825 = vpack.c.b16 %v3665, %v3661
  %v3826 = vpack.c.b16 %v3670, %v3666
  %v3827 = vpack.c.b16 %v3671, %v3667
  %v3828 = vpack.c.b16 %v3672, %v3668
  %v3829 = vpack.c.b16 %v3673, %v3669
  %v3830 = vpack.c.b16 %v3678, %v3674
  %v3831 = vpack.c.b16 %v3679, %v3675
  %v3832 = vpack.c.b16 %v3680, %v3676
  %v3833 = vpack.c.b16 %v3681, %v3677
  %v3834 = vpack.c.b16 %v3686, %v3682
  %v3835 = vpack.c.b16 %v3687, %v3683
  %v3836 = vpack.c.b16 %v3688, %v3684
  %v3837 = vpack.c.b16 %v3689, %v3685
  %v3838 = vpack.c.b16 %v3694, %v3690
  %v3839 = vpack.c.b16 %v3695, %v3691
  %v3840 = vpack.c.b16 %v3696, %v3692
  %v3841 = vpack.c.b16 %v3697, %v3693
  %v3842 = vpack.c.b16 %v3702, %v3698
  %v3843 = vpack.c.b16 %v3703, %v3699
  %v3844 = vpack.c.b16 %v3704, %v3700
  %v3845 = vpack.c.b16 %v3705, %v3701
  %v3846 = vpack.c.b16 %v3710, %v3706
  %v3847 = vpack.c.b16 %v3711, %v3707
  %v3848 = vpack.c.b16 %v3712, %v3708
  %v3849 = vpack.c.b16 %v3713, %v3709
  %v3850 = vpack.c.b16 %v3718, %v3714
  %v3851 = vpack.c.b16 %v3719, %v3715
  %v3852 = vpack.c.b16 %v3720, %v3716
  %v3853 = vpack.c.b16 %v3721, %v3717
  %v3854 = vpack.c.b16 %v3726, %v3722
  %v3855 = vpack.c.b16 %v3727, %v3723
  %v3856 = vpack.c.b16 %v3728, %v3724
  %v3857 = vpack.c.b16 %v3729, %v3725
  %3986 = vmatprep.subr.bf16.mxu0 %v3731
  %3987 = vmatpush1.bf16.msra.mxu0 %v3730
  %3988 = vmatprep.subr.bf16.mxu0 %v3735
  %3989 = vmatpush1.bf16.msra.mxu0 %v3734
  %3990 = vmatprep.subr.bf16.mxu0 %v3739
  %3991 = vmatpush1.bf16.msra.mxu0 %v3738
  %3992 = vmatprep.subr.bf16.mxu0 %v3743
  %3993 = vmatpush1.bf16.msra.mxu0 %v3742
  %3994 = vmatprep.subr.bf16.mxu0 %v3747
  %3995 = vmatpush1.bf16.msra.mxu0 %v3746
  %3996 = vmatprep.subr.bf16.mxu0 %v3751
  %3997 = vmatpush1.bf16.msra.mxu0 %v3750
  %3998 = vmatprep.subr.bf16.mxu0 %v3755
  %3999 = vmatpush1.bf16.msra.mxu0 %v3754
  %4000 = vmatprep.subr.bf16.mxu0 %v3759
  %4001 = vmatpush1.bf16.msra.mxu0 %v3758
  %4002 = vmatprep.subr.bf16.mxu0 %v3763
  %4003 = vmatpush1.bf16.msra.mxu0 %v3762
  %4004 = vmatprep.subr.bf16.mxu0 %v3767
  %4005 = vmatpush1.bf16.msra.mxu0 %v3766
  %4006 = vmatprep.subr.bf16.mxu0 %v3771
  %4007 = vmatpush1.bf16.msra.mxu0 %v3770
  %4008 = vmatprep.subr.bf16.mxu0 %v3775
  %4009 = vmatpush1.bf16.msra.mxu0 %v3774
  %4010 = vmatprep.subr.bf16.mxu0 %v3779
  %4011 = vmatpush1.bf16.msra.mxu0 %v3778
  %4012 = vmatprep.subr.bf16.mxu0 %v3783
  %4013 = vmatpush1.bf16.msra.mxu0 %v3782
  %4014 = vmatprep.subr.bf16.mxu0 %v3787
  %4015 = vmatpush1.bf16.msra.mxu0 %v3786
  %4016 = vmatprep.subr.bf16.mxu0 %v3791
  %4017 = vmatpush1.bf16.msra.mxu0 %v3790
  %4018 = vmatprep.mubr.bf16.mxu0 %v3042
  %4019 = vmatmul.mubr.bf16.gmra.mrb[0].mxu0 %v3041
  %v4020 = vpop.f32.mrb[0].mxu0
  %v4021 = vadd.f32 0.0, %v4020
  %v4022 = vpop.f32.mrb[0].mxu0
  %v4023 = vadd.f32 0.0, %v4022
  %v4024 = vpop.f32.mrb[0].mxu0
  %v4025 = vadd.f32 0.0, %v4024
  %v4026 = vpop.f32.mrb[0].mxu0
  %v4027 = vadd.f32 0.0, %v4026
  %4028 = vmatprep.mubr.bf16.mxu0 %v3046
  %4029 = vmatmul.mubr.bf16.gmra.mrb[0].mxu0 %v3045
  %v4030 = vpop.f32.mrb[0].mxu0
  %v4031 = vadd.f32 0.0, %v4030
  %v4032 = vpop.f32.mrb[0].mxu0
  %v4033 = vadd.f32 0.0, %v4032
  %v4034 = vpop.f32.mrb[0].mxu0
  %v4035 = vadd.f32 0.0, %v4034
  %v4036 = vpop.f32.mrb[0].mxu0
  %v4037 = vadd.f32 0.0, %v4036
  %4038 = vmatprep.mubr.bf16.mxu0 %v3050
  %4039 = vmatmul.mubr.bf16.gmra.mrb[0].mxu0 %v3049
  %v4040 = vpop.f32.mrb[0].mxu0
  %v4041 = vadd.f32 0.0, %v4040
  %v4042 = vpop.f32.mrb[0].mxu0
  %v4043 = vadd.f32 0.0, %v4042
  %v4044 = vpop.f32.mrb[0].mxu0
  %v4045 = vadd.f32 0.0, %v4044
  %v4046 = vpop.f32.mrb[0].mxu0
  %v4047 = vadd.f32 0.0, %v4046
  %4048 = vmatprep.mubr.bf16.mxu0 %v3054
  %4049 = vmatmul.mubr.bf16.gmra.mrb[0].mxu0 %v3053
  %v4050 = vpop.f32.mrb[0].mxu0
  %v4051 = vadd.f32 0.0, %v4050
  %v4052 = vpop.f32.mrb[0].mxu0
  %v4053 = vadd.f32 0.0, %v4052
  %v4054 = vpop.f32.mrb[0].mxu0
  %v4055 = vadd.f32 0.0, %v4054
  %v4056 = vpop.f32.mrb[0].mxu0
  %v4057 = vadd.f32 0.0, %v4056
  %4058 = vmatprep.mubr.bf16.mxu0 %v3058
  %4059 = vmatmul.mubr.bf16.gmra.mrb[0].mxu0 %v3057
  %v4060 = vpop.f32.mrb[0].mxu0
  %v4061 = vadd.f32 0.0, %v4060
  %v4062 = vpop.f32.mrb[0].mxu0
  %v4063 = vadd.f32 0.0, %v4062
  %v4064 = vpop.f32.mrb[0].mxu0
  %v4065 = vadd.f32 0.0, %v4064
  %v4066 = vpop.f32.mrb[0].mxu0
  %v4067 = vadd.f32 0.0, %v4066
  %4068 = vmatprep.mubr.bf16.mxu0 %v3062
  %4069 = vmatmul.mubr.bf16.gmra.mrb[0].mxu0 %v3061
  %v4070 = vpop.f32.mrb[0].mxu0
  %v4071 = vadd.f32 0.0, %v4070
  %v4072 = vpop.f32.mrb[0].mxu0
  %v4073 = vadd.f32 0.0, %v4072
  %v4074 = vpop.f32.mrb[0].mxu0
  %v4075 = vadd.f32 0.0, %v4074
  %v4076 = vpop.f32.mrb[0].mxu0
  %v4077 = vadd.f32 0.0, %v4076
  %4078 = vmatprep.mubr.bf16.mxu0 %v3066
  %4079 = vmatmul.mubr.bf16.gmra.mrb[0].mxu0 %v3065
  %v4080 = vpop.f32.mrb[0].mxu0
  %v4081 = vadd.f32 0.0, %v4080
  %v4082 = vpop.f32.mrb[0].mxu0
  %v4083 = vadd.f32 0.0, %v4082
  %v4084 = vpop.f32.mrb[0].mxu0
  %v4085 = vadd.f32 0.0, %v4084
  %v4086 = vpop.f32.mrb[0].mxu0
  %v4087 = vadd.f32 0.0, %v4086
  %4088 = vmatprep.mubr.bf16.mxu0 %v3070
  %4089 = vmatmul.mubr.bf16.gmra.mrb[0].mxu0 %v3069
  %v4090 = vpop.f32.mrb[0].mxu0
  %v4091 = vadd.f32 0.0, %v4090
  %v4092 = vpop.f32.mrb[0].mxu0
  %v4093 = vadd.f32 0.0, %v4092
  %v4094 = vpop.f32.mrb[0].mxu0
  %v4095 = vadd.f32 0.0, %v4094
  %v4096 = vpop.f32.mrb[0].mxu0
  %v4097 = vadd.f32 0.0, %v4096
  %4098 = vdwg.mxu0
  %4099 = vmatprep.subr.bf16.mxu0 %v3795
  %4100 = vmatpush1.bf16.msra.mxu0 %v3794
  %4101 = vmatprep.subr.bf16.mxu0 %v3799
  %4102 = vmatpush1.bf16.msra.mxu0 %v3798
  %4103 = vmatprep.subr.bf16.mxu0 %v3803
  %4104 = vmatpush1.bf16.msra.mxu0 %v3802
  %4105 = vmatprep.subr.bf16.mxu0 %v3807
  %4106 = vmatpush1.bf16.msra.mxu0 %v3806
  %4107 = vmatprep.subr.bf16.mxu0 %v3811
  %4108 = vmatpush1.bf16.msra.mxu0 %v3810
  %4109 = vmatprep.subr.bf16.mxu0 %v3815
  %4110 = vmatpush1.bf16.msra.mxu0 %v3814
  %4111 = vmatprep.subr.bf16.mxu0 %v3819
  %4112 = vmatpush1.bf16.msra.mxu0 %v3818
  %4113 = vmatprep.subr.bf16.mxu0 %v3823
  %4114 = vmatpush1.bf16.msra.mxu0 %v3822
  %4115 = vmatprep.subr.bf16.mxu0 %v3827
  %4116 = vmatpush1.bf16.msra.mxu0 %v3826
  %4117 = vmatprep.subr.bf16.mxu0 %v3831
  %4118 = vmatpush1.bf16.msra.mxu0 %v3830
  %4119 = vmatprep.subr.bf16.mxu0 %v3835
  %4120 = vmatpush1.bf16.msra.mxu0 %v3834
  %4121 = vmatprep.subr.bf16.mxu0 %v3839
  %4122 = vmatpush1.bf16.msra.mxu0 %v3838
  %4123 = vmatprep.subr.bf16.mxu0 %v3843
  %4124 = vmatpush1.bf16.msra.mxu0 %v3842
  %4125 = vmatprep.subr.bf16.mxu0 %v3847
  %4126 = vmatpush1.bf16.msra.mxu0 %v3846
  %4127 = vmatprep.subr.bf16.mxu0 %v3851
  %4128 = vmatpush1.bf16.msra.mxu0 %v3850
  %4129 = vmatprep.subr.bf16.mxu0 %v3855
  %4130 = vmatpush1.bf16.msra.mxu0 %v3854
  %4131 = vmatprep.mubr.bf16.mxu0 %v3044
  %4132 = vmatmul.mubr.bf16.gmra.mrb[0].mxu0 %v3043
  %v4133 = vpop.f32.mrb[0].mxu0
  %v4134 = vadd.f32 %v4021, %v4133
  %v4135 = vpop.f32.mrb[0].mxu0
  %v4136 = vadd.f32 %v4023, %v4135
  %v4137 = vpop.f32.mrb[0].mxu0
  %v4138 = vadd.f32 %v4025, %v4137
  %v4139 = vpop.f32.mrb[0].mxu0
  %v4140 = vadd.f32 %v4027, %v4139
  %4141 = vmatprep.mubr.bf16.mxu0 %v3048
  %4142 = vmatmul.mubr.bf16.gmra.mrb[0].mxu0 %v3047
  %v4143 = vpop.f32.mrb[0].mxu0
  %v4144 = vadd.f32 %v4031, %v4143
  %v4145 = vpop.f32.mrb[0].mxu0
  %v4146 = vadd.f32 %v4033, %v4145
  %v4147 = vpop.f32.mrb[0].mxu0
  %v4148 = vadd.f32 %v4035, %v4147
  %v4149 = vpop.f32.mrb[0].mxu0
  %v4150 = vadd.f32 %v4037, %v4149
  %4151 = vmatprep.mubr.bf16.mxu0 %v3052
  %4152 = vmatmul.mubr.bf16.gmra.mrb[0].mxu0 %v3051
  %v4153 = vpop.f32.mrb[0].mxu0
  %v4154 = vadd.f32 %v4041, %v4153
  %v4155 = vpop.f32.mrb[0].mxu0
  %v4156 = vadd.f32 %v4043, %v4155
  %v4157 = vpop.f32.mrb[0].mxu0
  %v4158 = vadd.f32 %v4045, %v4157
  %v4159 = vpop.f32.mrb[0].mxu0
  %v4160 = vadd.f32 %v4047, %v4159
  %4161 = vmatprep.mubr.bf16.mxu0 %v3056
  %4162 = vmatmul.mubr.bf16.gmra.mrb[0].mxu0 %v3055
  %v4163 = vpop.f32.mrb[0].mxu0
  %v4164 = vadd.f32 %v4051, %v4163
  %v4165 = vpop.f32.mrb[0].mxu0
  %v4166 = vadd.f32 %v4053, %v4165
  %v4167 = vpop.f32.mrb[0].mxu0
  %v4168 = vadd.f32 %v4055, %v4167
  %v4169 = vpop.f32.mrb[0].mxu0
  %v4170 = vadd.f32 %v4057, %v4169
  %4171 = vmatprep.mubr.bf16.mxu0 %v3060
  %4172 = vmatmul.mubr.bf16.gmra.mrb[0].mxu0 %v3059
  %v4173 = vpop.f32.mrb[0].mxu0
  %v4174 = vadd.f32 %v4061, %v4173
  %v4175 = vpop.f32.mrb[0].mxu0
  %v4176 = vadd.f32 %v4063, %v4175
  %v4177 = vpop.f32.mrb[0].mxu0
  %v4178 = vadd.f32 %v4065, %v4177
  %v4179 = vpop.f32.mrb[0].mxu0
  %v4180 = vadd.f32 %v4067, %v4179
  %4181 = vmatprep.mubr.bf16.mxu0 %v3064
  %4182 = vmatmul.mubr.bf16.gmra.mrb[0].mxu0 %v3063
  %v4183 = vpop.f32.mrb[0].mxu0
  %v4184 = vadd.f32 %v4071, %v4183
  %v4185 = vpop.f32.mrb[0].mxu0
  %v4186 = vadd.f32 %v4073, %v4185
  %v4187 = vpop.f32.mrb[0].mxu0
  %v4188 = vadd.f32 %v4075, %v4187
  %v4189 = vpop.f32.mrb[0].mxu0
  %v4190 = vadd.f32 %v4077, %v4189
  %4191 = vmatprep.mubr.bf16.mxu0 %v3068
  %4192 = vmatmul.mubr.bf16.gmra.mrb[0].mxu0 %v3067
  %v4193 = vpop.f32.mrb[0].mxu0
  %v4194 = vadd.f32 %v4081, %v4193
  %v4195 = vpop.f32.mrb[0].mxu0
  %v4196 = vadd.f32 %v4083, %v4195
  %v4197 = vpop.f32.mrb[0].mxu0
  %v4198 = vadd.f32 %v4085, %v4197
  %v4199 = vpop.f32.mrb[0].mxu0
  %v4200 = vadd.f32 %v4087, %v4199
  %4201 = vmatprep.mubr.bf16.mxu0 %v3072
  %4202 = vmatmul.mubr.bf16.gmra.mrb[0].mxu0 %v3071
  %v4203 = vpop.f32.mrb[0].mxu0
  %v4204 = vadd.f32 %v4091, %v4203
  %v4205 = vpop.f32.mrb[0].mxu0
  %v4206 = vadd.f32 %v4093, %v4205
  %v4207 = vpop.f32.mrb[0].mxu0
  %v4208 = vadd.f32 %v4095, %v4207
  %v4209 = vpop.f32.mrb[0].mxu0
  %v4210 = vadd.f32 %v4097, %v4209
  %4211 = vdwg.mxu0
  %4212 = vmatprep.subr.bf16.mxu0 %v3733
  %4213 = vmatpush1.bf16.msra.mxu0 %v3732
  %4214 = vmatprep.subr.bf16.mxu0 %v3737
  %4215 = vmatpush1.bf16.msra.mxu0 %v3736
  %4216 = vmatprep.subr.bf16.mxu0 %v3741
  %4217 = vmatpush1.bf16.msra.mxu0 %v3740
  %4218 = vmatprep.subr.bf16.mxu0 %v3745
  %4219 = vmatpush1.bf16.msra.mxu0 %v3744
  %4220 = vmatprep.subr.bf16.mxu0 %v3749
  %4221 = vmatpush1.bf16.msra.mxu0 %v3748
  %4222 = vmatprep.subr.bf16.mxu0 %v3753
  %4223 = vmatpush1.bf16.msra.mxu0 %v3752
  %4224 = vmatprep.subr.bf16.mxu0 %v3757
  %4225 = vmatpush1.bf16.msra.mxu0 %v3756
  %4226 = vmatprep.subr.bf16.mxu0 %v3761
  %4227 = vmatpush1.bf16.msra.mxu0 %v3760
  %4228 = vmatprep.subr.bf16.mxu0 %v3765
  %4229 = vmatpush1.bf16.msra.mxu0 %v3764
  %4230 = vmatprep.subr.bf16.mxu0 %v3769
  %4231 = vmatpush1.bf16.msra.mxu0 %v3768
  %4232 = vmatprep.subr.bf16.mxu0 %v3773
  %4233 = vmatpush1.bf16.msra.mxu0 %v3772
  %4234 = vmatprep.subr.bf16.mxu0 %v3777
  %4235 = vmatpush1.bf16.msra.mxu0 %v3776
  %4236 = vmatprep.subr.bf16.mxu0 %v3781
  %4237 = vmatpush1.bf16.msra.mxu0 %v3780
  %4238 = vmatprep.subr.bf16.mxu0 %v3785
  %4239 = vmatpush1.bf16.msra.mxu0 %v3784
  %4240 = vmatprep.subr.bf16.mxu0 %v3789
  %4241 = vmatpush1.bf16.msra.mxu0 %v3788
  %4242 = vmatprep.subr.bf16.mxu0 %v3793
  %4243 = vmatpush1.bf16.msra.mxu0 %v3792
  %4244 = vmatprep.mubr.bf16.mxu0 %v3042
  %4245 = vmatmul.mubr.bf16.gmra.mrb[0].mxu0 %v3041
  %v4246 = vpop.f32.mrb[0].mxu0
  %v4247 = vadd.f32 0.0, %v4246
  %v4248 = vpop.f32.mrb[0].mxu0
  %v4249 = vadd.f32 0.0, %v4248
  %v4250 = vpop.f32.mrb[0].mxu0
  %v4251 = vadd.f32 0.0, %v4250
  %v4252 = vpop.f32.mrb[0].mxu0
  %v4253 = vadd.f32 0.0, %v4252
  %4254 = vmatprep.mubr.bf16.mxu0 %v3046
  %4255 = vmatmul.mubr.bf16.gmra.mrb[0].mxu0 %v3045
  %v4256 = vpop.f32.mrb[0].mxu0
  %v4257 = vadd.f32 0.0, %v4256
  %v4258 = vpop.f32.mrb[0].mxu0
  %v4259 = vadd.f32 0.0, %v4258
  %v4260 = vpop.f32.mrb[0].mxu0
  %v4261 = vadd.f32 0.0, %v4260
  %v4262 = vpop.f32.mrb[0].mxu0
  %v4263 = vadd.f32 0.0, %v4262
  %4264 = vmatprep.mubr.bf16.mxu0 %v3050
  %4265 = vmatmul.mubr.bf16.gmra.mrb[0].mxu0 %v3049
  %v4266 = vpop.f32.mrb[0].mxu0
  %v4267 = vadd.f32 0.0, %v4266
  %v4268 = vpop.f32.mrb[0].mxu0
  %v4269 = vadd.f32 0.0, %v4268
  %v4270 = vpop.f32.mrb[0].mxu0
  %v4271 = vadd.f32 0.0, %v4270
  %v4272 = vpop.f32.mrb[0].mxu0
  %v4273 = vadd.f32 0.0, %v4272
  %4274 = vmatprep.mubr.bf16.mxu0 %v3054
  %4275 = vmatmul.mubr.bf16.gmra.mrb[0].mxu0 %v3053
  %v4276 = vpop.f32.mrb[0].mxu0
  %v4277 = vadd.f32 0.0, %v4276
  %v4278 = vpop.f32.mrb[0].mxu0
  %v4279 = vadd.f32 0.0, %v4278
  %v4280 = vpop.f32.mrb[0].mxu0
  %v4281 = vadd.f32 0.0, %v4280
  %v4282 = vpop.f32.mrb[0].mxu0
  %v4283 = vadd.f32 0.0, %v4282
  %4284 = vmatprep.mubr.bf16.mxu0 %v3058
  %4285 = vmatmul.mubr.bf16.gmra.mrb[0].mxu0 %v3057
  %v4286 = vpop.f32.mrb[0].mxu0
  %v4287 = vadd.f32 0.0, %v4286
  %v4288 = vpop.f32.mrb[0].mxu0
  %v4289 = vadd.f32 0.0, %v4288
  %v4290 = vpop.f32.mrb[0].mxu0
  %v4291 = vadd.f32 0.0, %v4290
  %v4292 = vpop.f32.mrb[0].mxu0
  %v4293 = vadd.f32 0.0, %v4292
  %4294 = vmatprep.mubr.bf16.mxu0 %v3062
  %4295 = vmatmul.mubr.bf16.gmra.mrb[0].mxu0 %v3061
  %v4296 = vpop.f32.mrb[0].mxu0
  %v4297 = vadd.f32 0.0, %v4296
  %v4298 = vpop.f32.mrb[0].mxu0
  %v4299 = vadd.f32 0.0, %v4298
  %v4300 = vpop.f32.mrb[0].mxu0
  %v4301 = vadd.f32 0.0, %v4300
  %v4302 = vpop.f32.mrb[0].mxu0
  %v4303 = vadd.f32 0.0, %v4302
  %4304 = vmatprep.mubr.bf16.mxu0 %v3066
  %4305 = vmatmul.mubr.bf16.gmra.mrb[0].mxu0 %v3065
  %v4306 = vpop.f32.mrb[0].mxu0
  %v4307 = vadd.f32 0.0, %v4306
  %v4308 = vpop.f32.mrb[0].mxu0
  %v4309 = vadd.f32 0.0, %v4308
  %v4310 = vpop.f32.mrb[0].mxu0
  %v4311 = vadd.f32 0.0, %v4310
  %v4312 = vpop.f32.mrb[0].mxu0
  %v4313 = vadd.f32 0.0, %v4312
  %4314 = vmatprep.mubr.bf16.mxu0 %v3070
  %4315 = vmatmul.mubr.bf16.gmra.mrb[0].mxu0 %v3069
  %v4316 = vpop.f32.mrb[0].mxu0
  %v4317 = vadd.f32 0.0, %v4316
  %v4318 = vpop.f32.mrb[0].mxu0
  %v4319 = vadd.f32 0.0, %v4318
  %v4320 = vpop.f32.mrb[0].mxu0
  %v4321 = vadd.f32 0.0, %v4320
  %v4322 = vpop.f32.mrb[0].mxu0
  %v4323 = vadd.f32 0.0, %v4322
  %4324 = vdwg.mxu0
  %4325 = vmatprep.subr.bf16.mxu0 %v3797
  %4326 = vmatpush1.bf16.msra.mxu0 %v3796
  %4327 = vmatprep.subr.bf16.mxu0 %v3801
  %4328 = vmatpush1.bf16.msra.mxu0 %v3800
  %4329 = vmatprep.subr.bf16.mxu0 %v3805
  %4330 = vmatpush1.bf16.msra.mxu0 %v3804
  %4331 = vmatprep.subr.bf16.mxu0 %v3809
  %4332 = vmatpush1.bf16.msra.mxu0 %v3808
  %4333 = vmatprep.subr.bf16.mxu0 %v3813
  %4334 = vmatpush1.bf16.msra.mxu0 %v3812
  %4335 = vmatprep.subr.bf16.mxu0 %v3817
  %4336 = vmatpush1.bf16.msra.mxu0 %v3816
  %4337 = vmatprep.subr.bf16.mxu0 %v3821
  %4338 = vmatpush1.bf16.msra.mxu0 %v3820
  %4339 = vmatprep.subr.bf16.mxu0 %v3825
  %4340 = vmatpush1.bf16.msra.mxu0 %v3824
  %4341 = vmatprep.subr.bf16.mxu0 %v3829
  %4342 = vmatpush1.bf16.msra.mxu0 %v3828
  %4343 = vmatprep.subr.bf16.mxu0 %v3833
  %4344 = vmatpush1.bf16.msra.mxu0 %v3832
  %4345 = vmatprep.subr.bf16.mxu0 %v3837
  %4346 = vmatpush1.bf16.msra.mxu0 %v3836
  %4347 = vmatprep.subr.bf16.mxu0 %v3841
  %4348 = vmatpush1.bf16.msra.mxu0 %v3840
  %4349 = vmatprep.subr.bf16.mxu0 %v3845
  %4350 = vmatpush1.bf16.msra.mxu0 %v3844
  %4351 = vmatprep.subr.bf16.mxu0 %v3849
  %4352 = vmatpush1.bf16.msra.mxu0 %v3848
  %4353 = vmatprep.subr.bf16.mxu0 %v3853
  %4354 = vmatpush1.bf16.msra.mxu0 %v3852
  %4355 = vmatprep.subr.bf16.mxu0 %v3857
  %4356 = vmatpush1.bf16.msra.mxu0 %v3856
  %4357 = vmatprep.mubr.bf16.mxu0 %v3044
  %4358 = vmatmul.mubr.bf16.gmra.mrb[0].mxu0 %v3043
  %v4359 = vpop.f32.mrb[0].mxu0
  %v4360 = vadd.f32 %v4247, %v4359
  %v4361 = vpop.f32.mrb[0].mxu0
  %v4362 = vadd.f32 %v4249, %v4361
  %v4363 = vpop.f32.mrb[0].mxu0
  %v4364 = vadd.f32 %v4251, %v4363
  %v4365 = vpop.f32.mrb[0].mxu0
  %v4366 = vadd.f32 %v4253, %v4365
  %4367 = vmatprep.mubr.bf16.mxu0 %v3048
  %4368 = vmatmul.mubr.bf16.gmra.mrb[0].mxu0 %v3047
  %v4369 = vpop.f32.mrb[0].mxu0
  %v4370 = vadd.f32 %v4257, %v4369
  %v4371 = vpop.f32.mrb[0].mxu0
  %v4372 = vadd.f32 %v4259, %v4371
  %v4373 = vpop.f32.mrb[0].mxu0
  %v4374 = vadd.f32 %v4261, %v4373
  %v4375 = vpop.f32.mrb[0].mxu0
  %v4376 = vadd.f32 %v4263, %v4375
  %4377 = vmatprep.mubr.bf16.mxu0 %v3052
  %4378 = vmatmul.mubr.bf16.gmra.mrb[0].mxu0 %v3051
  %v4379 = vpop.f32.mrb[0].mxu0
  %v4380 = vadd.f32 %v4267, %v4379
  %v4381 = vpop.f32.mrb[0].mxu0
  %v4382 = vadd.f32 %v4269, %v4381
  %v4383 = vpop.f32.mrb[0].mxu0
  %v4384 = vadd.f32 %v4271, %v4383
  %v4385 = vpop.f32.mrb[0].mxu0
  %v4386 = vadd.f32 %v4273, %v4385
  %4387 = vmatprep.mubr.bf16.mxu0 %v3056
  %4388 = vmatmul.mubr.bf16.gmra.mrb[0].mxu0 %v3055
  %v4389 = vpop.f32.mrb[0].mxu0
  %v4390 = vadd.f32 %v4277, %v4389
  %v4391 = vpop.f32.mrb[0].mxu0
  %v4392 = vadd.f32 %v4279, %v4391
  %v4393 = vpop.f32.mrb[0].mxu0
  %v4394 = vadd.f32 %v4281, %v4393
  %v4395 = vpop.f32.mrb[0].mxu0
  %v4396 = vadd.f32 %v4283, %v4395
  %4397 = vmatprep.mubr.bf16.mxu0 %v3060
  %4398 = vmatmul.mubr.bf16.gmra.mrb[0].mxu0 %v3059
  %v4399 = vpop.f32.mrb[0].mxu0
  %v4400 = vadd.f32 %v4287, %v4399
  %v4401 = vpop.f32.mrb[0].mxu0
  %v4402 = vadd.f32 %v4289, %v4401
  %v4403 = vpop.f32.mrb[0].mxu0
  %v4404 = vadd.f32 %v4291, %v4403
  %v4405 = vpop.f32.mrb[0].mxu0
  %v4406 = vadd.f32 %v4293, %v4405
  %4407 = vmatprep.mubr.bf16.mxu0 %v3064
  %4408 = vmatmul.mubr.bf16.gmra.mrb[0].mxu0 %v3063
  %v4409 = vpop.f32.mrb[0].mxu0
  %v4410 = vadd.f32 %v4297, %v4409
  %v4411 = vpop.f32.mrb[0].mxu0
  %v4412 = vadd.f32 %v4299, %v4411
  %v4413 = vpop.f32.mrb[0].mxu0
  %v4414 = vadd.f32 %v4301, %v4413
  %v4415 = vpop.f32.mrb[0].mxu0
  %v4416 = vadd.f32 %v4303, %v4415
  %4417 = vmatprep.mubr.bf16.mxu0 %v3068
  %4418 = vmatmul.mubr.bf16.gmra.mrb[0].mxu0 %v3067
  %v4419 = vpop.f32.mrb[0].mxu0
  %v4420 = vadd.f32 %v4307, %v4419
  %v4421 = vpop.f32.mrb[0].mxu0
  %v4422 = vadd.f32 %v4309, %v4421
  %v4423 = vpop.f32.mrb[0].mxu0
  %v4424 = vadd.f32 %v4311, %v4423
  %v4425 = vpop.f32.mrb[0].mxu0
  %v4426 = vadd.f32 %v4313, %v4425
  %4427 = vmatprep.mubr.bf16.mxu0 %v3072
  %4428 = vmatmul.mubr.bf16.gmra.mrb[0].mxu0 %v3071
  %v4429 = vpop.f32.mrb[0].mxu0
  %v4430 = vadd.f32 %v4317, %v4429
  %v4431 = vpop.f32.mrb[0].mxu0
  %v4432 = vadd.f32 %v4319, %v4431
  %v4433 = vpop.f32.mrb[0].mxu0
  %v4434 = vadd.f32 %v4321, %v4433
  %v4435 = vpop.f32.mrb[0].mxu0
  %v4436 = vadd.f32 %v4323, %v4435
  %4437 = vdwg.mxu0
  %v4566 = vunpack.c.l.b16 %v3089
  %v4567 = vunpack.c.h.b16 %v3089
  %v4568 = vunpack.c.l.b16 %v3090
  %v4569 = vunpack.c.h.b16 %v3090
  %v4570 = vunpack.c.l.b16 %v3091
  %v4571 = vunpack.c.h.b16 %v3091
  %v4572 = vunpack.c.l.b16 %v3092
  %v4573 = vunpack.c.h.b16 %v3092
  %v4574 = vunpack.c.l.b16 %v3093
  %v4575 = vunpack.c.h.b16 %v3093
  %v4576 = vunpack.c.l.b16 %v3094
  %v4577 = vunpack.c.h.b16 %v3094
  %v4578 = vunpack.c.l.b16 %v3095
  %v4579 = vunpack.c.h.b16 %v3095
  %v4580 = vunpack.c.l.b16 %v3096
  %v4581 = vunpack.c.h.b16 %v3096
  %v4582 = vunpack.c.l.b16 %v3097
  %v4583 = vunpack.c.h.b16 %v3097
  %v4584 = vunpack.c.l.b16 %v3098
  %v4585 = vunpack.c.h.b16 %v3098
  %v4586 = vunpack.c.l.b16 %v3099
  %v4587 = vunpack.c.h.b16 %v3099
  %v4588 = vunpack.c.l.b16 %v3100
  %v4589 = vunpack.c.h.b16 %v3100
  %v4590 = vunpack.c.l.b16 %v3101
  %v4591 = vunpack.c.h.b16 %v3101
  %v4592 = vunpack.c.l.b16 %v3102
  %v4593 = vunpack.c.h.b16 %v3102
  %v4594 = vunpack.c.l.b16 %v3103
  %v4595 = vunpack.c.h.b16 %v3103
  %v4596 = vunpack.c.l.b16 %v3104
  %v4597 = vunpack.c.h.b16 %v3104
  %v4598 = vunpack.c.l.b16 %v3105
  %v4599 = vunpack.c.h.b16 %v3105
  %v4600 = vunpack.c.l.b16 %v3106
  %v4601 = vunpack.c.h.b16 %v3106
  %v4602 = vunpack.c.l.b16 %v3107
  %v4603 = vunpack.c.h.b16 %v3107
  %v4604 = vunpack.c.l.b16 %v3108
  %v4605 = vunpack.c.h.b16 %v3108
  %v4606 = vunpack.c.l.b16 %v3109
  %v4607 = vunpack.c.h.b16 %v3109
  %v4608 = vunpack.c.l.b16 %v3110
  %v4609 = vunpack.c.h.b16 %v3110
  %v4610 = vunpack.c.l.b16 %v3111
  %v4611 = vunpack.c.h.b16 %v3111
  %v4612 = vunpack.c.l.b16 %v3112
  %v4613 = vunpack.c.h.b16 %v3112
  %v4614 = vunpack.c.l.b16 %v3113
  %v4615 = vunpack.c.h.b16 %v3113
  %v4616 = vunpack.c.l.b16 %v3114
  %v4617 = vunpack.c.h.b16 %v3114
  %v4618 = vunpack.c.l.b16 %v3115
  %v4619 = vunpack.c.h.b16 %v3115
  %v4620 = vunpack.c.l.b16 %v3116
  %v4621 = vunpack.c.h.b16 %v3116
  %v4622 = vunpack.c.l.b16 %v3117
  %v4623 = vunpack.c.h.b16 %v3117
  %v4624 = vunpack.c.l.b16 %v3118
  %v4625 = vunpack.c.h.b16 %v3118
  %v4626 = vunpack.c.l.b16 %v3119
  %v4627 = vunpack.c.h.b16 %v3119
  %v4628 = vunpack.c.l.b16 %v3120
  %v4629 = vunpack.c.h.b16 %v3120
  %v4630 = vunpack.c.l.b16 %v3121
  %v4631 = vunpack.c.h.b16 %v3121
  %v4632 = vunpack.c.l.b16 %v3122
  %v4633 = vunpack.c.h.b16 %v3122
  %v4634 = vunpack.c.l.b16 %v3123
  %v4635 = vunpack.c.h.b16 %v3123
  %v4636 = vunpack.c.l.b16 %v3124
  %v4637 = vunpack.c.h.b16 %v3124
  %v4638 = vunpack.c.l.b16 %v3125
  %v4639 = vunpack.c.h.b16 %v3125
  %v4640 = vunpack.c.l.b16 %v3126
  %v4641 = vunpack.c.h.b16 %v3126
  %v4642 = vunpack.c.l.b16 %v3127
  %v4643 = vunpack.c.h.b16 %v3127
  %v4644 = vunpack.c.l.b16 %v3128
  %v4645 = vunpack.c.h.b16 %v3128
  %v4646 = vunpack.c.l.b16 %v3129
  %v4647 = vunpack.c.h.b16 %v3129
  %v4648 = vunpack.c.l.b16 %v3130
  %v4649 = vunpack.c.h.b16 %v3130
  %v4650 = vunpack.c.l.b16 %v3131
  %v4651 = vunpack.c.h.b16 %v3131
  %v4652 = vunpack.c.l.b16 %v3132
  %v4653 = vunpack.c.h.b16 %v3132
  %v4654 = vunpack.c.l.b16 %v3133
  %v4655 = vunpack.c.h.b16 %v3133
  %v4656 = vunpack.c.l.b16 %v3134
  %v4657 = vunpack.c.h.b16 %v3134
  %v4658 = vunpack.c.l.b16 %v3135
  %v4659 = vunpack.c.h.b16 %v3135
  %v4660 = vunpack.c.l.b16 %v3136
  %v4661 = vunpack.c.h.b16 %v3136
  %v4662 = vunpack.c.l.b16 %v3137
  %v4663 = vunpack.c.h.b16 %v3137
  %v4664 = vunpack.c.l.b16 %v3138
  %v4665 = vunpack.c.h.b16 %v3138
  %v4666 = vunpack.c.l.b16 %v3139
  %v4667 = vunpack.c.h.b16 %v3139
  %v4668 = vunpack.c.l.b16 %v3140
  %v4669 = vunpack.c.h.b16 %v3140
  %v4670 = vunpack.c.l.b16 %v3141
  %v4671 = vunpack.c.h.b16 %v3141
  %v4672 = vunpack.c.l.b16 %v3142
  %v4673 = vunpack.c.h.b16 %v3142
  %v4674 = vunpack.c.l.b16 %v3143
  %v4675 = vunpack.c.h.b16 %v3143
  %v4676 = vunpack.c.l.b16 %v3144
  %v4677 = vunpack.c.h.b16 %v3144
  %v4678 = vunpack.c.l.b16 %v3145
  %v4679 = vunpack.c.h.b16 %v3145
  %v4680 = vunpack.c.l.b16 %v3146
  %v4681 = vunpack.c.h.b16 %v3146
  %v4682 = vunpack.c.l.b16 %v3147
  %v4683 = vunpack.c.h.b16 %v3147
  %v4684 = vunpack.c.l.b16 %v3148
  %v4685 = vunpack.c.h.b16 %v3148
  %v4686 = vunpack.c.l.b16 %v3149
  %v4687 = vunpack.c.h.b16 %v3149
  %v4688 = vunpack.c.l.b16 %v3150
  %v4689 = vunpack.c.h.b16 %v3150
  %v4690 = vunpack.c.l.b16 %v3151
  %v4691 = vunpack.c.h.b16 %v3151
  %v4692 = vunpack.c.l.b16 %v3152
  %v4693 = vunpack.c.h.b16 %v3152
  %v4694 = vunpack.c.l.b16 %v3153
  %v4695 = vunpack.c.h.b16 %v3153
  %v4696 = vunpack.c.l.b16 %v3154
  %v4697 = vunpack.c.h.b16 %v3154
  %v4698 = vunpack.c.l.b16 %v3155
  %v4699 = vunpack.c.h.b16 %v3155
  %v4700 = vunpack.c.l.b16 %v3156
  %v4701 = vunpack.c.h.b16 %v3156
  %v4702 = vunpack.c.l.b16 %v3157
  %v4703 = vunpack.c.h.b16 %v3157
  %v4704 = vunpack.c.l.b16 %v3158
  %v4705 = vunpack.c.h.b16 %v3158
  %v4706 = vunpack.c.l.b16 %v3159
  %v4707 = vunpack.c.h.b16 %v3159
  %v4708 = vunpack.c.l.b16 %v3160
  %v4709 = vunpack.c.h.b16 %v3160
  %v4710 = vunpack.c.l.b16 %v3161
  %v4711 = vunpack.c.h.b16 %v3161
  %v4712 = vunpack.c.l.b16 %v3162
  %v4713 = vunpack.c.h.b16 %v3162
  %v4714 = vunpack.c.l.b16 %v3163
  %v4715 = vunpack.c.h.b16 %v3163
  %v4716 = vunpack.c.l.b16 %v3164
  %v4717 = vunpack.c.h.b16 %v3164
  %v4718 = vunpack.c.l.b16 %v3165
  %v4719 = vunpack.c.h.b16 %v3165
  %v4720 = vunpack.c.l.b16 %v3166
  %v4721 = vunpack.c.h.b16 %v3166
  %v4722 = vunpack.c.l.b16 %v3167
  %v4723 = vunpack.c.h.b16 %v3167
  %v4724 = vunpack.c.l.b16 %v3168
  %v4725 = vunpack.c.h.b16 %v3168
  %v4726 = vunpack.c.l.b16 %v3169
  %v4727 = vunpack.c.h.b16 %v3169
  %v4728 = vunpack.c.l.b16 %v3170
  %v4729 = vunpack.c.h.b16 %v3170
  %v4730 = vunpack.c.l.b16 %v3171
  %v4731 = vunpack.c.h.b16 %v3171
  %v4732 = vunpack.c.l.b16 %v3172
  %v4733 = vunpack.c.h.b16 %v3172
  %v4734 = vunpack.c.l.b16 %v3173
  %v4735 = vunpack.c.h.b16 %v3173
  %v4736 = vunpack.c.l.b16 %v3174
  %v4737 = vunpack.c.h.b16 %v3174
  %v4738 = vunpack.c.l.b16 %v3175
  %v4739 = vunpack.c.h.b16 %v3175
  %v4740 = vunpack.c.l.b16 %v3176
  %v4741 = vunpack.c.h.b16 %v3176
  %v4742 = vunpack.c.l.b16 %v3177
  %v4743 = vunpack.c.h.b16 %v3177
  %v4744 = vunpack.c.l.b16 %v3178
  %v4745 = vunpack.c.h.b16 %v3178
  %v4746 = vunpack.c.l.b16 %v3179
  %v4747 = vunpack.c.h.b16 %v3179
  %v4748 = vunpack.c.l.b16 %v3180
  %v4749 = vunpack.c.h.b16 %v3180
  %v4750 = vunpack.c.l.b16 %v3181
  %v4751 = vunpack.c.h.b16 %v3181
  %v4752 = vunpack.c.l.b16 %v3182
  %v4753 = vunpack.c.h.b16 %v3182
  %v4754 = vunpack.c.l.b16 %v3183
  %v4755 = vunpack.c.h.b16 %v3183
  %v4756 = vunpack.c.l.b16 %v3184
  %v4757 = vunpack.c.h.b16 %v3184
  %v4758 = vunpack.c.l.b16 %v3185
  %v4759 = vunpack.c.h.b16 %v3185
  %v4760 = vunpack.c.l.b16 %v3186
  %v4761 = vunpack.c.h.b16 %v3186
  %v4762 = vunpack.c.l.b16 %v3187
  %v4763 = vunpack.c.h.b16 %v3187
  %v4764 = vunpack.c.l.b16 %v3188
  %v4765 = vunpack.c.h.b16 %v3188
  %v4766 = vunpack.c.l.b16 %v3189
  %v4767 = vunpack.c.h.b16 %v3189
  %v4768 = vunpack.c.l.b16 %v3190
  %v4769 = vunpack.c.h.b16 %v3190
  %v4770 = vunpack.c.l.b16 %v3191
  %v4771 = vunpack.c.h.b16 %v3191
  %v4772 = vunpack.c.l.b16 %v3192
  %v4773 = vunpack.c.h.b16 %v3192
  %v4774 = vunpack.c.l.b16 %v3193
  %v4775 = vunpack.c.h.b16 %v3193
  %v4776 = vunpack.c.l.b16 %v3194
  %v4777 = vunpack.c.h.b16 %v3194
  %v4778 = vunpack.c.l.b16 %v3195
  %v4779 = vunpack.c.h.b16 %v3195
  %v4780 = vunpack.c.l.b16 %v3196
  %v4781 = vunpack.c.h.b16 %v3196
  %v4782 = vunpack.c.l.b16 %v3197
  %v4783 = vunpack.c.h.b16 %v3197
  %v4784 = vunpack.c.l.b16 %v3198
  %v4785 = vunpack.c.h.b16 %v3198
  %v4786 = vunpack.c.l.b16 %v3199
  %v4787 = vunpack.c.h.b16 %v3199
  %v4788 = vunpack.c.l.b16 %v3200
  %v4789 = vunpack.c.h.b16 %v3200
  %v4790 = vunpack.c.l.b16 %v3201
  %v4791 = vunpack.c.h.b16 %v3201
  %v4792 = vunpack.c.l.b16 %v3202
  %v4793 = vunpack.c.h.b16 %v3202
  %v4794 = vunpack.c.l.b16 %v3203
  %v4795 = vunpack.c.h.b16 %v3203
  %v4796 = vunpack.c.l.b16 %v3204
  %v4797 = vunpack.c.h.b16 %v3204
  %v4798 = vunpack.c.l.b16 %v3205
  %v4799 = vunpack.c.h.b16 %v3205
  %v4800 = vunpack.c.l.b16 %v3206
  %v4801 = vunpack.c.h.b16 %v3206
  %v4802 = vunpack.c.l.b16 %v3207
  %v4803 = vunpack.c.h.b16 %v3207
  %v4804 = vunpack.c.l.b16 %v3208
  %v4805 = vunpack.c.h.b16 %v3208
  %v4806 = vunpack.c.l.b16 %v3209
  %v4807 = vunpack.c.h.b16 %v3209
  %v4808 = vunpack.c.l.b16 %v3210
  %v4809 = vunpack.c.h.b16 %v3210
  %v4810 = vunpack.c.l.b16 %v3211
  %v4811 = vunpack.c.h.b16 %v3211
  %v4812 = vunpack.c.l.b16 %v3212
  %v4813 = vunpack.c.h.b16 %v3212
  %v4814 = vunpack.c.l.b16 %v3213
  %v4815 = vunpack.c.h.b16 %v3213
  %v4816 = vunpack.c.l.b16 %v3214
  %v4817 = vunpack.c.h.b16 %v3214
  %v4818 = vunpack.c.l.b16 %v3215
  %v4819 = vunpack.c.h.b16 %v3215
  %v4820 = vunpack.c.l.b16 %v3216
  %v4821 = vunpack.c.h.b16 %v3216
  %v4822 = vpack.c.b16 %v4570, %v4566
  %v4823 = vpack.c.b16 %v4571, %v4567
  %v4824 = vpack.c.b16 %v4572, %v4568
  %v4825 = vpack.c.b16 %v4573, %v4569
  %v4826 = vpack.c.b16 %v4578, %v4574
  %v4827 = vpack.c.b16 %v4579, %v4575
  %v4828 = vpack.c.b16 %v4580, %v4576
  %v4829 = vpack.c.b16 %v4581, %v4577
  %v4830 = vpack.c.b16 %v4586, %v4582
  %v4831 = vpack.c.b16 %v4587, %v4583
  %v4832 = vpack.c.b16 %v4588, %v4584
  %v4833 = vpack.c.b16 %v4589, %v4585
  %v4834 = vpack.c.b16 %v4594, %v4590
  %v4835 = vpack.c.b16 %v4595, %v4591
  %v4836 = vpack.c.b16 %v4596, %v4592
  %v4837 = vpack.c.b16 %v4597, %v4593
  %v4838 = vpack.c.b16 %v4602, %v4598
  %v4839 = vpack.c.b16 %v4603, %v4599
  %v4840 = vpack.c.b16 %v4604, %v4600
  %v4841 = vpack.c.b16 %v4605, %v4601
  %v4842 = vpack.c.b16 %v4610, %v4606
  %v4843 = vpack.c.b16 %v4611, %v4607
  %v4844 = vpack.c.b16 %v4612, %v4608
  %v4845 = vpack.c.b16 %v4613, %v4609
  %v4846 = vpack.c.b16 %v4618, %v4614
  %v4847 = vpack.c.b16 %v4619, %v4615
  %v4848 = vpack.c.b16 %v4620, %v4616
  %v4849 = vpack.c.b16 %v4621, %v4617
  %v4850 = vpack.c.b16 %v4626, %v4622
  %v4851 = vpack.c.b16 %v4627, %v4623
  %v4852 = vpack.c.b16 %v4628, %v4624
  %v4853 = vpack.c.b16 %v4629, %v4625
  %v4854 = vpack.c.b16 %v4634, %v4630
  %v4855 = vpack.c.b16 %v4635, %v4631
  %v4856 = vpack.c.b16 %v4636, %v4632
  %v4857 = vpack.c.b16 %v4637, %v4633
  %v4858 = vpack.c.b16 %v4642, %v4638
  %v4859 = vpack.c.b16 %v4643, %v4639
  %v4860 = vpack.c.b16 %v4644, %v4640
  %v4861 = vpack.c.b16 %v4645, %v4641
  %v4862 = vpack.c.b16 %v4650, %v4646
  %v4863 = vpack.c.b16 %v4651, %v4647
  %v4864 = vpack.c.b16 %v4652, %v4648
  %v4865 = vpack.c.b16 %v4653, %v4649
  %v4866 = vpack.c.b16 %v4658, %v4654
  %v4867 = vpack.c.b16 %v4659, %v4655
  %v4868 = vpack.c.b16 %v4660, %v4656
  %v4869 = vpack.c.b16 %v4661, %v4657
  %v4870 = vpack.c.b16 %v4666, %v4662
  %v4871 = vpack.c.b16 %v4667, %v4663
  %v4872 = vpack.c.b16 %v4668, %v4664
  %v4873 = vpack.c.b16 %v4669, %v4665
  %v4874 = vpack.c.b16 %v4674, %v4670
  %v4875 = vpack.c.b16 %v4675, %v4671
  %v4876 = vpack.c.b16 %v4676, %v4672
  %v4877 = vpack.c.b16 %v4677, %v4673
  %v4878 = vpack.c.b16 %v4682, %v4678
  %v4879 = vpack.c.b16 %v4683, %v4679
  %v4880 = vpack.c.b16 %v4684, %v4680
  %v4881 = vpack.c.b16 %v4685, %v4681
  %v4882 = vpack.c.b16 %v4690, %v4686
  %v4883 = vpack.c.b16 %v4691, %v4687
  %v4884 = vpack.c.b16 %v4692, %v4688
  %v4885 = vpack.c.b16 %v4693, %v4689
  %v4886 = vpack.c.b16 %v4698, %v4694
  %v4887 = vpack.c.b16 %v4699, %v4695
  %v4888 = vpack.c.b16 %v4700, %v4696
  %v4889 = vpack.c.b16 %v4701, %v4697
  %v4890 = vpack.c.b16 %v4706, %v4702
  %v4891 = vpack.c.b16 %v4707, %v4703
  %v4892 = vpack.c.b16 %v4708, %v4704
  %v4893 = vpack.c.b16 %v4709, %v4705
  %v4894 = vpack.c.b16 %v4714, %v4710
  %v4895 = vpack.c.b16 %v4715, %v4711
  %v4896 = vpack.c.b16 %v4716, %v4712
  %v4897 = vpack.c.b16 %v4717, %v4713
  %v4898 = vpack.c.b16 %v4722, %v4718
  %v4899 = vpack.c.b16 %v4723, %v4719
  %v4900 = vpack.c.b16 %v4724, %v4720
  %v4901 = vpack.c.b16 %v4725, %v4721
  %v4902 = vpack.c.b16 %v4730, %v4726
  %v4903 = vpack.c.b16 %v4731, %v4727
  %v4904 = vpack.c.b16 %v4732, %v4728
  %v4905 = vpack.c.b16 %v4733, %v4729
  %v4906 = vpack.c.b16 %v4738, %v4734
  %v4907 = vpack.c.b16 %v4739, %v4735
  %v4908 = vpack.c.b16 %v4740, %v4736
  %v4909 = vpack.c.b16 %v4741, %v4737
  %v4910 = vpack.c.b16 %v4746, %v4742
  %v4911 = vpack.c.b16 %v4747, %v4743
  %v4912 = vpack.c.b16 %v4748, %v4744
  %v4913 = vpack.c.b16 %v4749, %v4745
  %v4914 = vpack.c.b16 %v4754, %v4750
  %v4915 = vpack.c.b16 %v4755, %v4751
  %v4916 = vpack.c.b16 %v4756, %v4752
  %v4917 = vpack.c.b16 %v4757, %v4753
  %v4918 = vpack.c.b16 %v4762, %v4758
  %v4919 = vpack.c.b16 %v4763, %v4759
  %v4920 = vpack.c.b16 %v4764, %v4760
  %v4921 = vpack.c.b16 %v4765, %v4761
  %v4922 = vpack.c.b16 %v4770, %v4766
  %v4923 = vpack.c.b16 %v4771, %v4767
  %v4924 = vpack.c.b16 %v4772, %v4768
  %v4925 = vpack.c.b16 %v4773, %v4769
  %v4926 = vpack.c.b16 %v4778, %v4774
  %v4927 = vpack.c.b16 %v4779, %v4775
  %v4928 = vpack.c.b16 %v4780, %v4776
  %v4929 = vpack.c.b16 %v4781, %v4777
  %v4930 = vpack.c.b16 %v4786, %v4782
  %v4931 = vpack.c.b16 %v4787, %v4783
  %v4932 = vpack.c.b16 %v4788, %v4784
  %v4933 = vpack.c.b16 %v4789, %v4785
  %v4934 = vpack.c.b16 %v4794, %v4790
  %v4935 = vpack.c.b16 %v4795, %v4791
  %v4936 = vpack.c.b16 %v4796, %v4792
  %v4937 = vpack.c.b16 %v4797, %v4793
  %v4938 = vpack.c.b16 %v4802, %v4798
  %v4939 = vpack.c.b16 %v4803, %v4799
  %v4940 = vpack.c.b16 %v4804, %v4800
  %v4941 = vpack.c.b16 %v4805, %v4801
  %v4942 = vpack.c.b16 %v4810, %v4806
  %v4943 = vpack.c.b16 %v4811, %v4807
  %v4944 = vpack.c.b16 %v4812, %v4808
  %v4945 = vpack.c.b16 %v4813, %v4809
  %v4946 = vpack.c.b16 %v4818, %v4814
  %v4947 = vpack.c.b16 %v4819, %v4815
  %v4948 = vpack.c.b16 %v4820, %v4816
  %v4949 = vpack.c.b16 %v4821, %v4817
  %5078 = vmatprep.subr.bf16.mxu0 %v4823
  %5079 = vmatpush1.bf16.msra.mxu0 %v4822
  %5080 = vmatprep.subr.bf16.mxu0 %v4827
  %5081 = vmatpush1.bf16.msra.mxu0 %v4826
  %5082 = vmatprep.subr.bf16.mxu0 %v4831
  %5083 = vmatpush1.bf16.msra.mxu0 %v4830
  %5084 = vmatprep.subr.bf16.mxu0 %v4835
  %5085 = vmatpush1.bf16.msra.mxu0 %v4834
  %5086 = vmatprep.subr.bf16.mxu0 %v4839
  %5087 = vmatpush1.bf16.msra.mxu0 %v4838
  %5088 = vmatprep.subr.bf16.mxu0 %v4843
  %5089 = vmatpush1.bf16.msra.mxu0 %v4842
  %5090 = vmatprep.subr.bf16.mxu0 %v4847
  %5091 = vmatpush1.bf16.msra.mxu0 %v4846
  %5092 = vmatprep.subr.bf16.mxu0 %v4851
  %5093 = vmatpush1.bf16.msra.mxu0 %v4850
  %5094 = vmatprep.subr.bf16.mxu0 %v4855
  %5095 = vmatpush1.bf16.msra.mxu0 %v4854
  %5096 = vmatprep.subr.bf16.mxu0 %v4859
  %5097 = vmatpush1.bf16.msra.mxu0 %v4858
  %5098 = vmatprep.subr.bf16.mxu0 %v4863
  %5099 = vmatpush1.bf16.msra.mxu0 %v4862
  %5100 = vmatprep.subr.bf16.mxu0 %v4867
  %5101 = vmatpush1.bf16.msra.mxu0 %v4866
  %5102 = vmatprep.subr.bf16.mxu0 %v4871
  %5103 = vmatpush1.bf16.msra.mxu0 %v4870
  %5104 = vmatprep.subr.bf16.mxu0 %v4875
  %5105 = vmatpush1.bf16.msra.mxu0 %v4874
  %5106 = vmatprep.subr.bf16.mxu0 %v4879
  %5107 = vmatpush1.bf16.msra.mxu0 %v4878
  %5108 = vmatprep.subr.bf16.mxu0 %v4883
  %5109 = vmatpush1.bf16.msra.mxu0 %v4882
  %5110 = vmatprep.mubr.bf16.mxu0 %v3038
  %5111 = vmatmul.mubr.bf16.gmra.mrb[0].mxu0 %v3037
  %v5112 = vpop.f32.mrb[0].mxu0
  %v5113 = vadd.f32 %v4134, %v5112
  %v5114 = vpop.f32.mrb[0].mxu0
  %v5115 = vadd.f32 %v4136, %v5114
  %v5116 = vpop.f32.mrb[0].mxu0
  %v5117 = vadd.f32 %v4138, %v5116
  %v5118 = vpop.f32.mrb[0].mxu0
  %v5119 = vadd.f32 %v4140, %v5118
  %5120 = vmatprep.mubr.bf16.mxu0 %v3042
  %5121 = vmatmul.mubr.bf16.gmra.mrb[0].mxu0 %v3041
  %v5122 = vpop.f32.mrb[0].mxu0
  %v5123 = vadd.f32 %v4144, %v5122
  %v5124 = vpop.f32.mrb[0].mxu0
  %v5125 = vadd.f32 %v4146, %v5124
  %v5126 = vpop.f32.mrb[0].mxu0
  %v5127 = vadd.f32 %v4148, %v5126
  %v5128 = vpop.f32.mrb[0].mxu0
  %v5129 = vadd.f32 %v4150, %v5128
  %5130 = vmatprep.mubr.bf16.mxu0 %v3046
  %5131 = vmatmul.mubr.bf16.gmra.mrb[0].mxu0 %v3045
  %v5132 = vpop.f32.mrb[0].mxu0
  %v5133 = vadd.f32 %v4154, %v5132
  %v5134 = vpop.f32.mrb[0].mxu0
  %v5135 = vadd.f32 %v4156, %v5134
  %v5136 = vpop.f32.mrb[0].mxu0
  %v5137 = vadd.f32 %v4158, %v5136
  %v5138 = vpop.f32.mrb[0].mxu0
  %v5139 = vadd.f32 %v4160, %v5138
  %5140 = vmatprep.mubr.bf16.mxu0 %v3050
  %5141 = vmatmul.mubr.bf16.gmra.mrb[0].mxu0 %v3049
  %v5142 = vpop.f32.mrb[0].mxu0
  %v5143 = vadd.f32 %v4164, %v5142
  %v5144 = vpop.f32.mrb[0].mxu0
  %v5145 = vadd.f32 %v4166, %v5144
  %v5146 = vpop.f32.mrb[0].mxu0
  %v5147 = vadd.f32 %v4168, %v5146
  %v5148 = vpop.f32.mrb[0].mxu0
  %v5149 = vadd.f32 %v4170, %v5148
  %5150 = vmatprep.mubr.bf16.mxu0 %v3054
  %5151 = vmatmul.mubr.bf16.gmra.mrb[0].mxu0 %v3053
  %v5152 = vpop.f32.mrb[0].mxu0
  %v5153 = vadd.f32 %v4174, %v5152
  %v5154 = vpop.f32.mrb[0].mxu0
  %v5155 = vadd.f32 %v4176, %v5154
  %v5156 = vpop.f32.mrb[0].mxu0
  %v5157 = vadd.f32 %v4178, %v5156
  %v5158 = vpop.f32.mrb[0].mxu0
  %v5159 = vadd.f32 %v4180, %v5158
  %5160 = vmatprep.mubr.bf16.mxu0 %v3058
  %5161 = vmatmul.mubr.bf16.gmra.mrb[0].mxu0 %v3057
  %v5162 = vpop.f32.mrb[0].mxu0
  %v5163 = vadd.f32 %v4184, %v5162
  %v5164 = vpop.f32.mrb[0].mxu0
  %v5165 = vadd.f32 %v4186, %v5164
  %v5166 = vpop.f32.mrb[0].mxu0
  %v5167 = vadd.f32 %v4188, %v5166
  %v5168 = vpop.f32.mrb[0].mxu0
  %v5169 = vadd.f32 %v4190, %v5168
  %5170 = vmatprep.mubr.bf16.mxu0 %v3062
  %5171 = vmatmul.mubr.bf16.gmra.mrb[0].mxu0 %v3061
  %v5172 = vpop.f32.mrb[0].mxu0
  %v5173 = vadd.f32 %v4194, %v5172
  %v5174 = vpop.f32.mrb[0].mxu0
  %v5175 = vadd.f32 %v4196, %v5174
  %v5176 = vpop.f32.mrb[0].mxu0
  %v5177 = vadd.f32 %v4198, %v5176
  %v5178 = vpop.f32.mrb[0].mxu0
  %v5179 = vadd.f32 %v4200, %v5178
  %5180 = vmatprep.mubr.bf16.mxu0 %v3066
  %5181 = vmatmul.mubr.bf16.gmra.mrb[0].mxu0 %v3065
  %v5182 = vpop.f32.mrb[0].mxu0
  %v5183 = vadd.f32 %v4204, %v5182
  %v5184 = vpop.f32.mrb[0].mxu0
  %v5185 = vadd.f32 %v4206, %v5184
  %v5186 = vpop.f32.mrb[0].mxu0
  %v5187 = vadd.f32 %v4208, %v5186
  %v5188 = vpop.f32.mrb[0].mxu0
  %v5189 = vadd.f32 %v4210, %v5188
  %5190 = vdwg.mxu0
  %5191 = vmatprep.subr.bf16.mxu0 %v4887
  %5192 = vmatpush1.bf16.msra.mxu0 %v4886
  %5193 = vmatprep.subr.bf16.mxu0 %v4891
  %5194 = vmatpush1.bf16.msra.mxu0 %v4890
  %5195 = vmatprep.subr.bf16.mxu0 %v4895
  %5196 = vmatpush1.bf16.msra.mxu0 %v4894
  %5197 = vmatprep.subr.bf16.mxu0 %v4899
  %5198 = vmatpush1.bf16.msra.mxu0 %v4898
  %5199 = vmatprep.subr.bf16.mxu0 %v4903
  %5200 = vmatpush1.bf16.msra.mxu0 %v4902
  %5201 = vmatprep.subr.bf16.mxu0 %v4907
  %5202 = vmatpush1.bf16.msra.mxu0 %v4906
  %5203 = vmatprep.subr.bf16.mxu0 %v4911
  %5204 = vmatpush1.bf16.msra.mxu0 %v4910
  %5205 = vmatprep.subr.bf16.mxu0 %v4915
  %5206 = vmatpush1.bf16.msra.mxu0 %v4914
  %5207 = vmatprep.subr.bf16.mxu0 %v4919
  %5208 = vmatpush1.bf16.msra.mxu0 %v4918
  %5209 = vmatprep.subr.bf16.mxu0 %v4923
  %5210 = vmatpush1.bf16.msra.mxu0 %v4922
  %5211 = vmatprep.subr.bf16.mxu0 %v4927
  %5212 = vmatpush1.bf16.msra.mxu0 %v4926
  %5213 = vmatprep.subr.bf16.mxu0 %v4931
  %5214 = vmatpush1.bf16.msra.mxu0 %v4930
  %5215 = vmatprep.subr.bf16.mxu0 %v4935
  %5216 = vmatpush1.bf16.msra.mxu0 %v4934
  %5217 = vmatprep.subr.bf16.mxu0 %v4939
  %5218 = vmatpush1.bf16.msra.mxu0 %v4938
  %5219 = vmatprep.subr.bf16.mxu0 %v4943
  %5220 = vmatpush1.bf16.msra.mxu0 %v4942
  %5221 = vmatprep.subr.bf16.mxu0 %v4947
  %5222 = vmatpush1.bf16.msra.mxu0 %v4946
  %5223 = vmatprep.mubr.bf16.mxu0 %v3040
  %5224 = vmatmul.mubr.bf16.gmra.mrb[0].mxu0 %v3039
  %v5225 = vpop.f32.mrb[0].mxu0
  %v5226 = vadd.f32 %v5113, %v5225
  %v5227 = vpop.f32.mrb[0].mxu0
  %v5228 = vadd.f32 %v5115, %v5227
  %v5229 = vpop.f32.mrb[0].mxu0
  %v5230 = vadd.f32 %v5117, %v5229
  %v5231 = vpop.f32.mrb[0].mxu0
  %v5232 = vadd.f32 %v5119, %v5231
  %5233 = vmatprep.mubr.bf16.mxu0 %v3044
  %5234 = vmatmul.mubr.bf16.gmra.mrb[0].mxu0 %v3043
  %v5235 = vpop.f32.mrb[0].mxu0
  %v5236 = vadd.f32 %v5123, %v5235
  %v5237 = vpop.f32.mrb[0].mxu0
  %v5238 = vadd.f32 %v5125, %v5237
  %v5239 = vpop.f32.mrb[0].mxu0
  %v5240 = vadd.f32 %v5127, %v5239
  %v5241 = vpop.f32.mrb[0].mxu0
  %v5242 = vadd.f32 %v5129, %v5241
  %5243 = vmatprep.mubr.bf16.mxu0 %v3048
  %5244 = vmatmul.mubr.bf16.gmra.mrb[0].mxu0 %v3047
  %v5245 = vpop.f32.mrb[0].mxu0
  %v5246 = vadd.f32 %v5133, %v5245
  %v5247 = vpop.f32.mrb[0].mxu0
  %v5248 = vadd.f32 %v5135, %v5247
  %v5249 = vpop.f32.mrb[0].mxu0
  %v5250 = vadd.f32 %v5137, %v5249
  %v5251 = vpop.f32.mrb[0].mxu0
  %v5252 = vadd.f32 %v5139, %v5251
  %5253 = vmatprep.mubr.bf16.mxu0 %v3052
  %5254 = vmatmul.mubr.bf16.gmra.mrb[0].mxu0 %v3051
  %v5255 = vpop.f32.mrb[0].mxu0
  %v5256 = vadd.f32 %v5143, %v5255
  %v5257 = vpop.f32.mrb[0].mxu0
  %v5258 = vadd.f32 %v5145, %v5257
  %v5259 = vpop.f32.mrb[0].mxu0
  %v5260 = vadd.f32 %v5147, %v5259
  %v5261 = vpop.f32.mrb[0].mxu0
  %v5262 = vadd.f32 %v5149, %v5261
  %5263 = vmatprep.mubr.bf16.mxu0 %v3056
  %5264 = vmatmul.mubr.bf16.gmra.mrb[0].mxu0 %v3055
  %v5265 = vpop.f32.mrb[0].mxu0
  %v5266 = vadd.f32 %v5153, %v5265
  %v5267 = vpop.f32.mrb[0].mxu0
  %v5268 = vadd.f32 %v5155, %v5267
  %v5269 = vpop.f32.mrb[0].mxu0
  %v5270 = vadd.f32 %v5157, %v5269
  %v5271 = vpop.f32.mrb[0].mxu0
  %v5272 = vadd.f32 %v5159, %v5271
  %5273 = vmatprep.mubr.bf16.mxu0 %v3060
  %5274 = vmatmul.mubr.bf16.gmra.mrb[0].mxu0 %v3059
  %v5275 = vpop.f32.mrb[0].mxu0
  %v5276 = vadd.f32 %v5163, %v5275
  %v5277 = vpop.f32.mrb[0].mxu0
  %v5278 = vadd.f32 %v5165, %v5277
  %v5279 = vpop.f32.mrb[0].mxu0
  %v5280 = vadd.f32 %v5167, %v5279
  %v5281 = vpop.f32.mrb[0].mxu0
  %v5282 = vadd.f32 %v5169, %v5281
  %5283 = vmatprep.mubr.bf16.mxu0 %v3064
  %5284 = vmatmul.mubr.bf16.gmra.mrb[0].mxu0 %v3063
  %v5285 = vpop.f32.mrb[0].mxu0
  %v5286 = vadd.f32 %v5173, %v5285
  %v5287 = vpop.f32.mrb[0].mxu0
  %v5288 = vadd.f32 %v5175, %v5287
  %v5289 = vpop.f32.mrb[0].mxu0
  %v5290 = vadd.f32 %v5177, %v5289
  %v5291 = vpop.f32.mrb[0].mxu0
  %v5292 = vadd.f32 %v5179, %v5291
  %5293 = vmatprep.mubr.bf16.mxu0 %v3068
  %5294 = vmatmul.mubr.bf16.gmra.mrb[0].mxu0 %v3067
  %v5295 = vpop.f32.mrb[0].mxu0
  %v5296 = vadd.f32 %v5183, %v5295
  %v5297 = vpop.f32.mrb[0].mxu0
  %v5298 = vadd.f32 %v5185, %v5297
  %v5299 = vpop.f32.mrb[0].mxu0
  %v5300 = vadd.f32 %v5187, %v5299
  %v5301 = vpop.f32.mrb[0].mxu0
  %v5302 = vadd.f32 %v5189, %v5301
  %5303 = vdwg.mxu0
  %5304 = vmatprep.subr.bf16.mxu0 %v4825
  %5305 = vmatpush1.bf16.msra.mxu0 %v4824
  %5306 = vmatprep.subr.bf16.mxu0 %v4829
  %5307 = vmatpush1.bf16.msra.mxu0 %v4828
  %5308 = vmatprep.subr.bf16.mxu0 %v4833
  %5309 = vmatpush1.bf16.msra.mxu0 %v4832
  %5310 = vmatprep.subr.bf16.mxu0 %v4837
  %5311 = vmatpush1.bf16.msra.mxu0 %v4836
  %5312 = vmatprep.subr.bf16.mxu0 %v4841
  %5313 = vmatpush1.bf16.msra.mxu0 %v4840
  %5314 = vmatprep.subr.bf16.mxu0 %v4845
  %5315 = vmatpush1.bf16.msra.mxu0 %v4844
  %5316 = vmatprep.subr.bf16.mxu0 %v4849
  %5317 = vmatpush1.bf16.msra.mxu0 %v4848
  %5318 = vmatprep.subr.bf16.mxu0 %v4853
  %5319 = vmatpush1.bf16.msra.mxu0 %v4852
  %5320 = vmatprep.subr.bf16.mxu0 %v4857
  %5321 = vmatpush1.bf16.msra.mxu0 %v4856
  %5322 = vmatprep.subr.bf16.mxu0 %v4861
  %5323 = vmatpush1.bf16.msra.mxu0 %v4860
  %5324 = vmatprep.subr.bf16.mxu0 %v4865
  %5325 = vmatpush1.bf16.msra.mxu0 %v4864
  %5326 = vmatprep.subr.bf16.mxu0 %v4869
  %5327 = vmatpush1.bf16.msra.mxu0 %v4868
  %5328 = vmatprep.subr.bf16.mxu0 %v4873
  %5329 = vmatpush1.bf16.msra.mxu0 %v4872
  %5330 = vmatprep.subr.bf16.mxu0 %v4877
  %5331 = vmatpush1.bf16.msra.mxu0 %v4876
  %5332 = vmatprep.subr.bf16.mxu0 %v4881
  %5333 = vmatpush1.bf16.msra.mxu0 %v4880
  %5334 = vmatprep.subr.bf16.mxu0 %v4885
  %5335 = vmatpush1.bf16.msra.mxu0 %v4884
  %5336 = vmatprep.mubr.bf16.mxu0 %v3038
  %5337 = vmatmul.mubr.bf16.gmra.mrb[0].mxu0 %v3037
  %v5338 = vpop.f32.mrb[0].mxu0
  %v5339 = vadd.f32 %v4360, %v5338
  %v5340 = vpop.f32.mrb[0].mxu0
  %v5341 = vadd.f32 %v4362, %v5340
  %v5342 = vpop.f32.mrb[0].mxu0
  %v5343 = vadd.f32 %v4364, %v5342
  %v5344 = vpop.f32.mrb[0].mxu0
  %v5345 = vadd.f32 %v4366, %v5344
  %5346 = vmatprep.mubr.bf16.mxu0 %v3042
  %5347 = vmatmul.mubr.bf16.gmra.mrb[0].mxu0 %v3041
  %v5348 = vpop.f32.mrb[0].mxu0
  %v5349 = vadd.f32 %v4370, %v5348
  %v5350 = vpop.f32.mrb[0].mxu0
  %v5351 = vadd.f32 %v4372, %v5350
  %v5352 = vpop.f32.mrb[0].mxu0
  %v5353 = vadd.f32 %v4374, %v5352
  %v5354 = vpop.f32.mrb[0].mxu0
  %v5355 = vadd.f32 %v4376, %v5354
  %5356 = vmatprep.mubr.bf16.mxu0 %v3046
  %5357 = vmatmul.mubr.bf16.gmra.mrb[0].mxu0 %v3045
  %v5358 = vpop.f32.mrb[0].mxu0
  %v5359 = vadd.f32 %v4380, %v5358
  %v5360 = vpop.f32.mrb[0].mxu0
  %v5361 = vadd.f32 %v4382, %v5360
  %v5362 = vpop.f32.mrb[0].mxu0
  %v5363 = vadd.f32 %v4384, %v5362
  %v5364 = vpop.f32.mrb[0].mxu0
  %v5365 = vadd.f32 %v4386, %v5364
  %5366 = vmatprep.mubr.bf16.mxu0 %v3050
  %5367 = vmatmul.mubr.bf16.gmra.mrb[0].mxu0 %v3049
  %v5368 = vpop.f32.mrb[0].mxu0
  %v5369 = vadd.f32 %v4390, %v5368
  %v5370 = vpop.f32.mrb[0].mxu0
  %v5371 = vadd.f32 %v4392, %v5370
  %v5372 = vpop.f32.mrb[0].mxu0
  %v5373 = vadd.f32 %v4394, %v5372
  %v5374 = vpop.f32.mrb[0].mxu0
  %v5375 = vadd.f32 %v4396, %v5374
  %5376 = vmatprep.mubr.bf16.mxu0 %v3054
  %5377 = vmatmul.mubr.bf16.gmra.mrb[0].mxu0 %v3053
  %v5378 = vpop.f32.mrb[0].mxu0
  %v5379 = vadd.f32 %v4400, %v5378
  %v5380 = vpop.f32.mrb[0].mxu0
  %v5381 = vadd.f32 %v4402, %v5380
  %v5382 = vpop.f32.mrb[0].mxu0
  %v5383 = vadd.f32 %v4404, %v5382
  %v5384 = vpop.f32.mrb[0].mxu0
  %v5385 = vadd.f32 %v4406, %v5384
  %5386 = vmatprep.mubr.bf16.mxu0 %v3058
  %5387 = vmatmul.mubr.bf16.gmra.mrb[0].mxu0 %v3057
  %v5388 = vpop.f32.mrb[0].mxu0
  %v5389 = vadd.f32 %v4410, %v5388
  %v5390 = vpop.f32.mrb[0].mxu0
  %v5391 = vadd.f32 %v4412, %v5390
  %v5392 = vpop.f32.mrb[0].mxu0
  %v5393 = vadd.f32 %v4414, %v5392
  %v5394 = vpop.f32.mrb[0].mxu0
  %v5395 = vadd.f32 %v4416, %v5394
  %5396 = vmatprep.mubr.bf16.mxu0 %v3062
  %5397 = vmatmul.mubr.bf16.gmra.mrb[0].mxu0 %v3061
  %v5398 = vpop.f32.mrb[0].mxu0
  %v5399 = vadd.f32 %v4420, %v5398
  %v5400 = vpop.f32.mrb[0].mxu0
  %v5401 = vadd.f32 %v4422, %v5400
  %v5402 = vpop.f32.mrb[0].mxu0
  %v5403 = vadd.f32 %v4424, %v5402
  %v5404 = vpop.f32.mrb[0].mxu0
  %v5405 = vadd.f32 %v4426, %v5404
  %5406 = vmatprep.mubr.bf16.mxu0 %v3066
  %5407 = vmatmul.mubr.bf16.gmra.mrb[0].mxu0 %v3065
  %v5408 = vpop.f32.mrb[0].mxu0
  %v5409 = vadd.f32 %v4430, %v5408
  %v5410 = vpop.f32.mrb[0].mxu0
  %v5411 = vadd.f32 %v4432, %v5410
  %v5412 = vpop.f32.mrb[0].mxu0
  %v5413 = vadd.f32 %v4434, %v5412
  %v5414 = vpop.f32.mrb[0].mxu0
  %v5415 = vadd.f32 %v4436, %v5414
  %5416 = vdwg.mxu0
  %5417 = vmatprep.subr.bf16.mxu0 %v4889
  %5418 = vmatpush1.bf16.msra.mxu0 %v4888
  %5419 = vmatprep.subr.bf16.mxu0 %v4893
  %5420 = vmatpush1.bf16.msra.mxu0 %v4892
  %5421 = vmatprep.subr.bf16.mxu0 %v4897
  %5422 = vmatpush1.bf16.msra.mxu0 %v4896
  %5423 = vmatprep.subr.bf16.mxu0 %v4901
  %5424 = vmatpush1.bf16.msra.mxu0 %v4900
  %5425 = vmatprep.subr.bf16.mxu0 %v4905
  %5426 = vmatpush1.bf16.msra.mxu0 %v4904
  %5427 = vmatprep.subr.bf16.mxu0 %v4909
  %5428 = vmatpush1.bf16.msra.mxu0 %v4908
  %5429 = vmatprep.subr.bf16.mxu0 %v4913
  %5430 = vmatpush1.bf16.msra.mxu0 %v4912
  %5431 = vmatprep.subr.bf16.mxu0 %v4917
  %5432 = vmatpush1.bf16.msra.mxu0 %v4916
  %5433 = vmatprep.subr.bf16.mxu0 %v4921
  %5434 = vmatpush1.bf16.msra.mxu0 %v4920
  %5435 = vmatprep.subr.bf16.mxu0 %v4925
  %5436 = vmatpush1.bf16.msra.mxu0 %v4924
  %5437 = vmatprep.subr.bf16.mxu0 %v4929
  %5438 = vmatpush1.bf16.msra.mxu0 %v4928
  %5439 = vmatprep.subr.bf16.mxu0 %v4933
  %5440 = vmatpush1.bf16.msra.mxu0 %v4932
  %5441 = vmatprep.subr.bf16.mxu0 %v4937
  %5442 = vmatpush1.bf16.msra.mxu0 %v4936
  %5443 = vmatprep.subr.bf16.mxu0 %v4941
  %5444 = vmatpush1.bf16.msra.mxu0 %v4940
  %5445 = vmatprep.subr.bf16.mxu0 %v4945
  %5446 = vmatpush1.bf16.msra.mxu0 %v4944
  %5447 = vmatprep.subr.bf16.mxu0 %v4949
  %5448 = vmatpush1.bf16.msra.mxu0 %v4948
  %5449 = vmatprep.mubr.bf16.mxu0 %v3040
  %5450 = vmatmul.mubr.bf16.gmra.mrb[0].mxu0 %v3039
  %v5451 = vpop.f32.mrb[0].mxu0
  %v5452 = vadd.f32 %v5339, %v5451
  %v5453 = vpop.f32.mrb[0].mxu0
  %v5454 = vadd.f32 %v5341, %v5453
  %v5455 = vpop.f32.mrb[0].mxu0
  %v5456 = vadd.f32 %v5343, %v5455
  %v5457 = vpop.f32.mrb[0].mxu0
  %v5458 = vadd.f32 %v5345, %v5457
  %5459 = vmatprep.mubr.bf16.mxu0 %v3044
  %5460 = vmatmul.mubr.bf16.gmra.mrb[0].mxu0 %v3043
  %v5461 = vpop.f32.mrb[0].mxu0
  %v5462 = vadd.f32 %v5349, %v5461
  %v5463 = vpop.f32.mrb[0].mxu0
  %v5464 = vadd.f32 %v5351, %v5463
  %v5465 = vpop.f32.mrb[0].mxu0
  %v5466 = vadd.f32 %v5353, %v5465
  %v5467 = vpop.f32.mrb[0].mxu0
  %v5468 = vadd.f32 %v5355, %v5467
  %5469 = vmatprep.mubr.bf16.mxu0 %v3048
  %5470 = vmatmul.mubr.bf16.gmra.mrb[0].mxu0 %v3047
  %v5471 = vpop.f32.mrb[0].mxu0
  %v5472 = vadd.f32 %v5359, %v5471
  %v5473 = vpop.f32.mrb[0].mxu0
  %v5474 = vadd.f32 %v5361, %v5473
  %v5475 = vpop.f32.mrb[0].mxu0
  %v5476 = vadd.f32 %v5363, %v5475
  %v5477 = vpop.f32.mrb[0].mxu0
  %v5478 = vadd.f32 %v5365, %v5477
  %5479 = vmatprep.mubr.bf16.mxu0 %v3052
  %5480 = vmatmul.mubr.bf16.gmra.mrb[0].mxu0 %v3051
  %v5481 = vpop.f32.mrb[0].mxu0
  %v5482 = vadd.f32 %v5369, %v5481
  %v5483 = vpop.f32.mrb[0].mxu0
  %v5484 = vadd.f32 %v5371, %v5483
  %v5485 = vpop.f32.mrb[0].mxu0
  %v5486 = vadd.f32 %v5373, %v5485
  %v5487 = vpop.f32.mrb[0].mxu0
  %v5488 = vadd.f32 %v5375, %v5487
  %5489 = vmatprep.mubr.bf16.mxu0 %v3056
  %5490 = vmatmul.mubr.bf16.gmra.mrb[0].mxu0 %v3055
  %v5491 = vpop.f32.mrb[0].mxu0
  %v5492 = vadd.f32 %v5379, %v5491
  %v5493 = vpop.f32.mrb[0].mxu0
  %v5494 = vadd.f32 %v5381, %v5493
  %v5495 = vpop.f32.mrb[0].mxu0
  %v5496 = vadd.f32 %v5383, %v5495
  %v5497 = vpop.f32.mrb[0].mxu0
  %v5498 = vadd.f32 %v5385, %v5497
  %5499 = vmatprep.mubr.bf16.mxu0 %v3060
  %5500 = vmatmul.mubr.bf16.gmra.mrb[0].mxu0 %v3059
  %v5501 = vpop.f32.mrb[0].mxu0
  %v5502 = vadd.f32 %v5389, %v5501
  %v5503 = vpop.f32.mrb[0].mxu0
  %v5504 = vadd.f32 %v5391, %v5503
  %v5505 = vpop.f32.mrb[0].mxu0
  %v5506 = vadd.f32 %v5393, %v5505
  %v5507 = vpop.f32.mrb[0].mxu0
  %v5508 = vadd.f32 %v5395, %v5507
  %5509 = vmatprep.mubr.bf16.mxu0 %v3064
  %5510 = vmatmul.mubr.bf16.gmra.mrb[0].mxu0 %v3063
  %v5511 = vpop.f32.mrb[0].mxu0
  %v5512 = vadd.f32 %v5399, %v5511
  %v5513 = vpop.f32.mrb[0].mxu0
  %v5514 = vadd.f32 %v5401, %v5513
  %v5515 = vpop.f32.mrb[0].mxu0
  %v5516 = vadd.f32 %v5403, %v5515
  %v5517 = vpop.f32.mrb[0].mxu0
  %v5518 = vadd.f32 %v5405, %v5517
  %5519 = vmatprep.mubr.bf16.mxu0 %v3068
  %5520 = vmatmul.mubr.bf16.gmra.mrb[0].mxu0 %v3067
  %v5521 = vpop.f32.mrb[0].mxu0
  %v5522 = vadd.f32 %v5409, %v5521
  %v5523 = vpop.f32.mrb[0].mxu0
  %v5524 = vadd.f32 %v5411, %v5523
  %v5525 = vpop.f32.mrb[0].mxu0
  %v5526 = vadd.f32 %v5413, %v5525
  %v5527 = vpop.f32.mrb[0].mxu0
  %v5528 = vadd.f32 %v5415, %v5527
  %5529 = vdwg.mxu0
  %s5530 = scalar_lea.vmem %s2, 2048
  %v5531 = vld [vmem:[%s5530] sm:$0xff]
  %v5532 = vld [vmem:[%s5530 + $0x8] sm:$0xff]
  %v5533 = vld [vmem:[%s5530 + $0x10] sm:$0xff]
  %v5534 = vld [vmem:[%s5530 + $0x18] sm:$0xff]
  %v5535 = vld [vmem:[%s5530 + $0x20] sm:$0xff]
  %v5536 = vld [vmem:[%s5530 + $0x28] sm:$0xff]
  %v5537 = vld [vmem:[%s5530 + $0x30] sm:$0xff]
  %v5538 = vld [vmem:[%s5530 + $0x38] sm:$0xff]
  %v5539 = vld [vmem:[%s5530 + $0x40] sm:$0xff]
  %v5540 = vld [vmem:[%s5530 + $0x48] sm:$0xff]
  %v5541 = vld [vmem:[%s5530 + $0x50] sm:$0xff]
  %v5542 = vld [vmem:[%s5530 + $0x58] sm:$0xff]
  %v5543 = vld [vmem:[%s5530 + $0x60] sm:$0xff]
  %v5544 = vld [vmem:[%s5530 + $0x68] sm:$0xff]
  %v5545 = vld [vmem:[%s5530 + $0x70] sm:$0xff]
  %v5546 = vld [vmem:[%s5530 + $0x78] sm:$0xff]
  %v5547 = vld [vmem:[%s5530 + $0x80] sm:$0xff]
  %v5548 = vld [vmem:[%s5530 + $0x88] sm:$0xff]
  %v5549 = vld [vmem:[%s5530 + $0x90] sm:$0xff]
  %v5550 = vld [vmem:[%s5530 + $0x98] sm:$0xff]
  %v5551 = vld [vmem:[%s5530 + $0xa0] sm:$0xff]
  %v5552 = vld [vmem:[%s5530 + $0xa8] sm:$0xff]
  %v5553 = vld [vmem:[%s5530 + $0xb0] sm:$0xff]
  %v5554 = vld [vmem:[%s5530 + $0xb8] sm:$0xff]
  %v5555 = vld [vmem:[%s5530 + $0xc0] sm:$0xff]
  %v5556 = vld [vmem:[%s5530 + $0xc8] sm:$0xff]
  %v5557 = vld [vmem:[%s5530 + $0xd0] sm:$0xff]
  %v5558 = vld [vmem:[%s5530 + $0xd8] sm:$0xff]
  %v5559 = vld [vmem:[%s5530 + $0xe0] sm:$0xff]
  %v5560 = vld [vmem:[%s5530 + $0xe8] sm:$0xff]
  %v5561 = vld [vmem:[%s5530 + $0xf0] sm:$0xff]
  %v5562 = vld [vmem:[%s5530 + $0xf8] sm:$0xff]
  %v5563 = vld [vmem:[%s5530 + $0x100] sm:$0xff]
  %v5564 = vld [vmem:[%s5530 + $0x108] sm:$0xff]
  %v5565 = vld [vmem:[%s5530 + $0x110] sm:$0xff]
  %v5566 = vld [vmem:[%s5530 + $0x118] sm:$0xff]
  %v5567 = vld [vmem:[%s5530 + $0x120] sm:$0xff]
  %v5568 = vld [vmem:[%s5530 + $0x128] sm:$0xff]
  %v5569 = vld [vmem:[%s5530 + $0x130] sm:$0xff]
  %v5570 = vld [vmem:[%s5530 + $0x138] sm:$0xff]
  %v5571 = vld [vmem:[%s5530 + $0x140] sm:$0xff]
  %v5572 = vld [vmem:[%s5530 + $0x148] sm:$0xff]
  %v5573 = vld [vmem:[%s5530 + $0x150] sm:$0xff]
  %v5574 = vld [vmem:[%s5530 + $0x158] sm:$0xff]
  %v5575 = vld [vmem:[%s5530 + $0x160] sm:$0xff]
  %v5576 = vld [vmem:[%s5530 + $0x168] sm:$0xff]
  %v5577 = vld [vmem:[%s5530 + $0x170] sm:$0xff]
  %v5578 = vld [vmem:[%s5530 + $0x178] sm:$0xff]
  %v5579 = vld [vmem:[%s5530 + $0x180] sm:$0xff]
  %v5580 = vld [vmem:[%s5530 + $0x188] sm:$0xff]
  %v5581 = vld [vmem:[%s5530 + $0x190] sm:$0xff]
  %v5582 = vld [vmem:[%s5530 + $0x198] sm:$0xff]
  %v5583 = vld [vmem:[%s5530 + $0x1a0] sm:$0xff]
  %v5584 = vld [vmem:[%s5530 + $0x1a8] sm:$0xff]
  %v5585 = vld [vmem:[%s5530 + $0x1b0] sm:$0xff]
  %v5586 = vld [vmem:[%s5530 + $0x1b8] sm:$0xff]
  %v5587 = vld [vmem:[%s5530 + $0x1c0] sm:$0xff]
  %v5588 = vld [vmem:[%s5530 + $0x1c8] sm:$0xff]
  %v5589 = vld [vmem:[%s5530 + $0x1d0] sm:$0xff]
  %v5590 = vld [vmem:[%s5530 + $0x1d8] sm:$0xff]
  %v5591 = vld [vmem:[%s5530 + $0x1e0] sm:$0xff]
  %v5592 = vld [vmem:[%s5530 + $0x1e8] sm:$0xff]
  %v5593 = vld [vmem:[%s5530 + $0x1f0] sm:$0xff]
  %v5594 = vld [vmem:[%s5530 + $0x1f8] sm:$0xff]
  %v5595 = vld [vmem:[%s5530 + $0x200] sm:$0xff]
  %v5596 = vld [vmem:[%s5530 + $0x208] sm:$0xff]
  %v5597 = vld [vmem:[%s5530 + $0x210] sm:$0xff]
  %v5598 = vld [vmem:[%s5530 + $0x218] sm:$0xff]
  %v5599 = vld [vmem:[%s5530 + $0x220] sm:$0xff]
  %v5600 = vld [vmem:[%s5530 + $0x228] sm:$0xff]
  %v5601 = vld [vmem:[%s5530 + $0x230] sm:$0xff]
  %v5602 = vld [vmem:[%s5530 + $0x238] sm:$0xff]
  %v5603 = vld [vmem:[%s5530 + $0x240] sm:$0xff]
  %v5604 = vld [vmem:[%s5530 + $0x248] sm:$0xff]
  %v5605 = vld [vmem:[%s5530 + $0x250] sm:$0xff]
  %v5606 = vld [vmem:[%s5530 + $0x258] sm:$0xff]
  %v5607 = vld [vmem:[%s5530 + $0x260] sm:$0xff]
  %v5608 = vld [vmem:[%s5530 + $0x268] sm:$0xff]
  %v5609 = vld [vmem:[%s5530 + $0x270] sm:$0xff]
  %v5610 = vld [vmem:[%s5530 + $0x278] sm:$0xff]
  %v5611 = vld [vmem:[%s5530 + $0x280] sm:$0xff]
  %v5612 = vld [vmem:[%s5530 + $0x288] sm:$0xff]
  %v5613 = vld [vmem:[%s5530 + $0x290] sm:$0xff]
  %v5614 = vld [vmem:[%s5530 + $0x298] sm:$0xff]
  %v5615 = vld [vmem:[%s5530 + $0x2a0] sm:$0xff]
  %v5616 = vld [vmem:[%s5530 + $0x2a8] sm:$0xff]
  %v5617 = vld [vmem:[%s5530 + $0x2b0] sm:$0xff]
  %v5618 = vld [vmem:[%s5530 + $0x2b8] sm:$0xff]
  %v5619 = vld [vmem:[%s5530 + $0x2c0] sm:$0xff]
  %v5620 = vld [vmem:[%s5530 + $0x2c8] sm:$0xff]
  %v5621 = vld [vmem:[%s5530 + $0x2d0] sm:$0xff]
  %v5622 = vld [vmem:[%s5530 + $0x2d8] sm:$0xff]
  %v5623 = vld [vmem:[%s5530 + $0x2e0] sm:$0xff]
  %v5624 = vld [vmem:[%s5530 + $0x2e8] sm:$0xff]
  %v5625 = vld [vmem:[%s5530 + $0x2f0] sm:$0xff]
  %v5626 = vld [vmem:[%s5530 + $0x2f8] sm:$0xff]
  %v5627 = vld [vmem:[%s5530 + $0x300] sm:$0xff]
  %v5628 = vld [vmem:[%s5530 + $0x308] sm:$0xff]
  %v5629 = vld [vmem:[%s5530 + $0x310] sm:$0xff]
  %v5630 = vld [vmem:[%s5530 + $0x318] sm:$0xff]
  %v5631 = vld [vmem:[%s5530 + $0x320] sm:$0xff]
  %v5632 = vld [vmem:[%s5530 + $0x328] sm:$0xff]
  %v5633 = vld [vmem:[%s5530 + $0x330] sm:$0xff]
  %v5634 = vld [vmem:[%s5530 + $0x338] sm:$0xff]
  %v5635 = vld [vmem:[%s5530 + $0x340] sm:$0xff]
  %v5636 = vld [vmem:[%s5530 + $0x348] sm:$0xff]
  %v5637 = vld [vmem:[%s5530 + $0x350] sm:$0xff]
  %v5638 = vld [vmem:[%s5530 + $0x358] sm:$0xff]
  %v5639 = vld [vmem:[%s5530 + $0x360] sm:$0xff]
  %v5640 = vld [vmem:[%s5530 + $0x368] sm:$0xff]
  %v5641 = vld [vmem:[%s5530 + $0x370] sm:$0xff]
  %v5642 = vld [vmem:[%s5530 + $0x378] sm:$0xff]
  %v5643 = vld [vmem:[%s5530 + $0x380] sm:$0xff]
  %v5644 = vld [vmem:[%s5530 + $0x388] sm:$0xff]
  %v5645 = vld [vmem:[%s5530 + $0x390] sm:$0xff]
  %v5646 = vld [vmem:[%s5530 + $0x398] sm:$0xff]
  %v5647 = vld [vmem:[%s5530 + $0x3a0] sm:$0xff]
  %v5648 = vld [vmem:[%s5530 + $0x3a8] sm:$0xff]
  %v5649 = vld [vmem:[%s5530 + $0x3b0] sm:$0xff]
  %v5650 = vld [vmem:[%s5530 + $0x3b8] sm:$0xff]
  %v5651 = vld [vmem:[%s5530 + $0x3c0] sm:$0xff]
  %v5652 = vld [vmem:[%s5530 + $0x3c8] sm:$0xff]
  %v5653 = vld [vmem:[%s5530 + $0x3d0] sm:$0xff]
  %v5654 = vld [vmem:[%s5530 + $0x3d8] sm:$0xff]
  %v5655 = vld [vmem:[%s5530 + $0x3e0] sm:$0xff]
  %v5656 = vld [vmem:[%s5530 + $0x3e8] sm:$0xff]
  %v5657 = vld [vmem:[%s5530 + $0x3f0] sm:$0xff]
  %v5658 = vld [vmem:[%s5530 + $0x3f8] sm:$0xff]
  %v5787 = vunpack.c.l.b16 %v5531
  %v5788 = vunpack.c.h.b16 %v5531
  %v5789 = vunpack.c.l.b16 %v5532
  %v5790 = vunpack.c.h.b16 %v5532
  %v5791 = vunpack.c.l.b16 %v5533
  %v5792 = vunpack.c.h.b16 %v5533
  %v5793 = vunpack.c.l.b16 %v5534
  %v5794 = vunpack.c.h.b16 %v5534
  %v5795 = vunpack.c.l.b16 %v5535
  %v5796 = vunpack.c.h.b16 %v5535
  %v5797 = vunpack.c.l.b16 %v5536
  %v5798 = vunpack.c.h.b16 %v5536
  %v5799 = vunpack.c.l.b16 %v5537
  %v5800 = vunpack.c.h.b16 %v5537
  %v5801 = vunpack.c.l.b16 %v5538
  %v5802 = vunpack.c.h.b16 %v5538
  %v5803 = vunpack.c.l.b16 %v5539
  %v5804 = vunpack.c.h.b16 %v5539
  %v5805 = vunpack.c.l.b16 %v5540
  %v5806 = vunpack.c.h.b16 %v5540
  %v5807 = vunpack.c.l.b16 %v5541
  %v5808 = vunpack.c.h.b16 %v5541
  %v5809 = vunpack.c.l.b16 %v5542
  %v5810 = vunpack.c.h.b16 %v5542
  %v5811 = vunpack.c.l.b16 %v5543
  %v5812 = vunpack.c.h.b16 %v5543
  %v5813 = vunpack.c.l.b16 %v5544
  %v5814 = vunpack.c.h.b16 %v5544
  %v5815 = vunpack.c.l.b16 %v5545
  %v5816 = vunpack.c.h.b16 %v5545
  %v5817 = vunpack.c.l.b16 %v5546
  %v5818 = vunpack.c.h.b16 %v5546
  %v5819 = vunpack.c.l.b16 %v5547
  %v5820 = vunpack.c.h.b16 %v5547
  %v5821 = vunpack.c.l.b16 %v5548
  %v5822 = vunpack.c.h.b16 %v5548
  %v5823 = vunpack.c.l.b16 %v5549
  %v5824 = vunpack.c.h.b16 %v5549
  %v5825 = vunpack.c.l.b16 %v5550
  %v5826 = vunpack.c.h.b16 %v5550
  %v5827 = vunpack.c.l.b16 %v5551
  %v5828 = vunpack.c.h.b16 %v5551
  %v5829 = vunpack.c.l.b16 %v5552
  %v5830 = vunpack.c.h.b16 %v5552
  %v5831 = vunpack.c.l.b16 %v5553
  %v5832 = vunpack.c.h.b16 %v5553
  %v5833 = vunpack.c.l.b16 %v5554
  %v5834 = vunpack.c.h.b16 %v5554
  %v5835 = vunpack.c.l.b16 %v5555
  %v5836 = vunpack.c.h.b16 %v5555
  %v5837 = vunpack.c.l.b16 %v5556
  %v5838 = vunpack.c.h.b16 %v5556
  %v5839 = vunpack.c.l.b16 %v5557
  %v5840 = vunpack.c.h.b16 %v5557
  %v5841 = vunpack.c.l.b16 %v5558
  %v5842 = vunpack.c.h.b16 %v5558
  %v5843 = vunpack.c.l.b16 %v5559
  %v5844 = vunpack.c.h.b16 %v5559
  %v5845 = vunpack.c.l.b16 %v5560
  %v5846 = vunpack.c.h.b16 %v5560
  %v5847 = vunpack.c.l.b16 %v5561
  %v5848 = vunpack.c.h.b16 %v5561
  %v5849 = vunpack.c.l.b16 %v5562
  %v5850 = vunpack.c.h.b16 %v5562
  %v5851 = vunpack.c.l.b16 %v5563
  %v5852 = vunpack.c.h.b16 %v5563
  %v5853 = vunpack.c.l.b16 %v5564
  %v5854 = vunpack.c.h.b16 %v5564
  %v5855 = vunpack.c.l.b16 %v5565
  %v5856 = vunpack.c.h.b16 %v5565
  %v5857 = vunpack.c.l.b16 %v5566
  %v5858 = vunpack.c.h.b16 %v5566
  %v5859 = vunpack.c.l.b16 %v5567
  %v5860 = vunpack.c.h.b16 %v5567
  %v5861 = vunpack.c.l.b16 %v5568
  %v5862 = vunpack.c.h.b16 %v5568
  %v5863 = vunpack.c.l.b16 %v5569
  %v5864 = vunpack.c.h.b16 %v5569
  %v5865 = vunpack.c.l.b16 %v5570
  %v5866 = vunpack.c.h.b16 %v5570
  %v5867 = vunpack.c.l.b16 %v5571
  %v5868 = vunpack.c.h.b16 %v5571
  %v5869 = vunpack.c.l.b16 %v5572
  %v5870 = vunpack.c.h.b16 %v5572
  %v5871 = vunpack.c.l.b16 %v5573
  %v5872 = vunpack.c.h.b16 %v5573
  %v5873 = vunpack.c.l.b16 %v5574
  %v5874 = vunpack.c.h.b16 %v5574
  %v5875 = vunpack.c.l.b16 %v5575
  %v5876 = vunpack.c.h.b16 %v5575
  %v5877 = vunpack.c.l.b16 %v5576
  %v5878 = vunpack.c.h.b16 %v5576
  %v5879 = vunpack.c.l.b16 %v5577
  %v5880 = vunpack.c.h.b16 %v5577
  %v5881 = vunpack.c.l.b16 %v5578
  %v5882 = vunpack.c.h.b16 %v5578
  %v5883 = vunpack.c.l.b16 %v5579
  %v5884 = vunpack.c.h.b16 %v5579
  %v5885 = vunpack.c.l.b16 %v5580
  %v5886 = vunpack.c.h.b16 %v5580
  %v5887 = vunpack.c.l.b16 %v5581
  %v5888 = vunpack.c.h.b16 %v5581
  %v5889 = vunpack.c.l.b16 %v5582
  %v5890 = vunpack.c.h.b16 %v5582
  %v5891 = vunpack.c.l.b16 %v5583
  %v5892 = vunpack.c.h.b16 %v5583
  %v5893 = vunpack.c.l.b16 %v5584
  %v5894 = vunpack.c.h.b16 %v5584
  %v5895 = vunpack.c.l.b16 %v5585
  %v5896 = vunpack.c.h.b16 %v5585
  %v5897 = vunpack.c.l.b16 %v5586
  %v5898 = vunpack.c.h.b16 %v5586
  %v5899 = vunpack.c.l.b16 %v5587
  %v5900 = vunpack.c.h.b16 %v5587
  %v5901 = vunpack.c.l.b16 %v5588
  %v5902 = vunpack.c.h.b16 %v5588
  %v5903 = vunpack.c.l.b16 %v5589
  %v5904 = vunpack.c.h.b16 %v5589
  %v5905 = vunpack.c.l.b16 %v5590
  %v5906 = vunpack.c.h.b16 %v5590
  %v5907 = vunpack.c.l.b16 %v5591
  %v5908 = vunpack.c.h.b16 %v5591
  %v5909 = vunpack.c.l.b16 %v5592
  %v5910 = vunpack.c.h.b16 %v5592
  %v5911 = vunpack.c.l.b16 %v5593
  %v5912 = vunpack.c.h.b16 %v5593
  %v5913 = vunpack.c.l.b16 %v5594
  %v5914 = vunpack.c.h.b16 %v5594
  %v5915 = vunpack.c.l.b16 %v5595
  %v5916 = vunpack.c.h.b16 %v5595
  %v5917 = vunpack.c.l.b16 %v5596
  %v5918 = vunpack.c.h.b16 %v5596
  %v5919 = vunpack.c.l.b16 %v5597
  %v5920 = vunpack.c.h.b16 %v5597
  %v5921 = vunpack.c.l.b16 %v5598
  %v5922 = vunpack.c.h.b16 %v5598
  %v5923 = vunpack.c.l.b16 %v5599
  %v5924 = vunpack.c.h.b16 %v5599
  %v5925 = vunpack.c.l.b16 %v5600
  %v5926 = vunpack.c.h.b16 %v5600
  %v5927 = vunpack.c.l.b16 %v5601
  %v5928 = vunpack.c.h.b16 %v5601
  %v5929 = vunpack.c.l.b16 %v5602
  %v5930 = vunpack.c.h.b16 %v5602
  %v5931 = vunpack.c.l.b16 %v5603
  %v5932 = vunpack.c.h.b16 %v5603
  %v5933 = vunpack.c.l.b16 %v5604
  %v5934 = vunpack.c.h.b16 %v5604
  %v5935 = vunpack.c.l.b16 %v5605
  %v5936 = vunpack.c.h.b16 %v5605
  %v5937 = vunpack.c.l.b16 %v5606
  %v5938 = vunpack.c.h.b16 %v5606
  %v5939 = vunpack.c.l.b16 %v5607
  %v5940 = vunpack.c.h.b16 %v5607
  %v5941 = vunpack.c.l.b16 %v5608
  %v5942 = vunpack.c.h.b16 %v5608
  %v5943 = vunpack.c.l.b16 %v5609
  %v5944 = vunpack.c.h.b16 %v5609
  %v5945 = vunpack.c.l.b16 %v5610
  %v5946 = vunpack.c.h.b16 %v5610
  %v5947 = vunpack.c.l.b16 %v5611
  %v5948 = vunpack.c.h.b16 %v5611
  %v5949 = vunpack.c.l.b16 %v5612
  %v5950 = vunpack.c.h.b16 %v5612
  %v5951 = vunpack.c.l.b16 %v5613
  %v5952 = vunpack.c.h.b16 %v5613
  %v5953 = vunpack.c.l.b16 %v5614
  %v5954 = vunpack.c.h.b16 %v5614
  %v5955 = vunpack.c.l.b16 %v5615
  %v5956 = vunpack.c.h.b16 %v5615
  %v5957 = vunpack.c.l.b16 %v5616
  %v5958 = vunpack.c.h.b16 %v5616
  %v5959 = vunpack.c.l.b16 %v5617
  %v5960 = vunpack.c.h.b16 %v5617
  %v5961 = vunpack.c.l.b16 %v5618
  %v5962 = vunpack.c.h.b16 %v5618
  %v5963 = vunpack.c.l.b16 %v5619
  %v5964 = vunpack.c.h.b16 %v5619
  %v5965 = vunpack.c.l.b16 %v5620
  %v5966 = vunpack.c.h.b16 %v5620
  %v5967 = vunpack.c.l.b16 %v5621
  %v5968 = vunpack.c.h.b16 %v5621
  %v5969 = vunpack.c.l.b16 %v5622
  %v5970 = vunpack.c.h.b16 %v5622
  %v5971 = vunpack.c.l.b16 %v5623
  %v5972 = vunpack.c.h.b16 %v5623
  %v5973 = vunpack.c.l.b16 %v5624
  %v5974 = vunpack.c.h.b16 %v5624
  %v5975 = vunpack.c.l.b16 %v5625
  %v5976 = vunpack.c.h.b16 %v5625
  %v5977 = vunpack.c.l.b16 %v5626
  %v5978 = vunpack.c.h.b16 %v5626
  %v5979 = vunpack.c.l.b16 %v5627
  %v5980 = vunpack.c.h.b16 %v5627
  %v5981 = vunpack.c.l.b16 %v5628
  %v5982 = vunpack.c.h.b16 %v5628
  %v5983 = vunpack.c.l.b16 %v5629
  %v5984 = vunpack.c.h.b16 %v5629
  %v5985 = vunpack.c.l.b16 %v5630
  %v5986 = vunpack.c.h.b16 %v5630
  %v5987 = vunpack.c.l.b16 %v5631
  %v5988 = vunpack.c.h.b16 %v5631
  %v5989 = vunpack.c.l.b16 %v5632
  %v5990 = vunpack.c.h.b16 %v5632
  %v5991 = vunpack.c.l.b16 %v5633
  %v5992 = vunpack.c.h.b16 %v5633
  %v5993 = vunpack.c.l.b16 %v5634
  %v5994 = vunpack.c.h.b16 %v5634
  %v5995 = vunpack.c.l.b16 %v5635
  %v5996 = vunpack.c.h.b16 %v5635
  %v5997 = vunpack.c.l.b16 %v5636
  %v5998 = vunpack.c.h.b16 %v5636
  %v5999 = vunpack.c.l.b16 %v5637
  %v6000 = vunpack.c.h.b16 %v5637
  %v6001 = vunpack.c.l.b16 %v5638
  %v6002 = vunpack.c.h.b16 %v5638
  %v6003 = vunpack.c.l.b16 %v5639
  %v6004 = vunpack.c.h.b16 %v5639
  %v6005 = vunpack.c.l.b16 %v5640
  %v6006 = vunpack.c.h.b16 %v5640
  %v6007 = vunpack.c.l.b16 %v5641
  %v6008 = vunpack.c.h.b16 %v5641
  %v6009 = vunpack.c.l.b16 %v5642
  %v6010 = vunpack.c.h.b16 %v5642
  %v6011 = vunpack.c.l.b16 %v5643
  %v6012 = vunpack.c.h.b16 %v5643
  %v6013 = vunpack.c.l.b16 %v5644
  %v6014 = vunpack.c.h.b16 %v5644
  %v6015 = vunpack.c.l.b16 %v5645
  %v6016 = vunpack.c.h.b16 %v5645
  %v6017 = vunpack.c.l.b16 %v5646
  %v6018 = vunpack.c.h.b16 %v5646
  %v6019 = vunpack.c.l.b16 %v5647
  %v6020 = vunpack.c.h.b16 %v5647
  %v6021 = vunpack.c.l.b16 %v5648
  %v6022 = vunpack.c.h.b16 %v5648
  %v6023 = vunpack.c.l.b16 %v5649
  %v6024 = vunpack.c.h.b16 %v5649
  %v6025 = vunpack.c.l.b16 %v5650
  %v6026 = vunpack.c.h.b16 %v5650
  %v6027 = vunpack.c.l.b16 %v5651
  %v6028 = vunpack.c.h.b16 %v5651
  %v6029 = vunpack.c.l.b16 %v5652
  %v6030 = vunpack.c.h.b16 %v5652
  %v6031 = vunpack.c.l.b16 %v5653
  %v6032 = vunpack.c.h.b16 %v5653
  %v6033 = vunpack.c.l.b16 %v5654
  %v6034 = vunpack.c.h.b16 %v5654
  %v6035 = vunpack.c.l.b16 %v5655
  %v6036 = vunpack.c.h.b16 %v5655
  %v6037 = vunpack.c.l.b16 %v5656
  %v6038 = vunpack.c.h.b16 %v5656
  %v6039 = vunpack.c.l.b16 %v5657
  %v6040 = vunpack.c.h.b16 %v5657
  %v6041 = vunpack.c.l.b16 %v5658
  %v6042 = vunpack.c.h.b16 %v5658
  %v6043 = vpack.c.b16 %v5791, %v5787
  %v6044 = vpack.c.b16 %v5792, %v5788
  %v6045 = vpack.c.b16 %v5793, %v5789
  %v6046 = vpack.c.b16 %v5794, %v5790
  %v6047 = vpack.c.b16 %v5799, %v5795
  %v6048 = vpack.c.b16 %v5800, %v5796
  %v6049 = vpack.c.b16 %v5801, %v5797
  %v6050 = vpack.c.b16 %v5802, %v5798
  %v6051 = vpack.c.b16 %v5807, %v5803
  %v6052 = vpack.c.b16 %v5808, %v5804
  %v6053 = vpack.c.b16 %v5809, %v5805
  %v6054 = vpack.c.b16 %v5810, %v5806
  %v6055 = vpack.c.b16 %v5815, %v5811
  %v6056 = vpack.c.b16 %v5816, %v5812
  %v6057 = vpack.c.b16 %v5817, %v5813
  %v6058 = vpack.c.b16 %v5818, %v5814
  %v6059 = vpack.c.b16 %v5823, %v5819
  %v6060 = vpack.c.b16 %v5824, %v5820
  %v6061 = vpack.c.b16 %v5825, %v5821
  %v6062 = vpack.c.b16 %v5826, %v5822
  %v6063 = vpack.c.b16 %v5831, %v5827
  %v6064 = vpack.c.b16 %v5832, %v5828
  %v6065 = vpack.c.b16 %v5833, %v5829
  %v6066 = vpack.c.b16 %v5834, %v5830
  %v6067 = vpack.c.b16 %v5839, %v5835
  %v6068 = vpack.c.b16 %v5840, %v5836
  %v6069 = vpack.c.b16 %v5841, %v5837
  %v6070 = vpack.c.b16 %v5842, %v5838
  %v6071 = vpack.c.b16 %v5847, %v5843
  %v6072 = vpack.c.b16 %v5848, %v5844
  %v6073 = vpack.c.b16 %v5849, %v5845
  %v6074 = vpack.c.b16 %v5850, %v5846
  %v6075 = vpack.c.b16 %v5855, %v5851
  %v6076 = vpack.c.b16 %v5856, %v5852
  %v6077 = vpack.c.b16 %v5857, %v5853
  %v6078 = vpack.c.b16 %v5858, %v5854
  %v6079 = vpack.c.b16 %v5863, %v5859
  %v6080 = vpack.c.b16 %v5864, %v5860
  %v6081 = vpack.c.b16 %v5865, %v5861
  %v6082 = vpack.c.b16 %v5866, %v5862
  %v6083 = vpack.c.b16 %v5871, %v5867
  %v6084 = vpack.c.b16 %v5872, %v5868
  %v6085 = vpack.c.b16 %v5873, %v5869
  %v6086 = vpack.c.b16 %v5874, %v5870
  %v6087 = vpack.c.b16 %v5879, %v5875
  %v6088 = vpack.c.b16 %v5880, %v5876
  %v6089 = vpack.c.b16 %v5881, %v5877
  %v6090 = vpack.c.b16 %v5882, %v5878
  %v6091 = vpack.c.b16 %v5887, %v5883
  %v6092 = vpack.c.b16 %v5888, %v5884
  %v6093 = vpack.c.b16 %v5889, %v5885
  %v6094 = vpack.c.b16 %v5890, %v5886
  %v6095 = vpack.c.b16 %v5895, %v5891
  %v6096 = vpack.c.b16 %v5896, %v5892
  %v6097 = vpack.c.b16 %v5897, %v5893
  %v6098 = vpack.c.b16 %v5898, %v5894
  %v6099 = vpack.c.b16 %v5903, %v5899
  %v6100 = vpack.c.b16 %v5904, %v5900
  %v6101 = vpack.c.b16 %v5905, %v5901
  %v6102 = vpack.c.b16 %v5906, %v5902
  %v6103 = vpack.c.b16 %v5911, %v5907
  %v6104 = vpack.c.b16 %v5912, %v5908
  %v6105 = vpack.c.b16 %v5913, %v5909
  %v6106 = vpack.c.b16 %v5914, %v5910
  %v6107 = vpack.c.b16 %v5919, %v5915
  %v6108 = vpack.c.b16 %v5920, %v5916
  %v6109 = vpack.c.b16 %v5921, %v5917
  %v6110 = vpack.c.b16 %v5922, %v5918
  %v6111 = vpack.c.b16 %v5927, %v5923
  %v6112 = vpack.c.b16 %v5928, %v5924
  %v6113 = vpack.c.b16 %v5929, %v5925
  %v6114 = vpack.c.b16 %v5930, %v5926
  %v6115 = vpack.c.b16 %v5935, %v5931
  %v6116 = vpack.c.b16 %v5936, %v5932
  %v6117 = vpack.c.b16 %v5937, %v5933
  %v6118 = vpack.c.b16 %v5938, %v5934
  %v6119 = vpack.c.b16 %v5943, %v5939
  %v6120 = vpack.c.b16 %v5944, %v5940
  %v6121 = vpack.c.b16 %v5945, %v5941
  %v6122 = vpack.c.b16 %v5946, %v5942
  %v6123 = vpack.c.b16 %v5951, %v5947
  %v6124 = vpack.c.b16 %v5952, %v5948
  %v6125 = vpack.c.b16 %v5953, %v5949
  %v6126 = vpack.c.b16 %v5954, %v5950
  %v6127 = vpack.c.b16 %v5959, %v5955
  %v6128 = vpack.c.b16 %v5960, %v5956
  %v6129 = vpack.c.b16 %v5961, %v5957
  %v6130 = vpack.c.b16 %v5962, %v5958
  %v6131 = vpack.c.b16 %v5967, %v5963
  %v6132 = vpack.c.b16 %v5968, %v5964
  %v6133 = vpack.c.b16 %v5969, %v5965
  %v6134 = vpack.c.b16 %v5970, %v5966
  %v6135 = vpack.c.b16 %v5975, %v5971
  %v6136 = vpack.c.b16 %v5976, %v5972
  %v6137 = vpack.c.b16 %v5977, %v5973
  %v6138 = vpack.c.b16 %v5978, %v5974
  %v6139 = vpack.c.b16 %v5983, %v5979
  %v6140 = vpack.c.b16 %v5984, %v5980
  %v6141 = vpack.c.b16 %v5985, %v5981
  %v6142 = vpack.c.b16 %v5986, %v5982
  %v6143 = vpack.c.b16 %v5991, %v5987
  %v6144 = vpack.c.b16 %v5992, %v5988
  %v6145 = vpack.c.b16 %v5993, %v5989
  %v6146 = vpack.c.b16 %v5994, %v5990
  %v6147 = vpack.c.b16 %v5999, %v5995
  %v6148 = vpack.c.b16 %v6000, %v5996
  %v6149 = vpack.c.b16 %v6001, %v5997
  %v6150 = vpack.c.b16 %v6002, %v5998
  %v6151 = vpack.c.b16 %v6007, %v6003
  %v6152 = vpack.c.b16 %v6008, %v6004
  %v6153 = vpack.c.b16 %v6009, %v6005
  %v6154 = vpack.c.b16 %v6010, %v6006
  %v6155 = vpack.c.b16 %v6015, %v6011
  %v6156 = vpack.c.b16 %v6016, %v6012
  %v6157 = vpack.c.b16 %v6017, %v6013
  %v6158 = vpack.c.b16 %v6018, %v6014
  %v6159 = vpack.c.b16 %v6023, %v6019
  %v6160 = vpack.c.b16 %v6024, %v6020
  %v6161 = vpack.c.b16 %v6025, %v6021
  %v6162 = vpack.c.b16 %v6026, %v6022
  %v6163 = vpack.c.b16 %v6031, %v6027
  %v6164 = vpack.c.b16 %v6032, %v6028
  %v6165 = vpack.c.b16 %v6033, %v6029
  %v6166 = vpack.c.b16 %v6034, %v6030
  %v6167 = vpack.c.b16 %v6039, %v6035
  %v6168 = vpack.c.b16 %v6040, %v6036
  %v6169 = vpack.c.b16 %v6041, %v6037
  %v6170 = vpack.c.b16 %v6042, %v6038
  %6299 = vmatprep.subr.bf16.mxu0 %v6044
  %6300 = vmatpush1.bf16.msra.mxu0 %v6043
  %6301 = vmatprep.subr.bf16.mxu0 %v6048
  %6302 = vmatpush1.bf16.msra.mxu0 %v6047
  %6303 = vmatprep.subr.bf16.mxu0 %v6052
  %6304 = vmatpush1.bf16.msra.mxu0 %v6051
  %6305 = vmatprep.subr.bf16.mxu0 %v6056
  %6306 = vmatpush1.bf16.msra.mxu0 %v6055
  %6307 = vmatprep.subr.bf16.mxu0 %v6060
  %6308 = vmatpush1.bf16.msra.mxu0 %v6059
  %6309 = vmatprep.subr.bf16.mxu0 %v6064
  %6310 = vmatpush1.bf16.msra.mxu0 %v6063
  %6311 = vmatprep.subr.bf16.mxu0 %v6068
  %6312 = vmatpush1.bf16.msra.mxu0 %v6067
  %6313 = vmatprep.subr.bf16.mxu0 %v6072
  %6314 = vmatpush1.bf16.msra.mxu0 %v6071
  %6315 = vmatprep.subr.bf16.mxu0 %v6076
  %6316 = vmatpush1.bf16.msra.mxu0 %v6075
  %6317 = vmatprep.subr.bf16.mxu0 %v6080
  %6318 = vmatpush1.bf16.msra.mxu0 %v6079
  %6319 = vmatprep.subr.bf16.mxu0 %v6084
  %6320 = vmatpush1.bf16.msra.mxu0 %v6083
  %6321 = vmatprep.subr.bf16.mxu0 %v6088
  %6322 = vmatpush1.bf16.msra.mxu0 %v6087
  %6323 = vmatprep.subr.bf16.mxu0 %v6092
  %6324 = vmatpush1.bf16.msra.mxu0 %v6091
  %6325 = vmatprep.subr.bf16.mxu0 %v6096
  %6326 = vmatpush1.bf16.msra.mxu0 %v6095
  %6327 = vmatprep.subr.bf16.mxu0 %v6100
  %6328 = vmatpush1.bf16.msra.mxu0 %v6099
  %6329 = vmatprep.subr.bf16.mxu0 %v6104
  %6330 = vmatpush1.bf16.msra.mxu0 %v6103
  %6331 = vmatprep.mubr.bf16.mxu0 %v3046
  %6332 = vmatmul.mubr.bf16.gmra.mrb[0].mxu0 %v3045
  %v6333 = vpop.f32.mrb[0].mxu0
  %v6334 = vadd.f32 0.0, %v6333
  %v6335 = vpop.f32.mrb[0].mxu0
  %v6336 = vadd.f32 0.0, %v6335
  %v6337 = vpop.f32.mrb[0].mxu0
  %v6338 = vadd.f32 0.0, %v6337
  %v6339 = vpop.f32.mrb[0].mxu0
  %v6340 = vadd.f32 0.0, %v6339
  %6341 = vmatprep.mubr.bf16.mxu0 %v3050
  %6342 = vmatmul.mubr.bf16.gmra.mrb[0].mxu0 %v3049
  %v6343 = vpop.f32.mrb[0].mxu0
  %v6344 = vadd.f32 0.0, %v6343
  %v6345 = vpop.f32.mrb[0].mxu0
  %v6346 = vadd.f32 0.0, %v6345
  %v6347 = vpop.f32.mrb[0].mxu0
  %v6348 = vadd.f32 0.0, %v6347
  %v6349 = vpop.f32.mrb[0].mxu0
  %v6350 = vadd.f32 0.0, %v6349
  %6351 = vmatprep.mubr.bf16.mxu0 %v3054
  %6352 = vmatmul.mubr.bf16.gmra.mrb[0].mxu0 %v3053
  %v6353 = vpop.f32.mrb[0].mxu0
  %v6354 = vadd.f32 0.0, %v6353
  %v6355 = vpop.f32.mrb[0].mxu0
  %v6356 = vadd.f32 0.0, %v6355
  %v6357 = vpop.f32.mrb[0].mxu0
  %v6358 = vadd.f32 0.0, %v6357
  %v6359 = vpop.f32.mrb[0].mxu0
  %v6360 = vadd.f32 0.0, %v6359
  %6361 = vmatprep.mubr.bf16.mxu0 %v3058
  %6362 = vmatmul.mubr.bf16.gmra.mrb[0].mxu0 %v3057
  %v6363 = vpop.f32.mrb[0].mxu0
  %v6364 = vadd.f32 0.0, %v6363
  %v6365 = vpop.f32.mrb[0].mxu0
  %v6366 = vadd.f32 0.0, %v6365
  %v6367 = vpop.f32.mrb[0].mxu0
  %v6368 = vadd.f32 0.0, %v6367
  %v6369 = vpop.f32.mrb[0].mxu0
  %v6370 = vadd.f32 0.0, %v6369
  %6371 = vmatprep.mubr.bf16.mxu0 %v3062
  %6372 = vmatmul.mubr.bf16.gmra.mrb[0].mxu0 %v3061
  %v6373 = vpop.f32.mrb[0].mxu0
  %v6374 = vadd.f32 0.0, %v6373
  %v6375 = vpop.f32.mrb[0].mxu0
  %v6376 = vadd.f32 0.0, %v6375
  %v6377 = vpop.f32.mrb[0].mxu0
  %v6378 = vadd.f32 0.0, %v6377
  %v6379 = vpop.f32.mrb[0].mxu0
  %v6380 = vadd.f32 0.0, %v6379
  %6381 = vmatprep.mubr.bf16.mxu0 %v3066
  %6382 = vmatmul.mubr.bf16.gmra.mrb[0].mxu0 %v3065
  %v6383 = vpop.f32.mrb[0].mxu0
  %v6384 = vadd.f32 0.0, %v6383
  %v6385 = vpop.f32.mrb[0].mxu0
  %v6386 = vadd.f32 0.0, %v6385
  %v6387 = vpop.f32.mrb[0].mxu0
  %v6388 = vadd.f32 0.0, %v6387
  %v6389 = vpop.f32.mrb[0].mxu0
  %v6390 = vadd.f32 0.0, %v6389
  %6391 = vmatprep.mubr.bf16.mxu0 %v3070
  %6392 = vmatmul.mubr.bf16.gmra.mrb[0].mxu0 %v3069
  %v6393 = vpop.f32.mrb[0].mxu0
  %v6394 = vadd.f32 0.0, %v6393
  %v6395 = vpop.f32.mrb[0].mxu0
  %v6396 = vadd.f32 0.0, %v6395
  %v6397 = vpop.f32.mrb[0].mxu0
  %v6398 = vadd.f32 0.0, %v6397
  %v6399 = vpop.f32.mrb[0].mxu0
  %v6400 = vadd.f32 0.0, %v6399
  %6401 = vmatprep.mubr.bf16.mxu0 %v3074
  %6402 = vmatmul.mubr.bf16.gmra.mrb[0].mxu0 %v3073
  %v6403 = vpop.f32.mrb[0].mxu0
  %v6404 = vadd.f32 0.0, %v6403
  %v6405 = vpop.f32.mrb[0].mxu0
  %v6406 = vadd.f32 0.0, %v6405
  %v6407 = vpop.f32.mrb[0].mxu0
  %v6408 = vadd.f32 0.0, %v6407
  %v6409 = vpop.f32.mrb[0].mxu0
  %v6410 = vadd.f32 0.0, %v6409
  %6411 = vdwg.mxu0
  %6412 = vmatprep.subr.bf16.mxu0 %v6108
  %6413 = vmatpush1.bf16.msra.mxu0 %v6107
  %6414 = vmatprep.subr.bf16.mxu0 %v6112
  %6415 = vmatpush1.bf16.msra.mxu0 %v6111
  %6416 = vmatprep.subr.bf16.mxu0 %v6116
  %6417 = vmatpush1.bf16.msra.mxu0 %v6115
  %6418 = vmatprep.subr.bf16.mxu0 %v6120
  %6419 = vmatpush1.bf16.msra.mxu0 %v6119
  %6420 = vmatprep.subr.bf16.mxu0 %v6124
  %6421 = vmatpush1.bf16.msra.mxu0 %v6123
  %6422 = vmatprep.subr.bf16.mxu0 %v6128
  %6423 = vmatpush1.bf16.msra.mxu0 %v6127
  %6424 = vmatprep.subr.bf16.mxu0 %v6132
  %6425 = vmatpush1.bf16.msra.mxu0 %v6131
  %6426 = vmatprep.subr.bf16.mxu0 %v6136
  %6427 = vmatpush1.bf16.msra.mxu0 %v6135
  %6428 = vmatprep.subr.bf16.mxu0 %v6140
  %6429 = vmatpush1.bf16.msra.mxu0 %v6139
  %6430 = vmatprep.subr.bf16.mxu0 %v6144
  %6431 = vmatpush1.bf16.msra.mxu0 %v6143
  %6432 = vmatprep.subr.bf16.mxu0 %v6148
  %6433 = vmatpush1.bf16.msra.mxu0 %v6147
  %6434 = vmatprep.subr.bf16.mxu0 %v6152
  %6435 = vmatpush1.bf16.msra.mxu0 %v6151
  %6436 = vmatprep.subr.bf16.mxu0 %v6156
  %6437 = vmatpush1.bf16.msra.mxu0 %v6155
  %6438 = vmatprep.subr.bf16.mxu0 %v6160
  %6439 = vmatpush1.bf16.msra.mxu0 %v6159
  %6440 = vmatprep.subr.bf16.mxu0 %v6164
  %6441 = vmatpush1.bf16.msra.mxu0 %v6163
  %6442 = vmatprep.subr.bf16.mxu0 %v6168
  %6443 = vmatpush1.bf16.msra.mxu0 %v6167
  %6444 = vmatprep.mubr.bf16.mxu0 %v3048
  %6445 = vmatmul.mubr.bf16.gmra.mrb[0].mxu0 %v3047
  %v6446 = vpop.f32.mrb[0].mxu0
  %v6447 = vadd.f32 %v6334, %v6446
  %v6448 = vpop.f32.mrb[0].mxu0
  %v6449 = vadd.f32 %v6336, %v6448
  %v6450 = vpop.f32.mrb[0].mxu0
  %v6451 = vadd.f32 %v6338, %v6450
  %v6452 = vpop.f32.mrb[0].mxu0
  %v6453 = vadd.f32 %v6340, %v6452
  %6454 = vmatprep.mubr.bf16.mxu0 %v3052
  %6455 = vmatmul.mubr.bf16.gmra.mrb[0].mxu0 %v3051
  %v6456 = vpop.f32.mrb[0].mxu0
  %v6457 = vadd.f32 %v6344, %v6456
  %v6458 = vpop.f32.mrb[0].mxu0
  %v6459 = vadd.f32 %v6346, %v6458
  %v6460 = vpop.f32.mrb[0].mxu0
  %v6461 = vadd.f32 %v6348, %v6460
  %v6462 = vpop.f32.mrb[0].mxu0
  %v6463 = vadd.f32 %v6350, %v6462
  %6464 = vmatprep.mubr.bf16.mxu0 %v3056
  %6465 = vmatmul.mubr.bf16.gmra.mrb[0].mxu0 %v3055
  %v6466 = vpop.f32.mrb[0].mxu0
  %v6467 = vadd.f32 %v6354, %v6466
  %v6468 = vpop.f32.mrb[0].mxu0
  %v6469 = vadd.f32 %v6356, %v6468
  %v6470 = vpop.f32.mrb[0].mxu0
  %v6471 = vadd.f32 %v6358, %v6470
  %v6472 = vpop.f32.mrb[0].mxu0
  %v6473 = vadd.f32 %v6360, %v6472
  %6474 = vmatprep.mubr.bf16.mxu0 %v3060
  %6475 = vmatmul.mubr.bf16.gmra.mrb[0].mxu0 %v3059
  %v6476 = vpop.f32.mrb[0].mxu0
  %v6477 = vadd.f32 %v6364, %v6476
  %v6478 = vpop.f32.mrb[0].mxu0
  %v6479 = vadd.f32 %v6366, %v6478
  %v6480 = vpop.f32.mrb[0].mxu0
  %v6481 = vadd.f32 %v6368, %v6480
  %v6482 = vpop.f32.mrb[0].mxu0
  %v6483 = vadd.f32 %v6370, %v6482
  %6484 = vmatprep.mubr.bf16.mxu0 %v3064
  %6485 = vmatmul.mubr.bf16.gmra.mrb[0].mxu0 %v3063
  %v6486 = vpop.f32.mrb[0].mxu0
  %v6487 = vadd.f32 %v6374, %v6486
  %v6488 = vpop.f32.mrb[0].mxu0
  %v6489 = vadd.f32 %v6376, %v6488
  %v6490 = vpop.f32.mrb[0].mxu0
  %v6491 = vadd.f32 %v6378, %v6490
  %v6492 = vpop.f32.mrb[0].mxu0
  %v6493 = vadd.f32 %v6380, %v6492
  %6494 = vmatprep.mubr.bf16.mxu0 %v3068
  %6495 = vmatmul.mubr.bf16.gmra.mrb[0].mxu0 %v3067
  %v6496 = vpop.f32.mrb[0].mxu0
  %v6497 = vadd.f32 %v6384, %v6496
  %v6498 = vpop.f32.mrb[0].mxu0
  %v6499 = vadd.f32 %v6386, %v6498
  %v6500 = vpop.f32.mrb[0].mxu0
  %v6501 = vadd.f32 %v6388, %v6500
  %v6502 = vpop.f32.mrb[0].mxu0
  %v6503 = vadd.f32 %v6390, %v6502
  %6504 = vmatprep.mubr.bf16.mxu0 %v3072
  %6505 = vmatmul.mubr.bf16.gmra.mrb[0].mxu0 %v3071
  %v6506 = vpop.f32.mrb[0].mxu0
  %v6507 = vadd.f32 %v6394, %v6506
  %v6508 = vpop.f32.mrb[0].mxu0
  %v6509 = vadd.f32 %v6396, %v6508
  %v6510 = vpop.f32.mrb[0].mxu0
  %v6511 = vadd.f32 %v6398, %v6510
  %v6512 = vpop.f32.mrb[0].mxu0
  %v6513 = vadd.f32 %v6400, %v6512
  %6514 = vmatprep.mubr.bf16.mxu0 %v3076
  %6515 = vmatmul.mubr.bf16.gmra.mrb[0].mxu0 %v3075
  %v6516 = vpop.f32.mrb[0].mxu0
  %v6517 = vadd.f32 %v6404, %v6516
  %v6518 = vpop.f32.mrb[0].mxu0
  %v6519 = vadd.f32 %v6406, %v6518
  %v6520 = vpop.f32.mrb[0].mxu0
  %v6521 = vadd.f32 %v6408, %v6520
  %v6522 = vpop.f32.mrb[0].mxu0
  %v6523 = vadd.f32 %v6410, %v6522
  %6524 = vdwg.mxu0
  %6525 = vmatprep.subr.bf16.mxu0 %v6046
  %6526 = vmatpush1.bf16.msra.mxu0 %v6045
  %6527 = vmatprep.subr.bf16.mxu0 %v6050
  %6528 = vmatpush1.bf16.msra.mxu0 %v6049
  %6529 = vmatprep.subr.bf16.mxu0 %v6054
  %6530 = vmatpush1.bf16.msra.mxu0 %v6053
  %6531 = vmatprep.subr.bf16.mxu0 %v6058
  %6532 = vmatpush1.bf16.msra.mxu0 %v6057
  %6533 = vmatprep.subr.bf16.mxu0 %v6062
  %6534 = vmatpush1.bf16.msra.mxu0 %v6061
  %6535 = vmatprep.subr.bf16.mxu0 %v6066
  %6536 = vmatpush1.bf16.msra.mxu0 %v6065
  %6537 = vmatprep.subr.bf16.mxu0 %v6070
  %6538 = vmatpush1.bf16.msra.mxu0 %v6069
  %6539 = vmatprep.subr.bf16.mxu0 %v6074
  %6540 = vmatpush1.bf16.msra.mxu0 %v6073
  %6541 = vmatprep.subr.bf16.mxu0 %v6078
  %6542 = vmatpush1.bf16.msra.mxu0 %v6077
  %6543 = vmatprep.subr.bf16.mxu0 %v6082
  %6544 = vmatpush1.bf16.msra.mxu0 %v6081
  %6545 = vmatprep.subr.bf16.mxu0 %v6086
  %6546 = vmatpush1.bf16.msra.mxu0 %v6085
  %6547 = vmatprep.subr.bf16.mxu0 %v6090
  %6548 = vmatpush1.bf16.msra.mxu0 %v6089
  %6549 = vmatprep.subr.bf16.mxu0 %v6094
  %6550 = vmatpush1.bf16.msra.mxu0 %v6093
  %6551 = vmatprep.subr.bf16.mxu0 %v6098
  %6552 = vmatpush1.bf16.msra.mxu0 %v6097
  %6553 = vmatprep.subr.bf16.mxu0 %v6102
  %6554 = vmatpush1.bf16.msra.mxu0 %v6101
  %6555 = vmatprep.subr.bf16.mxu0 %v6106
  %6556 = vmatpush1.bf16.msra.mxu0 %v6105
  %6557 = vmatprep.mubr.bf16.mxu0 %v3046
  %6558 = vmatmul.mubr.bf16.gmra.mrb[0].mxu0 %v3045
  %v6559 = vpop.f32.mrb[0].mxu0
  %v6560 = vadd.f32 0.0, %v6559
  %v6561 = vpop.f32.mrb[0].mxu0
  %v6562 = vadd.f32 0.0, %v6561
  %v6563 = vpop.f32.mrb[0].mxu0
  %v6564 = vadd.f32 0.0, %v6563
  %v6565 = vpop.f32.mrb[0].mxu0
  %v6566 = vadd.f32 0.0, %v6565
  %6567 = vmatprep.mubr.bf16.mxu0 %v3050
  %6568 = vmatmul.mubr.bf16.gmra.mrb[0].mxu0 %v3049
  %v6569 = vpop.f32.mrb[0].mxu0
  %v6570 = vadd.f32 0.0, %v6569
  %v6571 = vpop.f32.mrb[0].mxu0
  %v6572 = vadd.f32 0.0, %v6571
  %v6573 = vpop.f32.mrb[0].mxu0
  %v6574 = vadd.f32 0.0, %v6573
  %v6575 = vpop.f32.mrb[0].mxu0
  %v6576 = vadd.f32 0.0, %v6575
  %6577 = vmatprep.mubr.bf16.mxu0 %v3054
  %6578 = vmatmul.mubr.bf16.gmra.mrb[0].mxu0 %v3053
  %v6579 = vpop.f32.mrb[0].mxu0
  %v6580 = vadd.f32 0.0, %v6579
  %v6581 = vpop.f32.mrb[0].mxu0
  %v6582 = vadd.f32 0.0, %v6581
  %v6583 = vpop.f32.mrb[0].mxu0
  %v6584 = vadd.f32 0.0, %v6583
  %v6585 = vpop.f32.mrb[0].mxu0
  %v6586 = vadd.f32 0.0, %v6585
  %6587 = vmatprep.mubr.bf16.mxu0 %v3058
  %6588 = vmatmul.mubr.bf16.gmra.mrb[0].mxu0 %v3057
  %v6589 = vpop.f32.mrb[0].mxu0
  %v6590 = vadd.f32 0.0, %v6589
  %v6591 = vpop.f32.mrb[0].mxu0
  %v6592 = vadd.f32 0.0, %v6591
  %v6593 = vpop.f32.mrb[0].mxu0
  %v6594 = vadd.f32 0.0, %v6593
  %v6595 = vpop.f32.mrb[0].mxu0
  %v6596 = vadd.f32 0.0, %v6595
  %6597 = vmatprep.mubr.bf16.mxu0 %v3062
  %6598 = vmatmul.mubr.bf16.gmra.mrb[0].mxu0 %v3061
  %v6599 = vpop.f32.mrb[0].mxu0
  %v6600 = vadd.f32 0.0, %v6599
  %v6601 = vpop.f32.mrb[0].mxu0
  %v6602 = vadd.f32 0.0, %v6601
  %v6603 = vpop.f32.mrb[0].mxu0
  %v6604 = vadd.f32 0.0, %v6603
  %v6605 = vpop.f32.mrb[0].mxu0
  %v6606 = vadd.f32 0.0, %v6605
  %6607 = vmatprep.mubr.bf16.mxu0 %v3066
  %6608 = vmatmul.mubr.bf16.gmra.mrb[0].mxu0 %v3065
  %v6609 = vpop.f32.mrb[0].mxu0
  %v6610 = vadd.f32 0.0, %v6609
  %v6611 = vpop.f32.mrb[0].mxu0
  %v6612 = vadd.f32 0.0, %v6611
  %v6613 = vpop.f32.mrb[0].mxu0
  %v6614 = vadd.f32 0.0, %v6613
  %v6615 = vpop.f32.mrb[0].mxu0
  %v6616 = vadd.f32 0.0, %v6615
  %6617 = vmatprep.mubr.bf16.mxu0 %v3070
  %6618 = vmatmul.mubr.bf16.gmra.mrb[0].mxu0 %v3069
  %v6619 = vpop.f32.mrb[0].mxu0
  %v6620 = vadd.f32 0.0, %v6619
  %v6621 = vpop.f32.mrb[0].mxu0
  %v6622 = vadd.f32 0.0, %v6621
  %v6623 = vpop.f32.mrb[0].mxu0
  %v6624 = vadd.f32 0.0, %v6623
  %v6625 = vpop.f32.mrb[0].mxu0
  %v6626 = vadd.f32 0.0, %v6625
  %6627 = vmatprep.mubr.bf16.mxu0 %v3074
  %6628 = vmatmul.mubr.bf16.gmra.mrb[0].mxu0 %v3073
  %v6629 = vpop.f32.mrb[0].mxu0
  %v6630 = vadd.f32 0.0, %v6629
  %v6631 = vpop.f32.mrb[0].mxu0
  %v6632 = vadd.f32 0.0, %v6631
  %v6633 = vpop.f32.mrb[0].mxu0
  %v6634 = vadd.f32 0.0, %v6633
  %v6635 = vpop.f32.mrb[0].mxu0
  %v6636 = vadd.f32 0.0, %v6635
  %6637 = vdwg.mxu0
  %6638 = vmatprep.subr.bf16.mxu0 %v6110
  %6639 = vmatpush1.bf16.msra.mxu0 %v6109
  %6640 = vmatprep.subr.bf16.mxu0 %v6114
  %6641 = vmatpush1.bf16.msra.mxu0 %v6113
  %6642 = vmatprep.subr.bf16.mxu0 %v6118
  %6643 = vmatpush1.bf16.msra.mxu0 %v6117
  %6644 = vmatprep.subr.bf16.mxu0 %v6122
  %6645 = vmatpush1.bf16.msra.mxu0 %v6121
  %6646 = vmatprep.subr.bf16.mxu0 %v6126
  %6647 = vmatpush1.bf16.msra.mxu0 %v6125
  %6648 = vmatprep.subr.bf16.mxu0 %v6130
  %6649 = vmatpush1.bf16.msra.mxu0 %v6129
  %6650 = vmatprep.subr.bf16.mxu0 %v6134
  %6651 = vmatpush1.bf16.msra.mxu0 %v6133
  %6652 = vmatprep.subr.bf16.mxu0 %v6138
  %6653 = vmatpush1.bf16.msra.mxu0 %v6137
  %6654 = vmatprep.subr.bf16.mxu0 %v6142
  %6655 = vmatpush1.bf16.msra.mxu0 %v6141
  %6656 = vmatprep.subr.bf16.mxu0 %v6146
  %6657 = vmatpush1.bf16.msra.mxu0 %v6145
  %6658 = vmatprep.subr.bf16.mxu0 %v6150
  %6659 = vmatpush1.bf16.msra.mxu0 %v6149
  %6660 = vmatprep.subr.bf16.mxu0 %v6154
  %6661 = vmatpush1.bf16.msra.mxu0 %v6153
  %6662 = vmatprep.subr.bf16.mxu0 %v6158
  %6663 = vmatpush1.bf16.msra.mxu0 %v6157
  %6664 = vmatprep.subr.bf16.mxu0 %v6162
  %6665 = vmatpush1.bf16.msra.mxu0 %v6161
  %6666 = vmatprep.subr.bf16.mxu0 %v6166
  %6667 = vmatpush1.bf16.msra.mxu0 %v6165
  %6668 = vmatprep.subr.bf16.mxu0 %v6170
  %6669 = vmatpush1.bf16.msra.mxu0 %v6169
  %6670 = vmatprep.mubr.bf16.mxu0 %v3048
  %6671 = vmatmul.mubr.bf16.gmra.mrb[0].mxu0 %v3047
  %v6672 = vpop.f32.mrb[0].mxu0
  %v6673 = vadd.f32 %v6560, %v6672
  %v6674 = vpop.f32.mrb[0].mxu0
  %v6675 = vadd.f32 %v6562, %v6674
  %v6676 = vpop.f32.mrb[0].mxu0
  %v6677 = vadd.f32 %v6564, %v6676
  %v6678 = vpop.f32.mrb[0].mxu0
  %v6679 = vadd.f32 %v6566, %v6678
  %6680 = vmatprep.mubr.bf16.mxu0 %v3052
  %6681 = vmatmul.mubr.bf16.gmra.mrb[0].mxu0 %v3051
  %v6682 = vpop.f32.mrb[0].mxu0
  %v6683 = vadd.f32 %v6570, %v6682
  %v6684 = vpop.f32.mrb[0].mxu0
  %v6685 = vadd.f32 %v6572, %v6684
  %v6686 = vpop.f32.mrb[0].mxu0
  %v6687 = vadd.f32 %v6574, %v6686
  %v6688 = vpop.f32.mrb[0].mxu0
  %v6689 = vadd.f32 %v6576, %v6688
  %6690 = vmatprep.mubr.bf16.mxu0 %v3056
  %6691 = vmatmul.mubr.bf16.gmra.mrb[0].mxu0 %v3055
  %v6692 = vpop.f32.mrb[0].mxu0
  %v6693 = vadd.f32 %v6580, %v6692
  %v6694 = vpop.f32.mrb[0].mxu0
  %v6695 = vadd.f32 %v6582, %v6694
  %v6696 = vpop.f32.mrb[0].mxu0
  %v6697 = vadd.f32 %v6584, %v6696
  %v6698 = vpop.f32.mrb[0].mxu0
  %v6699 = vadd.f32 %v6586, %v6698
  %6700 = vmatprep.mubr.bf16.mxu0 %v3060
  %6701 = vmatmul.mubr.bf16.gmra.mrb[0].mxu0 %v3059
  %v6702 = vpop.f32.mrb[0].mxu0
  %v6703 = vadd.f32 %v6590, %v6702
  %v6704 = vpop.f32.mrb[0].mxu0
  %v6705 = vadd.f32 %v6592, %v6704
  %v6706 = vpop.f32.mrb[0].mxu0
  %v6707 = vadd.f32 %v6594, %v6706
  %v6708 = vpop.f32.mrb[0].mxu0
  %v6709 = vadd.f32 %v6596, %v6708
  %6710 = vmatprep.mubr.bf16.mxu0 %v3064
  %6711 = vmatmul.mubr.bf16.gmra.mrb[0].mxu0 %v3063
  %v6712 = vpop.f32.mrb[0].mxu0
  %v6713 = vadd.f32 %v6600, %v6712
  %v6714 = vpop.f32.mrb[0].mxu0
  %v6715 = vadd.f32 %v6602, %v6714
  %v6716 = vpop.f32.mrb[0].mxu0
  %v6717 = vadd.f32 %v6604, %v6716
  %v6718 = vpop.f32.mrb[0].mxu0
  %v6719 = vadd.f32 %v6606, %v6718
  %6720 = vmatprep.mubr.bf16.mxu0 %v3068
  %6721 = vmatmul.mubr.bf16.gmra.mrb[0].mxu0 %v3067
  %v6722 = vpop.f32.mrb[0].mxu0
  %v6723 = vadd.f32 %v6610, %v6722
  %v6724 = vpop.f32.mrb[0].mxu0
  %v6725 = vadd.f32 %v6612, %v6724
  %v6726 = vpop.f32.mrb[0].mxu0
  %v6727 = vadd.f32 %v6614, %v6726
  %v6728 = vpop.f32.mrb[0].mxu0
  %v6729 = vadd.f32 %v6616, %v6728
  %6730 = vmatprep.mubr.bf16.mxu0 %v3072
  %6731 = vmatmul.mubr.bf16.gmra.mrb[0].mxu0 %v3071
  %v6732 = vpop.f32.mrb[0].mxu0
  %v6733 = vadd.f32 %v6620, %v6732
  %v6734 = vpop.f32.mrb[0].mxu0
  %v6735 = vadd.f32 %v6622, %v6734
  %v6736 = vpop.f32.mrb[0].mxu0
  %v6737 = vadd.f32 %v6624, %v6736
  %v6738 = vpop.f32.mrb[0].mxu0
  %v6739 = vadd.f32 %v6626, %v6738
  %6740 = vmatprep.mubr.bf16.mxu0 %v3076
  %6741 = vmatmul.mubr.bf16.gmra.mrb[0].mxu0 %v3075
  %v6742 = vpop.f32.mrb[0].mxu0
  %v6743 = vadd.f32 %v6630, %v6742
  %v6744 = vpop.f32.mrb[0].mxu0
  %v6745 = vadd.f32 %v6632, %v6744
  %v6746 = vpop.f32.mrb[0].mxu0
  %v6747 = vadd.f32 %v6634, %v6746
  %v6748 = vpop.f32.mrb[0].mxu0
  %v6749 = vadd.f32 %v6636, %v6748
  %6750 = vdwg.mxu0
  %v6751 = vadd.f32 %v5226, %v6447
  %v6752 = vadd.f32 %v5228, %v6449
  %v6753 = vadd.f32 %v5452, %v6673
  %v6754 = vadd.f32 %v5454, %v6675
  %v6755 = vadd.f32 %v5230, %v6451
  %v6756 = vadd.f32 %v5232, %v6453
  %v6757 = vadd.f32 %v5456, %v6677
  %v6758 = vadd.f32 %v5458, %v6679
  %v6759 = vadd.f32 %v5236, %v6457
  %v6760 = vadd.f32 %v5238, %v6459
  %v6761 = vadd.f32 %v5462, %v6683
  %v6762 = vadd.f32 %v5464, %v6685
  %v6763 = vadd.f32 %v5240, %v6461
  %v6764 = vadd.f32 %v5242, %v6463
  %v6765 = vadd.f32 %v5466, %v6687
  %v6766 = vadd.f32 %v5468, %v6689
  %v6767 = vadd.f32 %v5246, %v6467
  %v6768 = vadd.f32 %v5248, %v6469
  %v6769 = vadd.f32 %v5472, %v6693
  %v6770 = vadd.f32 %v5474, %v6695
  %v6771 = vadd.f32 %v5250, %v6471
  %v6772 = vadd.f32 %v5252, %v6473
  %v6773 = vadd.f32 %v5476, %v6697
  %v6774 = vadd.f32 %v5478, %v6699
  %v6775 = vadd.f32 %v5256, %v6477
  %v6776 = vadd.f32 %v5258, %v6479
  %v6777 = vadd.f32 %v5482, %v6703
  %v6778 = vadd.f32 %v5484, %v6705
  %v6779 = vadd.f32 %v5260, %v6481
  %v6780 = vadd.f32 %v5262, %v6483
  %v6781 = vadd.f32 %v5486, %v6707
  %v6782 = vadd.f32 %v5488, %v6709
  %v6783 = vadd.f32 %v5266, %v6487
  %v6784 = vadd.f32 %v5268, %v6489
  %v6785 = vadd.f32 %v5492, %v6713
  %v6786 = vadd.f32 %v5494, %v6715
  %v6787 = vadd.f32 %v5270, %v6491
  %v6788 = vadd.f32 %v5272, %v6493
  %v6789 = vadd.f32 %v5496, %v6717
  %v6790 = vadd.f32 %v5498, %v6719
  %v6791 = vadd.f32 %v5276, %v6497
  %v6792 = vadd.f32 %v5278, %v6499
  %v6793 = vadd.f32 %v5502, %v6723
  %v6794 = vadd.f32 %v5504, %v6725
  %v6795 = vadd.f32 %v5280, %v6501
  %v6796 = vadd.f32 %v5282, %v6503
  %v6797 = vadd.f32 %v5506, %v6727
  %v6798 = vadd.f32 %v5508, %v6729
  %v6799 = vadd.f32 %v5286, %v6507
  %v6800 = vadd.f32 %v5288, %v6509
  %v6801 = vadd.f32 %v5512, %v6733
  %v6802 = vadd.f32 %v5514, %v6735
  %v6803 = vadd.f32 %v5290, %v6511
  %v6804 = vadd.f32 %v5292, %v6513
  %v6805 = vadd.f32 %v5516, %v6737
  %v6806 = vadd.f32 %v5518, %v6739
  %v6807 = vadd.f32 %v5296, %v6517
  %v6808 = vadd.f32 %v5298, %v6519
  %v6809 = vadd.f32 %v5522, %v6743
  %v6810 = vadd.f32 %v5524, %v6745
  %v6811 = vadd.f32 %v5300, %v6521
  %v6812 = vadd.f32 %v5302, %v6523
  %v6813 = vadd.f32 %v5526, %v6747
  %v6814 = vadd.f32 %v5528, %v6749
  %s6815 = scalar_lea.vmem %s2, 3072
  %v6816 = vld [vmem:[%s6815] sm:$0xff]
  %v6817 = vld [vmem:[%s6815 + $0x8] sm:$0xff]
  %v6818 = vld [vmem:[%s6815 + $0x10] sm:$0xff]
  %v6819 = vld [vmem:[%s6815 + $0x18] sm:$0xff]
  %v6820 = vld [vmem:[%s6815 + $0x20] sm:$0xff]
  %v6821 = vld [vmem:[%s6815 + $0x28] sm:$0xff]
  %v6822 = vld [vmem:[%s6815 + $0x30] sm:$0xff]
  %v6823 = vld [vmem:[%s6815 + $0x38] sm:$0xff]
  %v6824 = vld [vmem:[%s6815 + $0x40] sm:$0xff]
  %v6825 = vld [vmem:[%s6815 + $0x48] sm:$0xff]
  %v6826 = vld [vmem:[%s6815 + $0x50] sm:$0xff]
  %v6827 = vld [vmem:[%s6815 + $0x58] sm:$0xff]
  %v6828 = vld [vmem:[%s6815 + $0x60] sm:$0xff]
  %v6829 = vld [vmem:[%s6815 + $0x68] sm:$0xff]
  %v6830 = vld [vmem:[%s6815 + $0x70] sm:$0xff]
  %v6831 = vld [vmem:[%s6815 + $0x78] sm:$0xff]
  %v6832 = vld [vmem:[%s6815 + $0x80] sm:$0xff]
  %v6833 = vld [vmem:[%s6815 + $0x88] sm:$0xff]
  %v6834 = vld [vmem:[%s6815 + $0x90] sm:$0xff]
  %v6835 = vld [vmem:[%s6815 + $0x98] sm:$0xff]
  %v6836 = vld [vmem:[%s6815 + $0xa0] sm:$0xff]
  %v6837 = vld [vmem:[%s6815 + $0xa8] sm:$0xff]
  %v6838 = vld [vmem:[%s6815 + $0xb0] sm:$0xff]
  %v6839 = vld [vmem:[%s6815 + $0xb8] sm:$0xff]
  %v6840 = vld [vmem:[%s6815 + $0xc0] sm:$0xff]
  %v6841 = vld [vmem:[%s6815 + $0xc8] sm:$0xff]
  %v6842 = vld [vmem:[%s6815 + $0xd0] sm:$0xff]
  %v6843 = vld [vmem:[%s6815 + $0xd8] sm:$0xff]
  %v6844 = vld [vmem:[%s6815 + $0xe0] sm:$0xff]
  %v6845 = vld [vmem:[%s6815 + $0xe8] sm:$0xff]
  %v6846 = vld [vmem:[%s6815 + $0xf0] sm:$0xff]
  %v6847 = vld [vmem:[%s6815 + $0xf8] sm:$0xff]
  %v6848 = vld [vmem:[%s6815 + $0x100] sm:$0xff]
  %v6849 = vld [vmem:[%s6815 + $0x108] sm:$0xff]
  %v6850 = vld [vmem:[%s6815 + $0x110] sm:$0xff]
  %v6851 = vld [vmem:[%s6815 + $0x118] sm:$0xff]
  %v6852 = vld [vmem:[%s6815 + $0x120] sm:$0xff]
  %v6853 = vld [vmem:[%s6815 + $0x128] sm:$0xff]
  %v6854 = vld [vmem:[%s6815 + $0x130] sm:$0xff]
  %v6855 = vld [vmem:[%s6815 + $0x138] sm:$0xff]
  %v6856 = vld [vmem:[%s6815 + $0x140] sm:$0xff]
  %v6857 = vld [vmem:[%s6815 + $0x148] sm:$0xff]
  %v6858 = vld [vmem:[%s6815 + $0x150] sm:$0xff]
  %v6859 = vld [vmem:[%s6815 + $0x158] sm:$0xff]
  %v6860 = vld [vmem:[%s6815 + $0x160] sm:$0xff]
  %v6861 = vld [vmem:[%s6815 + $0x168] sm:$0xff]
  %v6862 = vld [vmem:[%s6815 + $0x170] sm:$0xff]
  %v6863 = vld [vmem:[%s6815 + $0x178] sm:$0xff]
  %v6864 = vld [vmem:[%s6815 + $0x180] sm:$0xff]
  %v6865 = vld [vmem:[%s6815 + $0x188] sm:$0xff]
  %v6866 = vld [vmem:[%s6815 + $0x190] sm:$0xff]
  %v6867 = vld [vmem:[%s6815 + $0x198] sm:$0xff]
  %v6868 = vld [vmem:[%s6815 + $0x1a0] sm:$0xff]
  %v6869 = vld [vmem:[%s6815 + $0x1a8] sm:$0xff]
  %v6870 = vld [vmem:[%s6815 + $0x1b0] sm:$0xff]
  %v6871 = vld [vmem:[%s6815 + $0x1b8] sm:$0xff]
  %v6872 = vld [vmem:[%s6815 + $0x1c0] sm:$0xff]
  %v6873 = vld [vmem:[%s6815 + $0x1c8] sm:$0xff]
  %v6874 = vld [vmem:[%s6815 + $0x1d0] sm:$0xff]
  %v6875 = vld [vmem:[%s6815 + $0x1d8] sm:$0xff]
  %v6876 = vld [vmem:[%s6815 + $0x1e0] sm:$0xff]
  %v6877 = vld [vmem:[%s6815 + $0x1e8] sm:$0xff]
  %v6878 = vld [vmem:[%s6815 + $0x1f0] sm:$0xff]
  %v6879 = vld [vmem:[%s6815 + $0x1f8] sm:$0xff]
  %v6880 = vld [vmem:[%s6815 + $0x200] sm:$0xff]
  %v6881 = vld [vmem:[%s6815 + $0x208] sm:$0xff]
  %v6882 = vld [vmem:[%s6815 + $0x210] sm:$0xff]
  %v6883 = vld [vmem:[%s6815 + $0x218] sm:$0xff]
  %v6884 = vld [vmem:[%s6815 + $0x220] sm:$0xff]
  %v6885 = vld [vmem:[%s6815 + $0x228] sm:$0xff]
  %v6886 = vld [vmem:[%s6815 + $0x230] sm:$0xff]
  %v6887 = vld [vmem:[%s6815 + $0x238] sm:$0xff]
  %v6888 = vld [vmem:[%s6815 + $0x240] sm:$0xff]
  %v6889 = vld [vmem:[%s6815 + $0x248] sm:$0xff]
  %v6890 = vld [vmem:[%s6815 + $0x250] sm:$0xff]
  %v6891 = vld [vmem:[%s6815 + $0x258] sm:$0xff]
  %v6892 = vld [vmem:[%s6815 + $0x260] sm:$0xff]
  %v6893 = vld [vmem:[%s6815 + $0x268] sm:$0xff]
  %v6894 = vld [vmem:[%s6815 + $0x270] sm:$0xff]
  %v6895 = vld [vmem:[%s6815 + $0x278] sm:$0xff]
  %v6896 = vld [vmem:[%s6815 + $0x280] sm:$0xff]
  %v6897 = vld [vmem:[%s6815 + $0x288] sm:$0xff]
  %v6898 = vld [vmem:[%s6815 + $0x290] sm:$0xff]
  %v6899 = vld [vmem:[%s6815 + $0x298] sm:$0xff]
  %v6900 = vld [vmem:[%s6815 + $0x2a0] sm:$0xff]
  %v6901 = vld [vmem:[%s6815 + $0x2a8] sm:$0xff]
  %v6902 = vld [vmem:[%s6815 + $0x2b0] sm:$0xff]
  %v6903 = vld [vmem:[%s6815 + $0x2b8] sm:$0xff]
  %v6904 = vld [vmem:[%s6815 + $0x2c0] sm:$0xff]
  %v6905 = vld [vmem:[%s6815 + $0x2c8] sm:$0xff]
  %v6906 = vld [vmem:[%s6815 + $0x2d0] sm:$0xff]
  %v6907 = vld [vmem:[%s6815 + $0x2d8] sm:$0xff]
  %v6908 = vld [vmem:[%s6815 + $0x2e0] sm:$0xff]
  %v6909 = vld [vmem:[%s6815 + $0x2e8] sm:$0xff]
  %v6910 = vld [vmem:[%s6815 + $0x2f0] sm:$0xff]
  %v6911 = vld [vmem:[%s6815 + $0x2f8] sm:$0xff]
  %v6912 = vld [vmem:[%s6815 + $0x300] sm:$0xff]
  %v6913 = vld [vmem:[%s6815 + $0x308] sm:$0xff]
  %v6914 = vld [vmem:[%s6815 + $0x310] sm:$0xff]
  %v6915 = vld [vmem:[%s6815 + $0x318] sm:$0xff]
  %v6916 = vld [vmem:[%s6815 + $0x320] sm:$0xff]
  %v6917 = vld [vmem:[%s6815 + $0x328] sm:$0xff]
  %v6918 = vld [vmem:[%s6815 + $0x330] sm:$0xff]
  %v6919 = vld [vmem:[%s6815 + $0x338] sm:$0xff]
  %v6920 = vld [vmem:[%s6815 + $0x340] sm:$0xff]
  %v6921 = vld [vmem:[%s6815 + $0x348] sm:$0xff]
  %v6922 = vld [vmem:[%s6815 + $0x350] sm:$0xff]
  %v6923 = vld [vmem:[%s6815 + $0x358] sm:$0xff]
  %v6924 = vld [vmem:[%s6815 + $0x360] sm:$0xff]
  %v6925 = vld [vmem:[%s6815 + $0x368] sm:$0xff]
  %v6926 = vld [vmem:[%s6815 + $0x370] sm:$0xff]
  %v6927 = vld [vmem:[%s6815 + $0x378] sm:$0xff]
  %v6928 = vld [vmem:[%s6815 + $0x380] sm:$0xff]
  %v6929 = vld [vmem:[%s6815 + $0x388] sm:$0xff]
  %v6930 = vld [vmem:[%s6815 + $0x390] sm:$0xff]
  %v6931 = vld [vmem:[%s6815 + $0x398] sm:$0xff]
  %v6932 = vld [vmem:[%s6815 + $0x3a0] sm:$0xff]
  %v6933 = vld [vmem:[%s6815 + $0x3a8] sm:$0xff]
  %v6934 = vld [vmem:[%s6815 + $0x3b0] sm:$0xff]
  %v6935 = vld [vmem:[%s6815 + $0x3b8] sm:$0xff]
  %v6936 = vld [vmem:[%s6815 + $0x3c0] sm:$0xff]
  %v6937 = vld [vmem:[%s6815 + $0x3c8] sm:$0xff]
  %v6938 = vld [vmem:[%s6815 + $0x3d0] sm:$0xff]
  %v6939 = vld [vmem:[%s6815 + $0x3d8] sm:$0xff]
  %v6940 = vld [vmem:[%s6815 + $0x3e0] sm:$0xff]
  %v6941 = vld [vmem:[%s6815 + $0x3e8] sm:$0xff]
  %v6942 = vld [vmem:[%s6815 + $0x3f0] sm:$0xff]
  %v6943 = vld [vmem:[%s6815 + $0x3f8] sm:$0xff]
  %v7072 = vunpack.c.l.b16 %v6816
  %v7073 = vunpack.c.h.b16 %v6816
  %v7074 = vunpack.c.l.b16 %v6817
  %v7075 = vunpack.c.h.b16 %v6817
  %v7076 = vunpack.c.l.b16 %v6818
  %v7077 = vunpack.c.h.b16 %v6818
  %v7078 = vunpack.c.l.b16 %v6819
  %v7079 = vunpack.c.h.b16 %v6819
  %v7080 = vunpack.c.l.b16 %v6820
  %v7081 = vunpack.c.h.b16 %v6820
  %v7082 = vunpack.c.l.b16 %v6821
  %v7083 = vunpack.c.h.b16 %v6821
  %v7084 = vunpack.c.l.b16 %v6822
  %v7085 = vunpack.c.h.b16 %v6822
  %v7086 = vunpack.c.l.b16 %v6823
  %v7087 = vunpack.c.h.b16 %v6823
  %v7088 = vunpack.c.l.b16 %v6824
  %v7089 = vunpack.c.h.b16 %v6824
  %v7090 = vunpack.c.l.b16 %v6825
  %v7091 = vunpack.c.h.b16 %v6825
  %v7092 = vunpack.c.l.b16 %v6826
  %v7093 = vunpack.c.h.b16 %v6826
  %v7094 = vunpack.c.l.b16 %v6827
  %v7095 = vunpack.c.h.b16 %v6827
  %v7096 = vunpack.c.l.b16 %v6828
  %v7097 = vunpack.c.h.b16 %v6828
  %v7098 = vunpack.c.l.b16 %v6829
  %v7099 = vunpack.c.h.b16 %v6829
  %v7100 = vunpack.c.l.b16 %v6830
  %v7101 = vunpack.c.h.b16 %v6830
  %v7102 = vunpack.c.l.b16 %v6831
  %v7103 = vunpack.c.h.b16 %v6831
  %v7104 = vunpack.c.l.b16 %v6832
  %v7105 = vunpack.c.h.b16 %v6832
  %v7106 = vunpack.c.l.b16 %v6833
  %v7107 = vunpack.c.h.b16 %v6833
  %v7108 = vunpack.c.l.b16 %v6834
  %v7109 = vunpack.c.h.b16 %v6834
  %v7110 = vunpack.c.l.b16 %v6835
  %v7111 = vunpack.c.h.b16 %v6835
  %v7112 = vunpack.c.l.b16 %v6836
  %v7113 = vunpack.c.h.b16 %v6836
  %v7114 = vunpack.c.l.b16 %v6837
  %v7115 = vunpack.c.h.b16 %v6837
  %v7116 = vunpack.c.l.b16 %v6838
  %v7117 = vunpack.c.h.b16 %v6838
  %v7118 = vunpack.c.l.b16 %v6839
  %v7119 = vunpack.c.h.b16 %v6839
  %v7120 = vunpack.c.l.b16 %v6840
  %v7121 = vunpack.c.h.b16 %v6840
  %v7122 = vunpack.c.l.b16 %v6841
  %v7123 = vunpack.c.h.b16 %v6841
  %v7124 = vunpack.c.l.b16 %v6842
  %v7125 = vunpack.c.h.b16 %v6842
  %v7126 = vunpack.c.l.b16 %v6843
  %v7127 = vunpack.c.h.b16 %v6843
  %v7128 = vunpack.c.l.b16 %v6844
  %v7129 = vunpack.c.h.b16 %v6844
  %v7130 = vunpack.c.l.b16 %v6845
  %v7131 = vunpack.c.h.b16 %v6845
  %v7132 = vunpack.c.l.b16 %v6846
  %v7133 = vunpack.c.h.b16 %v6846
  %v7134 = vunpack.c.l.b16 %v6847
  %v7135 = vunpack.c.h.b16 %v6847
  %v7136 = vunpack.c.l.b16 %v6848
  %v7137 = vunpack.c.h.b16 %v6848
  %v7138 = vunpack.c.l.b16 %v6849
  %v7139 = vunpack.c.h.b16 %v6849
  %v7140 = vunpack.c.l.b16 %v6850
  %v7141 = vunpack.c.h.b16 %v6850
  %v7142 = vunpack.c.l.b16 %v6851
  %v7143 = vunpack.c.h.b16 %v6851
  %v7144 = vunpack.c.l.b16 %v6852
  %v7145 = vunpack.c.h.b16 %v6852
  %v7146 = vunpack.c.l.b16 %v6853
  %v7147 = vunpack.c.h.b16 %v6853
  %v7148 = vunpack.c.l.b16 %v6854
  %v7149 = vunpack.c.h.b16 %v6854
  %v7150 = vunpack.c.l.b16 %v6855
  %v7151 = vunpack.c.h.b16 %v6855
  %v7152 = vunpack.c.l.b16 %v6856
  %v7153 = vunpack.c.h.b16 %v6856
  %v7154 = vunpack.c.l.b16 %v6857
  %v7155 = vunpack.c.h.b16 %v6857
  %v7156 = vunpack.c.l.b16 %v6858
  %v7157 = vunpack.c.h.b16 %v6858
  %v7158 = vunpack.c.l.b16 %v6859
  %v7159 = vunpack.c.h.b16 %v6859
  %v7160 = vunpack.c.l.b16 %v6860
  %v7161 = vunpack.c.h.b16 %v6860
  %v7162 = vunpack.c.l.b16 %v6861
  %v7163 = vunpack.c.h.b16 %v6861
  %v7164 = vunpack.c.l.b16 %v6862
  %v7165 = vunpack.c.h.b16 %v6862
  %v7166 = vunpack.c.l.b16 %v6863
  %v7167 = vunpack.c.h.b16 %v6863
  %v7168 = vunpack.c.l.b16 %v6864
  %v7169 = vunpack.c.h.b16 %v6864
  %v7170 = vunpack.c.l.b16 %v6865
  %v7171 = vunpack.c.h.b16 %v6865
  %v7172 = vunpack.c.l.b16 %v6866
  %v7173 = vunpack.c.h.b16 %v6866
  %v7174 = vunpack.c.l.b16 %v6867
  %v7175 = vunpack.c.h.b16 %v6867
  %v7176 = vunpack.c.l.b16 %v6868
  %v7177 = vunpack.c.h.b16 %v6868
  %v7178 = vunpack.c.l.b16 %v6869
  %v7179 = vunpack.c.h.b16 %v6869
  %v7180 = vunpack.c.l.b16 %v6870
  %v7181 = vunpack.c.h.b16 %v6870
  %v7182 = vunpack.c.l.b16 %v6871
  %v7183 = vunpack.c.h.b16 %v6871
  %v7184 = vunpack.c.l.b16 %v6872
  %v7185 = vunpack.c.h.b16 %v6872
  %v7186 = vunpack.c.l.b16 %v6873
  %v7187 = vunpack.c.h.b16 %v6873
  %v7188 = vunpack.c.l.b16 %v6874
  %v7189 = vunpack.c.h.b16 %v6874
  %v7190 = vunpack.c.l.b16 %v6875
  %v7191 = vunpack.c.h.b16 %v6875
  %v7192 = vunpack.c.l.b16 %v6876
  %v7193 = vunpack.c.h.b16 %v6876
  %v7194 = vunpack.c.l.b16 %v6877
  %v7195 = vunpack.c.h.b16 %v6877
  %v7196 = vunpack.c.l.b16 %v6878
  %v7197 = vunpack.c.h.b16 %v6878
  %v7198 = vunpack.c.l.b16 %v6879
  %v7199 = vunpack.c.h.b16 %v6879
  %v7200 = vunpack.c.l.b16 %v6880
  %v7201 = vunpack.c.h.b16 %v6880
  %v7202 = vunpack.c.l.b16 %v6881
  %v7203 = vunpack.c.h.b16 %v6881
  %v7204 = vunpack.c.l.b16 %v6882
  %v7205 = vunpack.c.h.b16 %v6882
  %v7206 = vunpack.c.l.b16 %v6883
  %v7207 = vunpack.c.h.b16 %v6883
  %v7208 = vunpack.c.l.b16 %v6884
  %v7209 = vunpack.c.h.b16 %v6884
  %v7210 = vunpack.c.l.b16 %v6885
  %v7211 = vunpack.c.h.b16 %v6885
  %v7212 = vunpack.c.l.b16 %v6886
  %v7213 = vunpack.c.h.b16 %v6886
  %v7214 = vunpack.c.l.b16 %v6887
  %v7215 = vunpack.c.h.b16 %v6887
  %v7216 = vunpack.c.l.b16 %v6888
  %v7217 = vunpack.c.h.b16 %v6888
  %v7218 = vunpack.c.l.b16 %v6889
  %v7219 = vunpack.c.h.b16 %v6889
  %v7220 = vunpack.c.l.b16 %v6890
  %v7221 = vunpack.c.h.b16 %v6890
  %v7222 = vunpack.c.l.b16 %v6891
  %v7223 = vunpack.c.h.b16 %v6891
  %v7224 = vunpack.c.l.b16 %v6892
  %v7225 = vunpack.c.h.b16 %v6892
  %v7226 = vunpack.c.l.b16 %v6893
  %v7227 = vunpack.c.h.b16 %v6893
  %v7228 = vunpack.c.l.b16 %v6894
  %v7229 = vunpack.c.h.b16 %v6894
  %v7230 = vunpack.c.l.b16 %v6895
  %v7231 = vunpack.c.h.b16 %v6895
  %v7232 = vunpack.c.l.b16 %v6896
  %v7233 = vunpack.c.h.b16 %v6896
  %v7234 = vunpack.c.l.b16 %v6897
  %v7235 = vunpack.c.h.b16 %v6897
  %v7236 = vunpack.c.l.b16 %v6898
  %v7237 = vunpack.c.h.b16 %v6898
  %v7238 = vunpack.c.l.b16 %v6899
  %v7239 = vunpack.c.h.b16 %v6899
  %v7240 = vunpack.c.l.b16 %v6900
  %v7241 = vunpack.c.h.b16 %v6900
  %v7242 = vunpack.c.l.b16 %v6901
  %v7243 = vunpack.c.h.b16 %v6901
  %v7244 = vunpack.c.l.b16 %v6902
  %v7245 = vunpack.c.h.b16 %v6902
  %v7246 = vunpack.c.l.b16 %v6903
  %v7247 = vunpack.c.h.b16 %v6903
  %v7248 = vunpack.c.l.b16 %v6904
  %v7249 = vunpack.c.h.b16 %v6904
  %v7250 = vunpack.c.l.b16 %v6905
  %v7251 = vunpack.c.h.b16 %v6905
  %v7252 = vunpack.c.l.b16 %v6906
  %v7253 = vunpack.c.h.b16 %v6906
  %v7254 = vunpack.c.l.b16 %v6907
  %v7255 = vunpack.c.h.b16 %v6907
  %v7256 = vunpack.c.l.b16 %v6908
  %v7257 = vunpack.c.h.b16 %v6908
  %v7258 = vunpack.c.l.b16 %v6909
  %v7259 = vunpack.c.h.b16 %v6909
  %v7260 = vunpack.c.l.b16 %v6910
  %v7261 = vunpack.c.h.b16 %v6910
  %v7262 = vunpack.c.l.b16 %v6911
  %v7263 = vunpack.c.h.b16 %v6911
  %v7264 = vunpack.c.l.b16 %v6912
  %v7265 = vunpack.c.h.b16 %v6912
  %v7266 = vunpack.c.l.b16 %v6913
  %v7267 = vunpack.c.h.b16 %v6913
  %v7268 = vunpack.c.l.b16 %v6914
  %v7269 = vunpack.c.h.b16 %v6914
  %v7270 = vunpack.c.l.b16 %v6915
  %v7271 = vunpack.c.h.b16 %v6915
  %v7272 = vunpack.c.l.b16 %v6916
  %v7273 = vunpack.c.h.b16 %v6916
  %v7274 = vunpack.c.l.b16 %v6917
  %v7275 = vunpack.c.h.b16 %v6917
  %v7276 = vunpack.c.l.b16 %v6918
  %v7277 = vunpack.c.h.b16 %v6918
  %v7278 = vunpack.c.l.b16 %v6919
  %v7279 = vunpack.c.h.b16 %v6919
  %v7280 = vunpack.c.l.b16 %v6920
  %v7281 = vunpack.c.h.b16 %v6920
  %v7282 = vunpack.c.l.b16 %v6921
  %v7283 = vunpack.c.h.b16 %v6921
  %v7284 = vunpack.c.l.b16 %v6922
  %v7285 = vunpack.c.h.b16 %v6922
  %v7286 = vunpack.c.l.b16 %v6923
  %v7287 = vunpack.c.h.b16 %v6923
  %v7288 = vunpack.c.l.b16 %v6924
  %v7289 = vunpack.c.h.b16 %v6924
  %v7290 = vunpack.c.l.b16 %v6925
  %v7291 = vunpack.c.h.b16 %v6925
  %v7292 = vunpack.c.l.b16 %v6926
  %v7293 = vunpack.c.h.b16 %v6926
  %v7294 = vunpack.c.l.b16 %v6927
  %v7295 = vunpack.c.h.b16 %v6927
  %v7296 = vunpack.c.l.b16 %v6928
  %v7297 = vunpack.c.h.b16 %v6928
  %v7298 = vunpack.c.l.b16 %v6929
  %v7299 = vunpack.c.h.b16 %v6929
  %v7300 = vunpack.c.l.b16 %v6930
  %v7301 = vunpack.c.h.b16 %v6930
  %v7302 = vunpack.c.l.b16 %v6931
  %v7303 = vunpack.c.h.b16 %v6931
  %v7304 = vunpack.c.l.b16 %v6932
  %v7305 = vunpack.c.h.b16 %v6932
  %v7306 = vunpack.c.l.b16 %v6933
  %v7307 = vunpack.c.h.b16 %v6933
  %v7308 = vunpack.c.l.b16 %v6934
  %v7309 = vunpack.c.h.b16 %v6934
  %v7310 = vunpack.c.l.b16 %v6935
  %v7311 = vunpack.c.h.b16 %v6935
  %v7312 = vunpack.c.l.b16 %v6936
  %v7313 = vunpack.c.h.b16 %v6936
  %v7314 = vunpack.c.l.b16 %v6937
  %v7315 = vunpack.c.h.b16 %v6937
  %v7316 = vunpack.c.l.b16 %v6938
  %v7317 = vunpack.c.h.b16 %v6938
  %v7318 = vunpack.c.l.b16 %v6939
  %v7319 = vunpack.c.h.b16 %v6939
  %v7320 = vunpack.c.l.b16 %v6940
  %v7321 = vunpack.c.h.b16 %v6940
  %v7322 = vunpack.c.l.b16 %v6941
  %v7323 = vunpack.c.h.b16 %v6941
  %v7324 = vunpack.c.l.b16 %v6942
  %v7325 = vunpack.c.h.b16 %v6942
  %v7326 = vunpack.c.l.b16 %v6943
  %v7327 = vunpack.c.h.b16 %v6943
  %v7328 = vpack.c.b16 %v7076, %v7072
  %v7329 = vpack.c.b16 %v7077, %v7073
  %v7330 = vpack.c.b16 %v7078, %v7074
  %v7331 = vpack.c.b16 %v7079, %v7075
  %v7332 = vpack.c.b16 %v7084, %v7080
  %v7333 = vpack.c.b16 %v7085, %v7081
  %v7334 = vpack.c.b16 %v7086, %v7082
  %v7335 = vpack.c.b16 %v7087, %v7083
  %v7336 = vpack.c.b16 %v7092, %v7088
  %v7337 = vpack.c.b16 %v7093, %v7089
  %v7338 = vpack.c.b16 %v7094, %v7090
  %v7339 = vpack.c.b16 %v7095, %v7091
  %v7340 = vpack.c.b16 %v7100, %v7096
  %v7341 = vpack.c.b16 %v7101, %v7097
  %v7342 = vpack.c.b16 %v7102, %v7098
  %v7343 = vpack.c.b16 %v7103, %v7099
  %v7344 = vpack.c.b16 %v7108, %v7104
  %v7345 = vpack.c.b16 %v7109, %v7105
  %v7346 = vpack.c.b16 %v7110, %v7106
  %v7347 = vpack.c.b16 %v7111, %v7107
  %v7348 = vpack.c.b16 %v7116, %v7112
  %v7349 = vpack.c.b16 %v7117, %v7113
  %v7350 = vpack.c.b16 %v7118, %v7114
  %v7351 = vpack.c.b16 %v7119, %v7115
  %v7352 = vpack.c.b16 %v7124, %v7120
  %v7353 = vpack.c.b16 %v7125, %v7121
  %v7354 = vpack.c.b16 %v7126, %v7122
  %v7355 = vpack.c.b16 %v7127, %v7123
  %v7356 = vpack.c.b16 %v7132, %v7128
  %v7357 = vpack.c.b16 %v7133, %v7129
  %v7358 = vpack.c.b16 %v7134, %v7130
  %v7359 = vpack.c.b16 %v7135, %v7131
  %v7360 = vpack.c.b16 %v7140, %v7136
  %v7361 = vpack.c.b16 %v7141, %v7137
  %v7362 = vpack.c.b16 %v7142, %v7138
  %v7363 = vpack.c.b16 %v7143, %v7139
  %v7364 = vpack.c.b16 %v7148, %v7144
  %v7365 = vpack.c.b16 %v7149, %v7145
  %v7366 = vpack.c.b16 %v7150, %v7146
  %v7367 = vpack.c.b16 %v7151, %v7147
  %v7368 = vpack.c.b16 %v7156, %v7152
  %v7369 = vpack.c.b16 %v7157, %v7153
  %v7370 = vpack.c.b16 %v7158, %v7154
  %v7371 = vpack.c.b16 %v7159, %v7155
  %v7372 = vpack.c.b16 %v7164, %v7160
  %v7373 = vpack.c.b16 %v7165, %v7161
  %v7374 = vpack.c.b16 %v7166, %v7162
  %v7375 = vpack.c.b16 %v7167, %v7163
  %v7376 = vpack.c.b16 %v7172, %v7168
  %v7377 = vpack.c.b16 %v7173, %v7169
  %v7378 = vpack.c.b16 %v7174, %v7170
  %v7379 = vpack.c.b16 %v7175, %v7171
  %v7380 = vpack.c.b16 %v7180, %v7176
  %v7381 = vpack.c.b16 %v7181, %v7177
  %v7382 = vpack.c.b16 %v7182, %v7178
  %v7383 = vpack.c.b16 %v7183, %v7179
  %v7384 = vpack.c.b16 %v7188, %v7184
  %v7385 = vpack.c.b16 %v7189, %v7185
  %v7386 = vpack.c.b16 %v7190, %v7186
  %v7387 = vpack.c.b16 %v7191, %v7187
  %v7388 = vpack.c.b16 %v7196, %v7192
  %v7389 = vpack.c.b16 %v7197, %v7193
  %v7390 = vpack.c.b16 %v7198, %v7194
  %v7391 = vpack.c.b16 %v7199, %v7195
  %v7392 = vpack.c.b16 %v7204, %v7200
  %v7393 = vpack.c.b16 %v7205, %v7201
  %v7394 = vpack.c.b16 %v7206, %v7202
  %v7395 = vpack.c.b16 %v7207, %v7203
  %v7396 = vpack.c.b16 %v7212, %v7208
  %v7397 = vpack.c.b16 %v7213, %v7209
  %v7398 = vpack.c.b16 %v7214, %v7210
  %v7399 = vpack.c.b16 %v7215, %v7211
  %v7400 = vpack.c.b16 %v7220, %v7216
  %v7401 = vpack.c.b16 %v7221, %v7217
  %v7402 = vpack.c.b16 %v7222, %v7218
  %v7403 = vpack.c.b16 %v7223, %v7219
  %v7404 = vpack.c.b16 %v7228, %v7224
  %v7405 = vpack.c.b16 %v7229, %v7225
  %v7406 = vpack.c.b16 %v7230, %v7226
  %v7407 = vpack.c.b16 %v7231, %v7227
  %v7408 = vpack.c.b16 %v7236, %v7232
  %v7409 = vpack.c.b16 %v7237, %v7233
  %v7410 = vpack.c.b16 %v7238, %v7234
  %v7411 = vpack.c.b16 %v7239, %v7235
  %v7412 = vpack.c.b16 %v7244, %v7240
  %v7413 = vpack.c.b16 %v7245, %v7241
  %v7414 = vpack.c.b16 %v7246, %v7242
  %v7415 = vpack.c.b16 %v7247, %v7243
  %v7416 = vpack.c.b16 %v7252, %v7248
  %v7417 = vpack.c.b16 %v7253, %v7249
  %v7418 = vpack.c.b16 %v7254, %v7250
  %v7419 = vpack.c.b16 %v7255, %v7251
  %v7420 = vpack.c.b16 %v7260, %v7256
  %v7421 = vpack.c.b16 %v7261, %v7257
  %v7422 = vpack.c.b16 %v7262, %v7258
  %v7423 = vpack.c.b16 %v7263, %v7259
  %v7424 = vpack.c.b16 %v7268, %v7264
  %v7425 = vpack.c.b16 %v7269, %v7265
  %v7426 = vpack.c.b16 %v7270, %v7266
  %v7427 = vpack.c.b16 %v7271, %v7267
  %v7428 = vpack.c.b16 %v7276, %v7272
  %v7429 = vpack.c.b16 %v7277, %v7273
  %v7430 = vpack.c.b16 %v7278, %v7274
  %v7431 = vpack.c.b16 %v7279, %v7275
  %v7432 = vpack.c.b16 %v7284, %v7280
  %v7433 = vpack.c.b16 %v7285, %v7281
  %v7434 = vpack.c.b16 %v7286, %v7282
  %v7435 = vpack.c.b16 %v7287, %v7283
  %v7436 = vpack.c.b16 %v7292, %v7288
  %v7437 = vpack.c.b16 %v7293, %v7289
  %v7438 = vpack.c.b16 %v7294, %v7290
  %v7439 = vpack.c.b16 %v7295, %v7291
  %v7440 = vpack.c.b16 %v7300, %v7296
  %v7441 = vpack.c.b16 %v7301, %v7297
  %v7442 = vpack.c.b16 %v7302, %v7298
  %v7443 = vpack.c.b16 %v7303, %v7299
  %v7444 = vpack.c.b16 %v7308, %v7304
  %v7445 = vpack.c.b16 %v7309, %v7305
  %v7446 = vpack.c.b16 %v7310, %v7306
  %v7447 = vpack.c.b16 %v7311, %v7307
  %v7448 = vpack.c.b16 %v7316, %v7312
  %v7449 = vpack.c.b16 %v7317, %v7313
  %v7450 = vpack.c.b16 %v7318, %v7314
  %v7451 = vpack.c.b16 %v7319, %v7315
  %v7452 = vpack.c.b16 %v7324, %v7320
  %v7453 = vpack.c.b16 %v7325, %v7321
  %v7454 = vpack.c.b16 %v7326, %v7322
  %v7455 = vpack.c.b16 %v7327, %v7323
  %7584 = vmatprep.subr.bf16.mxu0 %v7329
  %7585 = vmatpush1.bf16.msra.mxu0 %v7328
  %7586 = vmatprep.subr.bf16.mxu0 %v7333
  %7587 = vmatpush1.bf16.msra.mxu0 %v7332
  %7588 = vmatprep.subr.bf16.mxu0 %v7337
  %7589 = vmatpush1.bf16.msra.mxu0 %v7336
  %7590 = vmatprep.subr.bf16.mxu0 %v7341
  %7591 = vmatpush1.bf16.msra.mxu0 %v7340
  %7592 = vmatprep.subr.bf16.mxu0 %v7345
  %7593 = vmatpush1.bf16.msra.mxu0 %v7344
  %7594 = vmatprep.subr.bf16.mxu0 %v7349
  %7595 = vmatpush1.bf16.msra.mxu0 %v7348
  %7596 = vmatprep.subr.bf16.mxu0 %v7353
  %7597 = vmatpush1.bf16.msra.mxu0 %v7352
  %7598 = vmatprep.subr.bf16.mxu0 %v7357
  %7599 = vmatpush1.bf16.msra.mxu0 %v7356
  %7600 = vmatprep.subr.bf16.mxu0 %v7361
  %7601 = vmatpush1.bf16.msra.mxu0 %v7360
  %7602 = vmatprep.subr.bf16.mxu0 %v7365
  %7603 = vmatpush1.bf16.msra.mxu0 %v7364
  %7604 = vmatprep.subr.bf16.mxu0 %v7369
  %7605 = vmatpush1.bf16.msra.mxu0 %v7368
  %7606 = vmatprep.subr.bf16.mxu0 %v7373
  %7607 = vmatpush1.bf16.msra.mxu0 %v7372
  %7608 = vmatprep.subr.bf16.mxu0 %v7377
  %7609 = vmatpush1.bf16.msra.mxu0 %v7376
  %7610 = vmatprep.subr.bf16.mxu0 %v7381
  %7611 = vmatpush1.bf16.msra.mxu0 %v7380
  %7612 = vmatprep.subr.bf16.mxu0 %v7385
  %7613 = vmatpush1.bf16.msra.mxu0 %v7384
  %7614 = vmatprep.subr.bf16.mxu0 %v7389
  %7615 = vmatpush1.bf16.msra.mxu0 %v7388
  %7616 = vmatprep.mubr.bf16.mxu0 %v3050
  %7617 = vmatmul.mubr.bf16.gmra.mrb[0].mxu0 %v3049
  %v7618 = vpop.f32.mrb[0].mxu0
  %v7619 = vadd.f32 0.0, %v7618
  %v7620 = vpop.f32.mrb[0].mxu0
  %v7621 = vadd.f32 0.0, %v7620
  %v7622 = vpop.f32.mrb[0].mxu0
  %v7623 = vadd.f32 0.0, %v7622
  %v7624 = vpop.f32.mrb[0].mxu0
  %v7625 = vadd.f32 0.0, %v7624
  %7626 = vmatprep.mubr.bf16.mxu0 %v3054
  %7627 = vmatmul.mubr.bf16.gmra.mrb[0].mxu0 %v3053
  %v7628 = vpop.f32.mrb[0].mxu0
  %v7629 = vadd.f32 0.0, %v7628
  %v7630 = vpop.f32.mrb[0].mxu0
  %v7631 = vadd.f32 0.0, %v7630
  %v7632 = vpop.f32.mrb[0].mxu0
  %v7633 = vadd.f32 0.0, %v7632
  %v7634 = vpop.f32.mrb[0].mxu0
  %v7635 = vadd.f32 0.0, %v7634
  %7636 = vmatprep.mubr.bf16.mxu0 %v3058
  %7637 = vmatmul.mubr.bf16.gmra.mrb[0].mxu0 %v3057
  %v7638 = vpop.f32.mrb[0].mxu0
  %v7639 = vadd.f32 0.0, %v7638
  %v7640 = vpop.f32.mrb[0].mxu0
  %v7641 = vadd.f32 0.0, %v7640
  %v7642 = vpop.f32.mrb[0].mxu0
  %v7643 = vadd.f32 0.0, %v7642
  %v7644 = vpop.f32.mrb[0].mxu0
  %v7645 = vadd.f32 0.0, %v7644
  %7646 = vmatprep.mubr.bf16.mxu0 %v3062
  %7647 = vmatmul.mubr.bf16.gmra.mrb[0].mxu0 %v3061
  %v7648 = vpop.f32.mrb[0].mxu0
  %v7649 = vadd.f32 0.0, %v7648
  %v7650 = vpop.f32.mrb[0].mxu0
  %v7651 = vadd.f32 0.0, %v7650
  %v7652 = vpop.f32.mrb[0].mxu0
  %v7653 = vadd.f32 0.0, %v7652
  %v7654 = vpop.f32.mrb[0].mxu0
  %v7655 = vadd.f32 0.0, %v7654
  %7656 = vmatprep.mubr.bf16.mxu0 %v3066
  %7657 = vmatmul.mubr.bf16.gmra.mrb[0].mxu0 %v3065
  %v7658 = vpop.f32.mrb[0].mxu0
  %v7659 = vadd.f32 0.0, %v7658
  %v7660 = vpop.f32.mrb[0].mxu0
  %v7661 = vadd.f32 0.0, %v7660
  %v7662 = vpop.f32.mrb[0].mxu0
  %v7663 = vadd.f32 0.0, %v7662
  %v7664 = vpop.f32.mrb[0].mxu0
  %v7665 = vadd.f32 0.0, %v7664
  %7666 = vmatprep.mubr.bf16.mxu0 %v3070
  %7667 = vmatmul.mubr.bf16.gmra.mrb[0].mxu0 %v3069
  %v7668 = vpop.f32.mrb[0].mxu0
  %v7669 = vadd.f32 0.0, %v7668
  %v7670 = vpop.f32.mrb[0].mxu0
  %v7671 = vadd.f32 0.0, %v7670
  %v7672 = vpop.f32.mrb[0].mxu0
  %v7673 = vadd.f32 0.0, %v7672
  %v7674 = vpop.f32.mrb[0].mxu0
  %v7675 = vadd.f32 0.0, %v7674
  %7676 = vmatprep.mubr.bf16.mxu0 %v3074
  %7677 = vmatmul.mubr.bf16.gmra.mrb[0].mxu0 %v3073
  %v7678 = vpop.f32.mrb[0].mxu0
  %v7679 = vadd.f32 0.0, %v7678
  %v7680 = vpop.f32.mrb[0].mxu0
  %v7681 = vadd.f32 0.0, %v7680
  %v7682 = vpop.f32.mrb[0].mxu0
  %v7683 = vadd.f32 0.0, %v7682
  %v7684 = vpop.f32.mrb[0].mxu0
  %v7685 = vadd.f32 0.0, %v7684
  %7686 = vmatprep.mubr.bf16.mxu0 %v3078
  %7687 = vmatmul.mubr.bf16.gmra.mrb[0].mxu0 %v3077
  %v7688 = vpop.f32.mrb[0].mxu0
  %v7689 = vadd.f32 0.0, %v7688
  %v7690 = vpop.f32.mrb[0].mxu0
  %v7691 = vadd.f32 0.0, %v7690
  %v7692 = vpop.f32.mrb[0].mxu0
  %v7693 = vadd.f32 0.0, %v7692
  %v7694 = vpop.f32.mrb[0].mxu0
  %v7695 = vadd.f32 0.0, %v7694
  %7696 = vdwg.mxu0
  %7697 = vmatprep.subr.bf16.mxu0 %v7393
  %7698 = vmatpush1.bf16.msra.mxu0 %v7392
  %7699 = vmatprep.subr.bf16.mxu0 %v7397
  %7700 = vmatpush1.bf16.msra.mxu0 %v7396
  %7701 = vmatprep.subr.bf16.mxu0 %v7401
  %7702 = vmatpush1.bf16.msra.mxu0 %v7400
  %7703 = vmatprep.subr.bf16.mxu0 %v7405
  %7704 = vmatpush1.bf16.msra.mxu0 %v7404
  %7705 = vmatprep.subr.bf16.mxu0 %v7409
  %7706 = vmatpush1.bf16.msra.mxu0 %v7408
  %7707 = vmatprep.subr.bf16.mxu0 %v7413
  %7708 = vmatpush1.bf16.msra.mxu0 %v7412
  %7709 = vmatprep.subr.bf16.mxu0 %v7417
  %7710 = vmatpush1.bf16.msra.mxu0 %v7416
  %7711 = vmatprep.subr.bf16.mxu0 %v7421
  %7712 = vmatpush1.bf16.msra.mxu0 %v7420
  %7713 = vmatprep.subr.bf16.mxu0 %v7425
  %7714 = vmatpush1.bf16.msra.mxu0 %v7424
  %7715 = vmatprep.subr.bf16.mxu0 %v7429
  %7716 = vmatpush1.bf16.msra.mxu0 %v7428
  %7717 = vmatprep.subr.bf16.mxu0 %v7433
  %7718 = vmatpush1.bf16.msra.mxu0 %v7432
  %7719 = vmatprep.subr.bf16.mxu0 %v7437
  %7720 = vmatpush1.bf16.msra.mxu0 %v7436
  %7721 = vmatprep.subr.bf16.mxu0 %v7441
  %7722 = vmatpush1.bf16.msra.mxu0 %v7440
  %7723 = vmatprep.subr.bf16.mxu0 %v7445
  %7724 = vmatpush1.bf16.msra.mxu0 %v7444
  %7725 = vmatprep.subr.bf16.mxu0 %v7449
  %7726 = vmatpush1.bf16.msra.mxu0 %v7448
  %7727 = vmatprep.subr.bf16.mxu0 %v7453
  %7728 = vmatpush1.bf16.msra.mxu0 %v7452
  %7729 = vmatprep.mubr.bf16.mxu0 %v3052
  %7730 = vmatmul.mubr.bf16.gmra.mrb[0].mxu0 %v3051
  %v7731 = vpop.f32.mrb[0].mxu0
  %v7732 = vadd.f32 %v7619, %v7731
  %v7733 = vpop.f32.mrb[0].mxu0
  %v7734 = vadd.f32 %v7621, %v7733
  %v7735 = vpop.f32.mrb[0].mxu0
  %v7736 = vadd.f32 %v7623, %v7735
  %v7737 = vpop.f32.mrb[0].mxu0
  %v7738 = vadd.f32 %v7625, %v7737
  %7739 = vmatprep.mubr.bf16.mxu0 %v3056
  %7740 = vmatmul.mubr.bf16.gmra.mrb[0].mxu0 %v3055
  %v7741 = vpop.f32.mrb[0].mxu0
  %v7742 = vadd.f32 %v7629, %v7741
  %v7743 = vpop.f32.mrb[0].mxu0
  %v7744 = vadd.f32 %v7631, %v7743
  %v7745 = vpop.f32.mrb[0].mxu0
  %v7746 = vadd.f32 %v7633, %v7745
  %v7747 = vpop.f32.mrb[0].mxu0
  %v7748 = vadd.f32 %v7635, %v7747
  %7749 = vmatprep.mubr.bf16.mxu0 %v3060
  %7750 = vmatmul.mubr.bf16.gmra.mrb[0].mxu0 %v3059
  %v7751 = vpop.f32.mrb[0].mxu0
  %v7752 = vadd.f32 %v7639, %v7751
  %v7753 = vpop.f32.mrb[0].mxu0
  %v7754 = vadd.f32 %v7641, %v7753
  %v7755 = vpop.f32.mrb[0].mxu0
  %v7756 = vadd.f32 %v7643, %v7755
  %v7757 = vpop.f32.mrb[0].mxu0
  %v7758 = vadd.f32 %v7645, %v7757
  %7759 = vmatprep.mubr.bf16.mxu0 %v3064
  %7760 = vmatmul.mubr.bf16.gmra.mrb[0].mxu0 %v3063
  %v7761 = vpop.f32.mrb[0].mxu0
  %v7762 = vadd.f32 %v7649, %v7761
  %v7763 = vpop.f32.mrb[0].mxu0
  %v7764 = vadd.f32 %v7651, %v7763
  %v7765 = vpop.f32.mrb[0].mxu0
  %v7766 = vadd.f32 %v7653, %v7765
  %v7767 = vpop.f32.mrb[0].mxu0
  %v7768 = vadd.f32 %v7655, %v7767
  %7769 = vmatprep.mubr.bf16.mxu0 %v3068
  %7770 = vmatmul.mubr.bf16.gmra.mrb[0].mxu0 %v3067
  %v7771 = vpop.f32.mrb[0].mxu0
  %v7772 = vadd.f32 %v7659, %v7771
  %v7773 = vpop.f32.mrb[0].mxu0
  %v7774 = vadd.f32 %v7661, %v7773
  %v7775 = vpop.f32.mrb[0].mxu0
  %v7776 = vadd.f32 %v7663, %v7775
  %v7777 = vpop.f32.mrb[0].mxu0
  %v7778 = vadd.f32 %v7665, %v7777
  %7779 = vmatprep.mubr.bf16.mxu0 %v3072
  %7780 = vmatmul.mubr.bf16.gmra.mrb[0].mxu0 %v3071
  %v7781 = vpop.f32.mrb[0].mxu0
  %v7782 = vadd.f32 %v7669, %v7781
  %v7783 = vpop.f32.mrb[0].mxu0
  %v7784 = vadd.f32 %v7671, %v7783
  %v7785 = vpop.f32.mrb[0].mxu0
  %v7786 = vadd.f32 %v7673, %v7785
  %v7787 = vpop.f32.mrb[0].mxu0
  %v7788 = vadd.f32 %v7675, %v7787
  %7789 = vmatprep.mubr.bf16.mxu0 %v3076
  %7790 = vmatmul.mubr.bf16.gmra.mrb[0].mxu0 %v3075
  %v7791 = vpop.f32.mrb[0].mxu0
  %v7792 = vadd.f32 %v7679, %v7791
  %v7793 = vpop.f32.mrb[0].mxu0
  %v7794 = vadd.f32 %v7681, %v7793
  %v7795 = vpop.f32.mrb[0].mxu0
  %v7796 = vadd.f32 %v7683, %v7795
  %v7797 = vpop.f32.mrb[0].mxu0
  %v7798 = vadd.f32 %v7685, %v7797
  %7799 = vmatprep.mubr.bf16.mxu0 %v3080
  %7800 = vmatmul.mubr.bf16.gmra.mrb[0].mxu0 %v3079
  %v7801 = vpop.f32.mrb[0].mxu0
  %v7802 = vadd.f32 %v7689, %v7801
  %v7803 = vpop.f32.mrb[0].mxu0
  %v7804 = vadd.f32 %v7691, %v7803
  %v7805 = vpop.f32.mrb[0].mxu0
  %v7806 = vadd.f32 %v7693, %v7805
  %v7807 = vpop.f32.mrb[0].mxu0
  %v7808 = vadd.f32 %v7695, %v7807
  %7809 = vdwg.mxu0
  %7810 = vmatprep.subr.bf16.mxu0 %v7331
  %7811 = vmatpush1.bf16.msra.mxu0 %v7330
  %7812 = vmatprep.subr.bf16.mxu0 %v7335
  %7813 = vmatpush1.bf16.msra.mxu0 %v7334
  %7814 = vmatprep.subr.bf16.mxu0 %v7339
  %7815 = vmatpush1.bf16.msra.mxu0 %v7338
  %7816 = vmatprep.subr.bf16.mxu0 %v7343
  %7817 = vmatpush1.bf16.msra.mxu0 %v7342
  %7818 = vmatprep.subr.bf16.mxu0 %v7347
  %7819 = vmatpush1.bf16.msra.mxu0 %v7346
  %7820 = vmatprep.subr.bf16.mxu0 %v7351
  %7821 = vmatpush1.bf16.msra.mxu0 %v7350
  %7822 = vmatprep.subr.bf16.mxu0 %v7355
  %7823 = vmatpush1.bf16.msra.mxu0 %v7354
  %7824 = vmatprep.subr.bf16.mxu0 %v7359
  %7825 = vmatpush1.bf16.msra.mxu0 %v7358
  %7826 = vmatprep.subr.bf16.mxu0 %v7363
  %7827 = vmatpush1.bf16.msra.mxu0 %v7362
  %7828 = vmatprep.subr.bf16.mxu0 %v7367
  %7829 = vmatpush1.bf16.msra.mxu0 %v7366
  %7830 = vmatprep.subr.bf16.mxu0 %v7371
  %7831 = vmatpush1.bf16.msra.mxu0 %v7370
  %7832 = vmatprep.subr.bf16.mxu0 %v7375
  %7833 = vmatpush1.bf16.msra.mxu0 %v7374
  %7834 = vmatprep.subr.bf16.mxu0 %v7379
  %7835 = vmatpush1.bf16.msra.mxu0 %v7378
  %7836 = vmatprep.subr.bf16.mxu0 %v7383
  %7837 = vmatpush1.bf16.msra.mxu0 %v7382
  %7838 = vmatprep.subr.bf16.mxu0 %v7387
  %7839 = vmatpush1.bf16.msra.mxu0 %v7386
  %7840 = vmatprep.subr.bf16.mxu0 %v7391
  %7841 = vmatpush1.bf16.msra.mxu0 %v7390
  %7842 = vmatprep.mubr.bf16.mxu0 %v3050
  %7843 = vmatmul.mubr.bf16.gmra.mrb[0].mxu0 %v3049
  %v7844 = vpop.f32.mrb[0].mxu0
  %v7845 = vadd.f32 0.0, %v7844
  %v7846 = vpop.f32.mrb[0].mxu0
  %v7847 = vadd.f32 0.0, %v7846
  %v7848 = vpop.f32.mrb[0].mxu0
  %v7849 = vadd.f32 0.0, %v7848
  %v7850 = vpop.f32.mrb[0].mxu0
  %v7851 = vadd.f32 0.0, %v7850
  %7852 = vmatprep.mubr.bf16.mxu0 %v3054
  %7853 = vmatmul.mubr.bf16.gmra.mrb[0].mxu0 %v3053
  %v7854 = vpop.f32.mrb[0].mxu0
  %v7855 = vadd.f32 0.0, %v7854
  %v7856 = vpop.f32.mrb[0].mxu0
  %v7857 = vadd.f32 0.0, %v7856
  %v7858 = vpop.f32.mrb[0].mxu0
  %v7859 = vadd.f32 0.0, %v7858
  %v7860 = vpop.f32.mrb[0].mxu0
  %v7861 = vadd.f32 0.0, %v7860
  %7862 = vmatprep.mubr.bf16.mxu0 %v3058
  %7863 = vmatmul.mubr.bf16.gmra.mrb[0].mxu0 %v3057
  %v7864 = vpop.f32.mrb[0].mxu0
  %v7865 = vadd.f32 0.0, %v7864
  %v7866 = vpop.f32.mrb[0].mxu0
  %v7867 = vadd.f32 0.0, %v7866
  %v7868 = vpop.f32.mrb[0].mxu0
  %v7869 = vadd.f32 0.0, %v7868
  %v7870 = vpop.f32.mrb[0].mxu0
  %v7871 = vadd.f32 0.0, %v7870
  %7872 = vmatprep.mubr.bf16.mxu0 %v3062
  %7873 = vmatmul.mubr.bf16.gmra.mrb[0].mxu0 %v3061
  %v7874 = vpop.f32.mrb[0].mxu0
  %v7875 = vadd.f32 0.0, %v7874
  %v7876 = vpop.f32.mrb[0].mxu0
  %v7877 = vadd.f32 0.0, %v7876
  %v7878 = vpop.f32.mrb[0].mxu0
  %v7879 = vadd.f32 0.0, %v7878
  %v7880 = vpop.f32.mrb[0].mxu0
  %v7881 = vadd.f32 0.0, %v7880
  %7882 = vmatprep.mubr.bf16.mxu0 %v3066
  %7883 = vmatmul.mubr.bf16.gmra.mrb[0].mxu0 %v3065
  %v7884 = vpop.f32.mrb[0].mxu0
  %v7885 = vadd.f32 0.0, %v7884
  %v7886 = vpop.f32.mrb[0].mxu0
  %v7887 = vadd.f32 0.0, %v7886
  %v7888 = vpop.f32.mrb[0].mxu0
  %v7889 = vadd.f32 0.0, %v7888
  %v7890 = vpop.f32.mrb[0].mxu0
  %v7891 = vadd.f32 0.0, %v7890
  %7892 = vmatprep.mubr.bf16.mxu0 %v3070
  %7893 = vmatmul.mubr.bf16.gmra.mrb[0].mxu0 %v3069
  %v7894 = vpop.f32.mrb[0].mxu0
  %v7895 = vadd.f32 0.0, %v7894
  %v7896 = vpop.f32.mrb[0].mxu0
  %v7897 = vadd.f32 0.0, %v7896
  %v7898 = vpop.f32.mrb[0].mxu0
  %v7899 = vadd.f32 0.0, %v7898
  %v7900 = vpop.f32.mrb[0].mxu0
  %v7901 = vadd.f32 0.0, %v7900
  %7902 = vmatprep.mubr.bf16.mxu0 %v3074
  %7903 = vmatmul.mubr.bf16.gmra.mrb[0].mxu0 %v3073
  %v7904 = vpop.f32.mrb[0].mxu0
  %v7905 = vadd.f32 0.0, %v7904
  %v7906 = vpop.f32.mrb[0].mxu0
  %v7907 = vadd.f32 0.0, %v7906
  %v7908 = vpop.f32.mrb[0].mxu0
  %v7909 = vadd.f32 0.0, %v7908
  %v7910 = vpop.f32.mrb[0].mxu0
  %v7911 = vadd.f32 0.0, %v7910
  %7912 = vmatprep.mubr.bf16.mxu0 %v3078
  %7913 = vmatmul.mubr.bf16.gmra.mrb[0].mxu0 %v3077
  %v7914 = vpop.f32.mrb[0].mxu0
  %v7915 = vadd.f32 0.0, %v7914
  %v7916 = vpop.f32.mrb[0].mxu0
  %v7917 = vadd.f32 0.0, %v7916
  %v7918 = vpop.f32.mrb[0].mxu0
  %v7919 = vadd.f32 0.0, %v7918
  %v7920 = vpop.f32.mrb[0].mxu0
  %v7921 = vadd.f32 0.0, %v7920
  %7922 = vdwg.mxu0
  %7923 = vmatprep.subr.bf16.mxu0 %v7395
  %7924 = vmatpush1.bf16.msra.mxu0 %v7394
  %7925 = vmatprep.subr.bf16.mxu0 %v7399
  %7926 = vmatpush1.bf16.msra.mxu0 %v7398
  %7927 = vmatprep.subr.bf16.mxu0 %v7403
  %7928 = vmatpush1.bf16.msra.mxu0 %v7402
  %7929 = vmatprep.subr.bf16.mxu0 %v7407
  %7930 = vmatpush1.bf16.msra.mxu0 %v7406
  %7931 = vmatprep.subr.bf16.mxu0 %v7411
  %7932 = vmatpush1.bf16.msra.mxu0 %v7410
  %7933 = vmatprep.subr.bf16.mxu0 %v7415
  %7934 = vmatpush1.bf16.msra.mxu0 %v7414
  %7935 = vmatprep.subr.bf16.mxu0 %v7419
  %7936 = vmatpush1.bf16.msra.mxu0 %v7418
  %7937 = vmatprep.subr.bf16.mxu0 %v7423
  %7938 = vmatpush1.bf16.msra.mxu0 %v7422
  %7939 = vmatprep.subr.bf16.mxu0 %v7427
  %7940 = vmatpush1.bf16.msra.mxu0 %v7426
  %7941 = vmatprep.subr.bf16.mxu0 %v7431
  %7942 = vmatpush1.bf16.msra.mxu0 %v7430
  %7943 = vmatprep.subr.bf16.mxu0 %v7435
  %7944 = vmatpush1.bf16.msra.mxu0 %v7434
  %7945 = vmatprep.subr.bf16.mxu0 %v7439
  %7946 = vmatpush1.bf16.msra.mxu0 %v7438
  %7947 = vmatprep.subr.bf16.mxu0 %v7443
  %7948 = vmatpush1.bf16.msra.mxu0 %v7442
  %7949 = vmatprep.subr.bf16.mxu0 %v7447
  %7950 = vmatpush1.bf16.msra.mxu0 %v7446
  %7951 = vmatprep.subr.bf16.mxu0 %v7451
  %7952 = vmatpush1.bf16.msra.mxu0 %v7450
  %7953 = vmatprep.subr.bf16.mxu0 %v7455
  %7954 = vmatpush1.bf16.msra.mxu0 %v7454
  %7955 = vmatprep.mubr.bf16.mxu0 %v3052
  %7956 = vmatmul.mubr.bf16.gmra.mrb[0].mxu0 %v3051
  %v7957 = vpop.f32.mrb[0].mxu0
  %v7958 = vadd.f32 %v7845, %v7957
  %v7959 = vpop.f32.mrb[0].mxu0
  %v7960 = vadd.f32 %v7847, %v7959
  %v7961 = vpop.f32.mrb[0].mxu0
  %v7962 = vadd.f32 %v7849, %v7961
  %v7963 = vpop.f32.mrb[0].mxu0
  %v7964 = vadd.f32 %v7851, %v7963
  %7965 = vmatprep.mubr.bf16.mxu0 %v3056
  %7966 = vmatmul.mubr.bf16.gmra.mrb[0].mxu0 %v3055
  %v7967 = vpop.f32.mrb[0].mxu0
  %v7968 = vadd.f32 %v7855, %v7967
  %v7969 = vpop.f32.mrb[0].mxu0
  %v7970 = vadd.f32 %v7857, %v7969
  %v7971 = vpop.f32.mrb[0].mxu0
  %v7972 = vadd.f32 %v7859, %v7971
  %v7973 = vpop.f32.mrb[0].mxu0
  %v7974 = vadd.f32 %v7861, %v7973
  %7975 = vmatprep.mubr.bf16.mxu0 %v3060
  %7976 = vmatmul.mubr.bf16.gmra.mrb[0].mxu0 %v3059
  %v7977 = vpop.f32.mrb[0].mxu0
  %v7978 = vadd.f32 %v7865, %v7977
  %v7979 = vpop.f32.mrb[0].mxu0
  %v7980 = vadd.f32 %v7867, %v7979
  %v7981 = vpop.f32.mrb[0].mxu0
  %v7982 = vadd.f32 %v7869, %v7981
  %v7983 = vpop.f32.mrb[0].mxu0
  %v7984 = vadd.f32 %v7871, %v7983
  %7985 = vmatprep.mubr.bf16.mxu0 %v3064
  %7986 = vmatmul.mubr.bf16.gmra.mrb[0].mxu0 %v3063
  %v7987 = vpop.f32.mrb[0].mxu0
  %v7988 = vadd.f32 %v7875, %v7987
  %v7989 = vpop.f32.mrb[0].mxu0
  %v7990 = vadd.f32 %v7877, %v7989
  %v7991 = vpop.f32.mrb[0].mxu0
  %v7992 = vadd.f32 %v7879, %v7991
  %v7993 = vpop.f32.mrb[0].mxu0
  %v7994 = vadd.f32 %v7881, %v7993
  %7995 = vmatprep.mubr.bf16.mxu0 %v3068
  %7996 = vmatmul.mubr.bf16.gmra.mrb[0].mxu0 %v3067
  %v7997 = vpop.f32.mrb[0].mxu0
  %v7998 = vadd.f32 %v7885, %v7997
  %v7999 = vpop.f32.mrb[0].mxu0
  %v8000 = vadd.f32 %v7887, %v7999
  %v8001 = vpop.f32.mrb[0].mxu0
  %v8002 = vadd.f32 %v7889, %v8001
  %v8003 = vpop.f32.mrb[0].mxu0
  %v8004 = vadd.f32 %v7891, %v8003
  %8005 = vmatprep.mubr.bf16.mxu0 %v3072
  %8006 = vmatmul.mubr.bf16.gmra.mrb[0].mxu0 %v3071
  %v8007 = vpop.f32.mrb[0].mxu0
  %v8008 = vadd.f32 %v7895, %v8007
  %v8009 = vpop.f32.mrb[0].mxu0
  %v8010 = vadd.f32 %v7897, %v8009
  %v8011 = vpop.f32.mrb[0].mxu0
  %v8012 = vadd.f32 %v7899, %v8011
  %v8013 = vpop.f32.mrb[0].mxu0
  %v8014 = vadd.f32 %v7901, %v8013
  %8015 = vmatprep.mubr.bf16.mxu0 %v3076
  %8016 = vmatmul.mubr.bf16.gmra.mrb[0].mxu0 %v3075
  %v8017 = vpop.f32.mrb[0].mxu0
  %v8018 = vadd.f32 %v7905, %v8017
  %v8019 = vpop.f32.mrb[0].mxu0
  %v8020 = vadd.f32 %v7907, %v8019
  %v8021 = vpop.f32.mrb[0].mxu0
  %v8022 = vadd.f32 %v7909, %v8021
  %v8023 = vpop.f32.mrb[0].mxu0
  %v8024 = vadd.f32 %v7911, %v8023
  %8025 = vmatprep.mubr.bf16.mxu0 %v3080
  %8026 = vmatmul.mubr.bf16.gmra.mrb[0].mxu0 %v3079
  %v8027 = vpop.f32.mrb[0].mxu0
  %v8028 = vadd.f32 %v7915, %v8027
  %v8029 = vpop.f32.mrb[0].mxu0
  %v8030 = vadd.f32 %v7917, %v8029
  %v8031 = vpop.f32.mrb[0].mxu0
  %v8032 = vadd.f32 %v7919, %v8031
  %v8033 = vpop.f32.mrb[0].mxu0
  %v8034 = vadd.f32 %v7921, %v8033
  %8035 = vdwg.mxu0
  %v8036 = vadd.f32 %v6751, %v7732
  %v8037 = vadd.f32 %v6752, %v7734
  %v8038 = vadd.f32 %v6753, %v7958
  %v8039 = vadd.f32 %v6754, %v7960
  %v8040 = vadd.f32 %v6755, %v7736
  %v8041 = vadd.f32 %v6756, %v7738
  %v8042 = vadd.f32 %v6757, %v7962
  %v8043 = vadd.f32 %v6758, %v7964
  %v8044 = vadd.f32 %v6759, %v7742
  %v8045 = vadd.f32 %v6760, %v7744
  %v8046 = vadd.f32 %v6761, %v7968
  %v8047 = vadd.f32 %v6762, %v7970
  %v8048 = vadd.f32 %v6763, %v7746
  %v8049 = vadd.f32 %v6764, %v7748
  %v8050 = vadd.f32 %v6765, %v7972
  %v8051 = vadd.f32 %v6766, %v7974
  %v8052 = vadd.f32 %v6767, %v7752
  %v8053 = vadd.f32 %v6768, %v7754
  %v8054 = vadd.f32 %v6769, %v7978
  %v8055 = vadd.f32 %v6770, %v7980
  %v8056 = vadd.f32 %v6771, %v7756
  %v8057 = vadd.f32 %v6772, %v7758
  %v8058 = vadd.f32 %v6773, %v7982
  %v8059 = vadd.f32 %v6774, %v7984
  %v8060 = vadd.f32 %v6775, %v7762
  %v8061 = vadd.f32 %v6776, %v7764
  %v8062 = vadd.f32 %v6777, %v7988
  %v8063 = vadd.f32 %v6778, %v7990
  %v8064 = vadd.f32 %v6779, %v7766
  %v8065 = vadd.f32 %v6780, %v7768
  %v8066 = vadd.f32 %v6781, %v7992
  %v8067 = vadd.f32 %v6782, %v7994
  %v8068 = vadd.f32 %v6783, %v7772
  %v8069 = vadd.f32 %v6784, %v7774
  %v8070 = vadd.f32 %v6785, %v7998
  %v8071 = vadd.f32 %v6786, %v8000
  %v8072 = vadd.f32 %v6787, %v7776
  %v8073 = vadd.f32 %v6788, %v7778
  %v8074 = vadd.f32 %v6789, %v8002
  %v8075 = vadd.f32 %v6790, %v8004
  %v8076 = vadd.f32 %v6791, %v7782
  %v8077 = vadd.f32 %v6792, %v7784
  %v8078 = vadd.f32 %v6793, %v8008
  %v8079 = vadd.f32 %v6794, %v8010
  %v8080 = vadd.f32 %v6795, %v7786
  %v8081 = vadd.f32 %v6796, %v7788
  %v8082 = vadd.f32 %v6797, %v8012
  %v8083 = vadd.f32 %v6798, %v8014
  %v8084 = vadd.f32 %v6799, %v7792
  %v8085 = vadd.f32 %v6800, %v7794
  %v8086 = vadd.f32 %v6801, %v8018
  %v8087 = vadd.f32 %v6802, %v8020
  %v8088 = vadd.f32 %v6803, %v7796
  %v8089 = vadd.f32 %v6804, %v7798
  %v8090 = vadd.f32 %v6805, %v8022
  %v8091 = vadd.f32 %v6806, %v8024
  %v8092 = vadd.f32 %v6807, %v7802
  %v8093 = vadd.f32 %v6808, %v7804
  %v8094 = vadd.f32 %v6809, %v8028
  %v8095 = vadd.f32 %v6810, %v8030
  %v8096 = vadd.f32 %v6811, %v7806
  %v8097 = vadd.f32 %v6812, %v7808
  %v8098 = vadd.f32 %v6813, %v8032
  %v8099 = vadd.f32 %v6814, %v8034
  %s8100 = scalar_lea.vmem %s2, 4096
  %v8101 = vld [vmem:[%s8100] sm:$0xff]
  %v8102 = vld [vmem:[%s8100 + $0x8] sm:$0xff]
  %v8103 = vld [vmem:[%s8100 + $0x10] sm:$0xff]
  %v8104 = vld [vmem:[%s8100 + $0x18] sm:$0xff]
  %v8105 = vld [vmem:[%s8100 + $0x20] sm:$0xff]
  %v8106 = vld [vmem:[%s8100 + $0x28] sm:$0xff]
  %v8107 = vld [vmem:[%s8100 + $0x30] sm:$0xff]
  %v8108 = vld [vmem:[%s8100 + $0x38] sm:$0xff]
  %v8109 = vld [vmem:[%s8100 + $0x40] sm:$0xff]
  %v8110 = vld [vmem:[%s8100 + $0x48] sm:$0xff]
  %v8111 = vld [vmem:[%s8100 + $0x50] sm:$0xff]
  %v8112 = vld [vmem:[%s8100 + $0x58] sm:$0xff]
  %v8113 = vld [vmem:[%s8100 + $0x60] sm:$0xff]
  %v8114 = vld [vmem:[%s8100 + $0x68] sm:$0xff]
  %v8115 = vld [vmem:[%s8100 + $0x70] sm:$0xff]
  %v8116 = vld [vmem:[%s8100 + $0x78] sm:$0xff]
  %v8117 = vld [vmem:[%s8100 + $0x80] sm:$0xff]
  %v8118 = vld [vmem:[%s8100 + $0x88] sm:$0xff]
  %v8119 = vld [vmem:[%s8100 + $0x90] sm:$0xff]
  %v8120 = vld [vmem:[%s8100 + $0x98] sm:$0xff]
  %v8121 = vld [vmem:[%s8100 + $0xa0] sm:$0xff]
  %v8122 = vld [vmem:[%s8100 + $0xa8] sm:$0xff]
  %v8123 = vld [vmem:[%s8100 + $0xb0] sm:$0xff]
  %v8124 = vld [vmem:[%s8100 + $0xb8] sm:$0xff]
  %v8125 = vld [vmem:[%s8100 + $0xc0] sm:$0xff]
  %v8126 = vld [vmem:[%s8100 + $0xc8] sm:$0xff]
  %v8127 = vld [vmem:[%s8100 + $0xd0] sm:$0xff]
  %v8128 = vld [vmem:[%s8100 + $0xd8] sm:$0xff]
  %v8129 = vld [vmem:[%s8100 + $0xe0] sm:$0xff]
  %v8130 = vld [vmem:[%s8100 + $0xe8] sm:$0xff]
  %v8131 = vld [vmem:[%s8100 + $0xf0] sm:$0xff]
  %v8132 = vld [vmem:[%s8100 + $0xf8] sm:$0xff]
  %v8133 = vld [vmem:[%s8100 + $0x100] sm:$0xff]
  %v8134 = vld [vmem:[%s8100 + $0x108] sm:$0xff]
  %v8135 = vld [vmem:[%s8100 + $0x110] sm:$0xff]
  %v8136 = vld [vmem:[%s8100 + $0x118] sm:$0xff]
  %v8137 = vld [vmem:[%s8100 + $0x120] sm:$0xff]
  %v8138 = vld [vmem:[%s8100 + $0x128] sm:$0xff]
  %v8139 = vld [vmem:[%s8100 + $0x130] sm:$0xff]
  %v8140 = vld [vmem:[%s8100 + $0x138] sm:$0xff]
  %v8141 = vld [vmem:[%s8100 + $0x140] sm:$0xff]
  %v8142 = vld [vmem:[%s8100 + $0x148] sm:$0xff]
  %v8143 = vld [vmem:[%s8100 + $0x150] sm:$0xff]
  %v8144 = vld [vmem:[%s8100 + $0x158] sm:$0xff]
  %v8145 = vld [vmem:[%s8100 + $0x160] sm:$0xff]
  %v8146 = vld [vmem:[%s8100 + $0x168] sm:$0xff]
  %v8147 = vld [vmem:[%s8100 + $0x170] sm:$0xff]
  %v8148 = vld [vmem:[%s8100 + $0x178] sm:$0xff]
  %v8149 = vld [vmem:[%s8100 + $0x180] sm:$0xff]
  %v8150 = vld [vmem:[%s8100 + $0x188] sm:$0xff]
  %v8151 = vld [vmem:[%s8100 + $0x190] sm:$0xff]
  %v8152 = vld [vmem:[%s8100 + $0x198] sm:$0xff]
  %v8153 = vld [vmem:[%s8100 + $0x1a0] sm:$0xff]
  %v8154 = vld [vmem:[%s8100 + $0x1a8] sm:$0xff]
  %v8155 = vld [vmem:[%s8100 + $0x1b0] sm:$0xff]
  %v8156 = vld [vmem:[%s8100 + $0x1b8] sm:$0xff]
  %v8157 = vld [vmem:[%s8100 + $0x1c0] sm:$0xff]
  %v8158 = vld [vmem:[%s8100 + $0x1c8] sm:$0xff]
  %v8159 = vld [vmem:[%s8100 + $0x1d0] sm:$0xff]
  %v8160 = vld [vmem:[%s8100 + $0x1d8] sm:$0xff]
  %v8161 = vld [vmem:[%s8100 + $0x1e0] sm:$0xff]
  %v8162 = vld [vmem:[%s8100 + $0x1e8] sm:$0xff]
  %v8163 = vld [vmem:[%s8100 + $0x1f0] sm:$0xff]
  %v8164 = vld [vmem:[%s8100 + $0x1f8] sm:$0xff]
  %v8165 = vld [vmem:[%s8100 + $0x200] sm:$0xff]
  %v8166 = vld [vmem:[%s8100 + $0x208] sm:$0xff]
  %v8167 = vld [vmem:[%s8100 + $0x210] sm:$0xff]
  %v8168 = vld [vmem:[%s8100 + $0x218] sm:$0xff]
  %v8169 = vld [vmem:[%s8100 + $0x220] sm:$0xff]
  %v8170 = vld [vmem:[%s8100 + $0x228] sm:$0xff]
  %v8171 = vld [vmem:[%s8100 + $0x230] sm:$0xff]
  %v8172 = vld [vmem:[%s8100 + $0x238] sm:$0xff]
  %v8173 = vld [vmem:[%s8100 + $0x240] sm:$0xff]
  %v8174 = vld [vmem:[%s8100 + $0x248] sm:$0xff]
  %v8175 = vld [vmem:[%s8100 + $0x250] sm:$0xff]
  %v8176 = vld [vmem:[%s8100 + $0x258] sm:$0xff]
  %v8177 = vld [vmem:[%s8100 + $0x260] sm:$0xff]
  %v8178 = vld [vmem:[%s8100 + $0x268] sm:$0xff]
  %v8179 = vld [vmem:[%s8100 + $0x270] sm:$0xff]
  %v8180 = vld [vmem:[%s8100 + $0x278] sm:$0xff]
  %v8181 = vld [vmem:[%s8100 + $0x280] sm:$0xff]
  %v8182 = vld [vmem:[%s8100 + $0x288] sm:$0xff]
  %v8183 = vld [vmem:[%s8100 + $0x290] sm:$0xff]
  %v8184 = vld [vmem:[%s8100 + $0x298] sm:$0xff]
  %v8185 = vld [vmem:[%s8100 + $0x2a0] sm:$0xff]
  %v8186 = vld [vmem:[%s8100 + $0x2a8] sm:$0xff]
  %v8187 = vld [vmem:[%s8100 + $0x2b0] sm:$0xff]
  %v8188 = vld [vmem:[%s8100 + $0x2b8] sm:$0xff]
  %v8189 = vld [vmem:[%s8100 + $0x2c0] sm:$0xff]
  %v8190 = vld [vmem:[%s8100 + $0x2c8] sm:$0xff]
  %v8191 = vld [vmem:[%s8100 + $0x2d0] sm:$0xff]
  %v8192 = vld [vmem:[%s8100 + $0x2d8] sm:$0xff]
  %v8193 = vld [vmem:[%s8100 + $0x2e0] sm:$0xff]
  %v8194 = vld [vmem:[%s8100 + $0x2e8] sm:$0xff]
  %v8195 = vld [vmem:[%s8100 + $0x2f0] sm:$0xff]
  %v8196 = vld [vmem:[%s8100 + $0x2f8] sm:$0xff]
  %v8197 = vld [vmem:[%s8100 + $0x300] sm:$0xff]
  %v8198 = vld [vmem:[%s8100 + $0x308] sm:$0xff]
  %v8199 = vld [vmem:[%s8100 + $0x310] sm:$0xff]
  %v8200 = vld [vmem:[%s8100 + $0x318] sm:$0xff]
  %v8201 = vld [vmem:[%s8100 + $0x320] sm:$0xff]
  %v8202 = vld [vmem:[%s8100 + $0x328] sm:$0xff]
  %v8203 = vld [vmem:[%s8100 + $0x330] sm:$0xff]
  %v8204 = vld [vmem:[%s8100 + $0x338] sm:$0xff]
  %v8205 = vld [vmem:[%s8100 + $0x340] sm:$0xff]
  %v8206 = vld [vmem:[%s8100 + $0x348] sm:$0xff]
  %v8207 = vld [vmem:[%s8100 + $0x350] sm:$0xff]
  %v8208 = vld [vmem:[%s8100 + $0x358] sm:$0xff]
  %v8209 = vld [vmem:[%s8100 + $0x360] sm:$0xff]
  %v8210 = vld [vmem:[%s8100 + $0x368] sm:$0xff]
  %v8211 = vld [vmem:[%s8100 + $0x370] sm:$0xff]
  %v8212 = vld [vmem:[%s8100 + $0x378] sm:$0xff]
  %v8213 = vld [vmem:[%s8100 + $0x380] sm:$0xff]
  %v8214 = vld [vmem:[%s8100 + $0x388] sm:$0xff]
  %v8215 = vld [vmem:[%s8100 + $0x390] sm:$0xff]
  %v8216 = vld [vmem:[%s8100 + $0x398] sm:$0xff]
  %v8217 = vld [vmem:[%s8100 + $0x3a0] sm:$0xff]
  %v8218 = vld [vmem:[%s8100 + $0x3a8] sm:$0xff]
  %v8219 = vld [vmem:[%s8100 + $0x3b0] sm:$0xff]
  %v8220 = vld [vmem:[%s8100 + $0x3b8] sm:$0xff]
  %v8221 = vld [vmem:[%s8100 + $0x3c0] sm:$0xff]
  %v8222 = vld [vmem:[%s8100 + $0x3c8] sm:$0xff]
  %v8223 = vld [vmem:[%s8100 + $0x3d0] sm:$0xff]
  %v8224 = vld [vmem:[%s8100 + $0x3d8] sm:$0xff]
  %v8225 = vld [vmem:[%s8100 + $0x3e0] sm:$0xff]
  %v8226 = vld [vmem:[%s8100 + $0x3e8] sm:$0xff]
  %v8227 = vld [vmem:[%s8100 + $0x3f0] sm:$0xff]
  %v8228 = vld [vmem:[%s8100 + $0x3f8] sm:$0xff]
  %v8357 = vunpack.c.l.b16 %v8101
  %v8358 = vunpack.c.h.b16 %v8101
  %v8359 = vunpack.c.l.b16 %v8102
  %v8360 = vunpack.c.h.b16 %v8102
  %v8361 = vunpack.c.l.b16 %v8103
  %v8362 = vunpack.c.h.b16 %v8103
  %v8363 = vunpack.c.l.b16 %v8104
  %v8364 = vunpack.c.h.b16 %v8104
  %v8365 = vunpack.c.l.b16 %v8105
  %v8366 = vunpack.c.h.b16 %v8105
  %v8367 = vunpack.c.l.b16 %v8106
  %v8368 = vunpack.c.h.b16 %v8106
  %v8369 = vunpack.c.l.b16 %v8107
  %v8370 = vunpack.c.h.b16 %v8107
  %v8371 = vunpack.c.l.b16 %v8108
  %v8372 = vunpack.c.h.b16 %v8108
  %v8373 = vunpack.c.l.b16 %v8109
  %v8374 = vunpack.c.h.b16 %v8109
  %v8375 = vunpack.c.l.b16 %v8110
  %v8376 = vunpack.c.h.b16 %v8110
  %v8377 = vunpack.c.l.b16 %v8111
  %v8378 = vunpack.c.h.b16 %v8111
  %v8379 = vunpack.c.l.b16 %v8112
  %v8380 = vunpack.c.h.b16 %v8112
  %v8381 = vunpack.c.l.b16 %v8113
  %v8382 = vunpack.c.h.b16 %v8113
  %v8383 = vunpack.c.l.b16 %v8114
  %v8384 = vunpack.c.h.b16 %v8114
  %v8385 = vunpack.c.l.b16 %v8115
  %v8386 = vunpack.c.h.b16 %v8115
  %v8387 = vunpack.c.l.b16 %v8116
  %v8388 = vunpack.c.h.b16 %v8116
  %v8389 = vunpack.c.l.b16 %v8117
  %v8390 = vunpack.c.h.b16 %v8117
  %v8391 = vunpack.c.l.b16 %v8118
  %v8392 = vunpack.c.h.b16 %v8118
  %v8393 = vunpack.c.l.b16 %v8119
  %v8394 = vunpack.c.h.b16 %v8119
  %v8395 = vunpack.c.l.b16 %v8120
  %v8396 = vunpack.c.h.b16 %v8120
  %v8397 = vunpack.c.l.b16 %v8121
  %v8398 = vunpack.c.h.b16 %v8121
  %v8399 = vunpack.c.l.b16 %v8122
  %v8400 = vunpack.c.h.b16 %v8122
  %v8401 = vunpack.c.l.b16 %v8123
  %v8402 = vunpack.c.h.b16 %v8123
  %v8403 = vunpack.c.l.b16 %v8124
  %v8404 = vunpack.c.h.b16 %v8124
  %v8405 = vunpack.c.l.b16 %v8125
  %v8406 = vunpack.c.h.b16 %v8125
  %v8407 = vunpack.c.l.b16 %v8126
  %v8408 = vunpack.c.h.b16 %v8126
  %v8409 = vunpack.c.l.b16 %v8127
  %v8410 = vunpack.c.h.b16 %v8127
  %v8411 = vunpack.c.l.b16 %v8128
  %v8412 = vunpack.c.h.b16 %v8128
  %v8413 = vunpack.c.l.b16 %v8129
  %v8414 = vunpack.c.h.b16 %v8129
  %v8415 = vunpack.c.l.b16 %v8130
  %v8416 = vunpack.c.h.b16 %v8130
  %v8417 = vunpack.c.l.b16 %v8131
  %v8418 = vunpack.c.h.b16 %v8131
  %v8419 = vunpack.c.l.b16 %v8132
  %v8420 = vunpack.c.h.b16 %v8132
  %v8421 = vunpack.c.l.b16 %v8133
  %v8422 = vunpack.c.h.b16 %v8133
  %v8423 = vunpack.c.l.b16 %v8134
  %v8424 = vunpack.c.h.b16 %v8134
  %v8425 = vunpack.c.l.b16 %v8135
  %v8426 = vunpack.c.h.b16 %v8135
  %v8427 = vunpack.c.l.b16 %v8136
  %v8428 = vunpack.c.h.b16 %v8136
  %v8429 = vunpack.c.l.b16 %v8137
  %v8430 = vunpack.c.h.b16 %v8137
  %v8431 = vunpack.c.l.b16 %v8138
  %v8432 = vunpack.c.h.b16 %v8138
  %v8433 = vunpack.c.l.b16 %v8139
  %v8434 = vunpack.c.h.b16 %v8139
  %v8435 = vunpack.c.l.b16 %v8140
  %v8436 = vunpack.c.h.b16 %v8140
  %v8437 = vunpack.c.l.b16 %v8141
  %v8438 = vunpack.c.h.b16 %v8141
  %v8439 = vunpack.c.l.b16 %v8142
  %v8440 = vunpack.c.h.b16 %v8142
  %v8441 = vunpack.c.l.b16 %v8143
  %v8442 = vunpack.c.h.b16 %v8143
  %v8443 = vunpack.c.l.b16 %v8144
  %v8444 = vunpack.c.h.b16 %v8144
  %v8445 = vunpack.c.l.b16 %v8145
  %v8446 = vunpack.c.h.b16 %v8145
  %v8447 = vunpack.c.l.b16 %v8146
  %v8448 = vunpack.c.h.b16 %v8146
  %v8449 = vunpack.c.l.b16 %v8147
  %v8450 = vunpack.c.h.b16 %v8147
  %v8451 = vunpack.c.l.b16 %v8148
  %v8452 = vunpack.c.h.b16 %v8148
  %v8453 = vunpack.c.l.b16 %v8149
  %v8454 = vunpack.c.h.b16 %v8149
  %v8455 = vunpack.c.l.b16 %v8150
  %v8456 = vunpack.c.h.b16 %v8150
  %v8457 = vunpack.c.l.b16 %v8151
  %v8458 = vunpack.c.h.b16 %v8151
  %v8459 = vunpack.c.l.b16 %v8152
  %v8460 = vunpack.c.h.b16 %v8152
  %v8461 = vunpack.c.l.b16 %v8153
  %v8462 = vunpack.c.h.b16 %v8153
  %v8463 = vunpack.c.l.b16 %v8154
  %v8464 = vunpack.c.h.b16 %v8154
  %v8465 = vunpack.c.l.b16 %v8155
  %v8466 = vunpack.c.h.b16 %v8155
  %v8467 = vunpack.c.l.b16 %v8156
  %v8468 = vunpack.c.h.b16 %v8156
  %v8469 = vunpack.c.l.b16 %v8157
  %v8470 = vunpack.c.h.b16 %v8157
  %v8471 = vunpack.c.l.b16 %v8158
  %v8472 = vunpack.c.h.b16 %v8158
  %v8473 = vunpack.c.l.b16 %v8159
  %v8474 = vunpack.c.h.b16 %v8159
  %v8475 = vunpack.c.l.b16 %v8160
  %v8476 = vunpack.c.h.b16 %v8160
  %v8477 = vunpack.c.l.b16 %v8161
  %v8478 = vunpack.c.h.b16 %v8161
  %v8479 = vunpack.c.l.b16 %v8162
  %v8480 = vunpack.c.h.b16 %v8162
  %v8481 = vunpack.c.l.b16 %v8163
  %v8482 = vunpack.c.h.b16 %v8163
  %v8483 = vunpack.c.l.b16 %v8164
  %v8484 = vunpack.c.h.b16 %v8164
  %v8485 = vunpack.c.l.b16 %v8165
  %v8486 = vunpack.c.h.b16 %v8165
  %v8487 = vunpack.c.l.b16 %v8166
  %v8488 = vunpack.c.h.b16 %v8166
  %v8489 = vunpack.c.l.b16 %v8167
  %v8490 = vunpack.c.h.b16 %v8167
  %v8491 = vunpack.c.l.b16 %v8168
  %v8492 = vunpack.c.h.b16 %v8168
  %v8493 = vunpack.c.l.b16 %v8169
  %v8494 = vunpack.c.h.b16 %v8169
  %v8495 = vunpack.c.l.b16 %v8170
  %v8496 = vunpack.c.h.b16 %v8170
  %v8497 = vunpack.c.l.b16 %v8171
  %v8498 = vunpack.c.h.b16 %v8171
  %v8499 = vunpack.c.l.b16 %v8172
  %v8500 = vunpack.c.h.b16 %v8172
  %v8501 = vunpack.c.l.b16 %v8173
  %v8502 = vunpack.c.h.b16 %v8173
  %v8503 = vunpack.c.l.b16 %v8174
  %v8504 = vunpack.c.h.b16 %v8174
  %v8505 = vunpack.c.l.b16 %v8175
  %v8506 = vunpack.c.h.b16 %v8175
  %v8507 = vunpack.c.l.b16 %v8176
  %v8508 = vunpack.c.h.b16 %v8176
  %v8509 = vunpack.c.l.b16 %v8177
  %v8510 = vunpack.c.h.b16 %v8177
  %v8511 = vunpack.c.l.b16 %v8178
  %v8512 = vunpack.c.h.b16 %v8178
  %v8513 = vunpack.c.l.b16 %v8179
  %v8514 = vunpack.c.h.b16 %v8179
  %v8515 = vunpack.c.l.b16 %v8180
  %v8516 = vunpack.c.h.b16 %v8180
  %v8517 = vunpack.c.l.b16 %v8181
  %v8518 = vunpack.c.h.b16 %v8181
  %v8519 = vunpack.c.l.b16 %v8182
  %v8520 = vunpack.c.h.b16 %v8182
  %v8521 = vunpack.c.l.b16 %v8183
  %v8522 = vunpack.c.h.b16 %v8183
  %v8523 = vunpack.c.l.b16 %v8184
  %v8524 = vunpack.c.h.b16 %v8184
  %v8525 = vunpack.c.l.b16 %v8185
  %v8526 = vunpack.c.h.b16 %v8185
  %v8527 = vunpack.c.l.b16 %v8186
  %v8528 = vunpack.c.h.b16 %v8186
  %v8529 = vunpack.c.l.b16 %v8187
  %v8530 = vunpack.c.h.b16 %v8187
  %v8531 = vunpack.c.l.b16 %v8188
  %v8532 = vunpack.c.h.b16 %v8188
  %v8533 = vunpack.c.l.b16 %v8189
  %v8534 = vunpack.c.h.b16 %v8189
  %v8535 = vunpack.c.l.b16 %v8190
  %v8536 = vunpack.c.h.b16 %v8190
  %v8537 = vunpack.c.l.b16 %v8191
  %v8538 = vunpack.c.h.b16 %v8191
  %v8539 = vunpack.c.l.b16 %v8192
  %v8540 = vunpack.c.h.b16 %v8192
  %v8541 = vunpack.c.l.b16 %v8193
  %v8542 = vunpack.c.h.b16 %v8193
  %v8543 = vunpack.c.l.b16 %v8194
  %v8544 = vunpack.c.h.b16 %v8194
  %v8545 = vunpack.c.l.b16 %v8195
  %v8546 = vunpack.c.h.b16 %v8195
  %v8547 = vunpack.c.l.b16 %v8196
  %v8548 = vunpack.c.h.b16 %v8196
  %v8549 = vunpack.c.l.b16 %v8197
  %v8550 = vunpack.c.h.b16 %v8197
  %v8551 = vunpack.c.l.b16 %v8198
  %v8552 = vunpack.c.h.b16 %v8198
  %v8553 = vunpack.c.l.b16 %v8199
  %v8554 = vunpack.c.h.b16 %v8199
  %v8555 = vunpack.c.l.b16 %v8200
  %v8556 = vunpack.c.h.b16 %v8200
  %v8557 = vunpack.c.l.b16 %v8201
  %v8558 = vunpack.c.h.b16 %v8201
  %v8559 = vunpack.c.l.b16 %v8202
  %v8560 = vunpack.c.h.b16 %v8202
  %v8561 = vunpack.c.l.b16 %v8203
  %v8562 = vunpack.c.h.b16 %v8203
  %v8563 = vunpack.c.l.b16 %v8204
  %v8564 = vunpack.c.h.b16 %v8204
  %v8565 = vunpack.c.l.b16 %v8205
  %v8566 = vunpack.c.h.b16 %v8205
  %v8567 = vunpack.c.l.b16 %v8206
  %v8568 = vunpack.c.h.b16 %v8206
  %v8569 = vunpack.c.l.b16 %v8207
  %v8570 = vunpack.c.h.b16 %v8207
  %v8571 = vunpack.c.l.b16 %v8208
  %v8572 = vunpack.c.h.b16 %v8208
  %v8573 = vunpack.c.l.b16 %v8209
  %v8574 = vunpack.c.h.b16 %v8209
  %v8575 = vunpack.c.l.b16 %v8210
  %v8576 = vunpack.c.h.b16 %v8210
  %v8577 = vunpack.c.l.b16 %v8211
  %v8578 = vunpack.c.h.b16 %v8211
  %v8579 = vunpack.c.l.b16 %v8212
  %v8580 = vunpack.c.h.b16 %v8212
  %v8581 = vunpack.c.l.b16 %v8213
  %v8582 = vunpack.c.h.b16 %v8213
  %v8583 = vunpack.c.l.b16 %v8214
  %v8584 = vunpack.c.h.b16 %v8214
  %v8585 = vunpack.c.l.b16 %v8215
  %v8586 = vunpack.c.h.b16 %v8215
  %v8587 = vunpack.c.l.b16 %v8216
  %v8588 = vunpack.c.h.b16 %v8216
  %v8589 = vunpack.c.l.b16 %v8217
  %v8590 = vunpack.c.h.b16 %v8217
  %v8591 = vunpack.c.l.b16 %v8218
  %v8592 = vunpack.c.h.b16 %v8218
  %v8593 = vunpack.c.l.b16 %v8219
  %v8594 = vunpack.c.h.b16 %v8219
  %v8595 = vunpack.c.l.b16 %v8220
  %v8596 = vunpack.c.h.b16 %v8220
  %v8597 = vunpack.c.l.b16 %v8221
  %v8598 = vunpack.c.h.b16 %v8221
  %v8599 = vunpack.c.l.b16 %v8222
  %v8600 = vunpack.c.h.b16 %v8222
  %v8601 = vunpack.c.l.b16 %v8223
  %v8602 = vunpack.c.h.b16 %v8223
  %v8603 = vunpack.c.l.b16 %v8224
  %v8604 = vunpack.c.h.b16 %v8224
  %v8605 = vunpack.c.l.b16 %v8225
  %v8606 = vunpack.c.h.b16 %v8225
  %v8607 = vunpack.c.l.b16 %v8226
  %v8608 = vunpack.c.h.b16 %v8226
  %v8609 = vunpack.c.l.b16 %v8227
  %v8610 = vunpack.c.h.b16 %v8227
  %v8611 = vunpack.c.l.b16 %v8228
  %v8612 = vunpack.c.h.b16 %v8228
  %v8613 = vpack.c.b16 %v8361, %v8357
  %v8614 = vpack.c.b16 %v8362, %v8358
  %v8615 = vpack.c.b16 %v8363, %v8359
  %v8616 = vpack.c.b16 %v8364, %v8360
  %v8617 = vpack.c.b16 %v8369, %v8365
  %v8618 = vpack.c.b16 %v8370, %v8366
  %v8619 = vpack.c.b16 %v8371, %v8367
  %v8620 = vpack.c.b16 %v8372, %v8368
  %v8621 = vpack.c.b16 %v8377, %v8373
  %v8622 = vpack.c.b16 %v8378, %v8374
  %v8623 = vpack.c.b16 %v8379, %v8375
  %v8624 = vpack.c.b16 %v8380, %v8376
  %v8625 = vpack.c.b16 %v8385, %v8381
  %v8626 = vpack.c.b16 %v8386, %v8382
  %v8627 = vpack.c.b16 %v8387, %v8383
  %v8628 = vpack.c.b16 %v8388, %v8384
  %v8629 = vpack.c.b16 %v8393, %v8389
  %v8630 = vpack.c.b16 %v8394, %v8390
  %v8631 = vpack.c.b16 %v8395, %v8391
  %v8632 = vpack.c.b16 %v8396, %v8392
  %v8633 = vpack.c.b16 %v8401, %v8397
  %v8634 = vpack.c.b16 %v8402, %v8398
  %v8635 = vpack.c.b16 %v8403, %v8399
  %v8636 = vpack.c.b16 %v8404, %v8400
  %v8637 = vpack.c.b16 %v8409, %v8405
  %v8638 = vpack.c.b16 %v8410, %v8406
  %v8639 = vpack.c.b16 %v8411, %v8407
  %v8640 = vpack.c.b16 %v8412, %v8408
  %v8641 = vpack.c.b16 %v8417, %v8413
  %v8642 = vpack.c.b16 %v8418, %v8414
  %v8643 = vpack.c.b16 %v8419, %v8415
  %v8644 = vpack.c.b16 %v8420, %v8416
  %v8645 = vpack.c.b16 %v8425, %v8421
  %v8646 = vpack.c.b16 %v8426, %v8422
  %v8647 = vpack.c.b16 %v8427, %v8423
  %v8648 = vpack.c.b16 %v8428, %v8424
  %v8649 = vpack.c.b16 %v8433, %v8429
  %v8650 = vpack.c.b16 %v8434, %v8430
  %v8651 = vpack.c.b16 %v8435, %v8431
  %v8652 = vpack.c.b16 %v8436, %v8432
  %v8653 = vpack.c.b16 %v8441, %v8437
  %v8654 = vpack.c.b16 %v8442, %v8438
  %v8655 = vpack.c.b16 %v8443, %v8439
  %v8656 = vpack.c.b16 %v8444, %v8440
  %v8657 = vpack.c.b16 %v8449, %v8445
  %v8658 = vpack.c.b16 %v8450, %v8446
  %v8659 = vpack.c.b16 %v8451, %v8447
  %v8660 = vpack.c.b16 %v8452, %v8448
  %v8661 = vpack.c.b16 %v8457, %v8453
  %v8662 = vpack.c.b16 %v8458, %v8454
  %v8663 = vpack.c.b16 %v8459, %v8455
  %v8664 = vpack.c.b16 %v8460, %v8456
  %v8665 = vpack.c.b16 %v8465, %v8461
  %v8666 = vpack.c.b16 %v8466, %v8462
  %v8667 = vpack.c.b16 %v8467, %v8463
  %v8668 = vpack.c.b16 %v8468, %v8464
  %v8669 = vpack.c.b16 %v8473, %v8469
  %v8670 = vpack.c.b16 %v8474, %v8470
  %v8671 = vpack.c.b16 %v8475, %v8471
  %v8672 = vpack.c.b16 %v8476, %v8472
  %v8673 = vpack.c.b16 %v8481, %v8477
  %v8674 = vpack.c.b16 %v8482, %v8478
  %v8675 = vpack.c.b16 %v8483, %v8479
  %v8676 = vpack.c.b16 %v8484, %v8480
  %v8677 = vpack.c.b16 %v8489, %v8485
  %v8678 = vpack.c.b16 %v8490, %v8486
  %v8679 = vpack.c.b16 %v8491, %v8487
  %v8680 = vpack.c.b16 %v8492, %v8488
  %v8681 = vpack.c.b16 %v8497, %v8493
  %v8682 = vpack.c.b16 %v8498, %v8494
  %v8683 = vpack.c.b16 %v8499, %v8495
  %v8684 = vpack.c.b16 %v8500, %v8496
  %v8685 = vpack.c.b16 %v8505, %v8501
  %v8686 = vpack.c.b16 %v8506, %v8502
  %v8687 = vpack.c.b16 %v8507, %v8503
  %v8688 = vpack.c.b16 %v8508, %v8504
  %v8689 = vpack.c.b16 %v8513, %v8509
  %v8690 = vpack.c.b16 %v8514, %v8510
  %v8691 = vpack.c.b16 %v8515, %v8511
  %v8692 = vpack.c.b16 %v8516, %v8512
  %v8693 = vpack.c.b16 %v8521, %v8517
  %v8694 = vpack.c.b16 %v8522, %v8518
  %v8695 = vpack.c.b16 %v8523, %v8519
  %v8696 = vpack.c.b16 %v8524, %v8520
  %v8697 = vpack.c.b16 %v8529, %v8525
  %v8698 = vpack.c.b16 %v8530, %v8526
  %v8699 = vpack.c.b16 %v8531, %v8527
  %v8700 = vpack.c.b16 %v8532, %v8528
  %v8701 = vpack.c.b16 %v8537, %v8533
  %v8702 = vpack.c.b16 %v8538, %v8534
  %v8703 = vpack.c.b16 %v8539, %v8535
  %v8704 = vpack.c.b16 %v8540, %v8536
  %v8705 = vpack.c.b16 %v8545, %v8541
  %v8706 = vpack.c.b16 %v8546, %v8542
  %v8707 = vpack.c.b16 %v8547, %v8543
  %v8708 = vpack.c.b16 %v8548, %v8544
  %v8709 = vpack.c.b16 %v8553, %v8549
  %v8710 = vpack.c.b16 %v8554, %v8550
  %v8711 = vpack.c.b16 %v8555, %v8551
  %v8712 = vpack.c.b16 %v8556, %v8552
  %v8713 = vpack.c.b16 %v8561, %v8557
  %v8714 = vpack.c.b16 %v8562, %v8558
  %v8715 = vpack.c.b16 %v8563, %v8559
  %v8716 = vpack.c.b16 %v8564, %v8560
  %v8717 = vpack.c.b16 %v8569, %v8565
  %v8718 = vpack.c.b16 %v8570, %v8566
  %v8719 = vpack.c.b16 %v8571, %v8567
  %v8720 = vpack.c.b16 %v8572, %v8568
  %v8721 = vpack.c.b16 %v8577, %v8573
  %v8722 = vpack.c.b16 %v8578, %v8574
  %v8723 = vpack.c.b16 %v8579, %v8575
  %v8724 = vpack.c.b16 %v8580, %v8576
  %v8725 = vpack.c.b16 %v8585, %v8581
  %v8726 = vpack.c.b16 %v8586, %v8582
  %v8727 = vpack.c.b16 %v8587, %v8583
  %v8728 = vpack.c.b16 %v8588, %v8584
  %v8729 = vpack.c.b16 %v8593, %v8589
  %v8730 = vpack.c.b16 %v8594, %v8590
  %v8731 = vpack.c.b16 %v8595, %v8591
  %v8732 = vpack.c.b16 %v8596, %v8592
  %v8733 = vpack.c.b16 %v8601, %v8597
  %v8734 = vpack.c.b16 %v8602, %v8598
  %v8735 = vpack.c.b16 %v8603, %v8599
  %v8736 = vpack.c.b16 %v8604, %v8600
  %v8737 = vpack.c.b16 %v8609, %v8605
  %v8738 = vpack.c.b16 %v8610, %v8606
  %v8739 = vpack.c.b16 %v8611, %v8607
  %v8740 = vpack.c.b16 %v8612, %v8608
  %8869 = vmatprep.subr.bf16.mxu0 %v8614
  %8870 = vmatpush1.bf16.msra.mxu0 %v8613
  %8871 = vmatprep.subr.bf16.mxu0 %v8618
  %8872 = vmatpush1.bf16.msra.mxu0 %v8617
  %8873 = vmatprep.subr.bf16.mxu0 %v8622
  %8874 = vmatpush1.bf16.msra.mxu0 %v8621
  %8875 = vmatprep.subr.bf16.mxu0 %v8626
  %8876 = vmatpush1.bf16.msra.mxu0 %v8625
  %8877 = vmatprep.subr.bf16.mxu0 %v8630
  %8878 = vmatpush1.bf16.msra.mxu0 %v8629
  %8879 = vmatprep.subr.bf16.mxu0 %v8634
  %8880 = vmatpush1.bf16.msra.mxu0 %v8633
  %8881 = vmatprep.subr.bf16.mxu0 %v8638
  %8882 = vmatpush1.bf16.msra.mxu0 %v8637
  %8883 = vmatprep.subr.bf16.mxu0 %v8642
  %8884 = vmatpush1.bf16.msra.mxu0 %v8641
  %8885 = vmatprep.subr.bf16.mxu0 %v8646
  %8886 = vmatpush1.bf16.msra.mxu0 %v8645
  %8887 = vmatprep.subr.bf16.mxu0 %v8650
  %8888 = vmatpush1.bf16.msra.mxu0 %v8649
  %8889 = vmatprep.subr.bf16.mxu0 %v8654
  %8890 = vmatpush1.bf16.msra.mxu0 %v8653
  %8891 = vmatprep.subr.bf16.mxu0 %v8658
  %8892 = vmatpush1.bf16.msra.mxu0 %v8657
  %8893 = vmatprep.subr.bf16.mxu0 %v8662
  %8894 = vmatpush1.bf16.msra.mxu0 %v8661
  %8895 = vmatprep.subr.bf16.mxu0 %v8666
  %8896 = vmatpush1.bf16.msra.mxu0 %v8665
  %8897 = vmatprep.subr.bf16.mxu0 %v8670
  %8898 = vmatpush1.bf16.msra.mxu0 %v8669
  %8899 = vmatprep.subr.bf16.mxu0 %v8674
  %8900 = vmatpush1.bf16.msra.mxu0 %v8673
  %8901 = vmatprep.mubr.bf16.mxu0 %v3054
  %8902 = vmatmul.mubr.bf16.gmra.mrb[0].mxu0 %v3053
  %v8903 = vpop.f32.mrb[0].mxu0
  %v8904 = vadd.f32 0.0, %v8903
  %v8905 = vpop.f32.mrb[0].mxu0
  %v8906 = vadd.f32 0.0, %v8905
  %v8907 = vpop.f32.mrb[0].mxu0
  %v8908 = vadd.f32 0.0, %v8907
  %v8909 = vpop.f32.mrb[0].mxu0
  %v8910 = vadd.f32 0.0, %v8909
  %8911 = vmatprep.mubr.bf16.mxu0 %v3058
  %8912 = vmatmul.mubr.bf16.gmra.mrb[0].mxu0 %v3057
  %v8913 = vpop.f32.mrb[0].mxu0
  %v8914 = vadd.f32 0.0, %v8913
  %v8915 = vpop.f32.mrb[0].mxu0
  %v8916 = vadd.f32 0.0, %v8915
  %v8917 = vpop.f32.mrb[0].mxu0
  %v8918 = vadd.f32 0.0, %v8917
  %v8919 = vpop.f32.mrb[0].mxu0
  %v8920 = vadd.f32 0.0, %v8919
  %8921 = vmatprep.mubr.bf16.mxu0 %v3062
  %8922 = vmatmul.mubr.bf16.gmra.mrb[0].mxu0 %v3061
  %v8923 = vpop.f32.mrb[0].mxu0
  %v8924 = vadd.f32 0.0, %v8923
  %v8925 = vpop.f32.mrb[0].mxu0
  %v8926 = vadd.f32 0.0, %v8925
  %v8927 = vpop.f32.mrb[0].mxu0
  %v8928 = vadd.f32 0.0, %v8927
  %v8929 = vpop.f32.mrb[0].mxu0
  %v8930 = vadd.f32 0.0, %v8929
  %8931 = vmatprep.mubr.bf16.mxu0 %v3066
  %8932 = vmatmul.mubr.bf16.gmra.mrb[0].mxu0 %v3065
  %v8933 = vpop.f32.mrb[0].mxu0
  %v8934 = vadd.f32 0.0, %v8933
  %v8935 = vpop.f32.mrb[0].mxu0
  %v8936 = vadd.f32 0.0, %v8935
  %v8937 = vpop.f32.mrb[0].mxu0
  %v8938 = vadd.f32 0.0, %v8937
  %v8939 = vpop.f32.mrb[0].mxu0
  %v8940 = vadd.f32 0.0, %v8939
  %8941 = vmatprep.mubr.bf16.mxu0 %v3070
  %8942 = vmatmul.mubr.bf16.gmra.mrb[0].mxu0 %v3069
  %v8943 = vpop.f32.mrb[0].mxu0
  %v8944 = vadd.f32 0.0, %v8943
  %v8945 = vpop.f32.mrb[0].mxu0
  %v8946 = vadd.f32 0.0, %v8945
  %v8947 = vpop.f32.mrb[0].mxu0
  %v8948 = vadd.f32 0.0, %v8947
  %v8949 = vpop.f32.mrb[0].mxu0
  %v8950 = vadd.f32 0.0, %v8949
  %8951 = vmatprep.mubr.bf16.mxu0 %v3074
  %8952 = vmatmul.mubr.bf16.gmra.mrb[0].mxu0 %v3073
  %v8953 = vpop.f32.mrb[0].mxu0
  %v8954 = vadd.f32 0.0, %v8953
  %v8955 = vpop.f32.mrb[0].mxu0
  %v8956 = vadd.f32 0.0, %v8955
  %v8957 = vpop.f32.mrb[0].mxu0
  %v8958 = vadd.f32 0.0, %v8957
  %v8959 = vpop.f32.mrb[0].mxu0
  %v8960 = vadd.f32 0.0, %v8959
  %8961 = vmatprep.mubr.bf16.mxu0 %v3078
  %8962 = vmatmul.mubr.bf16.gmra.mrb[0].mxu0 %v3077
  %v8963 = vpop.f32.mrb[0].mxu0
  %v8964 = vadd.f32 0.0, %v8963
  %v8965 = vpop.f32.mrb[0].mxu0
  %v8966 = vadd.f32 0.0, %v8965
  %v8967 = vpop.f32.mrb[0].mxu0
  %v8968 = vadd.f32 0.0, %v8967
  %v8969 = vpop.f32.mrb[0].mxu0
  %v8970 = vadd.f32 0.0, %v8969
  %8971 = vmatprep.mubr.bf16.mxu0 %v3082
  %8972 = vmatmul.mubr.bf16.gmra.mrb[0].mxu0 %v3081
  %v8973 = vpop.f32.mrb[0].mxu0
  %v8974 = vadd.f32 0.0, %v8973
  %v8975 = vpop.f32.mrb[0].mxu0
  %v8976 = vadd.f32 0.0, %v8975
  %v8977 = vpop.f32.mrb[0].mxu0
  %v8978 = vadd.f32 0.0, %v8977
  %v8979 = vpop.f32.mrb[0].mxu0
  %v8980 = vadd.f32 0.0, %v8979
  %8981 = vdwg.mxu0
  %8982 = vmatprep.subr.bf16.mxu0 %v8678
  %8983 = vmatpush1.bf16.msra.mxu0 %v8677
  %8984 = vmatprep.subr.bf16.mxu0 %v8682
  %8985 = vmatpush1.bf16.msra.mxu0 %v8681
  %8986 = vmatprep.subr.bf16.mxu0 %v8686
  %8987 = vmatpush1.bf16.msra.mxu0 %v8685
  %8988 = vmatprep.subr.bf16.mxu0 %v8690
  %8989 = vmatpush1.bf16.msra.mxu0 %v8689
  %8990 = vmatprep.subr.bf16.mxu0 %v8694
  %8991 = vmatpush1.bf16.msra.mxu0 %v8693
  %8992 = vmatprep.subr.bf16.mxu0 %v8698
  %8993 = vmatpush1.bf16.msra.mxu0 %v8697
  %8994 = vmatprep.subr.bf16.mxu0 %v8702
  %8995 = vmatpush1.bf16.msra.mxu0 %v8701
  %8996 = vmatprep.subr.bf16.mxu0 %v8706
  %8997 = vmatpush1.bf16.msra.mxu0 %v8705
  %8998 = vmatprep.subr.bf16.mxu0 %v8710
  %8999 = vmatpush1.bf16.msra.mxu0 %v8709
  %9000 = vmatprep.subr.bf16.mxu0 %v8714
  %9001 = vmatpush1.bf16.msra.mxu0 %v8713
  %9002 = vmatprep.subr.bf16.mxu0 %v8718
  %9003 = vmatpush1.bf16.msra.mxu0 %v8717
  %9004 = vmatprep.subr.bf16.mxu0 %v8722
  %9005 = vmatpush1.bf16.msra.mxu0 %v8721
  %9006 = vmatprep.subr.bf16.mxu0 %v8726
  %9007 = vmatpush1.bf16.msra.mxu0 %v8725
  %9008 = vmatprep.subr.bf16.mxu0 %v8730
  %9009 = vmatpush1.bf16.msra.mxu0 %v8729
  %9010 = vmatprep.subr.bf16.mxu0 %v8734
  %9011 = vmatpush1.bf16.msra.mxu0 %v8733
  %9012 = vmatprep.subr.bf16.mxu0 %v8738
  %9013 = vmatpush1.bf16.msra.mxu0 %v8737
  %9014 = vmatprep.mubr.bf16.mxu0 %v3056
  %9015 = vmatmul.mubr.bf16.gmra.mrb[0].mxu0 %v3055
  %v9016 = vpop.f32.mrb[0].mxu0
  %v9017 = vadd.f32 %v8904, %v9016
  %v9018 = vpop.f32.mrb[0].mxu0
  %v9019 = vadd.f32 %v8906, %v9018
  %v9020 = vpop.f32.mrb[0].mxu0
  %v9021 = vadd.f32 %v8908, %v9020
  %v9022 = vpop.f32.mrb[0].mxu0
  %v9023 = vadd.f32 %v8910, %v9022
  %9024 = vmatprep.mubr.bf16.mxu0 %v3060
  %9025 = vmatmul.mubr.bf16.gmra.mrb[0].mxu0 %v3059
  %v9026 = vpop.f32.mrb[0].mxu0
  %v9027 = vadd.f32 %v8914, %v9026
  %v9028 = vpop.f32.mrb[0].mxu0
  %v9029 = vadd.f32 %v8916, %v9028
  %v9030 = vpop.f32.mrb[0].mxu0
  %v9031 = vadd.f32 %v8918, %v9030
  %v9032 = vpop.f32.mrb[0].mxu0
  %v9033 = vadd.f32 %v8920, %v9032
  %9034 = vmatprep.mubr.bf16.mxu0 %v3064
  %9035 = vmatmul.mubr.bf16.gmra.mrb[0].mxu0 %v3063
  %v9036 = vpop.f32.mrb[0].mxu0
  %v9037 = vadd.f32 %v8924, %v9036
  %v9038 = vpop.f32.mrb[0].mxu0
  %v9039 = vadd.f32 %v8926, %v9038
  %v9040 = vpop.f32.mrb[0].mxu0
  %v9041 = vadd.f32 %v8928, %v9040
  %v9042 = vpop.f32.mrb[0].mxu0
  %v9043 = vadd.f32 %v8930, %v9042
  %9044 = vmatprep.mubr.bf16.mxu0 %v3068
  %9045 = vmatmul.mubr.bf16.gmra.mrb[0].mxu0 %v3067
  %v9046 = vpop.f32.mrb[0].mxu0
  %v9047 = vadd.f32 %v8934, %v9046
  %v9048 = vpop.f32.mrb[0].mxu0
  %v9049 = vadd.f32 %v8936, %v9048
  %v9050 = vpop.f32.mrb[0].mxu0
  %v9051 = vadd.f32 %v8938, %v9050
  %v9052 = vpop.f32.mrb[0].mxu0
  %v9053 = vadd.f32 %v8940, %v9052
  %9054 = vmatprep.mubr.bf16.mxu0 %v3072
  %9055 = vmatmul.mubr.bf16.gmra.mrb[0].mxu0 %v3071
  %v9056 = vpop.f32.mrb[0].mxu0
  %v9057 = vadd.f32 %v8944, %v9056
  %v9058 = vpop.f32.mrb[0].mxu0
  %v9059 = vadd.f32 %v8946, %v9058
  %v9060 = vpop.f32.mrb[0].mxu0
  %v9061 = vadd.f32 %v8948, %v9060
  %v9062 = vpop.f32.mrb[0].mxu0
  %v9063 = vadd.f32 %v8950, %v9062
  %9064 = vmatprep.mubr.bf16.mxu0 %v3076
  %9065 = vmatmul.mubr.bf16.gmra.mrb[0].mxu0 %v3075
  %v9066 = vpop.f32.mrb[0].mxu0
  %v9067 = vadd.f32 %v8954, %v9066
  %v9068 = vpop.f32.mrb[0].mxu0
  %v9069 = vadd.f32 %v8956, %v9068
  %v9070 = vpop.f32.mrb[0].mxu0
  %v9071 = vadd.f32 %v8958, %v9070
  %v9072 = vpop.f32.mrb[0].mxu0
  %v9073 = vadd.f32 %v8960, %v9072
  %9074 = vmatprep.mubr.bf16.mxu0 %v3080
  %9075 = vmatmul.mubr.bf16.gmra.mrb[0].mxu0 %v3079
  %v9076 = vpop.f32.mrb[0].mxu0
  %v9077 = vadd.f32 %v8964, %v9076
  %v9078 = vpop.f32.mrb[0].mxu0
  %v9079 = vadd.f32 %v8966, %v9078
  %v9080 = vpop.f32.mrb[0].mxu0
  %v9081 = vadd.f32 %v8968, %v9080
  %v9082 = vpop.f32.mrb[0].mxu0
  %v9083 = vadd.f32 %v8970, %v9082
  %9084 = vmatprep.mubr.bf16.mxu0 %v3084
  %9085 = vmatmul.mubr.bf16.gmra.mrb[0].mxu0 %v3083
  %v9086 = vpop.f32.mrb[0].mxu0
  %v9087 = vadd.f32 %v8974, %v9086
  %v9088 = vpop.f32.mrb[0].mxu0
  %v9089 = vadd.f32 %v8976, %v9088
  %v9090 = vpop.f32.mrb[0].mxu0
  %v9091 = vadd.f32 %v8978, %v9090
  %v9092 = vpop.f32.mrb[0].mxu0
  %v9093 = vadd.f32 %v8980, %v9092
  %9094 = vdwg.mxu0
  %9095 = vmatprep.subr.bf16.mxu0 %v8616
  %9096 = vmatpush1.bf16.msra.mxu0 %v8615
  %9097 = vmatprep.subr.bf16.mxu0 %v8620
  %9098 = vmatpush1.bf16.msra.mxu0 %v8619
  %9099 = vmatprep.subr.bf16.mxu0 %v8624
  %9100 = vmatpush1.bf16.msra.mxu0 %v8623
  %9101 = vmatprep.subr.bf16.mxu0 %v8628
  %9102 = vmatpush1.bf16.msra.mxu0 %v8627
  %9103 = vmatprep.subr.bf16.mxu0 %v8632
  %9104 = vmatpush1.bf16.msra.mxu0 %v8631
  %9105 = vmatprep.subr.bf16.mxu0 %v8636
  %9106 = vmatpush1.bf16.msra.mxu0 %v8635
  %9107 = vmatprep.subr.bf16.mxu0 %v8640
  %9108 = vmatpush1.bf16.msra.mxu0 %v8639
  %9109 = vmatprep.subr.bf16.mxu0 %v8644
  %9110 = vmatpush1.bf16.msra.mxu0 %v8643
  %9111 = vmatprep.subr.bf16.mxu0 %v8648
  %9112 = vmatpush1.bf16.msra.mxu0 %v8647
  %9113 = vmatprep.subr.bf16.mxu0 %v8652
  %9114 = vmatpush1.bf16.msra.mxu0 %v8651
  %9115 = vmatprep.subr.bf16.mxu0 %v8656
  %9116 = vmatpush1.bf16.msra.mxu0 %v8655
  %9117 = vmatprep.subr.bf16.mxu0 %v8660
  %9118 = vmatpush1.bf16.msra.mxu0 %v8659
  %9119 = vmatprep.subr.bf16.mxu0 %v8664
  %9120 = vmatpush1.bf16.msra.mxu0 %v8663
  %9121 = vmatprep.subr.bf16.mxu0 %v8668
  %9122 = vmatpush1.bf16.msra.mxu0 %v8667
  %9123 = vmatprep.subr.bf16.mxu0 %v8672
  %9124 = vmatpush1.bf16.msra.mxu0 %v8671
  %9125 = vmatprep.subr.bf16.mxu0 %v8676
  %9126 = vmatpush1.bf16.msra.mxu0 %v8675
  %9127 = vmatprep.mubr.bf16.mxu0 %v3054
  %9128 = vmatmul.mubr.bf16.gmra.mrb[0].mxu0 %v3053
  %v9129 = vpop.f32.mrb[0].mxu0
  %v9130 = vadd.f32 0.0, %v9129
  %v9131 = vpop.f32.mrb[0].mxu0
  %v9132 = vadd.f32 0.0, %v9131
  %v9133 = vpop.f32.mrb[0].mxu0
  %v9134 = vadd.f32 0.0, %v9133
  %v9135 = vpop.f32.mrb[0].mxu0
  %v9136 = vadd.f32 0.0, %v9135
  %9137 = vmatprep.mubr.bf16.mxu0 %v3058
  %9138 = vmatmul.mubr.bf16.gmra.mrb[0].mxu0 %v3057
  %v9139 = vpop.f32.mrb[0].mxu0
  %v9140 = vadd.f32 0.0, %v9139
  %v9141 = vpop.f32.mrb[0].mxu0
  %v9142 = vadd.f32 0.0, %v9141
  %v9143 = vpop.f32.mrb[0].mxu0
  %v9144 = vadd.f32 0.0, %v9143
  %v9145 = vpop.f32.mrb[0].mxu0
  %v9146 = vadd.f32 0.0, %v9145
  %9147 = vmatprep.mubr.bf16.mxu0 %v3062
  %9148 = vmatmul.mubr.bf16.gmra.mrb[0].mxu0 %v3061
  %v9149 = vpop.f32.mrb[0].mxu0
  %v9150 = vadd.f32 0.0, %v9149
  %v9151 = vpop.f32.mrb[0].mxu0
  %v9152 = vadd.f32 0.0, %v9151
  %v9153 = vpop.f32.mrb[0].mxu0
  %v9154 = vadd.f32 0.0, %v9153
  %v9155 = vpop.f32.mrb[0].mxu0
  %v9156 = vadd.f32 0.0, %v9155
  %9157 = vmatprep.mubr.bf16.mxu0 %v3066
  %9158 = vmatmul.mubr.bf16.gmra.mrb[0].mxu0 %v3065
  %v9159 = vpop.f32.mrb[0].mxu0
  %v9160 = vadd.f32 0.0, %v9159
  %v9161 = vpop.f32.mrb[0].mxu0
  %v9162 = vadd.f32 0.0, %v9161
  %v9163 = vpop.f32.mrb[0].mxu0
  %v9164 = vadd.f32 0.0, %v9163
  %v9165 = vpop.f32.mrb[0].mxu0
  %v9166 = vadd.f32 0.0, %v9165
  %9167 = vmatprep.mubr.bf16.mxu0 %v3070
  %9168 = vmatmul.mubr.bf16.gmra.mrb[0].mxu0 %v3069
  %v9169 = vpop.f32.mrb[0].mxu0
  %v9170 = vadd.f32 0.0, %v9169
  %v9171 = vpop.f32.mrb[0].mxu0
  %v9172 = vadd.f32 0.0, %v9171
  %v9173 = vpop.f32.mrb[0].mxu0
  %v9174 = vadd.f32 0.0, %v9173
  %v9175 = vpop.f32.mrb[0].mxu0
  %v9176 = vadd.f32 0.0, %v9175
  %9177 = vmatprep.mubr.bf16.mxu0 %v3074
  %9178 = vmatmul.mubr.bf16.gmra.mrb[0].mxu0 %v3073
  %v9179 = vpop.f32.mrb[0].mxu0
  %v9180 = vadd.f32 0.0, %v9179
  %v9181 = vpop.f32.mrb[0].mxu0
  %v9182 = vadd.f32 0.0, %v9181
  %v9183 = vpop.f32.mrb[0].mxu0
  %v9184 = vadd.f32 0.0, %v9183
  %v9185 = vpop.f32.mrb[0].mxu0
  %v9186 = vadd.f32 0.0, %v9185
  %9187 = vmatprep.mubr.bf16.mxu0 %v3078
  %9188 = vmatmul.mubr.bf16.gmra.mrb[0].mxu0 %v3077
  %v9189 = vpop.f32.mrb[0].mxu0
  %v9190 = vadd.f32 0.0, %v9189
  %v9191 = vpop.f32.mrb[0].mxu0
  %v9192 = vadd.f32 0.0, %v9191
  %v9193 = vpop.f32.mrb[0].mxu0
  %v9194 = vadd.f32 0.0, %v9193
  %v9195 = vpop.f32.mrb[0].mxu0
  %v9196 = vadd.f32 0.0, %v9195
  %9197 = vmatprep.mubr.bf16.mxu0 %v3082
  %9198 = vmatmul.mubr.bf16.gmra.mrb[0].mxu0 %v3081
  %v9199 = vpop.f32.mrb[0].mxu0
  %v9200 = vadd.f32 0.0, %v9199
  %v9201 = vpop.f32.mrb[0].mxu0
  %v9202 = vadd.f32 0.0, %v9201
  %v9203 = vpop.f32.mrb[0].mxu0
  %v9204 = vadd.f32 0.0, %v9203
  %v9205 = vpop.f32.mrb[0].mxu0
  %v9206 = vadd.f32 0.0, %v9205
  %9207 = vdwg.mxu0
  %9208 = vmatprep.subr.bf16.mxu0 %v8680
  %9209 = vmatpush1.bf16.msra.mxu0 %v8679
  %9210 = vmatprep.subr.bf16.mxu0 %v8684
  %9211 = vmatpush1.bf16.msra.mxu0 %v8683
  %9212 = vmatprep.subr.bf16.mxu0 %v8688
  %9213 = vmatpush1.bf16.msra.mxu0 %v8687
  %9214 = vmatprep.subr.bf16.mxu0 %v8692
  %9215 = vmatpush1.bf16.msra.mxu0 %v8691
  %9216 = vmatprep.subr.bf16.mxu0 %v8696
  %9217 = vmatpush1.bf16.msra.mxu0 %v8695
  %9218 = vmatprep.subr.bf16.mxu0 %v8700
  %9219 = vmatpush1.bf16.msra.mxu0 %v8699
  %9220 = vmatprep.subr.bf16.mxu0 %v8704
  %9221 = vmatpush1.bf16.msra.mxu0 %v8703
  %9222 = vmatprep.subr.bf16.mxu0 %v8708
  %9223 = vmatpush1.bf16.msra.mxu0 %v8707
  %9224 = vmatprep.subr.bf16.mxu0 %v8712
  %9225 = vmatpush1.bf16.msra.mxu0 %v8711
  %9226 = vmatprep.subr.bf16.mxu0 %v8716
  %9227 = vmatpush1.bf16.msra.mxu0 %v8715
  %9228 = vmatprep.subr.bf16.mxu0 %v8720
  %9229 = vmatpush1.bf16.msra.mxu0 %v8719
  %9230 = vmatprep.subr.bf16.mxu0 %v8724
  %9231 = vmatpush1.bf16.msra.mxu0 %v8723
  %9232 = vmatprep.subr.bf16.mxu0 %v8728
  %9233 = vmatpush1.bf16.msra.mxu0 %v8727
  %9234 = vmatprep.subr.bf16.mxu0 %v8732
  %9235 = vmatpush1.bf16.msra.mxu0 %v8731
  %9236 = vmatprep.subr.bf16.mxu0 %v8736
  %9237 = vmatpush1.bf16.msra.mxu0 %v8735
  %9238 = vmatprep.subr.bf16.mxu0 %v8740
  %9239 = vmatpush1.bf16.msra.mxu0 %v8739
  %9240 = vmatprep.mubr.bf16.mxu0 %v3056
  %9241 = vmatmul.mubr.bf16.gmra.mrb[0].mxu0 %v3055
  %v9242 = vpop.f32.mrb[0].mxu0
  %v9243 = vadd.f32 %v9130, %v9242
  %v9244 = vpop.f32.mrb[0].mxu0
  %v9245 = vadd.f32 %v9132, %v9244
  %v9246 = vpop.f32.mrb[0].mxu0
  %v9247 = vadd.f32 %v9134, %v9246
  %v9248 = vpop.f32.mrb[0].mxu0
  %v9249 = vadd.f32 %v9136, %v9248
  %9250 = vmatprep.mubr.bf16.mxu0 %v3060
  %9251 = vmatmul.mubr.bf16.gmra.mrb[0].mxu0 %v3059
  %v9252 = vpop.f32.mrb[0].mxu0
  %v9253 = vadd.f32 %v9140, %v9252
  %v9254 = vpop.f32.mrb[0].mxu0
  %v9255 = vadd.f32 %v9142, %v9254
  %v9256 = vpop.f32.mrb[0].mxu0
  %v9257 = vadd.f32 %v9144, %v9256
  %v9258 = vpop.f32.mrb[0].mxu0
  %v9259 = vadd.f32 %v9146, %v9258
  %9260 = vmatprep.mubr.bf16.mxu0 %v3064
  %9261 = vmatmul.mubr.bf16.gmra.mrb[0].mxu0 %v3063
  %v9262 = vpop.f32.mrb[0].mxu0
  %v9263 = vadd.f32 %v9150, %v9262
  %v9264 = vpop.f32.mrb[0].mxu0
  %v9265 = vadd.f32 %v9152, %v9264
  %v9266 = vpop.f32.mrb[0].mxu0
  %v9267 = vadd.f32 %v9154, %v9266
  %v9268 = vpop.f32.mrb[0].mxu0
  %v9269 = vadd.f32 %v9156, %v9268
  %9270 = vmatprep.mubr.bf16.mxu0 %v3068
  %9271 = vmatmul.mubr.bf16.gmra.mrb[0].mxu0 %v3067
  %v9272 = vpop.f32.mrb[0].mxu0
  %v9273 = vadd.f32 %v9160, %v9272
  %v9274 = vpop.f32.mrb[0].mxu0
  %v9275 = vadd.f32 %v9162, %v9274
  %v9276 = vpop.f32.mrb[0].mxu0
  %v9277 = vadd.f32 %v9164, %v9276
  %v9278 = vpop.f32.mrb[0].mxu0
  %v9279 = vadd.f32 %v9166, %v9278
  %9280 = vmatprep.mubr.bf16.mxu0 %v3072
  %9281 = vmatmul.mubr.bf16.gmra.mrb[0].mxu0 %v3071
  %v9282 = vpop.f32.mrb[0].mxu0
  %v9283 = vadd.f32 %v9170, %v9282
  %v9284 = vpop.f32.mrb[0].mxu0
  %v9285 = vadd.f32 %v9172, %v9284
  %v9286 = vpop.f32.mrb[0].mxu0
  %v9287 = vadd.f32 %v9174, %v9286
  %v9288 = vpop.f32.mrb[0].mxu0
  %v9289 = vadd.f32 %v9176, %v9288
  %9290 = vmatprep.mubr.bf16.mxu0 %v3076
  %9291 = vmatmul.mubr.bf16.gmra.mrb[0].mxu0 %v3075
  %v9292 = vpop.f32.mrb[0].mxu0
  %v9293 = vadd.f32 %v9180, %v9292
  %v9294 = vpop.f32.mrb[0].mxu0
  %v9295 = vadd.f32 %v9182, %v9294
  %v9296 = vpop.f32.mrb[0].mxu0
  %v9297 = vadd.f32 %v9184, %v9296
  %v9298 = vpop.f32.mrb[0].mxu0
  %v9299 = vadd.f32 %v9186, %v9298
  %9300 = vmatprep.mubr.bf16.mxu0 %v3080
  %9301 = vmatmul.mubr.bf16.gmra.mrb[0].mxu0 %v3079
  %v9302 = vpop.f32.mrb[0].mxu0
  %v9303 = vadd.f32 %v9190, %v9302
  %v9304 = vpop.f32.mrb[0].mxu0
  %v9305 = vadd.f32 %v9192, %v9304
  %v9306 = vpop.f32.mrb[0].mxu0
  %v9307 = vadd.f32 %v9194, %v9306
  %v9308 = vpop.f32.mrb[0].mxu0
  %v9309 = vadd.f32 %v9196, %v9308
  %9310 = vmatprep.mubr.bf16.mxu0 %v3084
  %9311 = vmatmul.mubr.bf16.gmra.mrb[0].mxu0 %v3083
  %v9312 = vpop.f32.mrb[0].mxu0
  %v9313 = vadd.f32 %v9200, %v9312
  %v9314 = vpop.f32.mrb[0].mxu0
  %v9315 = vadd.f32 %v9202, %v9314
  %v9316 = vpop.f32.mrb[0].mxu0
  %v9317 = vadd.f32 %v9204, %v9316
  %v9318 = vpop.f32.mrb[0].mxu0
  %v9319 = vadd.f32 %v9206, %v9318
  %9320 = vdwg.mxu0
  %v9321 = vadd.f32 %v8036, %v9017
  %v9322 = vadd.f32 %v8037, %v9019
  %v9323 = vadd.f32 %v8038, %v9243
  %v9324 = vadd.f32 %v8039, %v9245
  %v9325 = vadd.f32 %v8040, %v9021
  %v9326 = vadd.f32 %v8041, %v9023
  %v9327 = vadd.f32 %v8042, %v9247
  %v9328 = vadd.f32 %v8043, %v9249
  %v9329 = vadd.f32 %v8044, %v9027
  %v9330 = vadd.f32 %v8045, %v9029
  %v9331 = vadd.f32 %v8046, %v9253
  %v9332 = vadd.f32 %v8047, %v9255
  %v9333 = vadd.f32 %v8048, %v9031
  %v9334 = vadd.f32 %v8049, %v9033
  %v9335 = vadd.f32 %v8050, %v9257
  %v9336 = vadd.f32 %v8051, %v9259
  %v9337 = vadd.f32 %v8052, %v9037
  %v9338 = vadd.f32 %v8053, %v9039
  %v9339 = vadd.f32 %v8054, %v9263
  %v9340 = vadd.f32 %v8055, %v9265
  %v9341 = vadd.f32 %v8056, %v9041
  %v9342 = vadd.f32 %v8057, %v9043
  %v9343 = vadd.f32 %v8058, %v9267
  %v9344 = vadd.f32 %v8059, %v9269
  %v9345 = vadd.f32 %v8060, %v9047
  %v9346 = vadd.f32 %v8061, %v9049
  %v9347 = vadd.f32 %v8062, %v9273
  %v9348 = vadd.f32 %v8063, %v9275
  %v9349 = vadd.f32 %v8064, %v9051
  %v9350 = vadd.f32 %v8065, %v9053
  %v9351 = vadd.f32 %v8066, %v9277
  %v9352 = vadd.f32 %v8067, %v9279
  %v9353 = vadd.f32 %v8068, %v9057
  %v9354 = vadd.f32 %v8069, %v9059
  %v9355 = vadd.f32 %v8070, %v9283
  %v9356 = vadd.f32 %v8071, %v9285
  %v9357 = vadd.f32 %v8072, %v9061
  %v9358 = vadd.f32 %v8073, %v9063
  %v9359 = vadd.f32 %v8074, %v9287
  %v9360 = vadd.f32 %v8075, %v9289
  %v9361 = vadd.f32 %v8076, %v9067
  %v9362 = vadd.f32 %v8077, %v9069
  %v9363 = vadd.f32 %v8078, %v9293
  %v9364 = vadd.f32 %v8079, %v9295
  %v9365 = vadd.f32 %v8080, %v9071
  %v9366 = vadd.f32 %v8081, %v9073
  %v9367 = vadd.f32 %v8082, %v9297
  %v9368 = vadd.f32 %v8083, %v9299
  %v9369 = vadd.f32 %v8084, %v9077
  %v9370 = vadd.f32 %v8085, %v9079
  %v9371 = vadd.f32 %v8086, %v9303
  %v9372 = vadd.f32 %v8087, %v9305
  %v9373 = vadd.f32 %v8088, %v9081
  %v9374 = vadd.f32 %v8089, %v9083
  %v9375 = vadd.f32 %v8090, %v9307
  %v9376 = vadd.f32 %v8091, %v9309
  %v9377 = vadd.f32 %v8092, %v9087
  %v9378 = vadd.f32 %v8093, %v9089
  %v9379 = vadd.f32 %v8094, %v9313
  %v9380 = vadd.f32 %v8095, %v9315
  %v9381 = vadd.f32 %v8096, %v9091
  %v9382 = vadd.f32 %v8097, %v9093
  %v9383 = vadd.f32 %v8098, %v9317
  %v9384 = vadd.f32 %v8099, %v9319
  %s9385 = scalar_lea.vmem %s2, 5120
  %v9386 = vld [vmem:[%s9385] sm:$0xff]
  %v9387 = vld [vmem:[%s9385 + $0x8] sm:$0xff]
  %v9388 = vld [vmem:[%s9385 + $0x10] sm:$0xff]
  %v9389 = vld [vmem:[%s9385 + $0x18] sm:$0xff]
  %v9390 = vld [vmem:[%s9385 + $0x20] sm:$0xff]
  %v9391 = vld [vmem:[%s9385 + $0x28] sm:$0xff]
  %v9392 = vld [vmem:[%s9385 + $0x30] sm:$0xff]
  %v9393 = vld [vmem:[%s9385 + $0x38] sm:$0xff]
  %v9394 = vld [vmem:[%s9385 + $0x40] sm:$0xff]
  %v9395 = vld [vmem:[%s9385 + $0x48] sm:$0xff]
  %v9396 = vld [vmem:[%s9385 + $0x50] sm:$0xff]
  %v9397 = vld [vmem:[%s9385 + $0x58] sm:$0xff]
  %v9398 = vld [vmem:[%s9385 + $0x60] sm:$0xff]
  %v9399 = vld [vmem:[%s9385 + $0x68] sm:$0xff]
  %v9400 = vld [vmem:[%s9385 + $0x70] sm:$0xff]
  %v9401 = vld [vmem:[%s9385 + $0x78] sm:$0xff]
  %v9402 = vld [vmem:[%s9385 + $0x80] sm:$0xff]
  %v9403 = vld [vmem:[%s9385 + $0x88] sm:$0xff]
  %v9404 = vld [vmem:[%s9385 + $0x90] sm:$0xff]
  %v9405 = vld [vmem:[%s9385 + $0x98] sm:$0xff]
  %v9406 = vld [vmem:[%s9385 + $0xa0] sm:$0xff]
  %v9407 = vld [vmem:[%s9385 + $0xa8] sm:$0xff]
  %v9408 = vld [vmem:[%s9385 + $0xb0] sm:$0xff]
  %v9409 = vld [vmem:[%s9385 + $0xb8] sm:$0xff]
  %v9410 = vld [vmem:[%s9385 + $0xc0] sm:$0xff]
  %v9411 = vld [vmem:[%s9385 + $0xc8] sm:$0xff]
  %v9412 = vld [vmem:[%s9385 + $0xd0] sm:$0xff]
  %v9413 = vld [vmem:[%s9385 + $0xd8] sm:$0xff]
  %v9414 = vld [vmem:[%s9385 + $0xe0] sm:$0xff]
  %v9415 = vld [vmem:[%s9385 + $0xe8] sm:$0xff]
  %v9416 = vld [vmem:[%s9385 + $0xf0] sm:$0xff]
  %v9417 = vld [vmem:[%s9385 + $0xf8] sm:$0xff]
  %v9418 = vld [vmem:[%s9385 + $0x100] sm:$0xff]
  %v9419 = vld [vmem:[%s9385 + $0x108] sm:$0xff]
  %v9420 = vld [vmem:[%s9385 + $0x110] sm:$0xff]
  %v9421 = vld [vmem:[%s9385 + $0x118] sm:$0xff]
  %v9422 = vld [vmem:[%s9385 + $0x120] sm:$0xff]
  %v9423 = vld [vmem:[%s9385 + $0x128] sm:$0xff]
  %v9424 = vld [vmem:[%s9385 + $0x130] sm:$0xff]
  %v9425 = vld [vmem:[%s9385 + $0x138] sm:$0xff]
  %v9426 = vld [vmem:[%s9385 + $0x140] sm:$0xff]
  %v9427 = vld [vmem:[%s9385 + $0x148] sm:$0xff]
  %v9428 = vld [vmem:[%s9385 + $0x150] sm:$0xff]
  %v9429 = vld [vmem:[%s9385 + $0x158] sm:$0xff]
  %v9430 = vld [vmem:[%s9385 + $0x160] sm:$0xff]
  %v9431 = vld [vmem:[%s9385 + $0x168] sm:$0xff]
  %v9432 = vld [vmem:[%s9385 + $0x170] sm:$0xff]
  %v9433 = vld [vmem:[%s9385 + $0x178] sm:$0xff]
  %v9434 = vld [vmem:[%s9385 + $0x180] sm:$0xff]
  %v9435 = vld [vmem:[%s9385 + $0x188] sm:$0xff]
  %v9436 = vld [vmem:[%s9385 + $0x190] sm:$0xff]
  %v9437 = vld [vmem:[%s9385 + $0x198] sm:$0xff]
  %v9438 = vld [vmem:[%s9385 + $0x1a0] sm:$0xff]
  %v9439 = vld [vmem:[%s9385 + $0x1a8] sm:$0xff]
  %v9440 = vld [vmem:[%s9385 + $0x1b0] sm:$0xff]
  %v9441 = vld [vmem:[%s9385 + $0x1b8] sm:$0xff]
  %v9442 = vld [vmem:[%s9385 + $0x1c0] sm:$0xff]
  %v9443 = vld [vmem:[%s9385 + $0x1c8] sm:$0xff]
  %v9444 = vld [vmem:[%s9385 + $0x1d0] sm:$0xff]
  %v9445 = vld [vmem:[%s9385 + $0x1d8] sm:$0xff]
  %v9446 = vld [vmem:[%s9385 + $0x1e0] sm:$0xff]
  %v9447 = vld [vmem:[%s9385 + $0x1e8] sm:$0xff]
  %v9448 = vld [vmem:[%s9385 + $0x1f0] sm:$0xff]
  %v9449 = vld [vmem:[%s9385 + $0x1f8] sm:$0xff]
  %v9450 = vld [vmem:[%s9385 + $0x200] sm:$0xff]
  %v9451 = vld [vmem:[%s9385 + $0x208] sm:$0xff]
  %v9452 = vld [vmem:[%s9385 + $0x210] sm:$0xff]
  %v9453 = vld [vmem:[%s9385 + $0x218] sm:$0xff]
  %v9454 = vld [vmem:[%s9385 + $0x220] sm:$0xff]
  %v9455 = vld [vmem:[%s9385 + $0x228] sm:$0xff]
  %v9456 = vld [vmem:[%s9385 + $0x230] sm:$0xff]
  %v9457 = vld [vmem:[%s9385 + $0x238] sm:$0xff]
  %v9458 = vld [vmem:[%s9385 + $0x240] sm:$0xff]
  %v9459 = vld [vmem:[%s9385 + $0x248] sm:$0xff]
  %v9460 = vld [vmem:[%s9385 + $0x250] sm:$0xff]
  %v9461 = vld [vmem:[%s9385 + $0x258] sm:$0xff]
  %v9462 = vld [vmem:[%s9385 + $0x260] sm:$0xff]
  %v9463 = vld [vmem:[%s9385 + $0x268] sm:$0xff]
  %v9464 = vld [vmem:[%s9385 + $0x270] sm:$0xff]
  %v9465 = vld [vmem:[%s9385 + $0x278] sm:$0xff]
  %v9466 = vld [vmem:[%s9385 + $0x280] sm:$0xff]
  %v9467 = vld [vmem:[%s9385 + $0x288] sm:$0xff]
  %v9468 = vld [vmem:[%s9385 + $0x290] sm:$0xff]
  %v9469 = vld [vmem:[%s9385 + $0x298] sm:$0xff]
  %v9470 = vld [vmem:[%s9385 + $0x2a0] sm:$0xff]
  %v9471 = vld [vmem:[%s9385 + $0x2a8] sm:$0xff]
  %v9472 = vld [vmem:[%s9385 + $0x2b0] sm:$0xff]
  %v9473 = vld [vmem:[%s9385 + $0x2b8] sm:$0xff]
  %v9474 = vld [vmem:[%s9385 + $0x2c0] sm:$0xff]
  %v9475 = vld [vmem:[%s9385 + $0x2c8] sm:$0xff]
  %v9476 = vld [vmem:[%s9385 + $0x2d0] sm:$0xff]
  %v9477 = vld [vmem:[%s9385 + $0x2d8] sm:$0xff]
  %v9478 = vld [vmem:[%s9385 + $0x2e0] sm:$0xff]
  %v9479 = vld [vmem:[%s9385 + $0x2e8] sm:$0xff]
  %v9480 = vld [vmem:[%s9385 + $0x2f0] sm:$0xff]
  %v9481 = vld [vmem:[%s9385 + $0x2f8] sm:$0xff]
  %v9482 = vld [vmem:[%s9385 + $0x300] sm:$0xff]
  %v9483 = vld [vmem:[%s9385 + $0x308] sm:$0xff]
  %v9484 = vld [vmem:[%s9385 + $0x310] sm:$0xff]
  %v9485 = vld [vmem:[%s9385 + $0x318] sm:$0xff]
  %v9486 = vld [vmem:[%s9385 + $0x320] sm:$0xff]
  %v9487 = vld [vmem:[%s9385 + $0x328] sm:$0xff]
  %v9488 = vld [vmem:[%s9385 + $0x330] sm:$0xff]
  %v9489 = vld [vmem:[%s9385 + $0x338] sm:$0xff]
  %v9490 = vld [vmem:[%s9385 + $0x340] sm:$0xff]
  %v9491 = vld [vmem:[%s9385 + $0x348] sm:$0xff]
  %v9492 = vld [vmem:[%s9385 + $0x350] sm:$0xff]
  %v9493 = vld [vmem:[%s9385 + $0x358] sm:$0xff]
  %v9494 = vld [vmem:[%s9385 + $0x360] sm:$0xff]
  %v9495 = vld [vmem:[%s9385 + $0x368] sm:$0xff]
  %v9496 = vld [vmem:[%s9385 + $0x370] sm:$0xff]
  %v9497 = vld [vmem:[%s9385 + $0x378] sm:$0xff]
  %v9498 = vld [vmem:[%s9385 + $0x380] sm:$0xff]
  %v9499 = vld [vmem:[%s9385 + $0x388] sm:$0xff]
  %v9500 = vld [vmem:[%s9385 + $0x390] sm:$0xff]
  %v9501 = vld [vmem:[%s9385 + $0x398] sm:$0xff]
  %v9502 = vld [vmem:[%s9385 + $0x3a0] sm:$0xff]
  %v9503 = vld [vmem:[%s9385 + $0x3a8] sm:$0xff]
  %v9504 = vld [vmem:[%s9385 + $0x3b0] sm:$0xff]
  %v9505 = vld [vmem:[%s9385 + $0x3b8] sm:$0xff]
  %v9506 = vld [vmem:[%s9385 + $0x3c0] sm:$0xff]
  %v9507 = vld [vmem:[%s9385 + $0x3c8] sm:$0xff]
  %v9508 = vld [vmem:[%s9385 + $0x3d0] sm:$0xff]
  %v9509 = vld [vmem:[%s9385 + $0x3d8] sm:$0xff]
  %v9510 = vld [vmem:[%s9385 + $0x3e0] sm:$0xff]
  %v9511 = vld [vmem:[%s9385 + $0x3e8] sm:$0xff]
  %v9512 = vld [vmem:[%s9385 + $0x3f0] sm:$0xff]
  %v9513 = vld [vmem:[%s9385 + $0x3f8] sm:$0xff]
  %v9642 = vunpack.c.l.b16 %v9386
  %v9643 = vunpack.c.h.b16 %v9386
  %v9644 = vunpack.c.l.b16 %v9387
  %v9645 = vunpack.c.h.b16 %v9387
  %v9646 = vunpack.c.l.b16 %v9388
  %v9647 = vunpack.c.h.b16 %v9388
  %v9648 = vunpack.c.l.b16 %v9389
  %v9649 = vunpack.c.h.b16 %v9389
  %v9650 = vunpack.c.l.b16 %v9390
  %v9651 = vunpack.c.h.b16 %v9390
  %v9652 = vunpack.c.l.b16 %v9391
  %v9653 = vunpack.c.h.b16 %v9391
  %v9654 = vunpack.c.l.b16 %v9392
  %v9655 = vunpack.c.h.b16 %v9392
  %v9656 = vunpack.c.l.b16 %v9393
  %v9657 = vunpack.c.h.b16 %v9393
  %v9658 = vunpack.c.l.b16 %v9394
  %v9659 = vunpack.c.h.b16 %v9394
  %v9660 = vunpack.c.l.b16 %v9395
  %v9661 = vunpack.c.h.b16 %v9395
  %v9662 = vunpack.c.l.b16 %v9396
  %v9663 = vunpack.c.h.b16 %v9396
  %v9664 = vunpack.c.l.b16 %v9397
  %v9665 = vunpack.c.h.b16 %v9397
  %v9666 = vunpack.c.l.b16 %v9398
  %v9667 = vunpack.c.h.b16 %v9398
  %v9668 = vunpack.c.l.b16 %v9399
  %v9669 = vunpack.c.h.b16 %v9399
  %v9670 = vunpack.c.l.b16 %v9400
  %v9671 = vunpack.c.h.b16 %v9400
  %v9672 = vunpack.c.l.b16 %v9401
  %v9673 = vunpack.c.h.b16 %v9401
  %v9674 = vunpack.c.l.b16 %v9402
  %v9675 = vunpack.c.h.b16 %v9402
  %v9676 = vunpack.c.l.b16 %v9403
  %v9677 = vunpack.c.h.b16 %v9403
  %v9678 = vunpack.c.l.b16 %v9404
  %v9679 = vunpack.c.h.b16 %v9404
  %v9680 = vunpack.c.l.b16 %v9405
  %v9681 = vunpack.c.h.b16 %v9405
  %v9682 = vunpack.c.l.b16 %v9406
  %v9683 = vunpack.c.h.b16 %v9406
  %v9684 = vunpack.c.l.b16 %v9407
  %v9685 = vunpack.c.h.b16 %v9407
  %v9686 = vunpack.c.l.b16 %v9408
  %v9687 = vunpack.c.h.b16 %v9408
  %v9688 = vunpack.c.l.b16 %v9409
  %v9689 = vunpack.c.h.b16 %v9409
  %v9690 = vunpack.c.l.b16 %v9410
  %v9691 = vunpack.c.h.b16 %v9410
  %v9692 = vunpack.c.l.b16 %v9411
  %v9693 = vunpack.c.h.b16 %v9411
  %v9694 = vunpack.c.l.b16 %v9412
  %v9695 = vunpack.c.h.b16 %v9412
  %v9696 = vunpack.c.l.b16 %v9413
  %v9697 = vunpack.c.h.b16 %v9413
  %v9698 = vunpack.c.l.b16 %v9414
  %v9699 = vunpack.c.h.b16 %v9414
  %v9700 = vunpack.c.l.b16 %v9415
  %v9701 = vunpack.c.h.b16 %v9415
  %v9702 = vunpack.c.l.b16 %v9416
  %v9703 = vunpack.c.h.b16 %v9416
  %v9704 = vunpack.c.l.b16 %v9417
  %v9705 = vunpack.c.h.b16 %v9417
  %v9706 = vunpack.c.l.b16 %v9418
  %v9707 = vunpack.c.h.b16 %v9418
  %v9708 = vunpack.c.l.b16 %v9419
  %v9709 = vunpack.c.h.b16 %v9419
  %v9710 = vunpack.c.l.b16 %v9420
  %v9711 = vunpack.c.h.b16 %v9420
  %v9712 = vunpack.c.l.b16 %v9421
  %v9713 = vunpack.c.h.b16 %v9421
  %v9714 = vunpack.c.l.b16 %v9422
  %v9715 = vunpack.c.h.b16 %v9422
  %v9716 = vunpack.c.l.b16 %v9423
  %v9717 = vunpack.c.h.b16 %v9423
  %v9718 = vunpack.c.l.b16 %v9424
  %v9719 = vunpack.c.h.b16 %v9424
  %v9720 = vunpack.c.l.b16 %v9425
  %v9721 = vunpack.c.h.b16 %v9425
  %v9722 = vunpack.c.l.b16 %v9426
  %v9723 = vunpack.c.h.b16 %v9426
  %v9724 = vunpack.c.l.b16 %v9427
  %v9725 = vunpack.c.h.b16 %v9427
  %v9726 = vunpack.c.l.b16 %v9428
  %v9727 = vunpack.c.h.b16 %v9428
  %v9728 = vunpack.c.l.b16 %v9429
  %v9729 = vunpack.c.h.b16 %v9429
  %v9730 = vunpack.c.l.b16 %v9430
  %v9731 = vunpack.c.h.b16 %v9430
  %v9732 = vunpack.c.l.b16 %v9431
  %v9733 = vunpack.c.h.b16 %v9431
  %v9734 = vunpack.c.l.b16 %v9432
  %v9735 = vunpack.c.h.b16 %v9432
  %v9736 = vunpack.c.l.b16 %v9433
  %v9737 = vunpack.c.h.b16 %v9433
  %v9738 = vunpack.c.l.b16 %v9434
  %v9739 = vunpack.c.h.b16 %v9434
  %v9740 = vunpack.c.l.b16 %v9435
  %v9741 = vunpack.c.h.b16 %v9435
  %v9742 = vunpack.c.l.b16 %v9436
  %v9743 = vunpack.c.h.b16 %v9436
  %v9744 = vunpack.c.l.b16 %v9437
  %v9745 = vunpack.c.h.b16 %v9437
  %v9746 = vunpack.c.l.b16 %v9438
  %v9747 = vunpack.c.h.b16 %v9438
  %v9748 = vunpack.c.l.b16 %v9439
  %v9749 = vunpack.c.h.b16 %v9439
  %v9750 = vunpack.c.l.b16 %v9440
  %v9751 = vunpack.c.h.b16 %v9440
  %v9752 = vunpack.c.l.b16 %v9441
  %v9753 = vunpack.c.h.b16 %v9441
  %v9754 = vunpack.c.l.b16 %v9442
  %v9755 = vunpack.c.h.b16 %v9442
  %v9756 = vunpack.c.l.b16 %v9443
  %v9757 = vunpack.c.h.b16 %v9443
  %v9758 = vunpack.c.l.b16 %v9444
  %v9759 = vunpack.c.h.b16 %v9444
  %v9760 = vunpack.c.l.b16 %v9445
  %v9761 = vunpack.c.h.b16 %v9445
  %v9762 = vunpack.c.l.b16 %v9446
  %v9763 = vunpack.c.h.b16 %v9446
  %v9764 = vunpack.c.l.b16 %v9447
  %v9765 = vunpack.c.h.b16 %v9447
  %v9766 = vunpack.c.l.b16 %v9448
  %v9767 = vunpack.c.h.b16 %v9448
  %v9768 = vunpack.c.l.b16 %v9449
  %v9769 = vunpack.c.h.b16 %v9449
  %v9770 = vunpack.c.l.b16 %v9450
  %v9771 = vunpack.c.h.b16 %v9450
  %v9772 = vunpack.c.l.b16 %v9451
  %v9773 = vunpack.c.h.b16 %v9451
  %v9774 = vunpack.c.l.b16 %v9452
  %v9775 = vunpack.c.h.b16 %v9452
  %v9776 = vunpack.c.l.b16 %v9453
  %v9777 = vunpack.c.h.b16 %v9453
  %v9778 = vunpack.c.l.b16 %v9454
  %v9779 = vunpack.c.h.b16 %v9454
  %v9780 = vunpack.c.l.b16 %v9455
  %v9781 = vunpack.c.h.b16 %v9455
  %v9782 = vunpack.c.l.b16 %v9456
  %v9783 = vunpack.c.h.b16 %v9456
  %v9784 = vunpack.c.l.b16 %v9457
  %v9785 = vunpack.c.h.b16 %v9457
  %v9786 = vunpack.c.l.b16 %v9458
  %v9787 = vunpack.c.h.b16 %v9458
  %v9788 = vunpack.c.l.b16 %v9459
  %v9789 = vunpack.c.h.b16 %v9459
  %v9790 = vunpack.c.l.b16 %v9460
  %v9791 = vunpack.c.h.b16 %v9460
  %v9792 = vunpack.c.l.b16 %v9461
  %v9793 = vunpack.c.h.b16 %v9461
  %v9794 = vunpack.c.l.b16 %v9462
  %v9795 = vunpack.c.h.b16 %v9462
  %v9796 = vunpack.c.l.b16 %v9463
  %v9797 = vunpack.c.h.b16 %v9463
  %v9798 = vunpack.c.l.b16 %v9464
  %v9799 = vunpack.c.h.b16 %v9464
  %v9800 = vunpack.c.l.b16 %v9465
  %v9801 = vunpack.c.h.b16 %v9465
  %v9802 = vunpack.c.l.b16 %v9466
  %v9803 = vunpack.c.h.b16 %v9466
  %v9804 = vunpack.c.l.b16 %v9467
  %v9805 = vunpack.c.h.b16 %v9467
  %v9806 = vunpack.c.l.b16 %v9468
  %v9807 = vunpack.c.h.b16 %v9468
  %v9808 = vunpack.c.l.b16 %v9469
  %v9809 = vunpack.c.h.b16 %v9469
  %v9810 = vunpack.c.l.b16 %v9470
  %v9811 = vunpack.c.h.b16 %v9470
  %v9812 = vunpack.c.l.b16 %v9471
  %v9813 = vunpack.c.h.b16 %v9471
  %v9814 = vunpack.c.l.b16 %v9472
  %v9815 = vunpack.c.h.b16 %v9472
  %v9816 = vunpack.c.l.b16 %v9473
  %v9817 = vunpack.c.h.b16 %v9473
  %v9818 = vunpack.c.l.b16 %v9474
  %v9819 = vunpack.c.h.b16 %v9474
  %v9820 = vunpack.c.l.b16 %v9475
  %v9821 = vunpack.c.h.b16 %v9475
  %v9822 = vunpack.c.l.b16 %v9476
  %v9823 = vunpack.c.h.b16 %v9476
  %v9824 = vunpack.c.l.b16 %v9477
  %v9825 = vunpack.c.h.b16 %v9477
  %v9826 = vunpack.c.l.b16 %v9478
  %v9827 = vunpack.c.h.b16 %v9478
  %v9828 = vunpack.c.l.b16 %v9479
  %v9829 = vunpack.c.h.b16 %v9479
  %v9830 = vunpack.c.l.b16 %v9480
  %v9831 = vunpack.c.h.b16 %v9480
  %v9832 = vunpack.c.l.b16 %v9481
  %v9833 = vunpack.c.h.b16 %v9481
  %v9834 = vunpack.c.l.b16 %v9482
  %v9835 = vunpack.c.h.b16 %v9482
  %v9836 = vunpack.c.l.b16 %v9483
  %v9837 = vunpack.c.h.b16 %v9483
  %v9838 = vunpack.c.l.b16 %v9484
  %v9839 = vunpack.c.h.b16 %v9484
  %v9840 = vunpack.c.l.b16 %v9485
  %v9841 = vunpack.c.h.b16 %v9485
  %v9842 = vunpack.c.l.b16 %v9486
  %v9843 = vunpack.c.h.b16 %v9486
  %v9844 = vunpack.c.l.b16 %v9487
  %v9845 = vunpack.c.h.b16 %v9487
  %v9846 = vunpack.c.l.b16 %v9488
  %v9847 = vunpack.c.h.b16 %v9488
  %v9848 = vunpack.c.l.b16 %v9489
  %v9849 = vunpack.c.h.b16 %v9489
  %v9850 = vunpack.c.l.b16 %v9490
  %v9851 = vunpack.c.h.b16 %v9490
  %v9852 = vunpack.c.l.b16 %v9491
  %v9853 = vunpack.c.h.b16 %v9491
  %v9854 = vunpack.c.l.b16 %v9492
  %v9855 = vunpack.c.h.b16 %v9492
  %v9856 = vunpack.c.l.b16 %v9493
  %v9857 = vunpack.c.h.b16 %v9493
  %v9858 = vunpack.c.l.b16 %v9494
  %v9859 = vunpack.c.h.b16 %v9494
  %v9860 = vunpack.c.l.b16 %v9495
  %v9861 = vunpack.c.h.b16 %v9495
  %v9862 = vunpack.c.l.b16 %v9496
  %v9863 = vunpack.c.h.b16 %v9496
  %v9864 = vunpack.c.l.b16 %v9497
  %v9865 = vunpack.c.h.b16 %v9497
  %v9866 = vunpack.c.l.b16 %v9498
  %v9867 = vunpack.c.h.b16 %v9498
  %v9868 = vunpack.c.l.b16 %v9499
  %v9869 = vunpack.c.h.b16 %v9499
  %v9870 = vunpack.c.l.b16 %v9500
  %v9871 = vunpack.c.h.b16 %v9500
  %v9872 = vunpack.c.l.b16 %v9501
  %v9873 = vunpack.c.h.b16 %v9501
  %v9874 = vunpack.c.l.b16 %v9502
  %v9875 = vunpack.c.h.b16 %v9502
  %v9876 = vunpack.c.l.b16 %v9503
  %v9877 = vunpack.c.h.b16 %v9503
  %v9878 = vunpack.c.l.b16 %v9504
  %v9879 = vunpack.c.h.b16 %v9504
  %v9880 = vunpack.c.l.b16 %v9505
  %v9881 = vunpack.c.h.b16 %v9505
  %v9882 = vunpack.c.l.b16 %v9506
  %v9883 = vunpack.c.h.b16 %v9506
  %v9884 = vunpack.c.l.b16 %v9507
  %v9885 = vunpack.c.h.b16 %v9507
  %v9886 = vunpack.c.l.b16 %v9508
  %v9887 = vunpack.c.h.b16 %v9508
  %v9888 = vunpack.c.l.b16 %v9509
  %v9889 = vunpack.c.h.b16 %v9509
  %v9890 = vunpack.c.l.b16 %v9510
  %v9891 = vunpack.c.h.b16 %v9510
  %v9892 = vunpack.c.l.b16 %v9511
  %v9893 = vunpack.c.h.b16 %v9511
  %v9894 = vunpack.c.l.b16 %v9512
  %v9895 = vunpack.c.h.b16 %v9512
  %v9896 = vunpack.c.l.b16 %v9513
  %v9897 = vunpack.c.h.b16 %v9513
  %v9898 = vpack.c.b16 %v9646, %v9642
  %v9899 = vpack.c.b16 %v9647, %v9643
  %v9900 = vpack.c.b16 %v9648, %v9644
  %v9901 = vpack.c.b16 %v9649, %v9645
  %v9902 = vpack.c.b16 %v9654, %v9650
  %v9903 = vpack.c.b16 %v9655, %v9651
  %v9904 = vpack.c.b16 %v9656, %v9652
  %v9905 = vpack.c.b16 %v9657, %v9653
  %v9906 = vpack.c.b16 %v9662, %v9658
  %v9907 = vpack.c.b16 %v9663, %v9659
  %v9908 = vpack.c.b16 %v9664, %v9660
  %v9909 = vpack.c.b16 %v9665, %v9661
  %v9910 = vpack.c.b16 %v9670, %v9666
  %v9911 = vpack.c.b16 %v9671, %v9667
  %v9912 = vpack.c.b16 %v9672, %v9668
  %v9913 = vpack.c.b16 %v9673, %v9669
  %v9914 = vpack.c.b16 %v9678, %v9674
  %v9915 = vpack.c.b16 %v9679, %v9675
  %v9916 = vpack.c.b16 %v9680, %v9676
  %v9917 = vpack.c.b16 %v9681, %v9677
  %v9918 = vpack.c.b16 %v9686, %v9682
  %v9919 = vpack.c.b16 %v9687, %v9683
  %v9920 = vpack.c.b16 %v9688, %v9684
  %v9921 = vpack.c.b16 %v9689, %v9685
  %v9922 = vpack.c.b16 %v9694, %v9690
  %v9923 = vpack.c.b16 %v9695, %v9691
  %v9924 = vpack.c.b16 %v9696, %v9692
  %v9925 = vpack.c.b16 %v9697, %v9693
  %v9926 = vpack.c.b16 %v9702, %v9698
  %v9927 = vpack.c.b16 %v9703, %v9699
  %v9928 = vpack.c.b16 %v9704, %v9700
  %v9929 = vpack.c.b16 %v9705, %v9701
  %v9930 = vpack.c.b16 %v9710, %v9706
  %v9931 = vpack.c.b16 %v9711, %v9707
  %v9932 = vpack.c.b16 %v9712, %v9708
  %v9933 = vpack.c.b16 %v9713, %v9709
  %v9934 = vpack.c.b16 %v9718, %v9714
  %v9935 = vpack.c.b16 %v9719, %v9715
  %v9936 = vpack.c.b16 %v9720, %v9716
  %v9937 = vpack.c.b16 %v9721, %v9717
  %v9938 = vpack.c.b16 %v9726, %v9722
  %v9939 = vpack.c.b16 %v9727, %v9723
  %v9940 = vpack.c.b16 %v9728, %v9724
  %v9941 = vpack.c.b16 %v9729, %v9725
  %v9942 = vpack.c.b16 %v9734, %v9730
  %v9943 = vpack.c.b16 %v9735, %v9731
  %v9944 = vpack.c.b16 %v9736, %v9732
  %v9945 = vpack.c.b16 %v9737, %v9733
  %v9946 = vpack.c.b16 %v9742, %v9738
  %v9947 = vpack.c.b16 %v9743, %v9739
  %v9948 = vpack.c.b16 %v9744, %v9740
  %v9949 = vpack.c.b16 %v9745, %v9741
  %v9950 = vpack.c.b16 %v9750, %v9746
  %v9951 = vpack.c.b16 %v9751, %v9747
  %v9952 = vpack.c.b16 %v9752, %v9748
  %v9953 = vpack.c.b16 %v9753, %v9749
  %v9954 = vpack.c.b16 %v9758, %v9754
  %v9955 = vpack.c.b16 %v9759, %v9755
  %v9956 = vpack.c.b16 %v9760, %v9756
  %v9957 = vpack.c.b16 %v9761, %v9757
  %v9958 = vpack.c.b16 %v9766, %v9762
  %v9959 = vpack.c.b16 %v9767, %v9763
  %v9960 = vpack.c.b16 %v9768, %v9764
  %v9961 = vpack.c.b16 %v9769, %v9765
  %v9962 = vpack.c.b16 %v9774, %v9770
  %v9963 = vpack.c.b16 %v9775, %v9771
  %v9964 = vpack.c.b16 %v9776, %v9772
  %v9965 = vpack.c.b16 %v9777, %v9773
  %v9966 = vpack.c.b16 %v9782, %v9778
  %v9967 = vpack.c.b16 %v9783, %v9779
  %v9968 = vpack.c.b16 %v9784, %v9780
  %v9969 = vpack.c.b16 %v9785, %v9781
  %v9970 = vpack.c.b16 %v9790, %v9786
  %v9971 = vpack.c.b16 %v9791, %v9787
  %v9972 = vpack.c.b16 %v9792, %v9788
  %v9973 = vpack.c.b16 %v9793, %v9789
  %v9974 = vpack.c.b16 %v9798, %v9794
  %v9975 = vpack.c.b16 %v9799, %v9795
  %v9976 = vpack.c.b16 %v9800, %v9796
  %v9977 = vpack.c.b16 %v9801, %v9797
  %v9978 = vpack.c.b16 %v9806, %v9802
  %v9979 = vpack.c.b16 %v9807, %v9803
  %v9980 = vpack.c.b16 %v9808, %v9804
  %v9981 = vpack.c.b16 %v9809, %v9805
  %v9982 = vpack.c.b16 %v9814, %v9810
  %v9983 = vpack.c.b16 %v9815, %v9811
  %v9984 = vpack.c.b16 %v9816, %v9812
  %v9985 = vpack.c.b16 %v9817, %v9813
  %v9986 = vpack.c.b16 %v9822, %v9818
  %v9987 = vpack.c.b16 %v9823, %v9819
  %v9988 = vpack.c.b16 %v9824, %v9820
  %v9989 = vpack.c.b16 %v9825, %v9821
  %v9990 = vpack.c.b16 %v9830, %v9826
  %v9991 = vpack.c.b16 %v9831, %v9827
  %v9992 = vpack.c.b16 %v9832, %v9828
  %v9993 = vpack.c.b16 %v9833, %v9829
  %v9994 = vpack.c.b16 %v9838, %v9834
  %v9995 = vpack.c.b16 %v9839, %v9835
  %v9996 = vpack.c.b16 %v9840, %v9836
  %v9997 = vpack.c.b16 %v9841, %v9837
  %v9998 = vpack.c.b16 %v9846, %v9842
  %v9999 = vpack.c.b16 %v9847, %v9843
  %v10000 = vpack.c.b16 %v9848, %v9844
  %v10001 = vpack.c.b16 %v9849, %v9845
  %v10002 = vpack.c.b16 %v9854, %v9850
  %v10003 = vpack.c.b16 %v9855, %v9851
  %v10004 = vpack.c.b16 %v9856, %v9852
  %v10005 = vpack.c.b16 %v9857, %v9853
  %v10006 = vpack.c.b16 %v9862, %v9858
  %v10007 = vpack.c.b16 %v9863, %v9859
  %v10008 = vpack.c.b16 %v9864, %v9860
  %v10009 = vpack.c.b16 %v9865, %v9861
  %v10010 = vpack.c.b16 %v9870, %v9866
  %v10011 = vpack.c.b16 %v9871, %v9867
  %v10012 = vpack.c.b16 %v9872, %v9868
  %v10013 = vpack.c.b16 %v9873, %v9869
  %v10014 = vpack.c.b16 %v9878, %v9874
  %v10015 = vpack.c.b16 %v9879, %v9875
  %v10016 = vpack.c.b16 %v9880, %v9876
  %v10017 = vpack.c.b16 %v9881, %v9877
  %v10018 = vpack.c.b16 %v9886, %v9882
  %v10019 = vpack.c.b16 %v9887, %v9883
  %v10020 = vpack.c.b16 %v9888, %v9884
  %v10021 = vpack.c.b16 %v9889, %v9885
  %v10022 = vpack.c.b16 %v9894, %v9890
  %v10023 = vpack.c.b16 %v9895, %v9891
  %v10024 = vpack.c.b16 %v9896, %v9892
  %v10025 = vpack.c.b16 %v9897, %v9893
  %10154 = vmatprep.subr.bf16.mxu0 %v9899
  %10155 = vmatpush1.bf16.msra.mxu0 %v9898
  %10156 = vmatprep.subr.bf16.mxu0 %v9903
  %10157 = vmatpush1.bf16.msra.mxu0 %v9902
  %10158 = vmatprep.subr.bf16.mxu0 %v9907
  %10159 = vmatpush1.bf16.msra.mxu0 %v9906
  %10160 = vmatprep.subr.bf16.mxu0 %v9911
  %10161 = vmatpush1.bf16.msra.mxu0 %v9910
  %10162 = vmatprep.subr.bf16.mxu0 %v9915
  %10163 = vmatpush1.bf16.msra.mxu0 %v9914
  %10164 = vmatprep.subr.bf16.mxu0 %v9919
  %10165 = vmatpush1.bf16.msra.mxu0 %v9918
  %10166 = vmatprep.subr.bf16.mxu0 %v9923
  %10167 = vmatpush1.bf16.msra.mxu0 %v9922
  %10168 = vmatprep.subr.bf16.mxu0 %v9927
  %10169 = vmatpush1.bf16.msra.mxu0 %v9926
  %10170 = vmatprep.subr.bf16.mxu0 %v9931
  %10171 = vmatpush1.bf16.msra.mxu0 %v9930
  %10172 = vmatprep.subr.bf16.mxu0 %v9935
  %10173 = vmatpush1.bf16.msra.mxu0 %v9934
  %10174 = vmatprep.subr.bf16.mxu0 %v9939
  %10175 = vmatpush1.bf16.msra.mxu0 %v9938
  %10176 = vmatprep.subr.bf16.mxu0 %v9943
  %10177 = vmatpush1.bf16.msra.mxu0 %v9942
  %10178 = vmatprep.subr.bf16.mxu0 %v9947
  %10179 = vmatpush1.bf16.msra.mxu0 %v9946
  %10180 = vmatprep.subr.bf16.mxu0 %v9951
  %10181 = vmatpush1.bf16.msra.mxu0 %v9950
  %10182 = vmatprep.subr.bf16.mxu0 %v9955
  %10183 = vmatpush1.bf16.msra.mxu0 %v9954
  %10184 = vmatprep.subr.bf16.mxu0 %v9959
  %10185 = vmatpush1.bf16.msra.mxu0 %v9958
  %10186 = vmatprep.mubr.bf16.mxu0 %v3058
  %10187 = vmatmul.mubr.bf16.gmra.mrb[0].mxu0 %v3057
  %v10188 = vpop.f32.mrb[0].mxu0
  %v10189 = vadd.f32 0.0, %v10188
  %v10190 = vpop.f32.mrb[0].mxu0
  %v10191 = vadd.f32 0.0, %v10190
  %v10192 = vpop.f32.mrb[0].mxu0
  %v10193 = vadd.f32 0.0, %v10192
  %v10194 = vpop.f32.mrb[0].mxu0
  %v10195 = vadd.f32 0.0, %v10194
  %10196 = vmatprep.mubr.bf16.mxu0 %v3062
  %10197 = vmatmul.mubr.bf16.gmra.mrb[0].mxu0 %v3061
  %v10198 = vpop.f32.mrb[0].mxu0
  %v10199 = vadd.f32 0.0, %v10198
  %v10200 = vpop.f32.mrb[0].mxu0
  %v10201 = vadd.f32 0.0, %v10200
  %v10202 = vpop.f32.mrb[0].mxu0
  %v10203 = vadd.f32 0.0, %v10202
  %v10204 = vpop.f32.mrb[0].mxu0
  %v10205 = vadd.f32 0.0, %v10204
  %10206 = vmatprep.mubr.bf16.mxu0 %v3066
  %10207 = vmatmul.mubr.bf16.gmra.mrb[0].mxu0 %v3065
  %v10208 = vpop.f32.mrb[0].mxu0
  %v10209 = vadd.f32 0.0, %v10208
  %v10210 = vpop.f32.mrb[0].mxu0
  %v10211 = vadd.f32 0.0, %v10210
  %v10212 = vpop.f32.mrb[0].mxu0
  %v10213 = vadd.f32 0.0, %v10212
  %v10214 = vpop.f32.mrb[0].mxu0
  %v10215 = vadd.f32 0.0, %v10214
  %10216 = vmatprep.mubr.bf16.mxu0 %v3070
  %10217 = vmatmul.mubr.bf16.gmra.mrb[0].mxu0 %v3069
  %v10218 = vpop.f32.mrb[0].mxu0
  %v10219 = vadd.f32 0.0, %v10218
  %v10220 = vpop.f32.mrb[0].mxu0
  %v10221 = vadd.f32 0.0, %v10220
  %v10222 = vpop.f32.mrb[0].mxu0
  %v10223 = vadd.f32 0.0, %v10222
  %v10224 = vpop.f32.mrb[0].mxu0
  %v10225 = vadd.f32 0.0, %v10224
  %10226 = vmatprep.mubr.bf16.mxu0 %v3074
  %10227 = vmatmul.mubr.bf16.gmra.mrb[0].mxu0 %v3073
  %v10228 = vpop.f32.mrb[0].mxu0
  %v10229 = vadd.f32 0.0, %v10228
  %v10230 = vpop.f32.mrb[0].mxu0
  %v10231 = vadd.f32 0.0, %v10230
  %v10232 = vpop.f32.mrb[0].mxu0
  %v10233 = vadd.f32 0.0, %v10232
  %v10234 = vpop.f32.mrb[0].mxu0
  %v10235 = vadd.f32 0.0, %v10234
  %10236 = vmatprep.mubr.bf16.mxu0 %v3078
  %10237 = vmatmul.mubr.bf16.gmra.mrb[0].mxu0 %v3077
  %v10238 = vpop.f32.mrb[0].mxu0
  %v10239 = vadd.f32 0.0, %v10238
  %v10240 = vpop.f32.mrb[0].mxu0
  %v10241 = vadd.f32 0.0, %v10240
  %v10242 = vpop.f32.mrb[0].mxu0
  %v10243 = vadd.f32 0.0, %v10242
  %v10244 = vpop.f32.mrb[0].mxu0
  %v10245 = vadd.f32 0.0, %v10244
  %10246 = vmatprep.mubr.bf16.mxu0 %v3082
  %10247 = vmatmul.mubr.bf16.gmra.mrb[0].mxu0 %v3081
  %v10248 = vpop.f32.mrb[0].mxu0
  %v10249 = vadd.f32 0.0, %v10248
  %v10250 = vpop.f32.mrb[0].mxu0
  %v10251 = vadd.f32 0.0, %v10250
  %v10252 = vpop.f32.mrb[0].mxu0
  %v10253 = vadd.f32 0.0, %v10252
  %v10254 = vpop.f32.mrb[0].mxu0
  %v10255 = vadd.f32 0.0, %v10254
  %10256 = vmatprep.mubr.bf16.mxu0 %v3086
  %10257 = vmatmul.mubr.bf16.gmra.mrb[0].mxu0 %v3085
  %v10258 = vpop.f32.mrb[0].mxu0
  %v10259 = vadd.f32 0.0, %v10258
  %v10260 = vpop.f32.mrb[0].mxu0
  %v10261 = vadd.f32 0.0, %v10260
  %v10262 = vpop.f32.mrb[0].mxu0
  %v10263 = vadd.f32 0.0, %v10262
  %v10264 = vpop.f32.mrb[0].mxu0
  %v10265 = vadd.f32 0.0, %v10264
  %10266 = vdwg.mxu0
  %10267 = vmatprep.subr.bf16.mxu0 %v9963
  %10268 = vmatpush1.bf16.msra.mxu0 %v9962
  %10269 = vmatprep.subr.bf16.mxu0 %v9967
  %10270 = vmatpush1.bf16.msra.mxu0 %v9966
  %10271 = vmatprep.subr.bf16.mxu0 %v9971
  %10272 = vmatpush1.bf16.msra.mxu0 %v9970
  %10273 = vmatprep.subr.bf16.mxu0 %v9975
  %10274 = vmatpush1.bf16.msra.mxu0 %v9974
  %10275 = vmatprep.subr.bf16.mxu0 %v9979
  %10276 = vmatpush1.bf16.msra.mxu0 %v9978
  %10277 = vmatprep.subr.bf16.mxu0 %v9983
  %10278 = vmatpush1.bf16.msra.mxu0 %v9982
  %10279 = vmatprep.subr.bf16.mxu0 %v9987
  %10280 = vmatpush1.bf16.msra.mxu0 %v9986
  %10281 = vmatprep.subr.bf16.mxu0 %v9991
  %10282 = vmatpush1.bf16.msra.mxu0 %v9990
  %10283 = vmatprep.subr.bf16.mxu0 %v9995
  %10284 = vmatpush1.bf16.msra.mxu0 %v9994
  %10285 = vmatprep.subr.bf16.mxu0 %v9999
  %10286 = vmatpush1.bf16.msra.mxu0 %v9998
  %10287 = vmatprep.subr.bf16.mxu0 %v10003
  %10288 = vmatpush1.bf16.msra.mxu0 %v10002
  %10289 = vmatprep.subr.bf16.mxu0 %v10007
  %10290 = vmatpush1.bf16.msra.mxu0 %v10006
  %10291 = vmatprep.subr.bf16.mxu0 %v10011
  %10292 = vmatpush1.bf16.msra.mxu0 %v10010
  %10293 = vmatprep.subr.bf16.mxu0 %v10015
  %10294 = vmatpush1.bf16.msra.mxu0 %v10014
  %10295 = vmatprep.subr.bf16.mxu0 %v10019
  %10296 = vmatpush1.bf16.msra.mxu0 %v10018
  %10297 = vmatprep.subr.bf16.mxu0 %v10023
  %10298 = vmatpush1.bf16.msra.mxu0 %v10022
  %10299 = vmatprep.mubr.bf16.mxu0 %v3060
  %10300 = vmatmul.mubr.bf16.gmra.mrb[0].mxu0 %v3059
  %v10301 = vpop.f32.mrb[0].mxu0
  %v10302 = vadd.f32 %v10189, %v10301
  %v10303 = vpop.f32.mrb[0].mxu0
  %v10304 = vadd.f32 %v10191, %v10303
  %v10305 = vpop.f32.mrb[0].mxu0
  %v10306 = vadd.f32 %v10193, %v10305
  %v10307 = vpop.f32.mrb[0].mxu0
  %v10308 = vadd.f32 %v10195, %v10307
  %10309 = vmatprep.mubr.bf16.mxu0 %v3064
  %10310 = vmatmul.mubr.bf16.gmra.mrb[0].mxu0 %v3063
  %v10311 = vpop.f32.mrb[0].mxu0
  %v10312 = vadd.f32 %v10199, %v10311
  %v10313 = vpop.f32.mrb[0].mxu0
  %v10314 = vadd.f32 %v10201, %v10313
  %v10315 = vpop.f32.mrb[0].mxu0
  %v10316 = vadd.f32 %v10203, %v10315
  %v10317 = vpop.f32.mrb[0].mxu0
  %v10318 = vadd.f32 %v10205, %v10317
  %10319 = vmatprep.mubr.bf16.mxu0 %v3068
  %10320 = vmatmul.mubr.bf16.gmra.mrb[0].mxu0 %v3067
  %v10321 = vpop.f32.mrb[0].mxu0
  %v10322 = vadd.f32 %v10209, %v10321
  %v10323 = vpop.f32.mrb[0].mxu0
  %v10324 = vadd.f32 %v10211, %v10323
  %v10325 = vpop.f32.mrb[0].mxu0
  %v10326 = vadd.f32 %v10213, %v10325
  %v10327 = vpop.f32.mrb[0].mxu0
  %v10328 = vadd.f32 %v10215, %v10327
  %10329 = vmatprep.mubr.bf16.mxu0 %v3072
  %10330 = vmatmul.mubr.bf16.gmra.mrb[0].mxu0 %v3071
  %v10331 = vpop.f32.mrb[0].mxu0
  %v10332 = vadd.f32 %v10219, %v10331
  %v10333 = vpop.f32.mrb[0].mxu0
  %v10334 = vadd.f32 %v10221, %v10333
  %v10335 = vpop.f32.mrb[0].mxu0
  %v10336 = vadd.f32 %v10223, %v10335
  %v10337 = vpop.f32.mrb[0].mxu0
  %v10338 = vadd.f32 %v10225, %v10337
  %10339 = vmatprep.mubr.bf16.mxu0 %v3076
  %10340 = vmatmul.mubr.bf16.gmra.mrb[0].mxu0 %v3075
  %v10341 = vpop.f32.mrb[0].mxu0
  %v10342 = vadd.f32 %v10229, %v10341
  %v10343 = vpop.f32.mrb[0].mxu0
  %v10344 = vadd.f32 %v10231, %v10343
  %v10345 = vpop.f32.mrb[0].mxu0
  %v10346 = vadd.f32 %v10233, %v10345
  %v10347 = vpop.f32.mrb[0].mxu0
  %v10348 = vadd.f32 %v10235, %v10347
  %10349 = vmatprep.mubr.bf16.mxu0 %v3080
  %10350 = vmatmul.mubr.bf16.gmra.mrb[0].mxu0 %v3079
  %v10351 = vpop.f32.mrb[0].mxu0
  %v10352 = vadd.f32 %v10239, %v10351
  %v10353 = vpop.f32.mrb[0].mxu0
  %v10354 = vadd.f32 %v10241, %v10353
  %v10355 = vpop.f32.mrb[0].mxu0
  %v10356 = vadd.f32 %v10243, %v10355
  %v10357 = vpop.f32.mrb[0].mxu0
  %v10358 = vadd.f32 %v10245, %v10357
  %10359 = vmatprep.mubr.bf16.mxu0 %v3084
  %10360 = vmatmul.mubr.bf16.gmra.mrb[0].mxu0 %v3083
  %v10361 = vpop.f32.mrb[0].mxu0
  %v10362 = vadd.f32 %v10249, %v10361
  %v10363 = vpop.f32.mrb[0].mxu0
  %v10364 = vadd.f32 %v10251, %v10363
  %v10365 = vpop.f32.mrb[0].mxu0
  %v10366 = vadd.f32 %v10253, %v10365
  %v10367 = vpop.f32.mrb[0].mxu0
  %v10368 = vadd.f32 %v10255, %v10367
  %10369 = vmatprep.mubr.bf16.mxu0 %v3088
  %10370 = vmatmul.mubr.bf16.gmra.mrb[0].mxu0 %v3087
  %v10371 = vpop.f32.mrb[0].mxu0
  %v10372 = vadd.f32 %v10259, %v10371
  %v10373 = vpop.f32.mrb[0].mxu0
  %v10374 = vadd.f32 %v10261, %v10373
  %v10375 = vpop.f32.mrb[0].mxu0
  %v10376 = vadd.f32 %v10263, %v10375
  %v10377 = vpop.f32.mrb[0].mxu0
  %v10378 = vadd.f32 %v10265, %v10377
  %10379 = vdwg.mxu0
  %10380 = vmatprep.subr.bf16.mxu0 %v9901
  %10381 = vmatpush1.bf16.msra.mxu0 %v9900
  %10382 = vmatprep.subr.bf16.mxu0 %v9905
  %10383 = vmatpush1.bf16.msra.mxu0 %v9904
  %10384 = vmatprep.subr.bf16.mxu0 %v9909
  %10385 = vmatpush1.bf16.msra.mxu0 %v9908
  %10386 = vmatprep.subr.bf16.mxu0 %v9913
  %10387 = vmatpush1.bf16.msra.mxu0 %v9912
  %10388 = vmatprep.subr.bf16.mxu0 %v9917
  %10389 = vmatpush1.bf16.msra.mxu0 %v9916
  %10390 = vmatprep.subr.bf16.mxu0 %v9921
  %10391 = vmatpush1.bf16.msra.mxu0 %v9920
  %10392 = vmatprep.subr.bf16.mxu0 %v9925
  %10393 = vmatpush1.bf16.msra.mxu0 %v9924
  %10394 = vmatprep.subr.bf16.mxu0 %v9929
  %10395 = vmatpush1.bf16.msra.mxu0 %v9928
  %10396 = vmatprep.subr.bf16.mxu0 %v9933
  %10397 = vmatpush1.bf16.msra.mxu0 %v9932
  %10398 = vmatprep.subr.bf16.mxu0 %v9937
  %10399 = vmatpush1.bf16.msra.mxu0 %v9936
  %10400 = vmatprep.subr.bf16.mxu0 %v9941
  %10401 = vmatpush1.bf16.msra.mxu0 %v9940
  %10402 = vmatprep.subr.bf16.mxu0 %v9945
  %10403 = vmatpush1.bf16.msra.mxu0 %v9944
  %10404 = vmatprep.subr.bf16.mxu0 %v9949
  %10405 = vmatpush1.bf16.msra.mxu0 %v9948
  %10406 = vmatprep.subr.bf16.mxu0 %v9953
  %10407 = vmatpush1.bf16.msra.mxu0 %v9952
  %10408 = vmatprep.subr.bf16.mxu0 %v9957
  %10409 = vmatpush1.bf16.msra.mxu0 %v9956
  %10410 = vmatprep.subr.bf16.mxu0 %v9961
  %10411 = vmatpush1.bf16.msra.mxu0 %v9960
  %10412 = vmatprep.mubr.bf16.mxu0 %v3058
  %10413 = vmatmul.mubr.bf16.gmra.mrb[0].mxu0 %v3057
  %v10414 = vpop.f32.mrb[0].mxu0
  %v10415 = vadd.f32 0.0, %v10414
  %v10416 = vpop.f32.mrb[0].mxu0
  %v10417 = vadd.f32 0.0, %v10416
  %v10418 = vpop.f32.mrb[0].mxu0
  %v10419 = vadd.f32 0.0, %v10418
  %v10420 = vpop.f32.mrb[0].mxu0
  %v10421 = vadd.f32 0.0, %v10420
  %10422 = vmatprep.mubr.bf16.mxu0 %v3062
  %10423 = vmatmul.mubr.bf16.gmra.mrb[0].mxu0 %v3061
  %v10424 = vpop.f32.mrb[0].mxu0
  %v10425 = vadd.f32 0.0, %v10424
  %v10426 = vpop.f32.mrb[0].mxu0
  %v10427 = vadd.f32 0.0, %v10426
  %v10428 = vpop.f32.mrb[0].mxu0
  %v10429 = vadd.f32 0.0, %v10428
  %v10430 = vpop.f32.mrb[0].mxu0
  %v10431 = vadd.f32 0.0, %v10430
  %10432 = vmatprep.mubr.bf16.mxu0 %v3066
  %10433 = vmatmul.mubr.bf16.gmra.mrb[0].mxu0 %v3065
  %v10434 = vpop.f32.mrb[0].mxu0
  %v10435 = vadd.f32 0.0, %v10434
  %v10436 = vpop.f32.mrb[0].mxu0
  %v10437 = vadd.f32 0.0, %v10436
  %v10438 = vpop.f32.mrb[0].mxu0
  %v10439 = vadd.f32 0.0, %v10438
  %v10440 = vpop.f32.mrb[0].mxu0
  %v10441 = vadd.f32 0.0, %v10440
  %10442 = vmatprep.mubr.bf16.mxu0 %v3070
  %10443 = vmatmul.mubr.bf16.gmra.mrb[0].mxu0 %v3069
  %v10444 = vpop.f32.mrb[0].mxu0
  %v10445 = vadd.f32 0.0, %v10444
  %v10446 = vpop.f32.mrb[0].mxu0
  %v10447 = vadd.f32 0.0, %v10446
  %v10448 = vpop.f32.mrb[0].mxu0
  %v10449 = vadd.f32 0.0, %v10448
  %v10450 = vpop.f32.mrb[0].mxu0
  %v10451 = vadd.f32 0.0, %v10450
  %10452 = vmatprep.mubr.bf16.mxu0 %v3074
  %10453 = vmatmul.mubr.bf16.gmra.mrb[0].mxu0 %v3073
  %v10454 = vpop.f32.mrb[0].mxu0
  %v10455 = vadd.f32 0.0, %v10454
  %v10456 = vpop.f32.mrb[0].mxu0
  %v10457 = vadd.f32 0.0, %v10456
  %v10458 = vpop.f32.mrb[0].mxu0
  %v10459 = vadd.f32 0.0, %v10458
  %v10460 = vpop.f32.mrb[0].mxu0
  %v10461 = vadd.f32 0.0, %v10460
  %10462 = vmatprep.mubr.bf16.mxu0 %v3078
  %10463 = vmatmul.mubr.bf16.gmra.mrb[0].mxu0 %v3077
  %v10464 = vpop.f32.mrb[0].mxu0
  %v10465 = vadd.f32 0.0, %v10464
  %v10466 = vpop.f32.mrb[0].mxu0
  %v10467 = vadd.f32 0.0, %v10466
  %v10468 = vpop.f32.mrb[0].mxu0
  %v10469 = vadd.f32 0.0, %v10468
  %v10470 = vpop.f32.mrb[0].mxu0
  %v10471 = vadd.f32 0.0, %v10470
  %10472 = vmatprep.mubr.bf16.mxu0 %v3082
  %10473 = vmatmul.mubr.bf16.gmra.mrb[0].mxu0 %v3081
  %v10474 = vpop.f32.mrb[0].mxu0
  %v10475 = vadd.f32 0.0, %v10474
  %v10476 = vpop.f32.mrb[0].mxu0
  %v10477 = vadd.f32 0.0, %v10476
  %v10478 = vpop.f32.mrb[0].mxu0
  %v10479 = vadd.f32 0.0, %v10478
  %v10480 = vpop.f32.mrb[0].mxu0
  %v10481 = vadd.f32 0.0, %v10480
  %10482 = vmatprep.mubr.bf16.mxu0 %v3086
  %10483 = vmatmul.mubr.bf16.gmra.mrb[0].mxu0 %v3085
  %v10484 = vpop.f32.mrb[0].mxu0
  %v10485 = vadd.f32 0.0, %v10484
  %v10486 = vpop.f32.mrb[0].mxu0
  %v10487 = vadd.f32 0.0, %v10486
  %v10488 = vpop.f32.mrb[0].mxu0
  %v10489 = vadd.f32 0.0, %v10488
  %v10490 = vpop.f32.mrb[0].mxu0
  %v10491 = vadd.f32 0.0, %v10490
  %10492 = vdwg.mxu0
  %10493 = vmatprep.subr.bf16.mxu0 %v9965
  %10494 = vmatpush1.bf16.msra.mxu0 %v9964
  %10495 = vmatprep.subr.bf16.mxu0 %v9969
  %10496 = vmatpush1.bf16.msra.mxu0 %v9968
  %10497 = vmatprep.subr.bf16.mxu0 %v9973
  %10498 = vmatpush1.bf16.msra.mxu0 %v9972
  %10499 = vmatprep.subr.bf16.mxu0 %v9977
  %10500 = vmatpush1.bf16.msra.mxu0 %v9976
  %10501 = vmatprep.subr.bf16.mxu0 %v9981
  %10502 = vmatpush1.bf16.msra.mxu0 %v9980
  %10503 = vmatprep.subr.bf16.mxu0 %v9985
  %10504 = vmatpush1.bf16.msra.mxu0 %v9984
  %10505 = vmatprep.subr.bf16.mxu0 %v9989
  %10506 = vmatpush1.bf16.msra.mxu0 %v9988
  %10507 = vmatprep.subr.bf16.mxu0 %v9993
  %10508 = vmatpush1.bf16.msra.mxu0 %v9992
  %10509 = vmatprep.subr.bf16.mxu0 %v9997
  %10510 = vmatpush1.bf16.msra.mxu0 %v9996
  %10511 = vmatprep.subr.bf16.mxu0 %v10001
  %10512 = vmatpush1.bf16.msra.mxu0 %v10000
  %10513 = vmatprep.subr.bf16.mxu0 %v10005
  %10514 = vmatpush1.bf16.msra.mxu0 %v10004
  %10515 = vmatprep.subr.bf16.mxu0 %v10009
  %10516 = vmatpush1.bf16.msra.mxu0 %v10008
  %10517 = vmatprep.subr.bf16.mxu0 %v10013
  %10518 = vmatpush1.bf16.msra.mxu0 %v10012
  %10519 = vmatprep.subr.bf16.mxu0 %v10017
  %10520 = vmatpush1.bf16.msra.mxu0 %v10016
  %10521 = vmatprep.subr.bf16.mxu0 %v10021
  %10522 = vmatpush1.bf16.msra.mxu0 %v10020
  %10523 = vmatprep.subr.bf16.mxu0 %v10025
  %10524 = vmatpush1.bf16.msra.mxu0 %v10024
  %10525 = vmatprep.mubr.bf16.mxu0 %v3060
  %10526 = vmatmul.mubr.bf16.gmra.mrb[0].mxu0 %v3059
  %v10527 = vpop.f32.mrb[0].mxu0
  %v10528 = vadd.f32 %v10415, %v10527
  %v10529 = vpop.f32.mrb[0].mxu0
  %v10530 = vadd.f32 %v10417, %v10529
  %v10531 = vpop.f32.mrb[0].mxu0
  %v10532 = vadd.f32 %v10419, %v10531
  %v10533 = vpop.f32.mrb[0].mxu0
  %v10534 = vadd.f32 %v10421, %v10533
  %10535 = vmatprep.mubr.bf16.mxu0 %v3064
  %10536 = vmatmul.mubr.bf16.gmra.mrb[0].mxu0 %v3063
  %v10537 = vpop.f32.mrb[0].mxu0
  %v10538 = vadd.f32 %v10425, %v10537
  %v10539 = vpop.f32.mrb[0].mxu0
  %v10540 = vadd.f32 %v10427, %v10539
  %v10541 = vpop.f32.mrb[0].mxu0
  %v10542 = vadd.f32 %v10429, %v10541
  %v10543 = vpop.f32.mrb[0].mxu0
  %v10544 = vadd.f32 %v10431, %v10543
  %10545 = vmatprep.mubr.bf16.mxu0 %v3068
  %10546 = vmatmul.mubr.bf16.gmra.mrb[0].mxu0 %v3067
  %v10547 = vpop.f32.mrb[0].mxu0
  %v10548 = vadd.f32 %v10435, %v10547
  %v10549 = vpop.f32.mrb[0].mxu0
  %v10550 = vadd.f32 %v10437, %v10549
  %v10551 = vpop.f32.mrb[0].mxu0
  %v10552 = vadd.f32 %v10439, %v10551
  %v10553 = vpop.f32.mrb[0].mxu0
  %v10554 = vadd.f32 %v10441, %v10553
  %10555 = vmatprep.mubr.bf16.mxu0 %v3072
  %10556 = vmatmul.mubr.bf16.gmra.mrb[0].mxu0 %v3071
  %v10557 = vpop.f32.mrb[0].mxu0
  %v10558 = vadd.f32 %v10445, %v10557
  %v10559 = vpop.f32.mrb[0].mxu0
  %v10560 = vadd.f32 %v10447, %v10559
  %v10561 = vpop.f32.mrb[0].mxu0
  %v10562 = vadd.f32 %v10449, %v10561
  %v10563 = vpop.f32.mrb[0].mxu0
  %v10564 = vadd.f32 %v10451, %v10563
  %10565 = vmatprep.mubr.bf16.mxu0 %v3076
  %10566 = vmatmul.mubr.bf16.gmra.mrb[0].mxu0 %v3075
  %v10567 = vpop.f32.mrb[0].mxu0
  %v10568 = vadd.f32 %v10455, %v10567
  %v10569 = vpop.f32.mrb[0].mxu0
  %v10570 = vadd.f32 %v10457, %v10569
  %v10571 = vpop.f32.mrb[0].mxu0
  %v10572 = vadd.f32 %v10459, %v10571
  %v10573 = vpop.f32.mrb[0].mxu0
  %v10574 = vadd.f32 %v10461, %v10573
  %10575 = vmatprep.mubr.bf16.mxu0 %v3080
  %10576 = vmatmul.mubr.bf16.gmra.mrb[0].mxu0 %v3079
  %v10577 = vpop.f32.mrb[0].mxu0
  %v10578 = vadd.f32 %v10465, %v10577
  %v10579 = vpop.f32.mrb[0].mxu0
  %v10580 = vadd.f32 %v10467, %v10579
  %v10581 = vpop.f32.mrb[0].mxu0
  %v10582 = vadd.f32 %v10469, %v10581
  %v10583 = vpop.f32.mrb[0].mxu0
  %v10584 = vadd.f32 %v10471, %v10583
  %10585 = vmatprep.mubr.bf16.mxu0 %v3084
  %10586 = vmatmul.mubr.bf16.gmra.mrb[0].mxu0 %v3083
  %v10587 = vpop.f32.mrb[0].mxu0
  %v10588 = vadd.f32 %v10475, %v10587
  %v10589 = vpop.f32.mrb[0].mxu0
  %v10590 = vadd.f32 %v10477, %v10589
  %v10591 = vpop.f32.mrb[0].mxu0
  %v10592 = vadd.f32 %v10479, %v10591
  %v10593 = vpop.f32.mrb[0].mxu0
  %v10594 = vadd.f32 %v10481, %v10593
  %10595 = vmatprep.mubr.bf16.mxu0 %v3088
  %10596 = vmatmul.mubr.bf16.gmra.mrb[0].mxu0 %v3087
  %v10597 = vpop.f32.mrb[0].mxu0
  %v10598 = vadd.f32 %v10485, %v10597
  %v10599 = vpop.f32.mrb[0].mxu0
  %v10600 = vadd.f32 %v10487, %v10599
  %v10601 = vpop.f32.mrb[0].mxu0
  %v10602 = vadd.f32 %v10489, %v10601
  %v10603 = vpop.f32.mrb[0].mxu0
  %v10604 = vadd.f32 %v10491, %v10603
  %10605 = vdwg.mxu0
  %v10606 = vadd.f32 %v9321, %v10302
  %v10607 = vadd.f32 %v9322, %v10304
  %v10608 = vadd.f32 %v9323, %v10528
  %v10609 = vadd.f32 %v9324, %v10530
  %v10610 = vadd.f32 %v9325, %v10306
  %v10611 = vadd.f32 %v9326, %v10308
  %v10612 = vadd.f32 %v9327, %v10532
  %v10613 = vadd.f32 %v9328, %v10534
  %v10614 = vadd.f32 %v9329, %v10312
  %v10615 = vadd.f32 %v9330, %v10314
  %v10616 = vadd.f32 %v9331, %v10538
  %v10617 = vadd.f32 %v9332, %v10540
  %v10618 = vadd.f32 %v9333, %v10316
  %v10619 = vadd.f32 %v9334, %v10318
  %v10620 = vadd.f32 %v9335, %v10542
  %v10621 = vadd.f32 %v9336, %v10544
  %v10622 = vadd.f32 %v9337, %v10322
  %v10623 = vadd.f32 %v9338, %v10324
  %v10624 = vadd.f32 %v9339, %v10548
  %v10625 = vadd.f32 %v9340, %v10550
  %v10626 = vadd.f32 %v9341, %v10326
  %v10627 = vadd.f32 %v9342, %v10328
  %v10628 = vadd.f32 %v9343, %v10552
  %v10629 = vadd.f32 %v9344, %v10554
  %v10630 = vadd.f32 %v9345, %v10332
  %v10631 = vadd.f32 %v9346, %v10334
  %v10632 = vadd.f32 %v9347, %v10558
  %v10633 = vadd.f32 %v9348, %v10560
  %v10634 = vadd.f32 %v9349, %v10336
  %v10635 = vadd.f32 %v9350, %v10338
  %v10636 = vadd.f32 %v9351, %v10562
  %v10637 = vadd.f32 %v9352, %v10564
  %v10638 = vadd.f32 %v9353, %v10342
  %v10639 = vadd.f32 %v9354, %v10344
  %v10640 = vadd.f32 %v9355, %v10568
  %v10641 = vadd.f32 %v9356, %v10570
  %v10642 = vadd.f32 %v9357, %v10346
  %v10643 = vadd.f32 %v9358, %v10348
  %v10644 = vadd.f32 %v9359, %v10572
  %v10645 = vadd.f32 %v9360, %v10574
  %v10646 = vadd.f32 %v9361, %v10352
  %v10647 = vadd.f32 %v9362, %v10354
  %v10648 = vadd.f32 %v9363, %v10578
  %v10649 = vadd.f32 %v9364, %v10580
  %v10650 = vadd.f32 %v9365, %v10356
  %v10651 = vadd.f32 %v9366, %v10358
  %v10652 = vadd.f32 %v9367, %v10582
  %v10653 = vadd.f32 %v9368, %v10584
  %v10654 = vadd.f32 %v9369, %v10362
  %v10655 = vadd.f32 %v9370, %v10364
  %v10656 = vadd.f32 %v9371, %v10588
  %v10657 = vadd.f32 %v9372, %v10590
  %v10658 = vadd.f32 %v9373, %v10366
  %v10659 = vadd.f32 %v9374, %v10368
  %v10660 = vadd.f32 %v9375, %v10592
  %v10661 = vadd.f32 %v9376, %v10594
  %v10662 = vadd.f32 %v9377, %v10372
  %v10663 = vadd.f32 %v9378, %v10374
  %v10664 = vadd.f32 %v9379, %v10598
  %v10665 = vadd.f32 %v9380, %v10600
  %v10666 = vadd.f32 %v9381, %v10376
  %v10667 = vadd.f32 %v9382, %v10378
  %v10668 = vadd.f32 %v9383, %v10602
  %v10669 = vadd.f32 %v9384, %v10604
  %v10670 = vld [vmem:[%s5] sm:$0xf]
  %v10672 = vlaneseq
  %v10673 = vshrl.u32 %v10672, 7
  %v10674 = vsub.s32 0, %v10673
  %v10675 = vrot.slane %v10670, %v10674
  %v10676 = vlaneseq
  %v10677 = vshrl.u32 %v10676, 7
  %v10678 = vsub.s32 1, %v10677
  %v10679 = vrot.slane %v10670, %v10678
  %v10680 = vlaneseq
  %v10681 = vshrl.u32 %v10680, 7
  %v10682 = vsub.s32 2, %v10681
  %v10683 = vrot.slane %v10670, %v10682
  %v10684 = vlaneseq
  %v10685 = vshrl.u32 %v10684, 7
  %v10686 = vsub.s32 3, %v10685
  %v10687 = vrot.slane %v10670, %v10686
  %v10692 = vadd.f32 %v10606, %v10675
  %v10693 = vadd.f32 %v10607, %v10679
  %v10694 = vadd.f32 %v10608, %v10683
  %v10695 = vadd.f32 %v10609, %v10687
  %v10696 = vadd.f32 %v10610, %v10675
  %v10697 = vadd.f32 %v10611, %v10679
  %v10698 = vadd.f32 %v10612, %v10683
  %v10699 = vadd.f32 %v10613, %v10687
  %v10700 = vadd.f32 %v10614, %v10675
  %v10701 = vadd.f32 %v10615, %v10679
  %v10702 = vadd.f32 %v10616, %v10683
  %v10703 = vadd.f32 %v10617, %v10687
  %v10704 = vadd.f32 %v10618, %v10675
  %v10705 = vadd.f32 %v10619, %v10679
  %v10706 = vadd.f32 %v10620, %v10683
  %v10707 = vadd.f32 %v10621, %v10687
  %v10708 = vadd.f32 %v10622, %v10675
  %v10709 = vadd.f32 %v10623, %v10679
  %v10710 = vadd.f32 %v10624, %v10683
  %v10711 = vadd.f32 %v10625, %v10687
  %v10712 = vadd.f32 %v10626, %v10675
  %v10713 = vadd.f32 %v10627, %v10679
  %v10714 = vadd.f32 %v10628, %v10683
  %v10715 = vadd.f32 %v10629, %v10687
  %v10716 = vadd.f32 %v10630, %v10675
  %v10717 = vadd.f32 %v10631, %v10679
  %v10718 = vadd.f32 %v10632, %v10683
  %v10719 = vadd.f32 %v10633, %v10687
  %v10720 = vadd.f32 %v10634, %v10675
  %v10721 = vadd.f32 %v10635, %v10679
  %v10722 = vadd.f32 %v10636, %v10683
  %v10723 = vadd.f32 %v10637, %v10687
  %v10724 = vadd.f32 %v10638, %v10675
  %v10725 = vadd.f32 %v10639, %v10679
  %v10726 = vadd.f32 %v10640, %v10683
  %v10727 = vadd.f32 %v10641, %v10687
  %v10728 = vadd.f32 %v10642, %v10675
  %v10729 = vadd.f32 %v10643, %v10679
  %v10730 = vadd.f32 %v10644, %v10683
  %v10731 = vadd.f32 %v10645, %v10687
  %v10732 = vadd.f32 %v10646, %v10675
  %v10733 = vadd.f32 %v10647, %v10679
  %v10734 = vadd.f32 %v10648, %v10683
  %v10735 = vadd.f32 %v10649, %v10687
  %v10736 = vadd.f32 %v10650, %v10675
  %v10737 = vadd.f32 %v10651, %v10679
  %v10738 = vadd.f32 %v10652, %v10683
  %v10739 = vadd.f32 %v10653, %v10687
  %v10740 = vadd.f32 %v10654, %v10675
  %v10741 = vadd.f32 %v10655, %v10679
  %v10742 = vadd.f32 %v10656, %v10683
  %v10743 = vadd.f32 %v10657, %v10687
  %v10744 = vadd.f32 %v10658, %v10675
  %v10745 = vadd.f32 %v10659, %v10679
  %v10746 = vadd.f32 %v10660, %v10683
  %v10747 = vadd.f32 %v10661, %v10687
  %v10748 = vadd.f32 %v10662, %v10675
  %v10749 = vadd.f32 %v10663, %v10679
  %v10750 = vadd.f32 %v10664, %v10683
  %v10751 = vadd.f32 %v10665, %v10687
  %v10752 = vadd.f32 %v10666, %v10675
  %v10753 = vadd.f32 %v10667, %v10679
  %v10754 = vadd.f32 %v10668, %v10683
  %v10755 = vadd.f32 %v10669, %v10687
  %v10756 = vtanh.pop %v10692
  %v10757 = vtanh.pop %v10693
  %v10758 = vtanh.pop %v10694
  %v10759 = vtanh.pop %v10695
  %v10760 = vtanh.pop %v10696
  %v10761 = vtanh.pop %v10697
  %v10762 = vtanh.pop %v10698
  %v10763 = vtanh.pop %v10699
  %v10764 = vtanh.pop %v10700
  %v10765 = vtanh.pop %v10701
  %v10766 = vtanh.pop %v10702
  %v10767 = vtanh.pop %v10703
  %v10768 = vtanh.pop %v10704
  %v10769 = vtanh.pop %v10705
  %v10770 = vtanh.pop %v10706
  %v10771 = vtanh.pop %v10707
  %v10772 = vtanh.pop %v10708
  %v10773 = vtanh.pop %v10709
  %v10774 = vtanh.pop %v10710
  %v10775 = vtanh.pop %v10711
  %v10776 = vtanh.pop %v10712
  %v10777 = vtanh.pop %v10713
  %v10778 = vtanh.pop %v10714
  %v10779 = vtanh.pop %v10715
  %v10780 = vtanh.pop %v10716
  %v10781 = vtanh.pop %v10717
  %v10782 = vtanh.pop %v10718
  %v10783 = vtanh.pop %v10719
  %v10784 = vtanh.pop %v10720
  %v10785 = vtanh.pop %v10721
  %v10786 = vtanh.pop %v10722
  %v10787 = vtanh.pop %v10723
  %v10788 = vtanh.pop %v10724
  %v10789 = vtanh.pop %v10725
  %v10790 = vtanh.pop %v10726
  %v10791 = vtanh.pop %v10727
  %v10792 = vtanh.pop %v10728
  %v10793 = vtanh.pop %v10729
  %v10794 = vtanh.pop %v10730
  %v10795 = vtanh.pop %v10731
  %v10796 = vtanh.pop %v10732
  %v10797 = vtanh.pop %v10733
  %v10798 = vtanh.pop %v10734
  %v10799 = vtanh.pop %v10735
  %v10800 = vtanh.pop %v10736
  %v10801 = vtanh.pop %v10737
  %v10802 = vtanh.pop %v10738
  %v10803 = vtanh.pop %v10739
  %v10804 = vtanh.pop %v10740
  %v10805 = vtanh.pop %v10741
  %v10806 = vtanh.pop %v10742
  %v10807 = vtanh.pop %v10743
  %v10808 = vtanh.pop %v10744
  %v10809 = vtanh.pop %v10745
  %v10810 = vtanh.pop %v10746
  %v10811 = vtanh.pop %v10747
  %v10812 = vtanh.pop %v10748
  %v10813 = vtanh.pop %v10749
  %v10814 = vtanh.pop %v10750
  %v10815 = vtanh.pop %v10751
  %v10816 = vtanh.pop %v10752
  %v10817 = vtanh.pop %v10753
  %v10818 = vtanh.pop %v10754
  %v10819 = vtanh.pop %v10755
  %v10820 = vpack.c.bf16 %v10760, %v10756
  %v10821 = vpack.c.bf16 %v10761, %v10757
  %v10822 = vpack.c.bf16 %v10762, %v10758
  %v10823 = vpack.c.bf16 %v10763, %v10759
  %v10824 = vpack.c.bf16 %v10768, %v10764
  %v10825 = vpack.c.bf16 %v10769, %v10765
  %v10826 = vpack.c.bf16 %v10770, %v10766
  %v10827 = vpack.c.bf16 %v10771, %v10767
  %v10828 = vpack.c.bf16 %v10776, %v10772
  %v10829 = vpack.c.bf16 %v10777, %v10773
  %v10830 = vpack.c.bf16 %v10778, %v10774
  %v10831 = vpack.c.bf16 %v10779, %v10775
  %v10832 = vpack.c.bf16 %v10784, %v10780
  %v10833 = vpack.c.bf16 %v10785, %v10781
  %v10834 = vpack.c.bf16 %v10786, %v10782
  %v10835 = vpack.c.bf16 %v10787, %v10783
  %v10836 = vpack.c.bf16 %v10792, %v10788
  %v10837 = vpack.c.bf16 %v10793, %v10789
  %v10838 = vpack.c.bf16 %v10794, %v10790
  %v10839 = vpack.c.bf16 %v10795, %v10791
  %v10840 = vpack.c.bf16 %v10800, %v10796
  %v10841 = vpack.c.bf16 %v10801, %v10797
  %v10842 = vpack.c.bf16 %v10802, %v10798
  %v10843 = vpack.c.bf16 %v10803, %v10799
  %v10844 = vpack.c.bf16 %v10808, %v10804
  %v10845 = vpack.c.bf16 %v10809, %v10805
  %v10846 = vpack.c.bf16 %v10810, %v10806
  %v10847 = vpack.c.bf16 %v10811, %v10807
  %v10848 = vpack.c.bf16 %v10816, %v10812
  %v10849 = vpack.c.bf16 %v10817, %v10813
  %v10850 = vpack.c.bf16 %v10818, %v10814
  %v10851 = vpack.c.bf16 %v10819, %v10815
  %v10852 = vld [vmem:[%s3] sm:$0xf]
  %v10853 = vld [vmem:[%s3 + $0x4] sm:$0xf]
  %v10854 = vld [vmem:[%s3 + $0x8] sm:$0xf]
  %v10855 = vld [vmem:[%s3 + $0xc] sm:$0xf]
  %v10856 = vld [vmem:[%s3 + $0x10] sm:$0xf]
  %v10857 = vld [vmem:[%s3 + $0x14] sm:$0xf]
  %v10858 = vld [vmem:[%s3 + $0x18] sm:$0xf]
  %v10859 = vld [vmem:[%s3 + $0x1c] sm:$0xf]
  %v10860 = vld [vmem:[%s3 + $0x20] sm:$0xf]
  %v10861 = vld [vmem:[%s3 + $0x24] sm:$0xf]
  %v10862 = vld [vmem:[%s3 + $0x28] sm:$0xf]
  %v10863 = vld [vmem:[%s3 + $0x2c] sm:$0xf]
  %v10864 = vld [vmem:[%s3 + $0x30] sm:$0xf]
  %v10865 = vld [vmem:[%s3 + $0x34] sm:$0xf]
  %v10866 = vld [vmem:[%s3 + $0x38] sm:$0xf]
  %v10867 = vld [vmem:[%s3 + $0x3c] sm:$0xf]
  %v10868 = vld [vmem:[%s3 + $0x40] sm:$0xf]
  %v10869 = vld [vmem:[%s3 + $0x44] sm:$0xf]
  %v10870 = vld [vmem:[%s3 + $0x48] sm:$0xf]
  %v10871 = vld [vmem:[%s3 + $0x4c] sm:$0xf]
  %v10872 = vld [vmem:[%s3 + $0x50] sm:$0xf]
  %v10873 = vld [vmem:[%s3 + $0x54] sm:$0xf]
  %v10874 = vld [vmem:[%s3 + $0x58] sm:$0xf]
  %v10875 = vld [vmem:[%s3 + $0x5c] sm:$0xf]
  %v10876 = vld [vmem:[%s3 + $0x60] sm:$0xf]
  %v10877 = vld [vmem:[%s3 + $0x64] sm:$0xf]
  %v10878 = vld [vmem:[%s3 + $0x68] sm:$0xf]
  %v10879 = vld [vmem:[%s3 + $0x6c] sm:$0xf]
  %v10880 = vld [vmem:[%s3 + $0x70] sm:$0xf]
  %v10881 = vld [vmem:[%s3 + $0x74] sm:$0xf]
  %v10882 = vld [vmem:[%s3 + $0x78] sm:$0xf]
  %v10883 = vld [vmem:[%s3 + $0x7c] sm:$0xf]
  %v10884 = vld [vmem:[%s3 + $0x80] sm:$0xf]
  %v10885 = vld [vmem:[%s3 + $0x84] sm:$0xf]
  %v10886 = vld [vmem:[%s3 + $0x88] sm:$0xf]
  %v10887 = vld [vmem:[%s3 + $0x8c] sm:$0xf]
  %v10888 = vld [vmem:[%s3 + $0x90] sm:$0xf]
  %v10889 = vld [vmem:[%s3 + $0x94] sm:$0xf]
  %v10890 = vld [vmem:[%s3 + $0x98] sm:$0xf]
  %v10891 = vld [vmem:[%s3 + $0x9c] sm:$0xf]
  %v10892 = vld [vmem:[%s3 + $0xa0] sm:$0xf]
  %v10893 = vld [vmem:[%s3 + $0xa4] sm:$0xf]
  %v10894 = vld [vmem:[%s3 + $0xa8] sm:$0xf]
  %v10895 = vld [vmem:[%s3 + $0xac] sm:$0xf]
  %v10896 = vld [vmem:[%s3 + $0xb0] sm:$0xf]
  %v10897 = vld [vmem:[%s3 + $0xb4] sm:$0xf]
  %v10898 = vld [vmem:[%s3 + $0xb8] sm:$0xf]
  %v10899 = vld [vmem:[%s3 + $0xbc] sm:$0xf]
  %v10900 = vld [vmem:[%s3 + $0xc0] sm:$0xf]
  %v10901 = vld [vmem:[%s3 + $0xc4] sm:$0xf]
  %v10902 = vld [vmem:[%s3 + $0xc8] sm:$0xf]
  %v10903 = vld [vmem:[%s3 + $0xcc] sm:$0xf]
  %v10904 = vld [vmem:[%s3 + $0xd0] sm:$0xf]
  %v10905 = vld [vmem:[%s3 + $0xd4] sm:$0xf]
  %v10906 = vld [vmem:[%s3 + $0xd8] sm:$0xf]
  %v10907 = vld [vmem:[%s3 + $0xdc] sm:$0xf]
  %v10908 = vld [vmem:[%s3 + $0xe0] sm:$0xf]
  %v10909 = vld [vmem:[%s3 + $0xe4] sm:$0xf]
  %v10910 = vld [vmem:[%s3 + $0xe8] sm:$0xf]
  %v10911 = vld [vmem:[%s3 + $0xec] sm:$0xf]
  %v10912 = vld [vmem:[%s3 + $0xf0] sm:$0xf]
  %v10913 = vld [vmem:[%s3 + $0xf4] sm:$0xf]
  %v10914 = vld [vmem:[%s3 + $0xf8] sm:$0xf]
  %v10915 = vld [vmem:[%s3 + $0xfc] sm:$0xf]
  %v10916 = vld [vmem:[%s3 + $0x100] sm:$0xf]
  %v10917 = vld [vmem:[%s3 + $0x104] sm:$0xf]
  %v10918 = vld [vmem:[%s3 + $0x108] sm:$0xf]
  %v10919 = vld [vmem:[%s3 + $0x10c] sm:$0xf]
  %v10920 = vld [vmem:[%s3 + $0x110] sm:$0xf]
  %v10921 = vld [vmem:[%s3 + $0x114] sm:$0xf]
  %v10922 = vld [vmem:[%s3 + $0x118] sm:$0xf]
  %v10923 = vld [vmem:[%s3 + $0x11c] sm:$0xf]
  %v10924 = vld [vmem:[%s3 + $0x120] sm:$0xf]
  %v10925 = vld [vmem:[%s3 + $0x124] sm:$0xf]
  %v10926 = vld [vmem:[%s3 + $0x128] sm:$0xf]
  %v10927 = vld [vmem:[%s3 + $0x12c] sm:$0xf]
  %v10928 = vld [vmem:[%s3 + $0x130] sm:$0xf]
  %v10929 = vld [vmem:[%s3 + $0x134] sm:$0xf]
  %v10930 = vld [vmem:[%s3 + $0x138] sm:$0xf]
  %v10931 = vld [vmem:[%s3 + $0x13c] sm:$0xf]
  %v10932 = vld [vmem:[%s3 + $0x140] sm:$0xf]
  %v10933 = vld [vmem:[%s3 + $0x144] sm:$0xf]
  %v10934 = vld [vmem:[%s3 + $0x148] sm:$0xf]
  %v10935 = vld [vmem:[%s3 + $0x14c] sm:$0xf]
  %v10936 = vld [vmem:[%s3 + $0x150] sm:$0xf]
  %v10937 = vld [vmem:[%s3 + $0x154] sm:$0xf]
  %v10938 = vld [vmem:[%s3 + $0x158] sm:$0xf]
  %v10939 = vld [vmem:[%s3 + $0x15c] sm:$0xf]
  %v10940 = vld [vmem:[%s3 + $0x160] sm:$0xf]
  %v10941 = vld [vmem:[%s3 + $0x164] sm:$0xf]
  %v10942 = vld [vmem:[%s3 + $0x168] sm:$0xf]
  %v10943 = vld [vmem:[%s3 + $0x16c] sm:$0xf]
  %v10944 = vld [vmem:[%s3 + $0x170] sm:$0xf]
  %v10945 = vld [vmem:[%s3 + $0x174] sm:$0xf]
  %v10946 = vld [vmem:[%s3 + $0x178] sm:$0xf]
  %v10947 = vld [vmem:[%s3 + $0x17c] sm:$0xf]
  %v10948 = vld [vmem:[%s3 + $0x180] sm:$0xf]
  %v10949 = vld [vmem:[%s3 + $0x184] sm:$0xf]
  %v10950 = vld [vmem:[%s3 + $0x188] sm:$0xf]
  %v10951 = vld [vmem:[%s3 + $0x18c] sm:$0xf]
  %v10952 = vld [vmem:[%s3 + $0x190] sm:$0xf]
  %v10953 = vld [vmem:[%s3 + $0x194] sm:$0xf]
  %v10954 = vld [vmem:[%s3 + $0x198] sm:$0xf]
  %v10955 = vld [vmem:[%s3 + $0x19c] sm:$0xf]
  %v10956 = vld [vmem:[%s3 + $0x1a0] sm:$0xf]
  %v10957 = vld [vmem:[%s3 + $0x1a4] sm:$0xf]
  %v10958 = vld [vmem:[%s3 + $0x1a8] sm:$0xf]
  %v10959 = vld [vmem:[%s3 + $0x1ac] sm:$0xf]
  %v10960 = vld [vmem:[%s3 + $0x1b0] sm:$0xf]
  %v10961 = vld [vmem:[%s3 + $0x1b4] sm:$0xf]
  %v10962 = vld [vmem:[%s3 + $0x1b8] sm:$0xf]
  %v10963 = vld [vmem:[%s3 + $0x1bc] sm:$0xf]
  %v10964 = vld [vmem:[%s3 + $0x1c0] sm:$0xf]
  %v10965 = vld [vmem:[%s3 + $0x1c4] sm:$0xf]
  %v10966 = vld [vmem:[%s3 + $0x1c8] sm:$0xf]
  %v10967 = vld [vmem:[%s3 + $0x1cc] sm:$0xf]
  %v10968 = vld [vmem:[%s3 + $0x1d0] sm:$0xf]
  %v10969 = vld [vmem:[%s3 + $0x1d4] sm:$0xf]
  %v10970 = vld [vmem:[%s3 + $0x1d8] sm:$0xf]
  %v10971 = vld [vmem:[%s3 + $0x1dc] sm:$0xf]
  %v10972 = vld [vmem:[%s3 + $0x1e0] sm:$0xf]
  %v10973 = vld [vmem:[%s3 + $0x1e4] sm:$0xf]
  %v10974 = vld [vmem:[%s3 + $0x1e8] sm:$0xf]
  %v10975 = vld [vmem:[%s3 + $0x1ec] sm:$0xf]
  %v10976 = vld [vmem:[%s3 + $0x1f0] sm:$0xf]
  %v10977 = vld [vmem:[%s3 + $0x1f4] sm:$0xf]
  %v10978 = vld [vmem:[%s3 + $0x1f8] sm:$0xf]
  %v10979 = vld [vmem:[%s3 + $0x1fc] sm:$0xf]
  %v10980 = vld [vmem:[%s3 + $0x200] sm:$0xf]
  %v10981 = vld [vmem:[%s3 + $0x204] sm:$0xf]
  %v10982 = vld [vmem:[%s3 + $0x208] sm:$0xf]
  %v10983 = vld [vmem:[%s3 + $0x20c] sm:$0xf]
  %v10984 = vld [vmem:[%s3 + $0x210] sm:$0xf]
  %v10985 = vld [vmem:[%s3 + $0x214] sm:$0xf]
  %v10986 = vld [vmem:[%s3 + $0x218] sm:$0xf]
  %v10987 = vld [vmem:[%s3 + $0x21c] sm:$0xf]
  %v10988 = vld [vmem:[%s3 + $0x220] sm:$0xf]
  %v10989 = vld [vmem:[%s3 + $0x224] sm:$0xf]
  %v10990 = vld [vmem:[%s3 + $0x228] sm:$0xf]
  %v10991 = vld [vmem:[%s3 + $0x22c] sm:$0xf]
  %v10992 = vld [vmem:[%s3 + $0x230] sm:$0xf]
  %v10993 = vld [vmem:[%s3 + $0x234] sm:$0xf]
  %v10994 = vld [vmem:[%s3 + $0x238] sm:$0xf]
  %v10995 = vld [vmem:[%s3 + $0x23c] sm:$0xf]
  %v10996 = vld [vmem:[%s3 + $0x240] sm:$0xf]
  %v10997 = vld [vmem:[%s3 + $0x244] sm:$0xf]
  %v10998 = vld [vmem:[%s3 + $0x248] sm:$0xf]
  %v10999 = vld [vmem:[%s3 + $0x24c] sm:$0xf]
  %v11000 = vld [vmem:[%s3 + $0x250] sm:$0xf]
  %v11001 = vld [vmem:[%s3 + $0x254] sm:$0xf]
  %v11002 = vld [vmem:[%s3 + $0x258] sm:$0xf]
  %v11003 = vld [vmem:[%s3 + $0x25c] sm:$0xf]
  %v11004 = vld [vmem:[%s3 + $0x260] sm:$0xf]
  %v11005 = vld [vmem:[%s3 + $0x264] sm:$0xf]
  %v11006 = vld [vmem:[%s3 + $0x268] sm:$0xf]
  %v11007 = vld [vmem:[%s3 + $0x26c] sm:$0xf]
  %v11008 = vld [vmem:[%s3 + $0x270] sm:$0xf]
  %v11009 = vld [vmem:[%s3 + $0x274] sm:$0xf]
  %v11010 = vld [vmem:[%s3 + $0x278] sm:$0xf]
  %v11011 = vld [vmem:[%s3 + $0x27c] sm:$0xf]
  %v11012 = vld [vmem:[%s3 + $0x280] sm:$0xf]
  %v11013 = vld [vmem:[%s3 + $0x284] sm:$0xf]
  %v11014 = vld [vmem:[%s3 + $0x288] sm:$0xf]
  %v11015 = vld [vmem:[%s3 + $0x28c] sm:$0xf]
  %v11016 = vld [vmem:[%s3 + $0x290] sm:$0xf]
  %v11017 = vld [vmem:[%s3 + $0x294] sm:$0xf]
  %v11018 = vld [vmem:[%s3 + $0x298] sm:$0xf]
  %v11019 = vld [vmem:[%s3 + $0x29c] sm:$0xf]
  %v11020 = vld [vmem:[%s3 + $0x2a0] sm:$0xf]
  %v11021 = vld [vmem:[%s3 + $0x2a4] sm:$0xf]
  %v11022 = vld [vmem:[%s3 + $0x2a8] sm:$0xf]
  %v11023 = vld [vmem:[%s3 + $0x2ac] sm:$0xf]
  %v11024 = vld [vmem:[%s3 + $0x2b0] sm:$0xf]
  %v11025 = vld [vmem:[%s3 + $0x2b4] sm:$0xf]
  %v11026 = vld [vmem:[%s3 + $0x2b8] sm:$0xf]
  %v11027 = vld [vmem:[%s3 + $0x2bc] sm:$0xf]
  %v11028 = vld [vmem:[%s3 + $0x2c0] sm:$0xf]
  %v11029 = vld [vmem:[%s3 + $0x2c4] sm:$0xf]
  %v11030 = vld [vmem:[%s3 + $0x2c8] sm:$0xf]
  %v11031 = vld [vmem:[%s3 + $0x2cc] sm:$0xf]
  %v11032 = vld [vmem:[%s3 + $0x2d0] sm:$0xf]
  %v11033 = vld [vmem:[%s3 + $0x2d4] sm:$0xf]
  %v11034 = vld [vmem:[%s3 + $0x2d8] sm:$0xf]
  %v11035 = vld [vmem:[%s3 + $0x2dc] sm:$0xf]
  %v11036 = vld [vmem:[%s3 + $0x2e0] sm:$0xf]
  %v11037 = vld [vmem:[%s3 + $0x2e4] sm:$0xf]
  %v11038 = vld [vmem:[%s3 + $0x2e8] sm:$0xf]
  %v11039 = vld [vmem:[%s3 + $0x2ec] sm:$0xf]
  %v11040 = vld [vmem:[%s3 + $0x2f0] sm:$0xf]
  %v11041 = vld [vmem:[%s3 + $0x2f4] sm:$0xf]
  %v11042 = vld [vmem:[%s3 + $0x2f8] sm:$0xf]
  %v11043 = vld [vmem:[%s3 + $0x2fc] sm:$0xf]
  %v11044 = vld [vmem:[%s3 + $0x300] sm:$0xf]
  %v11045 = vld [vmem:[%s3 + $0x304] sm:$0xf]
  %v11046 = vld [vmem:[%s3 + $0x308] sm:$0xf]
  %v11047 = vld [vmem:[%s3 + $0x30c] sm:$0xf]
  %v11048 = vld [vmem:[%s3 + $0x310] sm:$0xf]
  %v11049 = vld [vmem:[%s3 + $0x314] sm:$0xf]
  %v11050 = vld [vmem:[%s3 + $0x318] sm:$0xf]
  %v11051 = vld [vmem:[%s3 + $0x31c] sm:$0xf]
  %v11052 = vld [vmem:[%s3 + $0x320] sm:$0xf]
  %v11053 = vld [vmem:[%s3 + $0x324] sm:$0xf]
  %v11054 = vld [vmem:[%s3 + $0x328] sm:$0xf]
  %v11055 = vld [vmem:[%s3 + $0x32c] sm:$0xf]
  %v11056 = vld [vmem:[%s3 + $0x330] sm:$0xf]
  %v11057 = vld [vmem:[%s3 + $0x334] sm:$0xf]
  %v11058 = vld [vmem:[%s3 + $0x338] sm:$0xf]
  %v11059 = vld [vmem:[%s3 + $0x33c] sm:$0xf]
  %v11060 = vld [vmem:[%s3 + $0x340] sm:$0xf]
  %v11061 = vld [vmem:[%s3 + $0x344] sm:$0xf]
  %v11062 = vld [vmem:[%s3 + $0x348] sm:$0xf]
  %v11063 = vld [vmem:[%s3 + $0x34c] sm:$0xf]
  %v11064 = vld [vmem:[%s3 + $0x350] sm:$0xf]
  %v11065 = vld [vmem:[%s3 + $0x354] sm:$0xf]
  %v11066 = vld [vmem:[%s3 + $0x358] sm:$0xf]
  %v11067 = vld [vmem:[%s3 + $0x35c] sm:$0xf]
  %v11068 = vld [vmem:[%s3 + $0x360] sm:$0xf]
  %v11069 = vld [vmem:[%s3 + $0x364] sm:$0xf]
  %v11070 = vld [vmem:[%s3 + $0x368] sm:$0xf]
  %v11071 = vld [vmem:[%s3 + $0x36c] sm:$0xf]
  %v11072 = vld [vmem:[%s3 + $0x370] sm:$0xf]
  %v11073 = vld [vmem:[%s3 + $0x374] sm:$0xf]
  %v11074 = vld [vmem:[%s3 + $0x378] sm:$0xf]
  %v11075 = vld [vmem:[%s3 + $0x37c] sm:$0xf]
  %v11076 = vld [vmem:[%s3 + $0x380] sm:$0xf]
  %v11077 = vld [vmem:[%s3 + $0x384] sm:$0xf]
  %v11078 = vld [vmem:[%s3 + $0x388] sm:$0xf]
  %v11079 = vld [vmem:[%s3 + $0x38c] sm:$0xf]
  %v11080 = vld [vmem:[%s3 + $0x390] sm:$0xf]
  %v11081 = vld [vmem:[%s3 + $0x394] sm:$0xf]
  %v11082 = vld [vmem:[%s3 + $0x398] sm:$0xf]
  %v11083 = vld [vmem:[%s3 + $0x39c] sm:$0xf]
  %v11084 = vld [vmem:[%s3 + $0x3a0] sm:$0xf]
  %v11085 = vld [vmem:[%s3 + $0x3a4] sm:$0xf]
  %v11086 = vld [vmem:[%s3 + $0x3a8] sm:$0xf]
  %v11087 = vld [vmem:[%s3 + $0x3ac] sm:$0xf]
  %v11088 = vld [vmem:[%s3 + $0x3b0] sm:$0xf]
  %v11089 = vld [vmem:[%s3 + $0x3b4] sm:$0xf]
  %v11090 = vld [vmem:[%s3 + $0x3b8] sm:$0xf]
  %v11091 = vld [vmem:[%s3 + $0x3bc] sm:$0xf]
  %v11092 = vld [vmem:[%s3 + $0x3c0] sm:$0xf]
  %v11093 = vld [vmem:[%s3 + $0x3c4] sm:$0xf]
  %v11094 = vld [vmem:[%s3 + $0x3c8] sm:$0xf]
  %v11095 = vld [vmem:[%s3 + $0x3cc] sm:$0xf]
  %v11096 = vld [vmem:[%s3 + $0x3d0] sm:$0xf]
  %v11097 = vld [vmem:[%s3 + $0x3d4] sm:$0xf]
  %v11098 = vld [vmem:[%s3 + $0x3d8] sm:$0xf]
  %v11099 = vld [vmem:[%s3 + $0x3dc] sm:$0xf]
  %v11100 = vld [vmem:[%s3 + $0x3e0] sm:$0xf]
  %v11101 = vld [vmem:[%s3 + $0x3e4] sm:$0xf]
  %v11102 = vld [vmem:[%s3 + $0x3e8] sm:$0xf]
  %v11103 = vld [vmem:[%s3 + $0x3ec] sm:$0xf]
  %v11104 = vld [vmem:[%s3 + $0x3f0] sm:$0xf]
  %v11105 = vld [vmem:[%s3 + $0x3f4] sm:$0xf]
  %v11106 = vld [vmem:[%s3 + $0x3f8] sm:$0xf]
  %v11107 = vld [vmem:[%s3 + $0x3fc] sm:$0xf]
  %v11108 = vld [vmem:[%s3 + $0x400] sm:$0xf]
  %v11109 = vld [vmem:[%s3 + $0x404] sm:$0xf]
  %v11110 = vld [vmem:[%s3 + $0x408] sm:$0xf]
  %v11111 = vld [vmem:[%s3 + $0x40c] sm:$0xf]
  %v11112 = vld [vmem:[%s3 + $0x410] sm:$0xf]
  %v11113 = vld [vmem:[%s3 + $0x414] sm:$0xf]
  %v11114 = vld [vmem:[%s3 + $0x418] sm:$0xf]
  %v11115 = vld [vmem:[%s3 + $0x41c] sm:$0xf]
  %v11116 = vld [vmem:[%s3 + $0x420] sm:$0xf]
  %v11117 = vld [vmem:[%s3 + $0x424] sm:$0xf]
  %v11118 = vld [vmem:[%s3 + $0x428] sm:$0xf]
  %v11119 = vld [vmem:[%s3 + $0x42c] sm:$0xf]
  %v11120 = vld [vmem:[%s3 + $0x430] sm:$0xf]
  %v11121 = vld [vmem:[%s3 + $0x434] sm:$0xf]
  %v11122 = vld [vmem:[%s3 + $0x438] sm:$0xf]
  %v11123 = vld [vmem:[%s3 + $0x43c] sm:$0xf]
  %v11124 = vld [vmem:[%s3 + $0x440] sm:$0xf]
  %v11125 = vld [vmem:[%s3 + $0x444] sm:$0xf]
  %v11126 = vld [vmem:[%s3 + $0x448] sm:$0xf]
  %v11127 = vld [vmem:[%s3 + $0x44c] sm:$0xf]
  %v11128 = vld [vmem:[%s3 + $0x450] sm:$0xf]
  %v11129 = vld [vmem:[%s3 + $0x454] sm:$0xf]
  %v11130 = vld [vmem:[%s3 + $0x458] sm:$0xf]
  %v11131 = vld [vmem:[%s3 + $0x45c] sm:$0xf]
  %v11132 = vld [vmem:[%s3 + $0x460] sm:$0xf]
  %v11133 = vld [vmem:[%s3 + $0x464] sm:$0xf]
  %v11134 = vld [vmem:[%s3 + $0x468] sm:$0xf]
  %v11135 = vld [vmem:[%s3 + $0x46c] sm:$0xf]
  %v11136 = vld [vmem:[%s3 + $0x470] sm:$0xf]
  %v11137 = vld [vmem:[%s3 + $0x474] sm:$0xf]
  %v11138 = vld [vmem:[%s3 + $0x478] sm:$0xf]
  %v11139 = vld [vmem:[%s3 + $0x47c] sm:$0xf]
  %v11140 = vld [vmem:[%s3 + $0x480] sm:$0xf]
  %v11141 = vld [vmem:[%s3 + $0x484] sm:$0xf]
  %v11142 = vld [vmem:[%s3 + $0x488] sm:$0xf]
  %v11143 = vld [vmem:[%s3 + $0x48c] sm:$0xf]
  %v11144 = vld [vmem:[%s3 + $0x490] sm:$0xf]
  %v11145 = vld [vmem:[%s3 + $0x494] sm:$0xf]
  %v11146 = vld [vmem:[%s3 + $0x498] sm:$0xf]
  %v11147 = vld [vmem:[%s3 + $0x49c] sm:$0xf]
  %v11148 = vld [vmem:[%s3 + $0x4a0] sm:$0xf]
  %v11149 = vld [vmem:[%s3 + $0x4a4] sm:$0xf]
  %v11150 = vld [vmem:[%s3 + $0x4a8] sm:$0xf]
  %v11151 = vld [vmem:[%s3 + $0x4ac] sm:$0xf]
  %v11152 = vld [vmem:[%s3 + $0x4b0] sm:$0xf]
  %v11153 = vld [vmem:[%s3 + $0x4b4] sm:$0xf]
  %v11154 = vld [vmem:[%s3 + $0x4b8] sm:$0xf]
  %v11155 = vld [vmem:[%s3 + $0x4bc] sm:$0xf]
  %v11156 = vld [vmem:[%s3 + $0x4c0] sm:$0xf]
  %v11157 = vld [vmem:[%s3 + $0x4c4] sm:$0xf]
  %v11158 = vld [vmem:[%s3 + $0x4c8] sm:$0xf]
  %v11159 = vld [vmem:[%s3 + $0x4cc] sm:$0xf]
  %v11160 = vld [vmem:[%s3 + $0x4d0] sm:$0xf]
  %v11161 = vld [vmem:[%s3 + $0x4d4] sm:$0xf]
  %v11162 = vld [vmem:[%s3 + $0x4d8] sm:$0xf]
  %v11163 = vld [vmem:[%s3 + $0x4dc] sm:$0xf]
  %v11164 = vld [vmem:[%s3 + $0x4e0] sm:$0xf]
  %v11165 = vld [vmem:[%s3 + $0x4e4] sm:$0xf]
  %v11166 = vld [vmem:[%s3 + $0x4e8] sm:$0xf]
  %v11167 = vld [vmem:[%s3 + $0x4ec] sm:$0xf]
  %v11168 = vld [vmem:[%s3 + $0x4f0] sm:$0xf]
  %v11169 = vld [vmem:[%s3 + $0x4f4] sm:$0xf]
  %v11170 = vld [vmem:[%s3 + $0x4f8] sm:$0xf]
  %v11171 = vld [vmem:[%s3 + $0x4fc] sm:$0xf]
  %v11172 = vld [vmem:[%s3 + $0x500] sm:$0xf]
  %v11173 = vld [vmem:[%s3 + $0x504] sm:$0xf]
  %v11174 = vld [vmem:[%s3 + $0x508] sm:$0xf]
  %v11175 = vld [vmem:[%s3 + $0x50c] sm:$0xf]
  %v11176 = vld [vmem:[%s3 + $0x510] sm:$0xf]
  %v11177 = vld [vmem:[%s3 + $0x514] sm:$0xf]
  %v11178 = vld [vmem:[%s3 + $0x518] sm:$0xf]
  %v11179 = vld [vmem:[%s3 + $0x51c] sm:$0xf]
  %v11180 = vld [vmem:[%s3 + $0x520] sm:$0xf]
  %v11181 = vld [vmem:[%s3 + $0x524] sm:$0xf]
  %v11182 = vld [vmem:[%s3 + $0x528] sm:$0xf]
  %v11183 = vld [vmem:[%s3 + $0x52c] sm:$0xf]
  %v11184 = vld [vmem:[%s3 + $0x530] sm:$0xf]
  %v11185 = vld [vmem:[%s3 + $0x534] sm:$0xf]
  %v11186 = vld [vmem:[%s3 + $0x538] sm:$0xf]
  %v11187 = vld [vmem:[%s3 + $0x53c] sm:$0xf]
  %v11188 = vld [vmem:[%s3 + $0x540] sm:$0xf]
  %v11189 = vld [vmem:[%s3 + $0x544] sm:$0xf]
  %v11190 = vld [vmem:[%s3 + $0x548] sm:$0xf]
  %v11191 = vld [vmem:[%s3 + $0x54c] sm:$0xf]
  %v11192 = vld [vmem:[%s3 + $0x550] sm:$0xf]
  %v11193 = vld [vmem:[%s3 + $0x554] sm:$0xf]
  %v11194 = vld [vmem:[%s3 + $0x558] sm:$0xf]
  %v11195 = vld [vmem:[%s3 + $0x55c] sm:$0xf]
  %v11196 = vld [vmem:[%s3 + $0x560] sm:$0xf]
  %v11197 = vld [vmem:[%s3 + $0x564] sm:$0xf]
  %v11198 = vld [vmem:[%s3 + $0x568] sm:$0xf]
  %v11199 = vld [vmem:[%s3 + $0x56c] sm:$0xf]
  %v11200 = vld [vmem:[%s3 + $0x570] sm:$0xf]
  %v11201 = vld [vmem:[%s3 + $0x574] sm:$0xf]
  %v11202 = vld [vmem:[%s3 + $0x578] sm:$0xf]
  %v11203 = vld [vmem:[%s3 + $0x57c] sm:$0xf]
  %v11204 = vld [vmem:[%s3 + $0x580] sm:$0xf]
  %v11205 = vld [vmem:[%s3 + $0x584] sm:$0xf]
  %v11206 = vld [vmem:[%s3 + $0x588] sm:$0xf]
  %v11207 = vld [vmem:[%s3 + $0x58c] sm:$0xf]
  %v11208 = vld [vmem:[%s3 + $0x590] sm:$0xf]
  %v11209 = vld [vmem:[%s3 + $0x594] sm:$0xf]
  %v11210 = vld [vmem:[%s3 + $0x598] sm:$0xf]
  %v11211 = vld [vmem:[%s3 + $0x59c] sm:$0xf]
  %v11212 = vld [vmem:[%s3 + $0x5a0] sm:$0xf]
  %v11213 = vld [vmem:[%s3 + $0x5a4] sm:$0xf]
  %v11214 = vld [vmem:[%s3 + $0x5a8] sm:$0xf]
  %v11215 = vld [vmem:[%s3 + $0x5ac] sm:$0xf]
  %v11216 = vld [vmem:[%s3 + $0x5b0] sm:$0xf]
  %v11217 = vld [vmem:[%s3 + $0x5b4] sm:$0xf]
  %v11218 = vld [vmem:[%s3 + $0x5b8] sm:$0xf]
  %v11219 = vld [vmem:[%s3 + $0x5bc] sm:$0xf]
  %v11220 = vld [vmem:[%s3 + $0x5c0] sm:$0xf]
  %v11221 = vld [vmem:[%s3 + $0x5c4] sm:$0xf]
  %v11222 = vld [vmem:[%s3 + $0x5c8] sm:$0xf]
  %v11223 = vld [vmem:[%s3 + $0x5cc] sm:$0xf]
  %v11224 = vld [vmem:[%s3 + $0x5d0] sm:$0xf]
  %v11225 = vld [vmem:[%s3 + $0x5d4] sm:$0xf]
  %v11226 = vld [vmem:[%s3 + $0x5d8] sm:$0xf]
  %v11227 = vld [vmem:[%s3 + $0x5dc] sm:$0xf]
  %v11228 = vld [vmem:[%s3 + $0x5e0] sm:$0xf]
  %v11229 = vld [vmem:[%s3 + $0x5e4] sm:$0xf]
  %v11230 = vld [vmem:[%s3 + $0x5e8] sm:$0xf]
  %v11231 = vld [vmem:[%s3 + $0x5ec] sm:$0xf]
  %v11232 = vld [vmem:[%s3 + $0x5f0] sm:$0xf]
  %v11233 = vld [vmem:[%s3 + $0x5f4] sm:$0xf]
  %v11234 = vld [vmem:[%s3 + $0x5f8] sm:$0xf]
  %v11235 = vld [vmem:[%s3 + $0x5fc] sm:$0xf]
  %v11236 = vld [vmem:[%s3 + $0x600] sm:$0xf]
  %v11237 = vld [vmem:[%s3 + $0x604] sm:$0xf]
  %v11238 = vld [vmem:[%s3 + $0x608] sm:$0xf]
  %v11239 = vld [vmem:[%s3 + $0x60c] sm:$0xf]
  %v11240 = vld [vmem:[%s3 + $0x610] sm:$0xf]
  %v11241 = vld [vmem:[%s3 + $0x614] sm:$0xf]
  %v11242 = vld [vmem:[%s3 + $0x618] sm:$0xf]
  %v11243 = vld [vmem:[%s3 + $0x61c] sm:$0xf]
  %v11244 = vld [vmem:[%s3 + $0x620] sm:$0xf]
  %v11245 = vld [vmem:[%s3 + $0x624] sm:$0xf]
  %v11246 = vld [vmem:[%s3 + $0x628] sm:$0xf]
  %v11247 = vld [vmem:[%s3 + $0x62c] sm:$0xf]
  %v11248 = vld [vmem:[%s3 + $0x630] sm:$0xf]
  %v11249 = vld [vmem:[%s3 + $0x634] sm:$0xf]
  %v11250 = vld [vmem:[%s3 + $0x638] sm:$0xf]
  %v11251 = vld [vmem:[%s3 + $0x63c] sm:$0xf]
  %v11252 = vld [vmem:[%s3 + $0x640] sm:$0xf]
  %v11253 = vld [vmem:[%s3 + $0x644] sm:$0xf]
  %v11254 = vld [vmem:[%s3 + $0x648] sm:$0xf]
  %v11255 = vld [vmem:[%s3 + $0x64c] sm:$0xf]
  %v11256 = vld [vmem:[%s3 + $0x650] sm:$0xf]
  %v11257 = vld [vmem:[%s3 + $0x654] sm:$0xf]
  %v11258 = vld [vmem:[%s3 + $0x658] sm:$0xf]
  %v11259 = vld [vmem:[%s3 + $0x65c] sm:$0xf]
  %v11260 = vld [vmem:[%s3 + $0x660] sm:$0xf]
  %v11261 = vld [vmem:[%s3 + $0x664] sm:$0xf]
  %v11262 = vld [vmem:[%s3 + $0x668] sm:$0xf]
  %v11263 = vld [vmem:[%s3 + $0x66c] sm:$0xf]
  %v11264 = vld [vmem:[%s3 + $0x670] sm:$0xf]
  %v11265 = vld [vmem:[%s3 + $0x674] sm:$0xf]
  %v11266 = vld [vmem:[%s3 + $0x678] sm:$0xf]
  %v11267 = vld [vmem:[%s3 + $0x67c] sm:$0xf]
  %v11268 = vld [vmem:[%s3 + $0x680] sm:$0xf]
  %v11269 = vld [vmem:[%s3 + $0x684] sm:$0xf]
  %v11270 = vld [vmem:[%s3 + $0x688] sm:$0xf]
  %v11271 = vld [vmem:[%s3 + $0x68c] sm:$0xf]
  %v11272 = vld [vmem:[%s3 + $0x690] sm:$0xf]
  %v11273 = vld [vmem:[%s3 + $0x694] sm:$0xf]
  %v11274 = vld [vmem:[%s3 + $0x698] sm:$0xf]
  %v11275 = vld [vmem:[%s3 + $0x69c] sm:$0xf]
  %v11276 = vld [vmem:[%s3 + $0x6a0] sm:$0xf]
  %v11277 = vld [vmem:[%s3 + $0x6a4] sm:$0xf]
  %v11278 = vld [vmem:[%s3 + $0x6a8] sm:$0xf]
  %v11279 = vld [vmem:[%s3 + $0x6ac] sm:$0xf]
  %v11280 = vld [vmem:[%s3 + $0x6b0] sm:$0xf]
  %v11281 = vld [vmem:[%s3 + $0x6b4] sm:$0xf]
  %v11282 = vld [vmem:[%s3 + $0x6b8] sm:$0xf]
  %v11283 = vld [vmem:[%s3 + $0x6bc] sm:$0xf]
  %v11284 = vld [vmem:[%s3 + $0x6c0] sm:$0xf]
  %v11285 = vld [vmem:[%s3 + $0x6c4] sm:$0xf]
  %v11286 = vld [vmem:[%s3 + $0x6c8] sm:$0xf]
  %v11287 = vld [vmem:[%s3 + $0x6cc] sm:$0xf]
  %v11288 = vld [vmem:[%s3 + $0x6d0] sm:$0xf]
  %v11289 = vld [vmem:[%s3 + $0x6d4] sm:$0xf]
  %v11290 = vld [vmem:[%s3 + $0x6d8] sm:$0xf]
  %v11291 = vld [vmem:[%s3 + $0x6dc] sm:$0xf]
  %v11292 = vld [vmem:[%s3 + $0x6e0] sm:$0xf]
  %v11293 = vld [vmem:[%s3 + $0x6e4] sm:$0xf]
  %v11294 = vld [vmem:[%s3 + $0x6e8] sm:$0xf]
  %v11295 = vld [vmem:[%s3 + $0x6ec] sm:$0xf]
  %v11296 = vld [vmem:[%s3 + $0x6f0] sm:$0xf]
  %v11297 = vld [vmem:[%s3 + $0x6f4] sm:$0xf]
  %v11298 = vld [vmem:[%s3 + $0x6f8] sm:$0xf]
  %v11299 = vld [vmem:[%s3 + $0x6fc] sm:$0xf]
  %v11300 = vld [vmem:[%s3 + $0x700] sm:$0xf]
  %v11301 = vld [vmem:[%s3 + $0x704] sm:$0xf]
  %v11302 = vld [vmem:[%s3 + $0x708] sm:$0xf]
  %v11303 = vld [vmem:[%s3 + $0x70c] sm:$0xf]
  %v11304 = vld [vmem:[%s3 + $0x710] sm:$0xf]
  %v11305 = vld [vmem:[%s3 + $0x714] sm:$0xf]
  %v11306 = vld [vmem:[%s3 + $0x718] sm:$0xf]
  %v11307 = vld [vmem:[%s3 + $0x71c] sm:$0xf]
  %v11308 = vld [vmem:[%s3 + $0x720] sm:$0xf]
  %v11309 = vld [vmem:[%s3 + $0x724] sm:$0xf]
  %v11310 = vld [vmem:[%s3 + $0x728] sm:$0xf]
  %v11311 = vld [vmem:[%s3 + $0x72c] sm:$0xf]
  %v11312 = vld [vmem:[%s3 + $0x730] sm:$0xf]
  %v11313 = vld [vmem:[%s3 + $0x734] sm:$0xf]
  %v11314 = vld [vmem:[%s3 + $0x738] sm:$0xf]
  %v11315 = vld [vmem:[%s3 + $0x73c] sm:$0xf]
  %v11316 = vld [vmem:[%s3 + $0x740] sm:$0xf]
  %v11317 = vld [vmem:[%s3 + $0x744] sm:$0xf]
  %v11318 = vld [vmem:[%s3 + $0x748] sm:$0xf]
  %v11319 = vld [vmem:[%s3 + $0x74c] sm:$0xf]
  %v11320 = vld [vmem:[%s3 + $0x750] sm:$0xf]
  %v11321 = vld [vmem:[%s3 + $0x754] sm:$0xf]
  %v11322 = vld [vmem:[%s3 + $0x758] sm:$0xf]
  %v11323 = vld [vmem:[%s3 + $0x75c] sm:$0xf]
  %v11324 = vld [vmem:[%s3 + $0x760] sm:$0xf]
  %v11325 = vld [vmem:[%s3 + $0x764] sm:$0xf]
  %v11326 = vld [vmem:[%s3 + $0x768] sm:$0xf]
  %v11327 = vld [vmem:[%s3 + $0x76c] sm:$0xf]
  %v11328 = vld [vmem:[%s3 + $0x770] sm:$0xf]
  %v11329 = vld [vmem:[%s3 + $0x774] sm:$0xf]
  %v11330 = vld [vmem:[%s3 + $0x778] sm:$0xf]
  %v11331 = vld [vmem:[%s3 + $0x77c] sm:$0xf]
  %v11332 = vld [vmem:[%s3 + $0x780] sm:$0xf]
  %v11333 = vld [vmem:[%s3 + $0x784] sm:$0xf]
  %v11334 = vld [vmem:[%s3 + $0x788] sm:$0xf]
  %v11335 = vld [vmem:[%s3 + $0x78c] sm:$0xf]
  %v11336 = vld [vmem:[%s3 + $0x790] sm:$0xf]
  %v11337 = vld [vmem:[%s3 + $0x794] sm:$0xf]
  %v11338 = vld [vmem:[%s3 + $0x798] sm:$0xf]
  %v11339 = vld [vmem:[%s3 + $0x79c] sm:$0xf]
  %v11340 = vld [vmem:[%s3 + $0x7a0] sm:$0xf]
  %v11341 = vld [vmem:[%s3 + $0x7a4] sm:$0xf]
  %v11342 = vld [vmem:[%s3 + $0x7a8] sm:$0xf]
  %v11343 = vld [vmem:[%s3 + $0x7ac] sm:$0xf]
  %v11344 = vld [vmem:[%s3 + $0x7b0] sm:$0xf]
  %v11345 = vld [vmem:[%s3 + $0x7b4] sm:$0xf]
  %v11346 = vld [vmem:[%s3 + $0x7b8] sm:$0xf]
  %v11347 = vld [vmem:[%s3 + $0x7bc] sm:$0xf]
  %v11348 = vld [vmem:[%s3 + $0x7c0] sm:$0xf]
  %v11349 = vld [vmem:[%s3 + $0x7c4] sm:$0xf]
  %v11350 = vld [vmem:[%s3 + $0x7c8] sm:$0xf]
  %v11351 = vld [vmem:[%s3 + $0x7cc] sm:$0xf]
  %v11352 = vld [vmem:[%s3 + $0x7d0] sm:$0xf]
  %v11353 = vld [vmem:[%s3 + $0x7d4] sm:$0xf]
  %v11354 = vld [vmem:[%s3 + $0x7d8] sm:$0xf]
  %v11355 = vld [vmem:[%s3 + $0x7dc] sm:$0xf]
  %v11356 = vld [vmem:[%s3 + $0x7e0] sm:$0xf]
  %v11357 = vld [vmem:[%s3 + $0x7e4] sm:$0xf]
  %v11358 = vld [vmem:[%s3 + $0x7e8] sm:$0xf]
  %v11359 = vld [vmem:[%s3 + $0x7ec] sm:$0xf]
  %v11360 = vld [vmem:[%s3 + $0x7f0] sm:$0xf]
  %v11361 = vld [vmem:[%s3 + $0x7f4] sm:$0xf]
  %v11362 = vld [vmem:[%s3 + $0x7f8] sm:$0xf]
  %v11363 = vld [vmem:[%s3 + $0x7fc] sm:$0xf]
  %v11364 = vld [vmem:[%s6] sm:$0x1]
  %v11366 = vlaneseq
  %v11367 = vshrl.u32 %v11366, 7
  %v11368 = vsub.s32 0, %v11367
  %v11369 = vrot.slane %v11364, %v11368
  %v11883 = vunpack.c.l.b16 %v10852
  %v11884 = vunpack.c.l.b16 %v10853
  %v11885 = vunpack.c.l.b16 %v10854
  %v11886 = vunpack.c.l.b16 %v10855
  %v11887 = vunpack.c.l.b16 %v10856
  %v11888 = vunpack.c.l.b16 %v10857
  %v11889 = vunpack.c.l.b16 %v10858
  %v11890 = vunpack.c.l.b16 %v10859
  %v11891 = vunpack.c.l.b16 %v10860
  %v11892 = vunpack.c.l.b16 %v10861
  %v11893 = vunpack.c.l.b16 %v10862
  %v11894 = vunpack.c.l.b16 %v10863
  %v11895 = vunpack.c.l.b16 %v10864
  %v11896 = vunpack.c.l.b16 %v10865
  %v11897 = vunpack.c.l.b16 %v10866
  %v11898 = vunpack.c.l.b16 %v10867
  %v11899 = vunpack.c.l.b16 %v10868
  %v11900 = vunpack.c.l.b16 %v10869
  %v11901 = vunpack.c.l.b16 %v10870
  %v11902 = vunpack.c.l.b16 %v10871
  %v11903 = vunpack.c.l.b16 %v10872
  %v11904 = vunpack.c.l.b16 %v10873
  %v11905 = vunpack.c.l.b16 %v10874
  %v11906 = vunpack.c.l.b16 %v10875
  %v11907 = vunpack.c.l.b16 %v10876
  %v11908 = vunpack.c.l.b16 %v10877
  %v11909 = vunpack.c.l.b16 %v10878
  %v11910 = vunpack.c.l.b16 %v10879
  %v11911 = vunpack.c.l.b16 %v10880
  %v11912 = vunpack.c.l.b16 %v10881
  %v11913 = vunpack.c.l.b16 %v10882
  %v11914 = vunpack.c.l.b16 %v10883
  %v11915 = vunpack.c.l.b16 %v10884
  %v11916 = vunpack.c.l.b16 %v10885
  %v11917 = vunpack.c.l.b16 %v10886
  %v11918 = vunpack.c.l.b16 %v10887
  %v11919 = vunpack.c.l.b16 %v10888
  %v11920 = vunpack.c.l.b16 %v10889
  %v11921 = vunpack.c.l.b16 %v10890
  %v11922 = vunpack.c.l.b16 %v10891
  %v11923 = vunpack.c.l.b16 %v10892
  %v11924 = vunpack.c.l.b16 %v10893
  %v11925 = vunpack.c.l.b16 %v10894
  %v11926 = vunpack.c.l.b16 %v10895
  %v11927 = vunpack.c.l.b16 %v10896
  %v11928 = vunpack.c.l.b16 %v10897
  %v11929 = vunpack.c.l.b16 %v10898
  %v11930 = vunpack.c.l.b16 %v10899
  %v11931 = vunpack.c.l.b16 %v10900
  %v11932 = vunpack.c.l.b16 %v10901
  %v11933 = vunpack.c.l.b16 %v10902
  %v11934 = vunpack.c.l.b16 %v10903
  %v11935 = vunpack.c.l.b16 %v10904
  %v11936 = vunpack.c.l.b16 %v10905
  %v11937 = vunpack.c.l.b16 %v10906
  %v11938 = vunpack.c.l.b16 %v10907
  %v11939 = vunpack.c.l.b16 %v10908
  %v11940 = vunpack.c.l.b16 %v10909
  %v11941 = vunpack.c.l.b16 %v10910
  %v11942 = vunpack.c.l.b16 %v10911
  %v11943 = vunpack.c.l.b16 %v10912
  %v11944 = vunpack.c.l.b16 %v10913
  %v11945 = vunpack.c.l.b16 %v10914
  %v11946 = vunpack.c.l.b16 %v10915
  %v11947 = vunpack.c.l.b16 %v10916
  %v11948 = vunpack.c.l.b16 %v10917
  %v11949 = vunpack.c.l.b16 %v10918
  %v11950 = vunpack.c.l.b16 %v10919
  %v11951 = vunpack.c.l.b16 %v10920
  %v11952 = vunpack.c.l.b16 %v10921
  %v11953 = vunpack.c.l.b16 %v10922
  %v11954 = vunpack.c.l.b16 %v10923
  %v11955 = vunpack.c.l.b16 %v10924
  %v11956 = vunpack.c.l.b16 %v10925
  %v11957 = vunpack.c.l.b16 %v10926
  %v11958 = vunpack.c.l.b16 %v10927
  %v11959 = vunpack.c.l.b16 %v10928
  %v11960 = vunpack.c.l.b16 %v10929
  %v11961 = vunpack.c.l.b16 %v10930
  %v11962 = vunpack.c.l.b16 %v10931
  %v11963 = vunpack.c.l.b16 %v10932
  %v11964 = vunpack.c.l.b16 %v10933
  %v11965 = vunpack.c.l.b16 %v10934
  %v11966 = vunpack.c.l.b16 %v10935
  %v11967 = vunpack.c.l.b16 %v10936
  %v11968 = vunpack.c.l.b16 %v10937
  %v11969 = vunpack.c.l.b16 %v10938
  %v11970 = vunpack.c.l.b16 %v10939
  %v11971 = vunpack.c.l.b16 %v10940
  %v11972 = vunpack.c.l.b16 %v10941
  %v11973 = vunpack.c.l.b16 %v10942
  %v11974 = vunpack.c.l.b16 %v10943
  %v11975 = vunpack.c.l.b16 %v10944
  %v11976 = vunpack.c.l.b16 %v10945
  %v11977 = vunpack.c.l.b16 %v10946
  %v11978 = vunpack.c.l.b16 %v10947
  %v11979 = vunpack.c.l.b16 %v10948
  %v11980 = vunpack.c.l.b16 %v10949
  %v11981 = vunpack.c.l.b16 %v10950
  %v11982 = vunpack.c.l.b16 %v10951
  %v11983 = vunpack.c.l.b16 %v10952
  %v11984 = vunpack.c.l.b16 %v10953
  %v11985 = vunpack.c.l.b16 %v10954
  %v11986 = vunpack.c.l.b16 %v10955
  %v11987 = vunpack.c.l.b16 %v10956
  %v11988 = vunpack.c.l.b16 %v10957
  %v11989 = vunpack.c.l.b16 %v10958
  %v11990 = vunpack.c.l.b16 %v10959
  %v11991 = vunpack.c.l.b16 %v10960
  %v11992 = vunpack.c.l.b16 %v10961
  %v11993 = vunpack.c.l.b16 %v10962
  %v11994 = vunpack.c.l.b16 %v10963
  %v11995 = vunpack.c.l.b16 %v10964
  %v11996 = vunpack.c.l.b16 %v10965
  %v11997 = vunpack.c.l.b16 %v10966
  %v11998 = vunpack.c.l.b16 %v10967
  %v11999 = vunpack.c.l.b16 %v10968
  %v12000 = vunpack.c.l.b16 %v10969
  %v12001 = vunpack.c.l.b16 %v10970
  %v12002 = vunpack.c.l.b16 %v10971
  %v12003 = vunpack.c.l.b16 %v10972
  %v12004 = vunpack.c.l.b16 %v10973
  %v12005 = vunpack.c.l.b16 %v10974
  %v12006 = vunpack.c.l.b16 %v10975
  %v12007 = vunpack.c.l.b16 %v10976
  %v12008 = vunpack.c.l.b16 %v10977
  %v12009 = vunpack.c.l.b16 %v10978
  %v12010 = vunpack.c.l.b16 %v10979
  %v12011 = vunpack.c.l.b16 %v10980
  %v12012 = vunpack.c.l.b16 %v10981
  %v12013 = vunpack.c.l.b16 %v10982
  %v12014 = vunpack.c.l.b16 %v10983
  %v12015 = vunpack.c.l.b16 %v10984
  %v12016 = vunpack.c.l.b16 %v10985
  %v12017 = vunpack.c.l.b16 %v10986
  %v12018 = vunpack.c.l.b16 %v10987
  %v12019 = vunpack.c.l.b16 %v10988
  %v12020 = vunpack.c.l.b16 %v10989
  %v12021 = vunpack.c.l.b16 %v10990
  %v12022 = vunpack.c.l.b16 %v10991
  %v12023 = vunpack.c.l.b16 %v10992
  %v12024 = vunpack.c.l.b16 %v10993
  %v12025 = vunpack.c.l.b16 %v10994
  %v12026 = vunpack.c.l.b16 %v10995
  %v12027 = vunpack.c.l.b16 %v10996
  %v12028 = vunpack.c.l.b16 %v10997
  %v12029 = vunpack.c.l.b16 %v10998
  %v12030 = vunpack.c.l.b16 %v10999
  %v12031 = vunpack.c.l.b16 %v11000
  %v12032 = vunpack.c.l.b16 %v11001
  %v12033 = vunpack.c.l.b16 %v11002
  %v12034 = vunpack.c.l.b16 %v11003
  %v12035 = vunpack.c.l.b16 %v11004
  %v12036 = vunpack.c.l.b16 %v11005
  %v12037 = vunpack.c.l.b16 %v11006
  %v12038 = vunpack.c.l.b16 %v11007
  %v12039 = vunpack.c.l.b16 %v11008
  %v12040 = vunpack.c.l.b16 %v11009
  %v12041 = vunpack.c.l.b16 %v11010
  %v12042 = vunpack.c.l.b16 %v11011
  %v12043 = vunpack.c.l.b16 %v11012
  %v12044 = vunpack.c.l.b16 %v11013
  %v12045 = vunpack.c.l.b16 %v11014
  %v12046 = vunpack.c.l.b16 %v11015
  %v12047 = vunpack.c.l.b16 %v11016
  %v12048 = vunpack.c.l.b16 %v11017
  %v12049 = vunpack.c.l.b16 %v11018
  %v12050 = vunpack.c.l.b16 %v11019
  %v12051 = vunpack.c.l.b16 %v11020
  %v12052 = vunpack.c.l.b16 %v11021
  %v12053 = vunpack.c.l.b16 %v11022
  %v12054 = vunpack.c.l.b16 %v11023
  %v12055 = vunpack.c.l.b16 %v11024
  %v12056 = vunpack.c.l.b16 %v11025
  %v12057 = vunpack.c.l.b16 %v11026
  %v12058 = vunpack.c.l.b16 %v11027
  %v12059 = vunpack.c.l.b16 %v11028
  %v12060 = vunpack.c.l.b16 %v11029
  %v12061 = vunpack.c.l.b16 %v11030
  %v12062 = vunpack.c.l.b16 %v11031
  %v12063 = vunpack.c.l.b16 %v11032
  %v12064 = vunpack.c.l.b16 %v11033
  %v12065 = vunpack.c.l.b16 %v11034
  %v12066 = vunpack.c.l.b16 %v11035
  %v12067 = vunpack.c.l.b16 %v11036
  %v12068 = vunpack.c.l.b16 %v11037
  %v12069 = vunpack.c.l.b16 %v11038
  %v12070 = vunpack.c.l.b16 %v11039
  %v12071 = vunpack.c.l.b16 %v11040
  %v12072 = vunpack.c.l.b16 %v11041
  %v12073 = vunpack.c.l.b16 %v11042
  %v12074 = vunpack.c.l.b16 %v11043
  %v12075 = vunpack.c.l.b16 %v11044
  %v12076 = vunpack.c.l.b16 %v11045
  %v12077 = vunpack.c.l.b16 %v11046
  %v12078 = vunpack.c.l.b16 %v11047
  %v12079 = vunpack.c.l.b16 %v11048
  %v12080 = vunpack.c.l.b16 %v11049
  %v12081 = vunpack.c.l.b16 %v11050
  %v12082 = vunpack.c.l.b16 %v11051
  %v12083 = vunpack.c.l.b16 %v11052
  %v12084 = vunpack.c.l.b16 %v11053
  %v12085 = vunpack.c.l.b16 %v11054
  %v12086 = vunpack.c.l.b16 %v11055
  %v12087 = vunpack.c.l.b16 %v11056
  %v12088 = vunpack.c.l.b16 %v11057
  %v12089 = vunpack.c.l.b16 %v11058
  %v12090 = vunpack.c.l.b16 %v11059
  %v12091 = vunpack.c.l.b16 %v11060
  %v12092 = vunpack.c.l.b16 %v11061
  %v12093 = vunpack.c.l.b16 %v11062
  %v12094 = vunpack.c.l.b16 %v11063
  %v12095 = vunpack.c.l.b16 %v11064
  %v12096 = vunpack.c.l.b16 %v11065
  %v12097 = vunpack.c.l.b16 %v11066
  %v12098 = vunpack.c.l.b16 %v11067
  %v12099 = vunpack.c.l.b16 %v11068
  %v12100 = vunpack.c.l.b16 %v11069
  %v12101 = vunpack.c.l.b16 %v11070
  %v12102 = vunpack.c.l.b16 %v11071
  %v12103 = vunpack.c.l.b16 %v11072
  %v12104 = vunpack.c.l.b16 %v11073
  %v12105 = vunpack.c.l.b16 %v11074
  %v12106 = vunpack.c.l.b16 %v11075
  %v12107 = vunpack.c.l.b16 %v11076
  %v12108 = vunpack.c.l.b16 %v11077
  %v12109 = vunpack.c.l.b16 %v11078
  %v12110 = vunpack.c.l.b16 %v11079
  %v12111 = vunpack.c.l.b16 %v11080
  %v12112 = vunpack.c.l.b16 %v11081
  %v12113 = vunpack.c.l.b16 %v11082
  %v12114 = vunpack.c.l.b16 %v11083
  %v12115 = vunpack.c.l.b16 %v11084
  %v12116 = vunpack.c.l.b16 %v11085
  %v12117 = vunpack.c.l.b16 %v11086
  %v12118 = vunpack.c.l.b16 %v11087
  %v12119 = vunpack.c.l.b16 %v11088
  %v12120 = vunpack.c.l.b16 %v11089
  %v12121 = vunpack.c.l.b16 %v11090
  %v12122 = vunpack.c.l.b16 %v11091
  %v12123 = vunpack.c.l.b16 %v11092
  %v12124 = vunpack.c.l.b16 %v11093
  %v12125 = vunpack.c.l.b16 %v11094
  %v12126 = vunpack.c.l.b16 %v11095
  %v12127 = vunpack.c.l.b16 %v11096
  %v12128 = vunpack.c.l.b16 %v11097
  %v12129 = vunpack.c.l.b16 %v11098
  %v12130 = vunpack.c.l.b16 %v11099
  %v12131 = vunpack.c.l.b16 %v11100
  %v12132 = vunpack.c.l.b16 %v11101
  %v12133 = vunpack.c.l.b16 %v11102
  %v12134 = vunpack.c.l.b16 %v11103
  %v12135 = vunpack.c.l.b16 %v11104
  %v12136 = vunpack.c.l.b16 %v11105
  %v12137 = vunpack.c.l.b16 %v11106
  %v12138 = vunpack.c.l.b16 %v11107
  %v12139 = vunpack.c.l.b16 %v11108
  %v12140 = vunpack.c.l.b16 %v11109
  %v12141 = vunpack.c.l.b16 %v11110
  %v12142 = vunpack.c.l.b16 %v11111
  %v12143 = vunpack.c.l.b16 %v11112
  %v12144 = vunpack.c.l.b16 %v11113
  %v12145 = vunpack.c.l.b16 %v11114
  %v12146 = vunpack.c.l.b16 %v11115
  %v12147 = vunpack.c.l.b16 %v11116
  %v12148 = vunpack.c.l.b16 %v11117
  %v12149 = vunpack.c.l.b16 %v11118
  %v12150 = vunpack.c.l.b16 %v11119
  %v12151 = vunpack.c.l.b16 %v11120
  %v12152 = vunpack.c.l.b16 %v11121
  %v12153 = vunpack.c.l.b16 %v11122
  %v12154 = vunpack.c.l.b16 %v11123
  %v12155 = vunpack.c.l.b16 %v11124
  %v12156 = vunpack.c.l.b16 %v11125
  %v12157 = vunpack.c.l.b16 %v11126
  %v12158 = vunpack.c.l.b16 %v11127
  %v12159 = vunpack.c.l.b16 %v11128
  %v12160 = vunpack.c.l.b16 %v11129
  %v12161 = vunpack.c.l.b16 %v11130
  %v12162 = vunpack.c.l.b16 %v11131
  %v12163 = vunpack.c.l.b16 %v11132
  %v12164 = vunpack.c.l.b16 %v11133
  %v12165 = vunpack.c.l.b16 %v11134
  %v12166 = vunpack.c.l.b16 %v11135
  %v12167 = vunpack.c.l.b16 %v11136
  %v12168 = vunpack.c.l.b16 %v11137
  %v12169 = vunpack.c.l.b16 %v11138
  %v12170 = vunpack.c.l.b16 %v11139
  %v12171 = vunpack.c.l.b16 %v11140
  %v12172 = vunpack.c.l.b16 %v11141
  %v12173 = vunpack.c.l.b16 %v11142
  %v12174 = vunpack.c.l.b16 %v11143
  %v12175 = vunpack.c.l.b16 %v11144
  %v12176 = vunpack.c.l.b16 %v11145
  %v12177 = vunpack.c.l.b16 %v11146
  %v12178 = vunpack.c.l.b16 %v11147
  %v12179 = vunpack.c.l.b16 %v11148
  %v12180 = vunpack.c.l.b16 %v11149
  %v12181 = vunpack.c.l.b16 %v11150
  %v12182 = vunpack.c.l.b16 %v11151
  %v12183 = vunpack.c.l.b16 %v11152
  %v12184 = vunpack.c.l.b16 %v11153
  %v12185 = vunpack.c.l.b16 %v11154
  %v12186 = vunpack.c.l.b16 %v11155
  %v12187 = vunpack.c.l.b16 %v11156
  %v12188 = vunpack.c.l.b16 %v11157
  %v12189 = vunpack.c.l.b16 %v11158
  %v12190 = vunpack.c.l.b16 %v11159
  %v12191 = vunpack.c.l.b16 %v11160
  %v12192 = vunpack.c.l.b16 %v11161
  %v12193 = vunpack.c.l.b16 %v11162
  %v12194 = vunpack.c.l.b16 %v11163
  %v12195 = vunpack.c.l.b16 %v11164
  %v12196 = vunpack.c.l.b16 %v11165
  %v12197 = vunpack.c.l.b16 %v11166
  %v12198 = vunpack.c.l.b16 %v11167
  %v12199 = vunpack.c.l.b16 %v11168
  %v12200 = vunpack.c.l.b16 %v11169
  %v12201 = vunpack.c.l.b16 %v11170
  %v12202 = vunpack.c.l.b16 %v11171
  %v12203 = vunpack.c.l.b16 %v11172
  %v12204 = vunpack.c.l.b16 %v11173
  %v12205 = vunpack.c.l.b16 %v11174
  %v12206 = vunpack.c.l.b16 %v11175
  %v12207 = vunpack.c.l.b16 %v11176
  %v12208 = vunpack.c.l.b16 %v11177
  %v12209 = vunpack.c.l.b16 %v11178
  %v12210 = vunpack.c.l.b16 %v11179
  %v12211 = vunpack.c.l.b16 %v11180
  %v12212 = vunpack.c.l.b16 %v11181
  %v12213 = vunpack.c.l.b16 %v11182
  %v12214 = vunpack.c.l.b16 %v11183
  %v12215 = vunpack.c.l.b16 %v11184
  %v12216 = vunpack.c.l.b16 %v11185
  %v12217 = vunpack.c.l.b16 %v11186
  %v12218 = vunpack.c.l.b16 %v11187
  %v12219 = vunpack.c.l.b16 %v11188
  %v12220 = vunpack.c.l.b16 %v11189
  %v12221 = vunpack.c.l.b16 %v11190
  %v12222 = vunpack.c.l.b16 %v11191
  %v12223 = vunpack.c.l.b16 %v11192
  %v12224 = vunpack.c.l.b16 %v11193
  %v12225 = vunpack.c.l.b16 %v11194
  %v12226 = vunpack.c.l.b16 %v11195
  %v12227 = vunpack.c.l.b16 %v11196
  %v12228 = vunpack.c.l.b16 %v11197
  %v12229 = vunpack.c.l.b16 %v11198
  %v12230 = vunpack.c.l.b16 %v11199
  %v12231 = vunpack.c.l.b16 %v11200
  %v12232 = vunpack.c.l.b16 %v11201
  %v12233 = vunpack.c.l.b16 %v11202
  %v12234 = vunpack.c.l.b16 %v11203
  %v12235 = vunpack.c.l.b16 %v11204
  %v12236 = vunpack.c.l.b16 %v11205
  %v12237 = vunpack.c.l.b16 %v11206
  %v12238 = vunpack.c.l.b16 %v11207
  %v12239 = vunpack.c.l.b16 %v11208
  %v12240 = vunpack.c.l.b16 %v11209
  %v12241 = vunpack.c.l.b16 %v11210
  %v12242 = vunpack.c.l.b16 %v11211
  %v12243 = vunpack.c.l.b16 %v11212
  %v12244 = vunpack.c.l.b16 %v11213
  %v12245 = vunpack.c.l.b16 %v11214
  %v12246 = vunpack.c.l.b16 %v11215
  %v12247 = vunpack.c.l.b16 %v11216
  %v12248 = vunpack.c.l.b16 %v11217
  %v12249 = vunpack.c.l.b16 %v11218
  %v12250 = vunpack.c.l.b16 %v11219
  %v12251 = vunpack.c.l.b16 %v11220
  %v12252 = vunpack.c.l.b16 %v11221
  %v12253 = vunpack.c.l.b16 %v11222
  %v12254 = vunpack.c.l.b16 %v11223
  %v12255 = vunpack.c.l.b16 %v11224
  %v12256 = vunpack.c.l.b16 %v11225
  %v12257 = vunpack.c.l.b16 %v11226
  %v12258 = vunpack.c.l.b16 %v11227
  %v12259 = vunpack.c.l.b16 %v11228
  %v12260 = vunpack.c.l.b16 %v11229
  %v12261 = vunpack.c.l.b16 %v11230
  %v12262 = vunpack.c.l.b16 %v11231
  %v12263 = vunpack.c.l.b16 %v11232
  %v12264 = vunpack.c.l.b16 %v11233
  %v12265 = vunpack.c.l.b16 %v11234
  %v12266 = vunpack.c.l.b16 %v11235
  %v12267 = vunpack.c.l.b16 %v11236
  %v12268 = vunpack.c.l.b16 %v11237
  %v12269 = vunpack.c.l.b16 %v11238
  %v12270 = vunpack.c.l.b16 %v11239
  %v12271 = vunpack.c.l.b16 %v11240
  %v12272 = vunpack.c.l.b16 %v11241
  %v12273 = vunpack.c.l.b16 %v11242
  %v12274 = vunpack.c.l.b16 %v11243
  %v12275 = vunpack.c.l.b16 %v11244
  %v12276 = vunpack.c.l.b16 %v11245
  %v12277 = vunpack.c.l.b16 %v11246
  %v12278 = vunpack.c.l.b16 %v11247
  %v12279 = vunpack.c.l.b16 %v11248
  %v12280 = vunpack.c.l.b16 %v11249
  %v12281 = vunpack.c.l.b16 %v11250
  %v12282 = vunpack.c.l.b16 %v11251
  %v12283 = vunpack.c.l.b16 %v11252
  %v12284 = vunpack.c.l.b16 %v11253
  %v12285 = vunpack.c.l.b16 %v11254
  %v12286 = vunpack.c.l.b16 %v11255
  %v12287 = vunpack.c.l.b16 %v11256
  %v12288 = vunpack.c.l.b16 %v11257
  %v12289 = vunpack.c.l.b16 %v11258
  %v12290 = vunpack.c.l.b16 %v11259
  %v12291 = vunpack.c.l.b16 %v11260
  %v12292 = vunpack.c.l.b16 %v11261
  %v12293 = vunpack.c.l.b16 %v11262
  %v12294 = vunpack.c.l.b16 %v11263
  %v12295 = vunpack.c.l.b16 %v11264
  %v12296 = vunpack.c.l.b16 %v11265
  %v12297 = vunpack.c.l.b16 %v11266
  %v12298 = vunpack.c.l.b16 %v11267
  %v12299 = vunpack.c.l.b16 %v11268
  %v12300 = vunpack.c.l.b16 %v11269
  %v12301 = vunpack.c.l.b16 %v11270
  %v12302 = vunpack.c.l.b16 %v11271
  %v12303 = vunpack.c.l.b16 %v11272
  %v12304 = vunpack.c.l.b16 %v11273
  %v12305 = vunpack.c.l.b16 %v11274
  %v12306 = vunpack.c.l.b16 %v11275
  %v12307 = vunpack.c.l.b16 %v11276
  %v12308 = vunpack.c.l.b16 %v11277
  %v12309 = vunpack.c.l.b16 %v11278
  %v12310 = vunpack.c.l.b16 %v11279
  %v12311 = vunpack.c.l.b16 %v11280
  %v12312 = vunpack.c.l.b16 %v11281
  %v12313 = vunpack.c.l.b16 %v11282
  %v12314 = vunpack.c.l.b16 %v11283
  %v12315 = vunpack.c.l.b16 %v11284
  %v12316 = vunpack.c.l.b16 %v11285
  %v12317 = vunpack.c.l.b16 %v11286
  %v12318 = vunpack.c.l.b16 %v11287
  %v12319 = vunpack.c.l.b16 %v11288
  %v12320 = vunpack.c.l.b16 %v11289
  %v12321 = vunpack.c.l.b16 %v11290
  %v12322 = vunpack.c.l.b16 %v11291
  %v12323 = vunpack.c.l.b16 %v11292
  %v12324 = vunpack.c.l.b16 %v11293
  %v12325 = vunpack.c.l.b16 %v11294
  %v12326 = vunpack.c.l.b16 %v11295
  %v12327 = vunpack.c.l.b16 %v11296
  %v12328 = vunpack.c.l.b16 %v11297
  %v12329 = vunpack.c.l.b16 %v11298
  %v12330 = vunpack.c.l.b16 %v11299
  %v12331 = vunpack.c.l.b16 %v11300
  %v12332 = vunpack.c.l.b16 %v11301
  %v12333 = vunpack.c.l.b16 %v11302
  %v12334 = vunpack.c.l.b16 %v11303
  %v12335 = vunpack.c.l.b16 %v11304
  %v12336 = vunpack.c.l.b16 %v11305
  %v12337 = vunpack.c.l.b16 %v11306
  %v12338 = vunpack.c.l.b16 %v11307
  %v12339 = vunpack.c.l.b16 %v11308
  %v12340 = vunpack.c.l.b16 %v11309
  %v12341 = vunpack.c.l.b16 %v11310
  %v12342 = vunpack.c.l.b16 %v11311
  %v12343 = vunpack.c.l.b16 %v11312
  %v12344 = vunpack.c.l.b16 %v11313
  %v12345 = vunpack.c.l.b16 %v11314
  %v12346 = vunpack.c.l.b16 %v11315
  %v12347 = vunpack.c.l.b16 %v11316
  %v12348 = vunpack.c.l.b16 %v11317
  %v12349 = vunpack.c.l.b16 %v11318
  %v12350 = vunpack.c.l.b16 %v11319
  %v12351 = vunpack.c.l.b16 %v11320
  %v12352 = vunpack.c.l.b16 %v11321
  %v12353 = vunpack.c.l.b16 %v11322
  %v12354 = vunpack.c.l.b16 %v11323
  %v12355 = vunpack.c.l.b16 %v11324
  %v12356 = vunpack.c.l.b16 %v11325
  %v12357 = vunpack.c.l.b16 %v11326
  %v12358 = vunpack.c.l.b16 %v11327
  %v12359 = vunpack.c.l.b16 %v11328
  %v12360 = vunpack.c.l.b16 %v11329
  %v12361 = vunpack.c.l.b16 %v11330
  %v12362 = vunpack.c.l.b16 %v11331
  %v12363 = vunpack.c.l.b16 %v11332
  %v12364 = vunpack.c.l.b16 %v11333
  %v12365 = vunpack.c.l.b16 %v11334
  %v12366 = vunpack.c.l.b16 %v11335
  %v12367 = vunpack.c.l.b16 %v11336
  %v12368 = vunpack.c.l.b16 %v11337
  %v12369 = vunpack.c.l.b16 %v11338
  %v12370 = vunpack.c.l.b16 %v11339
  %v12371 = vunpack.c.l.b16 %v11340
  %v12372 = vunpack.c.l.b16 %v11341
  %v12373 = vunpack.c.l.b16 %v11342
  %v12374 = vunpack.c.l.b16 %v11343
  %v12375 = vunpack.c.l.b16 %v11344
  %v12376 = vunpack.c.l.b16 %v11345
  %v12377 = vunpack.c.l.b16 %v11346
  %v12378 = vunpack.c.l.b16 %v11347
  %v12379 = vunpack.c.l.b16 %v11348
  %v12380 = vunpack.c.l.b16 %v11349
  %v12381 = vunpack.c.l.b16 %v11350
  %v12382 = vunpack.c.l.b16 %v11351
  %v12383 = vunpack.c.l.b16 %v11352
  %v12384 = vunpack.c.l.b16 %v11353
  %v12385 = vunpack.c.l.b16 %v11354
  %v12386 = vunpack.c.l.b16 %v11355
  %v12387 = vunpack.c.l.b16 %v11356
  %v12388 = vunpack.c.l.b16 %v11357
  %v12389 = vunpack.c.l.b16 %v11358
  %v12390 = vunpack.c.l.b16 %v11359
  %v12391 = vunpack.c.l.b16 %v11360
  %v12392 = vunpack.c.l.b16 %v11361
  %v12393 = vunpack.c.l.b16 %v11362
  %v12394 = vunpack.c.l.b16 %v11363
  %v12395 = vpack.c.b16 %v11884, %v11883
  %v12396 = vpack.c.b16 %v11886, %v11885
  %v12397 = vpack.c.b16 %v11888, %v11887
  %v12398 = vpack.c.b16 %v11890, %v11889
  %v12399 = vpack.c.b16 %v11892, %v11891
  %v12400 = vpack.c.b16 %v11894, %v11893
  %v12401 = vpack.c.b16 %v11896, %v11895
  %v12402 = vpack.c.b16 %v11898, %v11897
  %v12403 = vpack.c.b16 %v11900, %v11899
  %v12404 = vpack.c.b16 %v11902, %v11901
  %v12405 = vpack.c.b16 %v11904, %v11903
  %v12406 = vpack.c.b16 %v11906, %v11905
  %v12407 = vpack.c.b16 %v11908, %v11907
  %v12408 = vpack.c.b16 %v11910, %v11909
  %v12409 = vpack.c.b16 %v11912, %v11911
  %v12410 = vpack.c.b16 %v11914, %v11913
  %v12411 = vpack.c.b16 %v11916, %v11915
  %v12412 = vpack.c.b16 %v11918, %v11917
  %v12413 = vpack.c.b16 %v11920, %v11919
  %v12414 = vpack.c.b16 %v11922, %v11921
  %v12415 = vpack.c.b16 %v11924, %v11923
  %v12416 = vpack.c.b16 %v11926, %v11925
  %v12417 = vpack.c.b16 %v11928, %v11927
  %v12418 = vpack.c.b16 %v11930, %v11929
  %v12419 = vpack.c.b16 %v11932, %v11931
  %v12420 = vpack.c.b16 %v11934, %v11933
  %v12421 = vpack.c.b16 %v11936, %v11935
  %v12422 = vpack.c.b16 %v11938, %v11937
  %v12423 = vpack.c.b16 %v11940, %v11939
  %v12424 = vpack.c.b16 %v11942, %v11941
  %v12425 = vpack.c.b16 %v11944, %v11943
  %v12426 = vpack.c.b16 %v11946, %v11945
  %v12427 = vpack.c.b16 %v11948, %v11947
  %v12428 = vpack.c.b16 %v11950, %v11949
  %v12429 = vpack.c.b16 %v11952, %v11951
  %v12430 = vpack.c.b16 %v11954, %v11953
  %v12431 = vpack.c.b16 %v11956, %v11955
  %v12432 = vpack.c.b16 %v11958, %v11957
  %v12433 = vpack.c.b16 %v11960, %v11959
  %v12434 = vpack.c.b16 %v11962, %v11961
  %v12435 = vpack.c.b16 %v11964, %v11963
  %v12436 = vpack.c.b16 %v11966, %v11965
  %v12437 = vpack.c.b16 %v11968, %v11967
  %v12438 = vpack.c.b16 %v11970, %v11969
  %v12439 = vpack.c.b16 %v11972, %v11971
  %v12440 = vpack.c.b16 %v11974, %v11973
  %v12441 = vpack.c.b16 %v11976, %v11975
  %v12442 = vpack.c.b16 %v11978, %v11977
  %v12443 = vpack.c.b16 %v11980, %v11979
  %v12444 = vpack.c.b16 %v11982, %v11981
  %v12445 = vpack.c.b16 %v11984, %v11983
  %v12446 = vpack.c.b16 %v11986, %v11985
  %v12447 = vpack.c.b16 %v11988, %v11987
  %v12448 = vpack.c.b16 %v11990, %v11989
  %v12449 = vpack.c.b16 %v11992, %v11991
  %v12450 = vpack.c.b16 %v11994, %v11993
  %v12451 = vpack.c.b16 %v11996, %v11995
  %v12452 = vpack.c.b16 %v11998, %v11997
  %v12453 = vpack.c.b16 %v12000, %v11999
  %v12454 = vpack.c.b16 %v12002, %v12001
  %v12455 = vpack.c.b16 %v12004, %v12003
  %v12456 = vpack.c.b16 %v12006, %v12005
  %v12457 = vpack.c.b16 %v12008, %v12007
  %v12458 = vpack.c.b16 %v12010, %v12009
  %v12459 = vpack.c.b16 %v12012, %v12011
  %v12460 = vpack.c.b16 %v12014, %v12013
  %v12461 = vpack.c.b16 %v12016, %v12015
  %v12462 = vpack.c.b16 %v12018, %v12017
  %v12463 = vpack.c.b16 %v12020, %v12019
  %v12464 = vpack.c.b16 %v12022, %v12021
  %v12465 = vpack.c.b16 %v12024, %v12023
  %v12466 = vpack.c.b16 %v12026, %v12025
  %v12467 = vpack.c.b16 %v12028, %v12027
  %v12468 = vpack.c.b16 %v12030, %v12029
  %v12469 = vpack.c.b16 %v12032, %v12031
  %v12470 = vpack.c.b16 %v12034, %v12033
  %v12471 = vpack.c.b16 %v12036, %v12035
  %v12472 = vpack.c.b16 %v12038, %v12037
  %v12473 = vpack.c.b16 %v12040, %v12039
  %v12474 = vpack.c.b16 %v12042, %v12041
  %v12475 = vpack.c.b16 %v12044, %v12043
  %v12476 = vpack.c.b16 %v12046, %v12045
  %v12477 = vpack.c.b16 %v12048, %v12047
  %v12478 = vpack.c.b16 %v12050, %v12049
  %v12479 = vpack.c.b16 %v12052, %v12051
  %v12480 = vpack.c.b16 %v12054, %v12053
  %v12481 = vpack.c.b16 %v12056, %v12055
  %v12482 = vpack.c.b16 %v12058, %v12057
  %v12483 = vpack.c.b16 %v12060, %v12059
  %v12484 = vpack.c.b16 %v12062, %v12061
  %v12485 = vpack.c.b16 %v12064, %v12063
  %v12486 = vpack.c.b16 %v12066, %v12065
  %v12487 = vpack.c.b16 %v12068, %v12067
  %v12488 = vpack.c.b16 %v12070, %v12069
  %v12489 = vpack.c.b16 %v12072, %v12071
  %v12490 = vpack.c.b16 %v12074, %v12073
  %v12491 = vpack.c.b16 %v12076, %v12075
  %v12492 = vpack.c.b16 %v12078, %v12077
  %v12493 = vpack.c.b16 %v12080, %v12079
  %v12494 = vpack.c.b16 %v12082, %v12081
  %v12495 = vpack.c.b16 %v12084, %v12083
  %v12496 = vpack.c.b16 %v12086, %v12085
  %v12497 = vpack.c.b16 %v12088, %v12087
  %v12498 = vpack.c.b16 %v12090, %v12089
  %v12499 = vpack.c.b16 %v12092, %v12091
  %v12500 = vpack.c.b16 %v12094, %v12093
  %v12501 = vpack.c.b16 %v12096, %v12095
  %v12502 = vpack.c.b16 %v12098, %v12097
  %v12503 = vpack.c.b16 %v12100, %v12099
  %v12504 = vpack.c.b16 %v12102, %v12101
  %v12505 = vpack.c.b16 %v12104, %v12103
  %v12506 = vpack.c.b16 %v12106, %v12105
  %v12507 = vpack.c.b16 %v12108, %v12107
  %v12508 = vpack.c.b16 %v12110, %v12109
  %v12509 = vpack.c.b16 %v12112, %v12111
  %v12510 = vpack.c.b16 %v12114, %v12113
  %v12511 = vpack.c.b16 %v12116, %v12115
  %v12512 = vpack.c.b16 %v12118, %v12117
  %v12513 = vpack.c.b16 %v12120, %v12119
  %v12514 = vpack.c.b16 %v12122, %v12121
  %v12515 = vpack.c.b16 %v12124, %v12123
  %v12516 = vpack.c.b16 %v12126, %v12125
  %v12517 = vpack.c.b16 %v12128, %v12127
  %v12518 = vpack.c.b16 %v12130, %v12129
  %v12519 = vpack.c.b16 %v12132, %v12131
  %v12520 = vpack.c.b16 %v12134, %v12133
  %v12521 = vpack.c.b16 %v12136, %v12135
  %v12522 = vpack.c.b16 %v12138, %v12137
  %v12523 = vpack.c.b16 %v12140, %v12139
  %v12524 = vpack.c.b16 %v12142, %v12141
  %v12525 = vpack.c.b16 %v12144, %v12143
  %v12526 = vpack.c.b16 %v12146, %v12145
  %v12527 = vpack.c.b16 %v12148, %v12147
  %v12528 = vpack.c.b16 %v12150, %v12149
  %v12529 = vpack.c.b16 %v12152, %v12151
  %v12530 = vpack.c.b16 %v12154, %v12153
  %v12531 = vpack.c.b16 %v12156, %v12155
  %v12532 = vpack.c.b16 %v12158, %v12157
  %v12533 = vpack.c.b16 %v12160, %v12159
  %v12534 = vpack.c.b16 %v12162, %v12161
  %v12535 = vpack.c.b16 %v12164, %v12163
  %v12536 = vpack.c.b16 %v12166, %v12165
  %v12537 = vpack.c.b16 %v12168, %v12167
  %v12538 = vpack.c.b16 %v12170, %v12169
  %v12539 = vpack.c.b16 %v12172, %v12171
  %v12540 = vpack.c.b16 %v12174, %v12173
  %v12541 = vpack.c.b16 %v12176, %v12175
  %v12542 = vpack.c.b16 %v12178, %v12177
  %v12543 = vpack.c.b16 %v12180, %v12179
  %v12544 = vpack.c.b16 %v12182, %v12181
  %v12545 = vpack.c.b16 %v12184, %v12183
  %v12546 = vpack.c.b16 %v12186, %v12185
  %v12547 = vpack.c.b16 %v12188, %v12187
  %v12548 = vpack.c.b16 %v12190, %v12189
  %v12549 = vpack.c.b16 %v12192, %v12191
  %v12550 = vpack.c.b16 %v12194, %v12193
  %v12551 = vpack.c.b16 %v12196, %v12195
  %v12552 = vpack.c.b16 %v12198, %v12197
  %v12553 = vpack.c.b16 %v12200, %v12199
  %v12554 = vpack.c.b16 %v12202, %v12201
  %v12555 = vpack.c.b16 %v12204, %v12203
  %v12556 = vpack.c.b16 %v12206, %v12205
  %v12557 = vpack.c.b16 %v12208, %v12207
  %v12558 = vpack.c.b16 %v12210, %v12209
  %v12559 = vpack.c.b16 %v12212, %v12211
  %v12560 = vpack.c.b16 %v12214, %v12213
  %v12561 = vpack.c.b16 %v12216, %v12215
  %v12562 = vpack.c.b16 %v12218, %v12217
  %v12563 = vpack.c.b16 %v12220, %v12219
  %v12564 = vpack.c.b16 %v12222, %v12221
  %v12565 = vpack.c.b16 %v12224, %v12223
  %v12566 = vpack.c.b16 %v12226, %v12225
  %v12567 = vpack.c.b16 %v12228, %v12227
  %v12568 = vpack.c.b16 %v12230, %v12229
  %v12569 = vpack.c.b16 %v12232, %v12231
  %v12570 = vpack.c.b16 %v12234, %v12233
  %v12571 = vpack.c.b16 %v12236, %v12235
  %v12572 = vpack.c.b16 %v12238, %v12237
  %v12573 = vpack.c.b16 %v12240, %v12239
  %v12574 = vpack.c.b16 %v12242, %v12241
  %v12575 = vpack.c.b16 %v12244, %v12243
  %v12576 = vpack.c.b16 %v12246, %v12245
  %v12577 = vpack.c.b16 %v12248, %v12247
  %v12578 = vpack.c.b16 %v12250, %v12249
  %v12579 = vpack.c.b16 %v12252, %v12251
  %v12580 = vpack.c.b16 %v12254, %v12253
  %v12581 = vpack.c.b16 %v12256, %v12255
  %v12582 = vpack.c.b16 %v12258, %v12257
  %v12583 = vpack.c.b16 %v12260, %v12259
  %v12584 = vpack.c.b16 %v12262, %v12261
  %v12585 = vpack.c.b16 %v12264, %v12263
  %v12586 = vpack.c.b16 %v12266, %v12265
  %v12587 = vpack.c.b16 %v12268, %v12267
  %v12588 = vpack.c.b16 %v12270, %v12269
  %v12589 = vpack.c.b16 %v12272, %v12271
  %v12590 = vpack.c.b16 %v12274, %v12273
  %v12591 = vpack.c.b16 %v12276, %v12275
  %v12592 = vpack.c.b16 %v12278, %v12277
  %v12593 = vpack.c.b16 %v12280, %v12279
  %v12594 = vpack.c.b16 %v12282, %v12281
  %v12595 = vpack.c.b16 %v12284, %v12283
  %v12596 = vpack.c.b16 %v12286, %v12285
  %v12597 = vpack.c.b16 %v12288, %v12287
  %v12598 = vpack.c.b16 %v12290, %v12289
  %v12599 = vpack.c.b16 %v12292, %v12291
  %v12600 = vpack.c.b16 %v12294, %v12293
  %v12601 = vpack.c.b16 %v12296, %v12295
  %v12602 = vpack.c.b16 %v12298, %v12297
  %v12603 = vpack.c.b16 %v12300, %v12299
  %v12604 = vpack.c.b16 %v12302, %v12301
  %v12605 = vpack.c.b16 %v12304, %v12303
  %v12606 = vpack.c.b16 %v12306, %v12305
  %v12607 = vpack.c.b16 %v12308, %v12307
  %v12608 = vpack.c.b16 %v12310, %v12309
  %v12609 = vpack.c.b16 %v12312, %v12311
  %v12610 = vpack.c.b16 %v12314, %v12313
  %v12611 = vpack.c.b16 %v12316, %v12315
  %v12612 = vpack.c.b16 %v12318, %v12317
  %v12613 = vpack.c.b16 %v12320, %v12319
  %v12614 = vpack.c.b16 %v12322, %v12321
  %v12615 = vpack.c.b16 %v12324, %v12323
  %v12616 = vpack.c.b16 %v12326, %v12325
  %v12617 = vpack.c.b16 %v12328, %v12327
  %v12618 = vpack.c.b16 %v12330, %v12329
  %v12619 = vpack.c.b16 %v12332, %v12331
  %v12620 = vpack.c.b16 %v12334, %v12333
  %v12621 = vpack.c.b16 %v12336, %v12335
  %v12622 = vpack.c.b16 %v12338, %v12337
  %v12623 = vpack.c.b16 %v12340, %v12339
  %v12624 = vpack.c.b16 %v12342, %v12341
  %v12625 = vpack.c.b16 %v12344, %v12343
  %v12626 = vpack.c.b16 %v12346, %v12345
  %v12627 = vpack.c.b16 %v12348, %v12347
  %v12628 = vpack.c.b16 %v12350, %v12349
  %v12629 = vpack.c.b16 %v12352, %v12351
  %v12630 = vpack.c.b16 %v12354, %v12353
  %v12631 = vpack.c.b16 %v12356, %v12355
  %v12632 = vpack.c.b16 %v12358, %v12357
  %v12633 = vpack.c.b16 %v12360, %v12359
  %v12634 = vpack.c.b16 %v12362, %v12361
  %v12635 = vpack.c.b16 %v12364, %v12363
  %v12636 = vpack.c.b16 %v12366, %v12365
  %v12637 = vpack.c.b16 %v12368, %v12367
  %v12638 = vpack.c.b16 %v12370, %v12369
  %v12639 = vpack.c.b16 %v12372, %v12371
  %v12640 = vpack.c.b16 %v12374, %v12373
  %v12641 = vpack.c.b16 %v12376, %v12375
  %v12642 = vpack.c.b16 %v12378, %v12377
  %v12643 = vpack.c.b16 %v12380, %v12379
  %v12644 = vpack.c.b16 %v12382, %v12381
  %v12645 = vpack.c.b16 %v12384, %v12383
  %v12646 = vpack.c.b16 %v12386, %v12385
  %v12647 = vpack.c.b16 %v12388, %v12387
  %v12648 = vpack.c.b16 %v12390, %v12389
  %v12649 = vpack.c.b16 %v12392, %v12391
  %v12650 = vpack.c.b16 %v12394, %v12393
  %12907 = vmatprep.subr.bf16.mxu0 0
  %12908 = vmatpush1.bf16.msra.mxu0 %v12395
  %12909 = vmatprep.subr.bf16.mxu0 0
  %12910 = vmatpush1.bf16.msra.mxu0 %v12396
  %12911 = vmatprep.subr.bf16.mxu0 0
  %12912 = vmatpush1.bf16.msra.mxu0 %v12397
  %12913 = vmatprep.subr.bf16.mxu0 0
  %12914 = vmatpush1.bf16.msra.mxu0 %v12398
  %12915 = vmatprep.subr.bf16.mxu0 0
  %12916 = vmatpush1.bf16.msra.mxu0 %v12399
  %12917 = vmatprep.subr.bf16.mxu0 0
  %12918 = vmatpush1.bf16.msra.mxu0 %v12400
  %12919 = vmatprep.subr.bf16.mxu0 0
  %12920 = vmatpush1.bf16.msra.mxu0 %v12401
  %12921 = vmatprep.subr.bf16.mxu0 0
  %12922 = vmatpush1.bf16.msra.mxu0 %v12402
  %12923 = vmatprep.subr.bf16.mxu0 0
  %12924 = vmatpush1.bf16.msra.mxu0 %v12403
  %12925 = vmatprep.subr.bf16.mxu0 0
  %12926 = vmatpush1.bf16.msra.mxu0 %v12404
  %12927 = vmatprep.subr.bf16.mxu0 0
  %12928 = vmatpush1.bf16.msra.mxu0 %v12405
  %12929 = vmatprep.subr.bf16.mxu0 0
  %12930 = vmatpush1.bf16.msra.mxu0 %v12406
  %12931 = vmatprep.subr.bf16.mxu0 0
  %12932 = vmatpush1.bf16.msra.mxu0 %v12407
  %12933 = vmatprep.subr.bf16.mxu0 0
  %12934 = vmatpush1.bf16.msra.mxu0 %v12408
  %12935 = vmatprep.subr.bf16.mxu0 0
  %12936 = vmatpush1.bf16.msra.mxu0 %v12409
  %12937 = vmatprep.subr.bf16.mxu0 0
  %12938 = vmatpush1.bf16.msra.mxu0 %v12410
  %12939 = vmatprep.mubr.bf16.mxu0 %v10821
  %12940 = vmatmul.mubr.bf16.gmra.mrb[0].mxu0 %v10820
  %v12941 = vpop.f32.mrb[0].mxu0
  %v12942 = vadd.f32 %v11369, %v12941
  %v12943 = vpop.f32.mrb[0].mxu0
  %v12944 = vpop.f32.mrb[0].mxu0
  %v12945 = vadd.f32 %v11369, %v12944
  %v12946 = vpop.f32.mrb[0].mxu0
  %12947 = vdwg.mxu0
  %12948 = vmatprep.subr.bf16.mxu0 0
  %12949 = vmatpush1.bf16.msra.mxu0 %v12411
  %12950 = vmatprep.subr.bf16.mxu0 0
  %12951 = vmatpush1.bf16.msra.mxu0 %v12412
  %12952 = vmatprep.subr.bf16.mxu0 0
  %12953 = vmatpush1.bf16.msra.mxu0 %v12413
  %12954 = vmatprep.subr.bf16.mxu0 0
  %12955 = vmatpush1.bf16.msra.mxu0 %v12414
  %12956 = vmatprep.subr.bf16.mxu0 0
  %12957 = vmatpush1.bf16.msra.mxu0 %v12415
  %12958 = vmatprep.subr.bf16.mxu0 0
  %12959 = vmatpush1.bf16.msra.mxu0 %v12416
  %12960 = vmatprep.subr.bf16.mxu0 0
  %12961 = vmatpush1.bf16.msra.mxu0 %v12417
  %12962 = vmatprep.subr.bf16.mxu0 0
  %12963 = vmatpush1.bf16.msra.mxu0 %v12418
  %12964 = vmatprep.subr.bf16.mxu0 0
  %12965 = vmatpush1.bf16.msra.mxu0 %v12419
  %12966 = vmatprep.subr.bf16.mxu0 0
  %12967 = vmatpush1.bf16.msra.mxu0 %v12420
  %12968 = vmatprep.subr.bf16.mxu0 0
  %12969 = vmatpush1.bf16.msra.mxu0 %v12421
  %12970 = vmatprep.subr.bf16.mxu0 0
  %12971 = vmatpush1.bf16.msra.mxu0 %v12422
  %12972 = vmatprep.subr.bf16.mxu0 0
  %12973 = vmatpush1.bf16.msra.mxu0 %v12423
  %12974 = vmatprep.subr.bf16.mxu0 0
  %12975 = vmatpush1.bf16.msra.mxu0 %v12424
  %12976 = vmatprep.subr.bf16.mxu0 0
  %12977 = vmatpush1.bf16.msra.mxu0 %v12425
  %12978 = vmatprep.subr.bf16.mxu0 0
  %12979 = vmatpush1.bf16.msra.mxu0 %v12426
  %12980 = vmatprep.mubr.bf16.mxu0 %v10823
  %12981 = vmatmul.mubr.bf16.gmra.mrb[0].mxu0 %v10822
  %v12982 = vpop.f32.mrb[0].mxu0
  %v12983 = vadd.f32 %v12942, %v12982
  %v12984 = vpop.f32.mrb[0].mxu0
  %v12985 = vpop.f32.mrb[0].mxu0
  %v12986 = vadd.f32 %v12945, %v12985
  %v12987 = vpop.f32.mrb[0].mxu0
  %12988 = vdwg.mxu0
  %12989 = vmatprep.subr.bf16.mxu0 0
  %12990 = vmatpush1.bf16.msra.mxu0 %v12427
  %12991 = vmatprep.subr.bf16.mxu0 0
  %12992 = vmatpush1.bf16.msra.mxu0 %v12428
  %12993 = vmatprep.subr.bf16.mxu0 0
  %12994 = vmatpush1.bf16.msra.mxu0 %v12429
  %12995 = vmatprep.subr.bf16.mxu0 0
  %12996 = vmatpush1.bf16.msra.mxu0 %v12430
  %12997 = vmatprep.subr.bf16.mxu0 0
  %12998 = vmatpush1.bf16.msra.mxu0 %v12431
  %12999 = vmatprep.subr.bf16.mxu0 0
  %13000 = vmatpush1.bf16.msra.mxu0 %v12432
  %13001 = vmatprep.subr.bf16.mxu0 0
  %13002 = vmatpush1.bf16.msra.mxu0 %v12433
  %13003 = vmatprep.subr.bf16.mxu0 0
  %13004 = vmatpush1.bf16.msra.mxu0 %v12434
  %13005 = vmatprep.subr.bf16.mxu0 0
  %13006 = vmatpush1.bf16.msra.mxu0 %v12435
  %13007 = vmatprep.subr.bf16.mxu0 0
  %13008 = vmatpush1.bf16.msra.mxu0 %v12436
  %13009 = vmatprep.subr.bf16.mxu0 0
  %13010 = vmatpush1.bf16.msra.mxu0 %v12437
  %13011 = vmatprep.subr.bf16.mxu0 0
  %13012 = vmatpush1.bf16.msra.mxu0 %v12438
  %13013 = vmatprep.subr.bf16.mxu0 0
  %13014 = vmatpush1.bf16.msra.mxu0 %v12439
  %13015 = vmatprep.subr.bf16.mxu0 0
  %13016 = vmatpush1.bf16.msra.mxu0 %v12440
  %13017 = vmatprep.subr.bf16.mxu0 0
  %13018 = vmatpush1.bf16.msra.mxu0 %v12441
  %13019 = vmatprep.subr.bf16.mxu0 0
  %13020 = vmatpush1.bf16.msra.mxu0 %v12442
  %13021 = vmatprep.mubr.bf16.mxu0 %v10825
  %13022 = vmatmul.mubr.bf16.gmra.mrb[0].mxu0 %v10824
  %v13023 = vpop.f32.mrb[0].mxu0
  %v13024 = vadd.f32 %v12983, %v13023
  %v13025 = vpop.f32.mrb[0].mxu0
  %v13026 = vpop.f32.mrb[0].mxu0
  %v13027 = vadd.f32 %v12986, %v13026
  %v13028 = vpop.f32.mrb[0].mxu0
  %13029 = vdwg.mxu0
  %13030 = vmatprep.subr.bf16.mxu0 0
  %13031 = vmatpush1.bf16.msra.mxu0 %v12443
  %13032 = vmatprep.subr.bf16.mxu0 0
  %13033 = vmatpush1.bf16.msra.mxu0 %v12444
  %13034 = vmatprep.subr.bf16.mxu0 0
  %13035 = vmatpush1.bf16.msra.mxu0 %v12445
  %13036 = vmatprep.subr.bf16.mxu0 0
  %13037 = vmatpush1.bf16.msra.mxu0 %v12446
  %13038 = vmatprep.subr.bf16.mxu0 0
  %13039 = vmatpush1.bf16.msra.mxu0 %v12447
  %13040 = vmatprep.subr.bf16.mxu0 0
  %13041 = vmatpush1.bf16.msra.mxu0 %v12448
  %13042 = vmatprep.subr.bf16.mxu0 0
  %13043 = vmatpush1.bf16.msra.mxu0 %v12449
  %13044 = vmatprep.subr.bf16.mxu0 0
  %13045 = vmatpush1.bf16.msra.mxu0 %v12450
  %13046 = vmatprep.subr.bf16.mxu0 0
  %13047 = vmatpush1.bf16.msra.mxu0 %v12451
  %13048 = vmatprep.subr.bf16.mxu0 0
  %13049 = vmatpush1.bf16.msra.mxu0 %v12452
  %13050 = vmatprep.subr.bf16.mxu0 0
  %13051 = vmatpush1.bf16.msra.mxu0 %v12453
  %13052 = vmatprep.subr.bf16.mxu0 0
  %13053 = vmatpush1.bf16.msra.mxu0 %v12454
  %13054 = vmatprep.subr.bf16.mxu0 0
  %13055 = vmatpush1.bf16.msra.mxu0 %v12455
  %13056 = vmatprep.subr.bf16.mxu0 0
  %13057 = vmatpush1.bf16.msra.mxu0 %v12456
  %13058 = vmatprep.subr.bf16.mxu0 0
  %13059 = vmatpush1.bf16.msra.mxu0 %v12457
  %13060 = vmatprep.subr.bf16.mxu0 0
  %13061 = vmatpush1.bf16.msra.mxu0 %v12458
  %13062 = vmatprep.mubr.bf16.mxu0 %v10827
  %13063 = vmatmul.mubr.bf16.gmra.mrb[0].mxu0 %v10826
  %v13064 = vpop.f32.mrb[0].mxu0
  %v13065 = vadd.f32 %v13024, %v13064
  %v13066 = vpop.f32.mrb[0].mxu0
  %v13067 = vpop.f32.mrb[0].mxu0
  %v13068 = vadd.f32 %v13027, %v13067
  %v13069 = vpop.f32.mrb[0].mxu0
  %13070 = vdwg.mxu0
  %13071 = vmatprep.subr.bf16.mxu0 0
  %13072 = vmatpush1.bf16.msra.mxu0 %v12459
  %13073 = vmatprep.subr.bf16.mxu0 0
  %13074 = vmatpush1.bf16.msra.mxu0 %v12460
  %13075 = vmatprep.subr.bf16.mxu0 0
  %13076 = vmatpush1.bf16.msra.mxu0 %v12461
  %13077 = vmatprep.subr.bf16.mxu0 0
  %13078 = vmatpush1.bf16.msra.mxu0 %v12462
  %13079 = vmatprep.subr.bf16.mxu0 0
  %13080 = vmatpush1.bf16.msra.mxu0 %v12463
  %13081 = vmatprep.subr.bf16.mxu0 0
  %13082 = vmatpush1.bf16.msra.mxu0 %v12464
  %13083 = vmatprep.subr.bf16.mxu0 0
  %13084 = vmatpush1.bf16.msra.mxu0 %v12465
  %13085 = vmatprep.subr.bf16.mxu0 0
  %13086 = vmatpush1.bf16.msra.mxu0 %v12466
  %13087 = vmatprep.subr.bf16.mxu0 0
  %13088 = vmatpush1.bf16.msra.mxu0 %v12467
  %13089 = vmatprep.subr.bf16.mxu0 0
  %13090 = vmatpush1.bf16.msra.mxu0 %v12468
  %13091 = vmatprep.subr.bf16.mxu0 0
  %13092 = vmatpush1.bf16.msra.mxu0 %v12469
  %13093 = vmatprep.subr.bf16.mxu0 0
  %13094 = vmatpush1.bf16.msra.mxu0 %v12470
  %13095 = vmatprep.subr.bf16.mxu0 0
  %13096 = vmatpush1.bf16.msra.mxu0 %v12471
  %13097 = vmatprep.subr.bf16.mxu0 0
  %13098 = vmatpush1.bf16.msra.mxu0 %v12472
  %13099 = vmatprep.subr.bf16.mxu0 0
  %13100 = vmatpush1.bf16.msra.mxu0 %v12473
  %13101 = vmatprep.subr.bf16.mxu0 0
  %13102 = vmatpush1.bf16.msra.mxu0 %v12474
  %13103 = vmatprep.mubr.bf16.mxu0 %v10829
  %13104 = vmatmul.mubr.bf16.gmra.mrb[0].mxu0 %v10828
  %v13105 = vpop.f32.mrb[0].mxu0
  %v13106 = vadd.f32 %v13065, %v13105
  %v13107 = vpop.f32.mrb[0].mxu0
  %v13108 = vpop.f32.mrb[0].mxu0
  %v13109 = vadd.f32 %v13068, %v13108
  %v13110 = vpop.f32.mrb[0].mxu0
  %13111 = vdwg.mxu0
  %13112 = vmatprep.subr.bf16.mxu0 0
  %13113 = vmatpush1.bf16.msra.mxu0 %v12475
  %13114 = vmatprep.subr.bf16.mxu0 0
  %13115 = vmatpush1.bf16.msra.mxu0 %v12476
  %13116 = vmatprep.subr.bf16.mxu0 0
  %13117 = vmatpush1.bf16.msra.mxu0 %v12477
  %13118 = vmatprep.subr.bf16.mxu0 0
  %13119 = vmatpush1.bf16.msra.mxu0 %v12478
  %13120 = vmatprep.subr.bf16.mxu0 0
  %13121 = vmatpush1.bf16.msra.mxu0 %v12479
  %13122 = vmatprep.subr.bf16.mxu0 0
  %13123 = vmatpush1.bf16.msra.mxu0 %v12480
  %13124 = vmatprep.subr.bf16.mxu0 0
  %13125 = vmatpush1.bf16.msra.mxu0 %v12481
  %13126 = vmatprep.subr.bf16.mxu0 0
  %13127 = vmatpush1.bf16.msra.mxu0 %v12482
  %13128 = vmatprep.subr.bf16.mxu0 0
  %13129 = vmatpush1.bf16.msra.mxu0 %v12483
  %13130 = vmatprep.subr.bf16.mxu0 0
  %13131 = vmatpush1.bf16.msra.mxu0 %v12484
  %13132 = vmatprep.subr.bf16.mxu0 0
  %13133 = vmatpush1.bf16.msra.mxu0 %v12485
  %13134 = vmatprep.subr.bf16.mxu0 0
  %13135 = vmatpush1.bf16.msra.mxu0 %v12486
  %13136 = vmatprep.subr.bf16.mxu0 0
  %13137 = vmatpush1.bf16.msra.mxu0 %v12487
  %13138 = vmatprep.subr.bf16.mxu0 0
  %13139 = vmatpush1.bf16.msra.mxu0 %v12488
  %13140 = vmatprep.subr.bf16.mxu0 0
  %13141 = vmatpush1.bf16.msra.mxu0 %v12489
  %13142 = vmatprep.subr.bf16.mxu0 0
  %13143 = vmatpush1.bf16.msra.mxu0 %v12490
  %13144 = vmatprep.mubr.bf16.mxu0 %v10831
  %13145 = vmatmul.mubr.bf16.gmra.mrb[0].mxu0 %v10830
  %v13146 = vpop.f32.mrb[0].mxu0
  %v13147 = vadd.f32 %v13106, %v13146
  %v13148 = vpop.f32.mrb[0].mxu0
  %v13149 = vpop.f32.mrb[0].mxu0
  %v13150 = vadd.f32 %v13109, %v13149
  %v13151 = vpop.f32.mrb[0].mxu0
  %13152 = vdwg.mxu0
  %13153 = vmatprep.subr.bf16.mxu0 0
  %13154 = vmatpush1.bf16.msra.mxu0 %v12491
  %13155 = vmatprep.subr.bf16.mxu0 0
  %13156 = vmatpush1.bf16.msra.mxu0 %v12492
  %13157 = vmatprep.subr.bf16.mxu0 0
  %13158 = vmatpush1.bf16.msra.mxu0 %v12493
  %13159 = vmatprep.subr.bf16.mxu0 0
  %13160 = vmatpush1.bf16.msra.mxu0 %v12494
  %13161 = vmatprep.subr.bf16.mxu0 0
  %13162 = vmatpush1.bf16.msra.mxu0 %v12495
  %13163 = vmatprep.subr.bf16.mxu0 0
  %13164 = vmatpush1.bf16.msra.mxu0 %v12496
  %13165 = vmatprep.subr.bf16.mxu0 0
  %13166 = vmatpush1.bf16.msra.mxu0 %v12497
  %13167 = vmatprep.subr.bf16.mxu0 0
  %13168 = vmatpush1.bf16.msra.mxu0 %v12498
  %13169 = vmatprep.subr.bf16.mxu0 0
  %13170 = vmatpush1.bf16.msra.mxu0 %v12499
  %13171 = vmatprep.subr.bf16.mxu0 0
  %13172 = vmatpush1.bf16.msra.mxu0 %v12500
  %13173 = vmatprep.subr.bf16.mxu0 0
  %13174 = vmatpush1.bf16.msra.mxu0 %v12501
  %13175 = vmatprep.subr.bf16.mxu0 0
  %13176 = vmatpush1.bf16.msra.mxu0 %v12502
  %13177 = vmatprep.subr.bf16.mxu0 0
  %13178 = vmatpush1.bf16.msra.mxu0 %v12503
  %13179 = vmatprep.subr.bf16.mxu0 0
  %13180 = vmatpush1.bf16.msra.mxu0 %v12504
  %13181 = vmatprep.subr.bf16.mxu0 0
  %13182 = vmatpush1.bf16.msra.mxu0 %v12505
  %13183 = vmatprep.subr.bf16.mxu0 0
  %13184 = vmatpush1.bf16.msra.mxu0 %v12506
  %13185 = vmatprep.mubr.bf16.mxu0 %v10833
  %13186 = vmatmul.mubr.bf16.gmra.mrb[0].mxu0 %v10832
  %v13187 = vpop.f32.mrb[0].mxu0
  %v13188 = vadd.f32 %v13147, %v13187
  %v13189 = vpop.f32.mrb[0].mxu0
  %v13190 = vpop.f32.mrb[0].mxu0
  %v13191 = vadd.f32 %v13150, %v13190
  %v13192 = vpop.f32.mrb[0].mxu0
  %13193 = vdwg.mxu0
  %13194 = vmatprep.subr.bf16.mxu0 0
  %13195 = vmatpush1.bf16.msra.mxu0 %v12507
  %13196 = vmatprep.subr.bf16.mxu0 0
  %13197 = vmatpush1.bf16.msra.mxu0 %v12508
  %13198 = vmatprep.subr.bf16.mxu0 0
  %13199 = vmatpush1.bf16.msra.mxu0 %v12509
  %13200 = vmatprep.subr.bf16.mxu0 0
  %13201 = vmatpush1.bf16.msra.mxu0 %v12510
  %13202 = vmatprep.subr.bf16.mxu0 0
  %13203 = vmatpush1.bf16.msra.mxu0 %v12511
  %13204 = vmatprep.subr.bf16.mxu0 0
  %13205 = vmatpush1.bf16.msra.mxu0 %v12512
  %13206 = vmatprep.subr.bf16.mxu0 0
  %13207 = vmatpush1.bf16.msra.mxu0 %v12513
  %13208 = vmatprep.subr.bf16.mxu0 0
  %13209 = vmatpush1.bf16.msra.mxu0 %v12514
  %13210 = vmatprep.subr.bf16.mxu0 0
  %13211 = vmatpush1.bf16.msra.mxu0 %v12515
  %13212 = vmatprep.subr.bf16.mxu0 0
  %13213 = vmatpush1.bf16.msra.mxu0 %v12516
  %13214 = vmatprep.subr.bf16.mxu0 0
  %13215 = vmatpush1.bf16.msra.mxu0 %v12517
  %13216 = vmatprep.subr.bf16.mxu0 0
  %13217 = vmatpush1.bf16.msra.mxu0 %v12518
  %13218 = vmatprep.subr.bf16.mxu0 0
  %13219 = vmatpush1.bf16.msra.mxu0 %v12519
  %13220 = vmatprep.subr.bf16.mxu0 0
  %13221 = vmatpush1.bf16.msra.mxu0 %v12520
  %13222 = vmatprep.subr.bf16.mxu0 0
  %13223 = vmatpush1.bf16.msra.mxu0 %v12521
  %13224 = vmatprep.subr.bf16.mxu0 0
  %13225 = vmatpush1.bf16.msra.mxu0 %v12522
  %13226 = vmatprep.mubr.bf16.mxu0 %v10835
  %13227 = vmatmul.mubr.bf16.gmra.mrb[0].mxu0 %v10834
  %v13228 = vpop.f32.mrb[0].mxu0
  %v13229 = vadd.f32 %v13188, %v13228
  %v13230 = vpop.f32.mrb[0].mxu0
  %v13231 = vpop.f32.mrb[0].mxu0
  %v13232 = vadd.f32 %v13191, %v13231
  %v13233 = vpop.f32.mrb[0].mxu0
  %13234 = vdwg.mxu0
  %13235 = vmatprep.subr.bf16.mxu0 0
  %13236 = vmatpush1.bf16.msra.mxu0 %v12523
  %13237 = vmatprep.subr.bf16.mxu0 0
  %13238 = vmatpush1.bf16.msra.mxu0 %v12524
  %13239 = vmatprep.subr.bf16.mxu0 0
  %13240 = vmatpush1.bf16.msra.mxu0 %v12525
  %13241 = vmatprep.subr.bf16.mxu0 0
  %13242 = vmatpush1.bf16.msra.mxu0 %v12526
  %13243 = vmatprep.subr.bf16.mxu0 0
  %13244 = vmatpush1.bf16.msra.mxu0 %v12527
  %13245 = vmatprep.subr.bf16.mxu0 0
  %13246 = vmatpush1.bf16.msra.mxu0 %v12528
  %13247 = vmatprep.subr.bf16.mxu0 0
  %13248 = vmatpush1.bf16.msra.mxu0 %v12529
  %13249 = vmatprep.subr.bf16.mxu0 0
  %13250 = vmatpush1.bf16.msra.mxu0 %v12530
  %13251 = vmatprep.subr.bf16.mxu0 0
  %13252 = vmatpush1.bf16.msra.mxu0 %v12531
  %13253 = vmatprep.subr.bf16.mxu0 0
  %13254 = vmatpush1.bf16.msra.mxu0 %v12532
  %13255 = vmatprep.subr.bf16.mxu0 0
  %13256 = vmatpush1.bf16.msra.mxu0 %v12533
  %13257 = vmatprep.subr.bf16.mxu0 0
  %13258 = vmatpush1.bf16.msra.mxu0 %v12534
  %13259 = vmatprep.subr.bf16.mxu0 0
  %13260 = vmatpush1.bf16.msra.mxu0 %v12535
  %13261 = vmatprep.subr.bf16.mxu0 0
  %13262 = vmatpush1.bf16.msra.mxu0 %v12536
  %13263 = vmatprep.subr.bf16.mxu0 0
  %13264 = vmatpush1.bf16.msra.mxu0 %v12537
  %13265 = vmatprep.subr.bf16.mxu0 0
  %13266 = vmatpush1.bf16.msra.mxu0 %v12538
  %13267 = vmatprep.mubr.bf16.mxu0 %v10837
  %13268 = vmatmul.mubr.bf16.gmra.mrb[0].mxu0 %v10836
  %v13269 = vpop.f32.mrb[0].mxu0
  %v13270 = vadd.f32 %v13229, %v13269
  %v13271 = vpop.f32.mrb[0].mxu0
  %v13272 = vpop.f32.mrb[0].mxu0
  %v13273 = vadd.f32 %v13232, %v13272
  %v13274 = vpop.f32.mrb[0].mxu0
  %13275 = vdwg.mxu0
  %13276 = vmatprep.subr.bf16.mxu0 0
  %13277 = vmatpush1.bf16.msra.mxu0 %v12539
  %13278 = vmatprep.subr.bf16.mxu0 0
  %13279 = vmatpush1.bf16.msra.mxu0 %v12540
  %13280 = vmatprep.subr.bf16.mxu0 0
  %13281 = vmatpush1.bf16.msra.mxu0 %v12541
  %13282 = vmatprep.subr.bf16.mxu0 0
  %13283 = vmatpush1.bf16.msra.mxu0 %v12542
  %13284 = vmatprep.subr.bf16.mxu0 0
  %13285 = vmatpush1.bf16.msra.mxu0 %v12543
  %13286 = vmatprep.subr.bf16.mxu0 0
  %13287 = vmatpush1.bf16.msra.mxu0 %v12544
  %13288 = vmatprep.subr.bf16.mxu0 0
  %13289 = vmatpush1.bf16.msra.mxu0 %v12545
  %13290 = vmatprep.subr.bf16.mxu0 0
  %13291 = vmatpush1.bf16.msra.mxu0 %v12546
  %13292 = vmatprep.subr.bf16.mxu0 0
  %13293 = vmatpush1.bf16.msra.mxu0 %v12547
  %13294 = vmatprep.subr.bf16.mxu0 0
  %13295 = vmatpush1.bf16.msra.mxu0 %v12548
  %13296 = vmatprep.subr.bf16.mxu0 0
  %13297 = vmatpush1.bf16.msra.mxu0 %v12549
  %13298 = vmatprep.subr.bf16.mxu0 0
  %13299 = vmatpush1.bf16.msra.mxu0 %v12550
  %13300 = vmatprep.subr.bf16.mxu0 0
  %13301 = vmatpush1.bf16.msra.mxu0 %v12551
  %13302 = vmatprep.subr.bf16.mxu0 0
  %13303 = vmatpush1.bf16.msra.mxu0 %v12552
  %13304 = vmatprep.subr.bf16.mxu0 0
  %13305 = vmatpush1.bf16.msra.mxu0 %v12553
  %13306 = vmatprep.subr.bf16.mxu0 0
  %13307 = vmatpush1.bf16.msra.mxu0 %v12554
  %13308 = vmatprep.mubr.bf16.mxu0 %v10839
  %13309 = vmatmul.mubr.bf16.gmra.mrb[0].mxu0 %v10838
  %v13310 = vpop.f32.mrb[0].mxu0
  %v13311 = vadd.f32 %v13270, %v13310
  %v13312 = vpop.f32.mrb[0].mxu0
  %v13313 = vpop.f32.mrb[0].mxu0
  %v13314 = vadd.f32 %v13273, %v13313
  %v13315 = vpop.f32.mrb[0].mxu0
  %13316 = vdwg.mxu0
  %13317 = vmatprep.subr.bf16.mxu0 0
  %13318 = vmatpush1.bf16.msra.mxu0 %v12555
  %13319 = vmatprep.subr.bf16.mxu0 0
  %13320 = vmatpush1.bf16.msra.mxu0 %v12556
  %13321 = vmatprep.subr.bf16.mxu0 0
  %13322 = vmatpush1.bf16.msra.mxu0 %v12557
  %13323 = vmatprep.subr.bf16.mxu0 0
  %13324 = vmatpush1.bf16.msra.mxu0 %v12558
  %13325 = vmatprep.subr.bf16.mxu0 0
  %13326 = vmatpush1.bf16.msra.mxu0 %v12559
  %13327 = vmatprep.subr.bf16.mxu0 0
  %13328 = vmatpush1.bf16.msra.mxu0 %v12560
  %13329 = vmatprep.subr.bf16.mxu0 0
  %13330 = vmatpush1.bf16.msra.mxu0 %v12561
  %13331 = vmatprep.subr.bf16.mxu0 0
  %13332 = vmatpush1.bf16.msra.mxu0 %v12562
  %13333 = vmatprep.subr.bf16.mxu0 0
  %13334 = vmatpush1.bf16.msra.mxu0 %v12563
  %13335 = vmatprep.subr.bf16.mxu0 0
  %13336 = vmatpush1.bf16.msra.mxu0 %v12564
  %13337 = vmatprep.subr.bf16.mxu0 0
  %13338 = vmatpush1.bf16.msra.mxu0 %v12565
  %13339 = vmatprep.subr.bf16.mxu0 0
  %13340 = vmatpush1.bf16.msra.mxu0 %v12566
  %13341 = vmatprep.subr.bf16.mxu0 0
  %13342 = vmatpush1.bf16.msra.mxu0 %v12567
  %13343 = vmatprep.subr.bf16.mxu0 0
  %13344 = vmatpush1.bf16.msra.mxu0 %v12568
  %13345 = vmatprep.subr.bf16.mxu0 0
  %13346 = vmatpush1.bf16.msra.mxu0 %v12569
  %13347 = vmatprep.subr.bf16.mxu0 0
  %13348 = vmatpush1.bf16.msra.mxu0 %v12570
  %13349 = vmatprep.mubr.bf16.mxu0 %v10841
  %13350 = vmatmul.mubr.bf16.gmra.mrb[0].mxu0 %v10840
  %v13351 = vpop.f32.mrb[0].mxu0
  %v13352 = vadd.f32 %v13311, %v13351
  %v13353 = vpop.f32.mrb[0].mxu0
  %v13354 = vpop.f32.mrb[0].mxu0
  %v13355 = vadd.f32 %v13314, %v13354
  %v13356 = vpop.f32.mrb[0].mxu0
  %13357 = vdwg.mxu0
  %13358 = vmatprep.subr.bf16.mxu0 0
  %13359 = vmatpush1.bf16.msra.mxu0 %v12571
  %13360 = vmatprep.subr.bf16.mxu0 0
  %13361 = vmatpush1.bf16.msra.mxu0 %v12572
  %13362 = vmatprep.subr.bf16.mxu0 0
  %13363 = vmatpush1.bf16.msra.mxu0 %v12573
  %13364 = vmatprep.subr.bf16.mxu0 0
  %13365 = vmatpush1.bf16.msra.mxu0 %v12574
  %13366 = vmatprep.subr.bf16.mxu0 0
  %13367 = vmatpush1.bf16.msra.mxu0 %v12575
  %13368 = vmatprep.subr.bf16.mxu0 0
  %13369 = vmatpush1.bf16.msra.mxu0 %v12576
  %13370 = vmatprep.subr.bf16.mxu0 0
  %13371 = vmatpush1.bf16.msra.mxu0 %v12577
  %13372 = vmatprep.subr.bf16.mxu0 0
  %13373 = vmatpush1.bf16.msra.mxu0 %v12578
  %13374 = vmatprep.subr.bf16.mxu0 0
  %13375 = vmatpush1.bf16.msra.mxu0 %v12579
  %13376 = vmatprep.subr.bf16.mxu0 0
  %13377 = vmatpush1.bf16.msra.mxu0 %v12580
  %13378 = vmatprep.subr.bf16.mxu0 0
  %13379 = vmatpush1.bf16.msra.mxu0 %v12581
  %13380 = vmatprep.subr.bf16.mxu0 0
  %13381 = vmatpush1.bf16.msra.mxu0 %v12582
  %13382 = vmatprep.subr.bf16.mxu0 0
  %13383 = vmatpush1.bf16.msra.mxu0 %v12583
  %13384 = vmatprep.subr.bf16.mxu0 0
  %13385 = vmatpush1.bf16.msra.mxu0 %v12584
  %13386 = vmatprep.subr.bf16.mxu0 0
  %13387 = vmatpush1.bf16.msra.mxu0 %v12585
  %13388 = vmatprep.subr.bf16.mxu0 0
  %13389 = vmatpush1.bf16.msra.mxu0 %v12586
  %13390 = vmatprep.mubr.bf16.mxu0 %v10843
  %13391 = vmatmul.mubr.bf16.gmra.mrb[0].mxu0 %v10842
  %v13392 = vpop.f32.mrb[0].mxu0
  %v13393 = vadd.f32 %v13352, %v13392
  %v13394 = vpop.f32.mrb[0].mxu0
  %v13395 = vpop.f32.mrb[0].mxu0
  %v13396 = vadd.f32 %v13355, %v13395
  %v13397 = vpop.f32.mrb[0].mxu0
  %13398 = vdwg.mxu0
  %13399 = vmatprep.subr.bf16.mxu0 0
  %13400 = vmatpush1.bf16.msra.mxu0 %v12587
  %13401 = vmatprep.subr.bf16.mxu0 0
  %13402 = vmatpush1.bf16.msra.mxu0 %v12588
  %13403 = vmatprep.subr.bf16.mxu0 0
  %13404 = vmatpush1.bf16.msra.mxu0 %v12589
  %13405 = vmatprep.subr.bf16.mxu0 0
  %13406 = vmatpush1.bf16.msra.mxu0 %v12590
  %13407 = vmatprep.subr.bf16.mxu0 0
  %13408 = vmatpush1.bf16.msra.mxu0 %v12591
  %13409 = vmatprep.subr.bf16.mxu0 0
  %13410 = vmatpush1.bf16.msra.mxu0 %v12592
  %13411 = vmatprep.subr.bf16.mxu0 0
  %13412 = vmatpush1.bf16.msra.mxu0 %v12593
  %13413 = vmatprep.subr.bf16.mxu0 0
  %13414 = vmatpush1.bf16.msra.mxu0 %v12594
  %13415 = vmatprep.subr.bf16.mxu0 0
  %13416 = vmatpush1.bf16.msra.mxu0 %v12595
  %13417 = vmatprep.subr.bf16.mxu0 0
  %13418 = vmatpush1.bf16.msra.mxu0 %v12596
  %13419 = vmatprep.subr.bf16.mxu0 0
  %13420 = vmatpush1.bf16.msra.mxu0 %v12597
  %13421 = vmatprep.subr.bf16.mxu0 0
  %13422 = vmatpush1.bf16.msra.mxu0 %v12598
  %13423 = vmatprep.subr.bf16.mxu0 0
  %13424 = vmatpush1.bf16.msra.mxu0 %v12599
  %13425 = vmatprep.subr.bf16.mxu0 0
  %13426 = vmatpush1.bf16.msra.mxu0 %v12600
  %13427 = vmatprep.subr.bf16.mxu0 0
  %13428 = vmatpush1.bf16.msra.mxu0 %v12601
  %13429 = vmatprep.subr.bf16.mxu0 0
  %13430 = vmatpush1.bf16.msra.mxu0 %v12602
  %13431 = vmatprep.mubr.bf16.mxu0 %v10845
  %13432 = vmatmul.mubr.bf16.gmra.mrb[0].mxu0 %v10844
  %v13433 = vpop.f32.mrb[0].mxu0
  %v13434 = vadd.f32 %v13393, %v13433
  %v13435 = vpop.f32.mrb[0].mxu0
  %v13436 = vpop.f32.mrb[0].mxu0
  %v13437 = vadd.f32 %v13396, %v13436
  %v13438 = vpop.f32.mrb[0].mxu0
  %13439 = vdwg.mxu0
  %13440 = vmatprep.subr.bf16.mxu0 0
  %13441 = vmatpush1.bf16.msra.mxu0 %v12603
  %13442 = vmatprep.subr.bf16.mxu0 0
  %13443 = vmatpush1.bf16.msra.mxu0 %v12604
  %13444 = vmatprep.subr.bf16.mxu0 0
  %13445 = vmatpush1.bf16.msra.mxu0 %v12605
  %13446 = vmatprep.subr.bf16.mxu0 0
  %13447 = vmatpush1.bf16.msra.mxu0 %v12606
  %13448 = vmatprep.subr.bf16.mxu0 0
  %13449 = vmatpush1.bf16.msra.mxu0 %v12607
  %13450 = vmatprep.subr.bf16.mxu0 0
  %13451 = vmatpush1.bf16.msra.mxu0 %v12608
  %13452 = vmatprep.subr.bf16.mxu0 0
  %13453 = vmatpush1.bf16.msra.mxu0 %v12609
  %13454 = vmatprep.subr.bf16.mxu0 0
  %13455 = vmatpush1.bf16.msra.mxu0 %v12610
  %13456 = vmatprep.subr.bf16.mxu0 0
  %13457 = vmatpush1.bf16.msra.mxu0 %v12611
  %13458 = vmatprep.subr.bf16.mxu0 0
  %13459 = vmatpush1.bf16.msra.mxu0 %v12612
  %13460 = vmatprep.subr.bf16.mxu0 0
  %13461 = vmatpush1.bf16.msra.mxu0 %v12613
  %13462 = vmatprep.subr.bf16.mxu0 0
  %13463 = vmatpush1.bf16.msra.mxu0 %v12614
  %13464 = vmatprep.subr.bf16.mxu0 0
  %13465 = vmatpush1.bf16.msra.mxu0 %v12615
  %13466 = vmatprep.subr.bf16.mxu0 0
  %13467 = vmatpush1.bf16.msra.mxu0 %v12616
  %13468 = vmatprep.subr.bf16.mxu0 0
  %13469 = vmatpush1.bf16.msra.mxu0 %v12617
  %13470 = vmatprep.subr.bf16.mxu0 0
  %13471 = vmatpush1.bf16.msra.mxu0 %v12618
  %13472 = vmatprep.mubr.bf16.mxu0 %v10847
  %13473 = vmatmul.mubr.bf16.gmra.mrb[0].mxu0 %v10846
  %v13474 = vpop.f32.mrb[0].mxu0
  %v13475 = vadd.f32 %v13434, %v13474
  %v13476 = vpop.f32.mrb[0].mxu0
  %v13477 = vpop.f32.mrb[0].mxu0
  %v13478 = vadd.f32 %v13437, %v13477
  %v13479 = vpop.f32.mrb[0].mxu0
  %13480 = vdwg.mxu0
  %13481 = vmatprep.subr.bf16.mxu0 0
  %13482 = vmatpush1.bf16.msra.mxu0 %v12619
  %13483 = vmatprep.subr.bf16.mxu0 0
  %13484 = vmatpush1.bf16.msra.mxu0 %v12620
  %13485 = vmatprep.subr.bf16.mxu0 0
  %13486 = vmatpush1.bf16.msra.mxu0 %v12621
  %13487 = vmatprep.subr.bf16.mxu0 0
  %13488 = vmatpush1.bf16.msra.mxu0 %v12622
  %13489 = vmatprep.subr.bf16.mxu0 0
  %13490 = vmatpush1.bf16.msra.mxu0 %v12623
  %13491 = vmatprep.subr.bf16.mxu0 0
  %13492 = vmatpush1.bf16.msra.mxu0 %v12624
  %13493 = vmatprep.subr.bf16.mxu0 0
  %13494 = vmatpush1.bf16.msra.mxu0 %v12625
  %13495 = vmatprep.subr.bf16.mxu0 0
  %13496 = vmatpush1.bf16.msra.mxu0 %v12626
  %13497 = vmatprep.subr.bf16.mxu0 0
  %13498 = vmatpush1.bf16.msra.mxu0 %v12627
  %13499 = vmatprep.subr.bf16.mxu0 0
  %13500 = vmatpush1.bf16.msra.mxu0 %v12628
  %13501 = vmatprep.subr.bf16.mxu0 0
  %13502 = vmatpush1.bf16.msra.mxu0 %v12629
  %13503 = vmatprep.subr.bf16.mxu0 0
  %13504 = vmatpush1.bf16.msra.mxu0 %v12630
  %13505 = vmatprep.subr.bf16.mxu0 0
  %13506 = vmatpush1.bf16.msra.mxu0 %v12631
  %13507 = vmatprep.subr.bf16.mxu0 0
  %13508 = vmatpush1.bf16.msra.mxu0 %v12632
  %13509 = vmatprep.subr.bf16.mxu0 0
  %13510 = vmatpush1.bf16.msra.mxu0 %v12633
  %13511 = vmatprep.subr.bf16.mxu0 0
  %13512 = vmatpush1.bf16.msra.mxu0 %v12634
  %13513 = vmatprep.mubr.bf16.mxu0 %v10849
  %13514 = vmatmul.mubr.bf16.gmra.mrb[0].mxu0 %v10848
  %v13515 = vpop.f32.mrb[0].mxu0
  %v13516 = vadd.f32 %v13475, %v13515
  %v13517 = vpop.f32.mrb[0].mxu0
  %v13518 = vpop.f32.mrb[0].mxu0
  %v13519 = vadd.f32 %v13478, %v13518
  %v13520 = vpop.f32.mrb[0].mxu0
  %13521 = vdwg.mxu0
  %13522 = vmatprep.subr.bf16.mxu0 0
  %13523 = vmatpush1.bf16.msra.mxu0 %v12635
  %13524 = vmatprep.subr.bf16.mxu0 0
  %13525 = vmatpush1.bf16.msra.mxu0 %v12636
  %13526 = vmatprep.subr.bf16.mxu0 0
  %13527 = vmatpush1.bf16.msra.mxu0 %v12637
  %13528 = vmatprep.subr.bf16.mxu0 0
  %13529 = vmatpush1.bf16.msra.mxu0 %v12638
  %13530 = vmatprep.subr.bf16.mxu0 0
  %13531 = vmatpush1.bf16.msra.mxu0 %v12639
  %13532 = vmatprep.subr.bf16.mxu0 0
  %13533 = vmatpush1.bf16.msra.mxu0 %v12640
  %13534 = vmatprep.subr.bf16.mxu0 0
  %13535 = vmatpush1.bf16.msra.mxu0 %v12641
  %13536 = vmatprep.subr.bf16.mxu0 0
  %13537 = vmatpush1.bf16.msra.mxu0 %v12642
  %13538 = vmatprep.subr.bf16.mxu0 0
  %13539 = vmatpush1.bf16.msra.mxu0 %v12643
  %13540 = vmatprep.subr.bf16.mxu0 0
  %13541 = vmatpush1.bf16.msra.mxu0 %v12644
  %13542 = vmatprep.subr.bf16.mxu0 0
  %13543 = vmatpush1.bf16.msra.mxu0 %v12645
  %13544 = vmatprep.subr.bf16.mxu0 0
  %13545 = vmatpush1.bf16.msra.mxu0 %v12646
  %13546 = vmatprep.subr.bf16.mxu0 0
  %13547 = vmatpush1.bf16.msra.mxu0 %v12647
  %13548 = vmatprep.subr.bf16.mxu0 0
  %13549 = vmatpush1.bf16.msra.mxu0 %v12648
  %13550 = vmatprep.subr.bf16.mxu0 0
  %13551 = vmatpush1.bf16.msra.mxu0 %v12649
  %13552 = vmatprep.subr.bf16.mxu0 0
  %13553 = vmatpush1.bf16.msra.mxu0 %v12650
  %13554 = vmatprep.mubr.bf16.mxu0 %v10851
  %13555 = vmatmul.mubr.bf16.gmra.mrb[0].mxu0 %v10850
  %v13556 = vpop.f32.mrb[0].mxu0
  %v13557 = vadd.f32 %v13516, %v13556
  %v13558 = vpop.f32.mrb[0].mxu0
  %v13559 = vpop.f32.mrb[0].mxu0
  %v13560 = vadd.f32 %v13519, %v13559
  %v13561 = vpop.f32.mrb[0].mxu0
  %13562 = vdwg.mxu0
  %v13563 = vtanh.pop %v13557
  %v13564 = vtanh.pop %v13560
  %13565 = vst [vmem:[%s7] sm:$0xff] %v13563
  %13566 = vst [vmem:[%s7 + $0x8] sm:$0xff] %v13564
  // Predicated region
  $region30: #{tnet_forward.1} parent=0 // pred_check
    _
  $region31: #{tnet_forward.1} parent=0 // pred_check_branch
    %13568 = sbr.rel (0) target = $region33
  $region32: #{tnet_forward.1} parent=0 // pred_region
    _
  $region33: #{tnet_forward.1} parent=0 // pred_fallthru
    _
  // Predicated region
  $region34: #{tnet_forward.1} parent=0 // pred_check
    _
  $region35: #{tnet_forward.1} parent=0 // pred_check_branch
    %13570 = sbr.rel (0) target = $region37
  $region36: #{tnet_forward.1} parent=0 // pred_region
    _
  $region37: #{tnet_forward.1} parent=0 // pred_fallthru
    _

</llo_original>
